<compile_context>
chip_gen: v7x
topology: tpu7x:2x2x1
jax: 0.10.0
libtpu: 0.0.40
codegen_flags: <defaults>
</compile_context>

<pallas_src>
import jax
import jax.numpy as jnp
from jax.experimental import pallas as pl
from jax.experimental.pallas import tpu as pltpu


# ---------------------------------------------------------------------------
# Model dimensions (transform dims 512 / 1024 are fixed by iCAN_v1)
# ---------------------------------------------------------------------------
SP_C, SP_H, SP_W = 2, 16, 16
SP_IN = SP_C * SP_H * SP_W   # 512 (flattened spatial map)
VIS_IN = 256                 # synthetic visual feature dim
X_DIM = SP_IN + VIS_IN       # 768 packed activation slab width
SP_FEAT = 512                # spatial branch output (Linear(512, 512) input)
VIS_FEAT = 1024              # visual branch output (Linear(1024, 512) input)
TR_DIM = 512                 # output of each *_transform
HID = 128                    # classifier hidden dim
N_LR, N_MR, N_CR = 5, 7, 3   # classifier output dims (lr / mr / cr)
N_TOT = N_LR + N_MR + N_CR   # 15
OUT_PAD = 128                # lane-dense output slab width
HEADS_HID = 3 * HID          # 384 fused head-1 width
M_TILE = 256                 # batch/pair tile (fills the MXU M dimension)

# bias slab column offsets (all multiples of 128 -> free lane slices)
_B_OFF = {
    "sp_br": (0, 512),
    "vis_br": (512, 1536),
    "sp_tr": (1536, 2048),
    "vis_tr": (2048, 2560),
    "cat": (2560, 3072),
    "h1": (3072, 3456),
    "h2": (3456, 3584),
}
B_SLAB_W = 3584


# ---------------------------------------------------------------------------
# Pallas kernel: one batch tile of the entire fused forward pass
# ---------------------------------------------------------------------------
def ican_v1_kernel(
    x_ref,                       # (mt, 768) bf16: [spatial_flat | visual_feats]
    w_sp_br_ref, w_vis_br_ref,   # branch stand-ins (bf16)
    w_sp_tr_ref, w_vis_tr_ref,   # iCAN_v1 transforms (bf16)
    w_cat_ref,                   # concatenated transform (1024, 512) bf16
    w_h1_ref, w_h2_ref,          # fused classifier heads (bf16)
    b_ref,                       # (1, 3584) f32 bias slab
    out_ref,                     # (mt, 128) f32 lane-dense output slab
):
    f32 = jnp.float32
    bf16 = jnp.bfloat16

    def mm(x_bf, w_ref):
        # bf16 x bf16 -> f32 accumulation on the MXU
        return jnp.dot(x_bf, w_ref[...], preferred_element_type=f32)

    def bias(name):
        lo, hi = _B_OFF[name]
        return b_ref[:, lo:hi]

    relu = lambda v: jnp.maximum(v, 0.0)

    sp_x = x_ref[:, 0:SP_IN]             # (mt, 512) bf16
    vis_x = x_ref[:, SP_IN:X_DIM]        # (mt, 256) bf16

    # --- branches (stand-ins) + iCAN_v1 transforms --------------------------
    sp = relu(mm(sp_x, w_sp_br_ref) + bias("sp_br"))                 # (mt, 512)
    sp = relu(mm(sp.astype(bf16), w_sp_tr_ref) + bias("sp_tr"))      # (mt, 512)

    vis = relu(mm(vis_x, w_vis_br_ref) + bias("vis_br"))             # (mt, 1024)
    vis = relu(mm(vis.astype(bf16), w_vis_tr_ref) + bias("vis_tr"))  # (mt, 512)

    # concatenated_transform without materializing the concat buffer:
    cat = relu(
        jnp.dot(sp.astype(bf16), w_cat_ref[0:TR_DIM, :],
                preferred_element_type=f32)
        + jnp.dot(vis.astype(bf16), w_cat_ref[TR_DIM:2 * TR_DIM, :],
                  preferred_element_type=f32)
        + bias("cat"))                                                # (mt, 512)

    # --- fused classifier heads ---------------------------------------------
    hid = relu(mm(cat.astype(bf16), w_h1_ref) + bias("h1"))           # (mt, 384)
    logits = mm(hid.astype(bf16), w_h2_ref) + bias("h2")              # (mt, 128)
    # column layout of the slab:
    #   [0 : 5)   lr logits  -> sigmoid
    #   [5 : 12)  mr logits  -> sigmoid
    #   [12: 15)  cr logits  -> softmax over these 3 columns
    #   [15: 128) zero padding

    col = jax.lax.broadcasted_iota(jnp.int32, logits.shape, 1)
    is_sig = col < (N_LR + N_MR)
    is_cr = jnp.logical_and(col >= (N_LR + N_MR), col < N_TOT)

    sig = jax.nn.sigmoid(logits)

    # masked softmax over the 3 'cr' columns
    neg_big = jnp.float32(-1e30)
    masked = jnp.where(is_cr, logits, neg_big)
    m = jnp.max(masked, axis=-1, keepdims=True)
    e = jnp.where(is_cr, jnp.exp(masked - m), 0.0)
    s = jnp.sum(e, axis=-1, keepdims=True)
    r = pl.reciprocal(s, approx=True)    # EUP slot
    r = r * (2.0 - s * r)                # one Newton step -> ~f32 accuracy
    soft = e * r

    out_ref[...] = jnp.where(is_cr, soft, jnp.where(is_sig, sig, 0.0))


# ---------------------------------------------------------------------------
# Wrapper: batched grid with resident weights
# ---------------------------------------------------------------------------
@jax.jit
def ican_v1_forward(spatial_map_nchw, visual_feats, kp):
    bsz = spatial_map_nchw.shape[0]

    # Glue: flatten NCHW spatial map, pack [spatial | visual] into one bf16 slab.
    sp_x = spatial_map_nchw.reshape(bsz, -1)
    x = jnp.concatenate([sp_x, visual_feats], axis=-1).astype(jnp.bfloat16)

    # Batch tile: full array for sublane-unaligned batches (no padding needed),
    # otherwise up to M_TILE rows (multiple of 8) dividing the batch.
    if bsz % 8 != 0:
        mt = bsz
    else:
        mt = min(M_TILE, bsz)
        while bsz % mt:
            mt -= 8
    n_tiles = bsz // mt

    const2 = lambda i: (0, 0)           # weights/biases resident across tiles
    tiled = lambda i: (i, 0)            # activations/output tiled over batch

    weights = (kp["w_sp_br"], kp["w_vis_br"], kp["w_sp_tr"], kp["w_vis_tr"],
               kp["w_cat"], kp["w_h1"], kp["w_h2"])

    in_specs = [pl.BlockSpec((mt, X_DIM), tiled)]
    in_specs += [pl.BlockSpec(w.shape, const2) for w in weights]
    in_specs += [pl.BlockSpec(kp["b_slab"].shape, const2)]

    slab = pl.pallas_call(
        ican_v1_kernel,
        out_shape=jax.ShapeDtypeStruct((bsz, OUT_PAD), jnp.float32),
        grid=(n_tiles,),
        in_specs=in_specs,
        out_specs=pl.BlockSpec((mt, OUT_PAD), tiled),
        compiler_params=pltpu.CompilerParams(
            dimension_semantics=("parallel",),
            vmem_limit_bytes=48 * 1024 * 1024,
        ),
    )(x, *weights, kp["b_slab"])

    lr = slab[:, 0:N_LR]
    mr = slab[:, N_LR:N_LR + N_MR]
    cr = slab[:, N_LR + N_MR:N_TOT]
    return {"combined": {"lr": lr, "mr": mr, "cr": cr}}


# ---------------------------------------------------------------------------
# Deterministic parameter init (torch.nn.Linear-like uniform(-1/sqrt(fan_in)))
# ---------------------------------------------------------------------------
def init_params(key):
    def linear(key, fan_in, fan_out):
        kw, kb = jax.random.split(key)
        bound = 1.0 / jnp.sqrt(fan_in)
        w = jax.random.uniform(kw, (fan_in, fan_out), jnp.float32, -bound, bound)
        b = jax.random.uniform(kb, (1, fan_out), jnp.float32, -bound, bound)
        return w, b

    keys = jax.random.split(key, 11)
    p = {}
    p["w_sp_br"], p["b_sp_br"] = linear(keys[0], SP_IN, SP_FEAT)
    p["w_vis_br"], p["b_vis_br"] = linear(keys[1], VIS_IN, VIS_FEAT)
    p["w_sp_tr"], p["b_sp_tr"] = linear(keys[2], SP_FEAT, TR_DIM)
    p["w_vis_tr"], p["b_vis_tr"] = linear(keys[3], VIS_FEAT, TR_DIM)
    p["w_cat"], p["b_cat"] = linear(keys[4], 2 * TR_DIM, TR_DIM)
    p["w_lr1"], p["b_lr1"] = linear(keys[5], TR_DIM, HID)
    p["w_lr2"], p["b_lr2"] = linear(keys[6], HID, N_LR)
    p["w_mr1"], p["b_mr1"] = linear(keys[7], TR_DIM, HID)
    p["w_mr2"], p["b_mr2"] = linear(keys[8], HID, N_MR)
    p["w_cr1"], p["b_cr1"] = linear(keys[9], TR_DIM, HID)
    p["w_cr2"], p["b_cr2"] = linear(keys[10], HID, N_CR)
    return p


# ---------------------------------------------------------------------------
# Host-side packing: bf16 weights, fused heads, block-diagonal head-2 weight,
# single f32 bias slab.
# ---------------------------------------------------------------------------
def pack_params(p):
    bf16 = jnp.bfloat16

    # head-1 fusion: (512, 3*128)
    w_h1 = jnp.concatenate([p["w_lr1"], p["w_mr1"], p["w_cr1"]], axis=1)
    b_h1 = jnp.concatenate([p["b_lr1"], p["b_mr1"], p["b_cr1"]], axis=1)

    # head-2 block-diagonal: (3*128, 128) mapping each head's hidden chunk to
    # its own column range of the lane-dense output slab.
    w_h2 = jnp.zeros((HEADS_HID, OUT_PAD), jnp.float32)
    w_h2 = w_h2.at[0:HID, 0:N_LR].set(p["w_lr2"])
    w_h2 = w_h2.at[HID:2 * HID, N_LR:N_LR + N_MR].set(p["w_mr2"])
    w_h2 = w_h2.at[2 * HID:3 * HID, N_LR + N_MR:N_TOT].set(p["w_cr2"])
    b_h2 = jnp.zeros((1, OUT_PAD), jnp.float32)
    b_h2 = b_h2.at[:, 0:N_LR].set(p["b_lr2"])
    b_h2 = b_h2.at[:, N_LR:N_LR + N_MR].set(p["b_mr2"])
    b_h2 = b_h2.at[:, N_LR + N_MR:N_TOT].set(p["b_cr2"])

    # single f32 bias slab (column layout = _B_OFF)
    b_slab = jnp.concatenate(
        [p["b_sp_br"], p["b_vis_br"], p["b_sp_tr"], p["b_vis_tr"],
         p["b_cat"], b_h1, b_h2], axis=1)
    assert b_slab.shape == (1, B_SLAB_W)

    return {
        "w_sp_br": p["w_sp_br"].astype(bf16),
        "w_vis_br": p["w_vis_br"].astype(bf16),
        "w_sp_tr": p["w_sp_tr"].astype(bf16),
        "w_vis_tr": p["w_vis_tr"].astype(bf16),
        "w_cat": p["w_cat"].astype(bf16),
        "w_h1": w_h1.astype(bf16),
        "w_h2": w_h2.astype(bf16),
        "b_slab": b_slab,
    }


# ---------------------------------------------------------------------------
# Pure-JAX reference (mirrors the PyTorch forward semantics; same bf16-weight
# / f32-accumulation precision policy as the kernel so tolerances stay tight)
# ---------------------------------------------------------------------------
def reference_forward(spatial_map_nchw, visual_feats, p):
    bf16 = jnp.bfloat16
    relu = lambda v: jnp.maximum(v, 0.0)

    def lin(x, w, b):
        return jnp.dot(x.astype(bf16), w.astype(bf16),
                       preferred_element_type=jnp.float32) + b

    sp_x = spatial_map_nchw.reshape(spatial_map_nchw.shape[0], -1)
    sp = relu(lin(sp_x, p["w_sp_br"], p["b_sp_br"]))
    sp = relu(lin(sp, p["w_sp_tr"], p["b_sp_tr"]))
    vis = relu(lin(visual_feats, p["w_vis_br"], p["b_vis_br"]))
    vis = relu(lin(vis, p["w_vis_tr"], p["b_vis_tr"]))
    cat = relu(lin(jnp.concatenate([sp, vis], axis=-1), p["w_cat"], p["b_cat"]))

    def head(w1, b1, w2, b2):
        return lin(relu(lin(cat, w1, b1)), w2, b2)

    lr = jax.nn.sigmoid(head(p["w_lr1"], p["b_lr1"], p["w_lr2"], p["b_lr2"]))
    mr = jax.nn.sigmoid(head(p["w_mr1"], p["b_mr1"], p["w_mr2"], p["b_mr2"]))
    cr = jax.nn.softmax(head(p["w_cr1"], p["b_cr1"], p["w_cr2"], p["b_cr2"]), axis=1)
    return {"combined": {"lr": lr, "mr": mr, "cr": cr}}


def _check(out, ref, bsz):
    for k, n in (("lr", N_LR), ("mr", N_MR), ("cr", N_CR)):
        assert out["combined"][k].shape == (bsz, n), (k, out["combined"][k].shape)
        assert jnp.allclose(out["combined"][k], ref["combined"][k],
                            atol=1e-4, rtol=1e-4), k
    assert jnp.allclose(jnp.sum(out["combined"]["cr"], axis=1), 1.0, atol=1e-4)


if __name__ == "__main__":
    key = jax.random.PRNGKey(0)
    k_sp, k_vis, k_param, k_sp2, k_vis2 = jax.random.split(key, 5)

    params = init_params(k_param)
    kernel_params = pack_params(params)

    # --- small-shape demo (batch = 2, as in the original module usage) ------
    B = 2
    spatial_map = (jax.random.uniform(k_sp, (B, SP_C, SP_H, SP_W)) > 0.5
                   ).astype(jnp.float32)
    visual_feats = jax.random.normal(k_vis, (B, VIS_IN), jnp.float32)

    out = ican_v1_forward(spatial_map, visual_feats, kernel_params)
    out = jax.block_until_ready(out)
    ref = reference_forward(spatial_map, visual_feats, params)
    _check(out, ref, B)

    # --- batched-grid path (all HOI pairs of an image in one call):
    #     512 rows -> 2 grid tiles of 256 with weights resident across tiles.
    BIG = 512
    spatial_map_b = (jax.random.uniform(k_sp2, (BIG, SP_C, SP_H, SP_W)) > 0.5
                     ).astype(jnp.float32)
    visual_feats_b = jax.random.normal(k_vis2, (BIG, VIS_IN), jnp.float32)

    out_b = ican_v1_forward(spatial_map_b, visual_feats_b, kernel_params)
    out_b = jax.block_until_ready(out_b)
    ref_b = reference_forward(spatial_map_b, visual_feats_b, params)
    _check(out_b, ref_b, BIG)

    print("KERNEL_OK")
</pallas_src>

<mosaic_0001>
module attributes {stable_mosaic.version = 11 : i64} {
  func.func @ican_v1_kernel(%arg0: i32, %arg1: memref<2x768xbf16, #tpu.memory_space<vmem>>, %arg2: memref<512x512xbf16, #tpu.memory_space<vmem>>, %arg3: memref<256x1024xbf16, #tpu.memory_space<vmem>>, %arg4: memref<512x512xbf16, #tpu.memory_space<vmem>>, %arg5: memref<1024x512xbf16, #tpu.memory_space<vmem>>, %arg6: memref<1024x512xbf16, #tpu.memory_space<vmem>>, %arg7: memref<512x384xbf16, #tpu.memory_space<vmem>>, %arg8: memref<384x128xbf16, #tpu.memory_space<vmem>>, %arg9: memref<1x3584xf32, #tpu.memory_space<vmem>>, %arg10: memref<2x128xf32, #tpu.memory_space<vmem>>) attributes {dimension_semantics = [#tpu.dimension_semantics<parallel>], iteration_bounds = array<i64: 1>, scalar_prefetch = 0 : i64, scratch_operands = 0 : i64, tpu.core_type = #tpu.core_type<tc>, window_params = [{transform_indices = @transform_0, window_bounds = array<i64: 2, 768>}, {pipeline_mode = #tpu.pipeline_mode<synchronous>, transform_indices = @transform_1, window_bounds = array<i64: 512, 512>}, {pipeline_mode = #tpu.pipeline_mode<synchronous>, transform_indices = @transform_2, window_bounds = array<i64: 256, 1024>}, {pipeline_mode = #tpu.pipeline_mode<synchronous>, transform_indices = @transform_3, window_bounds = array<i64: 512, 512>}, {pipeline_mode = #tpu.pipeline_mode<synchronous>, transform_indices = @transform_4, window_bounds = array<i64: 1024, 512>}, {pipeline_mode = #tpu.pipeline_mode<synchronous>, transform_indices = @transform_5, window_bounds = array<i64: 1024, 512>}, {pipeline_mode = #tpu.pipeline_mode<synchronous>, transform_indices = @transform_6, window_bounds = array<i64: 512, 384>}, {pipeline_mode = #tpu.pipeline_mode<synchronous>, transform_indices = @transform_7, window_bounds = array<i64: 384, 128>}, {pipeline_mode = #tpu.pipeline_mode<synchronous>, transform_indices = @transform_8, window_bounds = array<i64: 1, 3584>}, {transform_indices = @transform_9, window_bounds = array<i64: 2, 128>}]} {
    %c0 = arith.constant 0 : index
    %c0_0 = arith.constant 0 : index
    %0 = vector.load %arg1[%c0, %c0_0] : memref<2x768xbf16, #tpu.memory_space<vmem>>, vector<2x512xbf16>
    %c0_1 = arith.constant 0 : index
    %c512 = arith.constant 512 : index
    %1 = vector.load %arg1[%c0_1, %c512] : memref<2x768xbf16, #tpu.memory_space<vmem>>, vector<2x256xbf16>
    %c0_2 = arith.constant 0 : index
    %c0_3 = arith.constant 0 : index
    %2 = vector.load %arg2[%c0_2, %c0_3] : memref<512x512xbf16, #tpu.memory_space<vmem>>, vector<512x512xbf16>
    %cst = arith.constant dense<0.000000e+00> : vector<2x512xf32>
    %3 = tpu.matmul %0, %2, %cst {dimension_numbers = #tpu.dot_dimension_numbers<[1], [0], [0], [1], [0, 0, 1, 1], [], []>} : vector<2x512xbf16>, vector<512x512xbf16>, vector<2x512xf32> -> vector<2x512xf32>
    %c0_4 = arith.constant 0 : index
    %c0_5 = arith.constant 0 : index
    %4 = vector.load %arg9[%c0_4, %c0_5] : memref<1x3584xf32, #tpu.memory_space<vmem>>, vector<1x512xf32>
    %5 = vector.broadcast %4 : vector<1x512xf32> to vector<2x512xf32>
    %6 = arith.addf %3, %5 : vector<2x512xf32>
    %cst_6 = arith.constant 0.000000e+00 : f32
    %7 = vector.broadcast %cst_6 : f32 to vector<2x512xf32>
    %8 = arith.maximumf %6, %7 : vector<2x512xf32>
    %9 = arith.truncf %8 : vector<2x512xf32> to vector<2x512xbf16>
    %c0_7 = arith.constant 0 : index
    %c0_8 = arith.constant 0 : index
    %10 = vector.load %arg4[%c0_7, %c0_8] : memref<512x512xbf16, #tpu.memory_space<vmem>>, vector<512x512xbf16>
    %cst_9 = arith.constant dense<0.000000e+00> : vector<2x512xf32>
    %11 = tpu.matmul %9, %10, %cst_9 {dimension_numbers = #tpu.dot_dimension_numbers<[1], [0], [0], [1], [0, 0, 1, 1], [], []>} : vector<2x512xbf16>, vector<512x512xbf16>, vector<2x512xf32> -> vector<2x512xf32>
    %c0_10 = arith.constant 0 : index
    %c1536 = arith.constant 1536 : index
    %12 = vector.load %arg9[%c0_10, %c1536] : memref<1x3584xf32, #tpu.memory_space<vmem>>, vector<1x512xf32>
    %13 = vector.broadcast %12 : vector<1x512xf32> to vector<2x512xf32>
    %14 = arith.addf %11, %13 : vector<2x512xf32>
    %cst_11 = arith.constant 0.000000e+00 : f32
    %15 = vector.broadcast %cst_11 : f32 to vector<2x512xf32>
    %16 = arith.maximumf %14, %15 : vector<2x512xf32>
    %c0_12 = arith.constant 0 : index
    %c0_13 = arith.constant 0 : index
    %17 = vector.load %arg3[%c0_12, %c0_13] : memref<256x1024xbf16, #tpu.memory_space<vmem>>, vector<256x1024xbf16>
    %cst_14 = arith.constant dense<0.000000e+00> : vector<2x1024xf32>
    %18 = tpu.matmul %1, %17, %cst_14 {dimension_numbers = #tpu.dot_dimension_numbers<[1], [0], [0], [1], [0, 0, 1, 1], [], []>} : vector<2x256xbf16>, vector<256x1024xbf16>, vector<2x1024xf32> -> vector<2x1024xf32>
    %c0_15 = arith.constant 0 : index
    %c512_16 = arith.constant 512 : index
    %19 = vector.load %arg9[%c0_15, %c512_16] : memref<1x3584xf32, #tpu.memory_space<vmem>>, vector<1x1024xf32>
    %20 = vector.broadcast %19 : vector<1x1024xf32> to vector<2x1024xf32>
    %21 = arith.addf %18, %20 : vector<2x1024xf32>
    %cst_17 = arith.constant 0.000000e+00 : f32
    %22 = vector.broadcast %cst_17 : f32 to vector<2x1024xf32>
    %23 = arith.maximumf %21, %22 : vector<2x1024xf32>
    %24 = arith.truncf %23 : vector<2x1024xf32> to vector<2x1024xbf16>
    %c0_18 = arith.constant 0 : index
    %c0_19 = arith.constant 0 : index
    %25 = vector.load %arg5[%c0_18, %c0_19] : memref<1024x512xbf16, #tpu.memory_space<vmem>>, vector<1024x512xbf16>
    %cst_20 = arith.constant dense<0.000000e+00> : vector<2x512xf32>
    %26 = tpu.matmul %24, %25, %cst_20 {dimension_numbers = #tpu.dot_dimension_numbers<[1], [0], [0], [1], [0, 0, 1, 1], [], []>} : vector<2x1024xbf16>, vector<1024x512xbf16>, vector<2x512xf32> -> vector<2x512xf32>
    %c0_21 = arith.constant 0 : index
    %c2048 = arith.constant 2048 : index
    %27 = vector.load %arg9[%c0_21, %c2048] : memref<1x3584xf32, #tpu.memory_space<vmem>>, vector<1x512xf32>
    %28 = vector.broadcast %27 : vector<1x512xf32> to vector<2x512xf32>
    %29 = arith.addf %26, %28 : vector<2x512xf32>
    %cst_22 = arith.constant 0.000000e+00 : f32
    %30 = vector.broadcast %cst_22 : f32 to vector<2x512xf32>
    %31 = arith.maximumf %29, %30 : vector<2x512xf32>
    %32 = arith.truncf %16 : vector<2x512xf32> to vector<2x512xbf16>
    %c0_23 = arith.constant 0 : index
    %c0_24 = arith.constant 0 : index
    %33 = vector.load %arg6[%c0_23, %c0_24] : memref<1024x512xbf16, #tpu.memory_space<vmem>>, vector<512x512xbf16>
    %cst_25 = arith.constant dense<0.000000e+00> : vector<2x512xf32>
    %34 = tpu.matmul %32, %33, %cst_25 {dimension_numbers = #tpu.dot_dimension_numbers<[1], [0], [0], [1], [0, 0, 1, 1], [], []>} : vector<2x512xbf16>, vector<512x512xbf16>, vector<2x512xf32> -> vector<2x512xf32>
    %35 = arith.truncf %31 : vector<2x512xf32> to vector<2x512xbf16>
    %c512_26 = arith.constant 512 : index
    %c0_27 = arith.constant 0 : index
    %36 = vector.load %arg6[%c512_26, %c0_27] : memref<1024x512xbf16, #tpu.memory_space<vmem>>, vector<512x512xbf16>
    %cst_28 = arith.constant dense<0.000000e+00> : vector<2x512xf32>
    %37 = tpu.matmul %35, %36, %cst_28 {dimension_numbers = #tpu.dot_dimension_numbers<[1], [0], [0], [1], [0, 0, 1, 1], [], []>} : vector<2x512xbf16>, vector<512x512xbf16>, vector<2x512xf32> -> vector<2x512xf32>
    %38 = arith.addf %34, %37 : vector<2x512xf32>
    %c0_29 = arith.constant 0 : index
    %c2560 = arith.constant 2560 : index
    %39 = vector.load %arg9[%c0_29, %c2560] : memref<1x3584xf32, #tpu.memory_space<vmem>>, vector<1x512xf32>
    %40 = vector.broadcast %39 : vector<1x512xf32> to vector<2x512xf32>
    %41 = arith.addf %38, %40 : vector<2x512xf32>
    %cst_30 = arith.constant 0.000000e+00 : f32
    %42 = vector.broadcast %cst_30 : f32 to vector<2x512xf32>
    %43 = arith.maximumf %41, %42 : vector<2x512xf32>
    %44 = arith.truncf %43 : vector<2x512xf32> to vector<2x512xbf16>
    %c0_31 = arith.constant 0 : index
    %c0_32 = arith.constant 0 : index
    %45 = vector.load %arg7[%c0_31, %c0_32] : memref<512x384xbf16, #tpu.memory_space<vmem>>, vector<512x384xbf16>
    %cst_33 = arith.constant dense<0.000000e+00> : vector<2x384xf32>
    %46 = tpu.matmul %44, %45, %cst_33 {dimension_numbers = #tpu.dot_dimension_numbers<[1], [0], [0], [1], [0, 0, 1, 1], [], []>} : vector<2x512xbf16>, vector<512x384xbf16>, vector<2x384xf32> -> vector<2x384xf32>
    %c0_34 = arith.constant 0 : index
    %c3072 = arith.constant 3072 : index
    %47 = vector.load %arg9[%c0_34, %c3072] : memref<1x3584xf32, #tpu.memory_space<vmem>>, vector<1x384xf32>
    %48 = vector.broadcast %47 : vector<1x384xf32> to vector<2x384xf32>
    %49 = arith.addf %46, %48 : vector<2x384xf32>
    %cst_35 = arith.constant 0.000000e+00 : f32
    %50 = vector.broadcast %cst_35 : f32 to vector<2x384xf32>
    %51 = arith.maximumf %49, %50 : vector<2x384xf32>
    %52 = arith.truncf %51 : vector<2x384xf32> to vector<2x384xbf16>
    %c0_36 = arith.constant 0 : index
    %c0_37 = arith.constant 0 : index
    %53 = vector.load %arg8[%c0_36, %c0_37] : memref<384x128xbf16, #tpu.memory_space<vmem>>, vector<384x128xbf16>
    %cst_38 = arith.constant dense<0.000000e+00> : vector<2x128xf32>
    %54 = tpu.matmul %52, %53, %cst_38 {dimension_numbers = #tpu.dot_dimension_numbers<[1], [0], [0], [1], [0, 0, 1, 1], [], []>} : vector<2x384xbf16>, vector<384x128xbf16>, vector<2x128xf32> -> vector<2x128xf32>
    %c0_39 = arith.constant 0 : index
    %c3456 = arith.constant 3456 : index
    %55 = vector.load %arg9[%c0_39, %c3456] : memref<1x3584xf32, #tpu.memory_space<vmem>>, vector<1x128xf32>
    %56 = vector.broadcast %55 : vector<1x128xf32> to vector<2x128xf32>
    %57 = arith.addf %54, %56 : vector<2x128xf32>
    %58 = tpu.iota {dimensions = array<i32: 1>} : vector<2x128xi32>
    %c12_i32 = arith.constant 12 : i32
    %59 = vector.broadcast %c12_i32 : i32 to vector<2x128xi32>
    %60 = arith.cmpi slt, %58, %59 : vector<2x128xi32>
    %c12_i32_40 = arith.constant 12 : i32
    %61 = vector.broadcast %c12_i32_40 : i32 to vector<2x128xi32>
    %62 = arith.cmpi sge, %58, %61 : vector<2x128xi32>
    %c15_i32 = arith.constant 15 : i32
    %63 = vector.broadcast %c15_i32 : i32 to vector<2x128xi32>
    %64 = arith.cmpi slt, %58, %63 : vector<2x128xi32>
    %65 = arith.andi %62, %64 : vector<2x128xi1>
    %66 = arith.negf %57 : vector<2x128xf32>
    %67 = math.exp %66 : vector<2x128xf32>
    %cst_41 = arith.constant 1.000000e+00 : f32
    %68 = vector.broadcast %cst_41 : f32 to vector<2x128xf32>
    %69 = arith.addf %68, %67 : vector<2x128xf32>
    %70 = arith.divf %68, %69 : vector<2x128xf32>
    %cst_42 = arith.constant -1.000000e+30 : f32
    %71 = vector.broadcast %cst_42 : f32 to vector<2x128xf32>
    %72 = arith.select %65, %57, %71 : vector<2x128xi1>, vector<2x128xf32>
    %cst_43 = arith.constant dense<0xFF800000> : vector<2xf32>
    %73 = vector.multi_reduction <maximumf>, %72, %cst_43 [1] : vector<2x128xf32> to vector<2xf32>
    %74 = vector.shape_cast %73 : vector<2xf32> to vector<2x1xf32>
    %75 = vector.broadcast %74 : vector<2x1xf32> to vector<2x128xf32>
    %76 = arith.subf %72, %75 : vector<2x128xf32>
    %77 = math.exp %76 : vector<2x128xf32>
    %cst_44 = arith.constant 0.000000e+00 : f32
    %78 = vector.broadcast %cst_44 : f32 to vector<2x128xf32>
    %79 = arith.select %65, %77, %78 : vector<2x128xi1>, vector<2x128xf32>
    %cst_45 = arith.constant dense<0.000000e+00> : vector<2xf32>
    %80 = vector.multi_reduction <add>, %79, %cst_45 [1] : vector<2x128xf32> to vector<2xf32>
    %81 = vector.shape_cast %80 : vector<2xf32> to vector<2x1xf32>
    %82 = tpu.reciprocal %81 {approx = true} : vector<2x1xf32> -> vector<2x1xf32>
    %83 = arith.mulf %81, %82 : vector<2x1xf32>
    %cst_46 = arith.constant 2.000000e+00 : f32
    %84 = vector.broadcast %cst_46 : f32 to vector<2x1xf32>
    %85 = arith.subf %84, %83 : vector<2x1xf32>
    %86 = arith.mulf %82, %85 : vector<2x1xf32>
    %87 = vector.broadcast %86 : vector<2x1xf32> to vector<2x128xf32>
    %88 = arith.mulf %79, %87 : vector<2x128xf32>
    %cst_47 = arith.constant 0.000000e+00 : f32
    %89 = vector.broadcast %cst_47 : f32 to vector<2x128xf32>
    %90 = arith.select %60, %70, %89 : vector<2x128xi1>, vector<2x128xf32>
    %91 = arith.select %65, %88, %90 : vector<2x128xi1>, vector<2x128xf32>
    %c0_48 = arith.constant 0 : index
    %c0_49 = arith.constant 0 : index
    %92 = vector.load %arg10[%c0_48, %c0_49] : memref<2x128xf32, #tpu.memory_space<vmem>>, vector<2x128xf32>
    tpu.vector_store %arg10[%c0_48, %c0_49], %91 {strides = array<i32>} : memref<2x128xf32, #tpu.memory_space<vmem>>, vector<2x128xf32>,
    return
  }
  func.func @transform_0(%arg0: i32) -> (i32, i32) {
    %c0_i32 = arith.constant 0 : i32
    %c0_i32_0 = arith.constant 0 : i32
    return %arg0, %c0_i32 : i32, i32
  }
  func.func @transform_1(%arg0: i32) -> (i32, i32) {
    %c0_i32 = arith.constant 0 : i32
    %c0_i32_0 = arith.constant 0 : i32
    %c0_i32_1 = arith.constant 0 : i32
    return %c0_i32, %c0_i32_0 : i32, i32
  }
  func.func @transform_2(%arg0: i32) -> (i32, i32) {
    %c0_i32 = arith.constant 0 : i32
    %c0_i32_0 = arith.constant 0 : i32
    %c0_i32_1 = arith.constant 0 : i32
    return %c0_i32, %c0_i32_0 : i32, i32
  }
  func.func @transform_3(%arg0: i32) -> (i32, i32) {
    %c0_i32 = arith.constant 0 : i32
    %c0_i32_0 = arith.constant 0 : i32
    %c0_i32_1 = arith.constant 0 : i32
    return %c0_i32, %c0_i32_0 : i32, i32
  }
  func.func @transform_4(%arg0: i32) -> (i32, i32) {
    %c0_i32 = arith.constant 0 : i32
    %c0_i32_0 = arith.constant 0 : i32
    %c0_i32_1 = arith.constant 0 : i32
    return %c0_i32, %c0_i32_0 : i32, i32
  }
  func.func @transform_5(%arg0: i32) -> (i32, i32) {
    %c0_i32 = arith.constant 0 : i32
    %c0_i32_0 = arith.constant 0 : i32
    %c0_i32_1 = arith.constant 0 : i32
    return %c0_i32, %c0_i32_0 : i32, i32
  }
  func.func @transform_6(%arg0: i32) -> (i32, i32) {
    %c0_i32 = arith.constant 0 : i32
    %c0_i32_0 = arith.constant 0 : i32
    %c0_i32_1 = arith.constant 0 : i32
    return %c0_i32, %c0_i32_0 : i32, i32
  }
  func.func @transform_7(%arg0: i32) -> (i32, i32) {
    %c0_i32 = arith.constant 0 : i32
    %c0_i32_0 = arith.constant 0 : i32
    %c0_i32_1 = arith.constant 0 : i32
    return %c0_i32, %c0_i32_0 : i32, i32
  }
  func.func @transform_8(%arg0: i32) -> (i32, i32) {
    %c0_i32 = arith.constant 0 : i32
    %c0_i32_0 = arith.constant 0 : i32
    %c0_i32_1 = arith.constant 0 : i32
    return %c0_i32, %c0_i32_0 : i32, i32
  }
  func.func @transform_9(%arg0: i32) -> (i32, i32) {
    %c0_i32 = arith.constant 0 : i32
    %c0_i32_0 = arith.constant 0 : i32
    return %arg0, %c0_i32 : i32, i32
  }
}

</mosaic_0001>

<llo_original>
// kernel: ican_v1_forward.1
$region0: #{ican_v1_forward.1}
  #allocation0 [shape = 'u32[]', space=smem, size = 0x4, offset = 0x4, fixed_abs, tag = 'smem constant byte address 0x4 - core index']
  #allocation1 [shape = 'u32[144,128]{1,0:T(1,128)}', space=vmem, size = 0x12000, scoped, tag = 'internal scratch']
  %s0 = inlined_call_operand.vmem [shape: bf16[2,768], index: 0, kind: input, shape index: {}]
  %s1 = inlined_call_operand.hbm [shape: bf16[512,512], index: 1, kind: input, shape index: {}]
  %s2 = inlined_call_operand.hbm [shape: bf16[256,1024], index: 2, kind: input, shape index: {}]
  %s3 = inlined_call_operand.hbm [shape: bf16[512,512], index: 3, kind: input, shape index: {}]
  %s4 = inlined_call_operand.hbm [shape: bf16[1024,512], index: 4, kind: input, shape index: {}]
  %s5 = inlined_call_operand.hbm [shape: bf16[1024,512], index: 5, kind: input, shape index: {}]
  %s6 = inlined_call_operand.hbm [shape: bf16[512,384], index: 6, kind: input, shape index: {}]
  %s7 = inlined_call_operand.hbm [shape: bf16[384,128], index: 7, kind: input, shape index: {}]
  %s8 = inlined_call_operand.vmem [shape: f32[1,3584], index: 8, kind: input, shape index: {}]
  %s9 = inlined_call_operand.vmem [shape: f32[2,128], index: 9, kind: output, shape index: {}]
  %s10 = sld [smem:[#allocation0]]
  $region74: #{ican_v1_forward.1} parent=0
    _
  %s12 = ssub.s32 1, %s10
  %s13 = scalar_select 0, %s12, %s10
  $region1: #{ican_v1_forward.1} parent=0
    #allocation2 [shape = 'u8[524288]{0}', space=vmem, size = 0x80000, scoped, tag = 'input window, operand 1, single buffered']
    #allocation3 [shape = 's32[1]{0}', space=sflag, size = 0x4, scoped, tag = 'scoped memory for ican_v1_forward.1']
    #allocation4 [shape = 'u8[524288]{0}', space=vmem, size = 0x80000, scoped, tag = 'input window, operand 2, single buffered']
    #allocation5 [shape = 's32[1]{0}', space=sflag, size = 0x4, scoped, tag = 'scoped memory for ican_v1_forward.1']
    #allocation6 [shape = 'u8[524288]{0}', space=vmem, size = 0x80000, scoped, tag = 'input window, operand 3, single buffered']
    #allocation7 [shape = 'u8[1048576]{0}', space=vmem, size = 0x100000, scoped, tag = 'input window, operand 4, single buffered']
    #allocation8 [shape = 's32[1]{0}', space=sflag, size = 0x4, scoped, tag = 'scoped memory for ican_v1_forward.1']
    #allocation9 [shape = 'u8[1048576]{0}', space=vmem, size = 0x100000, scoped, tag = 'input window, operand 5, single buffered']
    #allocation10 [shape = 'u8[393216]{0}', space=vmem, size = 0x60000, scoped, tag = 'input window, operand 6, single buffered']
    #allocation11 [shape = 's32[1]{0}', space=sflag, size = 0x4, scoped, tag = 'scoped memory for ican_v1_forward.1']
    #allocation12 [shape = 'u8[98304]{0}', space=vmem, size = 0x18000, scoped, tag = 'input window, operand 7, single buffered']
    %14 = vsyncpa [#allocation3], 0
    %15 = vsyncpa [#allocation5], 0
    %16 = vsyncpa [#allocation8], 0
    %17 = vsyncpa [#allocation11], 0
    // Predicated region
    $region2: #{ican_v1_forward.1} parent=1 // pred_check
      _
    $region3: #{ican_v1_forward.1} parent=1 // pred_check_branch
      %19 = sbr.rel (0) target = $region5
    $region4: #{ican_v1_forward.1} parent=1 // pred_region
      _
    $region5: #{ican_v1_forward.1} parent=1 // pred_fallthru
      _
    // Predicated region
    $region6: #{ican_v1_forward.1} parent=1 // pred_check
      _
    $region7: #{ican_v1_forward.1} parent=1 // pred_check_branch
      %21 = sbr.rel (0) target = $region9
    $region8: #{ican_v1_forward.1} parent=1 // pred_region
      %s23 = ssub.s32 16384, 16384
      %24 = vsyncadd [#allocation3], %s23
      %s25 = sshll.u32 [#allocation2], 4
      %s26 = int_to_ptr.vmem [resolvable:$true] %s25
      %31 = dma.hbm_to_vmem [thread:$0]  %s1, 16384, %s26, [#allocation3], 256, 256, 16
    $region9: #{ican_v1_forward.1} parent=1 // pred_fallthru
      _
    // Predicated region
    $region10: #{ican_v1_forward.1} parent=1 // pred_check
      _
    $region11: #{ican_v1_forward.1} parent=1 // pred_check_branch
      %33 = sbr.rel (0) target = $region13
    $region12: #{ican_v1_forward.1} parent=1 // pred_region
      %s35 = ssub.s32 16384, 16384
      %36 = vsyncadd [#allocation5], %s35
      %s37 = sshll.u32 [#allocation4], 4
      %s38 = int_to_ptr.vmem [resolvable:$true] %s37
      %43 = dma.hbm_to_vmem [thread:$0]  %s2, 16384, %s38, [#allocation5], 512, 512, 32
    $region13: #{ican_v1_forward.1} parent=1 // pred_fallthru
      _
    // Predicated region
    $region14: #{ican_v1_forward.1} parent=1 // pred_check
      _
    $region15: #{ican_v1_forward.1} parent=1 // pred_check_branch
      %45 = sbr.rel (0) target = $region17
    $region16: #{ican_v1_forward.1} parent=1 // pred_region
      %s47 = ssub.s32 16384, 16384
      %48 = vsyncadd [#allocation5], %s47
      %s49 = sshll.u32 [#allocation6], 4
      %s50 = int_to_ptr.vmem [resolvable:$true] %s49
      %55 = dma.hbm_to_vmem [thread:$0]  %s3, 16384, %s50, [#allocation5], 256, 256, 16
    $region17: #{ican_v1_forward.1} parent=1 // pred_fallthru
      _
    // Predicated region
    $region18: #{ican_v1_forward.1} parent=1 // pred_check
      _
    $region19: #{ican_v1_forward.1} parent=1 // pred_check_branch
      %57 = sbr.rel (0) target = $region21
    $region20: #{ican_v1_forward.1} parent=1 // pred_region
      %s59 = ssub.s32 32768, 32768
      %60 = vsyncadd [#allocation8], %s59
      %s61 = sshll.u32 [#allocation7], 4
      %s62 = int_to_ptr.vmem [resolvable:$true] %s61
      %67 = dma.hbm_to_vmem [thread:$0]  %s4, 32768, %s62, [#allocation8], 256, 256, 16
    $region21: #{ican_v1_forward.1} parent=1 // pred_fallthru
      _
    // Predicated region
    $region22: #{ican_v1_forward.1} parent=1 // pred_check
      _
    $region23: #{ican_v1_forward.1} parent=1 // pred_check_branch
      %69 = sbr.rel (0) target = $region25
    $region24: #{ican_v1_forward.1} parent=1 // pred_region
      %s71 = ssub.s32 32768, 32768
      %72 = vsyncadd [#allocation8], %s71
      %s73 = sshll.u32 [#allocation9], 4
      %s74 = int_to_ptr.vmem [resolvable:$true] %s73
      %79 = dma.hbm_to_vmem [thread:$0]  %s5, 32768, %s74, [#allocation8], 256, 256, 16
    $region25: #{ican_v1_forward.1} parent=1 // pred_fallthru
      _
    // Predicated region
    $region26: #{ican_v1_forward.1} parent=1 // pred_check
      _
    $region27: #{ican_v1_forward.1} parent=1 // pred_check_branch
      %81 = sbr.rel (0) target = $region29
    $region28: #{ican_v1_forward.1} parent=1 // pred_region
      %s83 = ssub.s32 12288, 12288
      %84 = vsyncadd [#allocation11], %s83
      %s85 = sshll.u32 [#allocation10], 4
      %s86 = int_to_ptr.vmem [resolvable:$true] %s85
      %91 = dma.hbm_to_vmem [thread:$0]  %s6, 12288, %s86, [#allocation11], 192, 192, 12
    $region29: #{ican_v1_forward.1} parent=1 // pred_fallthru
      _
    // Predicated region
    $region30: #{ican_v1_forward.1} parent=1 // pred_check
      _
    $region31: #{ican_v1_forward.1} parent=1 // pred_check_branch
      %93 = sbr.rel (0) target = $region33
    $region32: #{ican_v1_forward.1} parent=1 // pred_region
      %s95 = ssub.s32 3072, 3072
      %96 = vsyncadd [#allocation11], %s95
      %s97 = sshll.u32 [#allocation12], 4
      %s98 = int_to_ptr.vmem [resolvable:$true] %s97
      %103 = dma.hbm_to_vmem [thread:$0]  %s7, 3072, %s98, [#allocation11], 64, 64, 4
    $region33: #{ican_v1_forward.1} parent=1 // pred_fallthru
      _
    // Predicated region
    $region34: #{ican_v1_forward.1} parent=1 // pred_check
      _
    $region35: #{ican_v1_forward.1} parent=1 // pred_check_branch
      %105 = sbr.rel (0) target = $region37
    $region36: #{ican_v1_forward.1} parent=1 // pred_region
      _
    $region37: #{ican_v1_forward.1} parent=1 // pred_fallthru
      _
    // Predicated region
    $region38: #{ican_v1_forward.1} parent=1 // pred_check
      _
    $region39: #{ican_v1_forward.1} parent=1 // pred_check_branch
      %107 = sbr.rel (0) target = $region41
    $region40: #{ican_v1_forward.1} parent=1 // pred_region
      %108 = dma.done [#allocation3], 16384
    $region41: #{ican_v1_forward.1} parent=1 // pred_fallthru
      _
    // Predicated region
    $region42: #{ican_v1_forward.1} parent=1 // pred_check
      _
    $region43: #{ican_v1_forward.1} parent=1 // pred_check_branch
      %110 = sbr.rel (0) target = $region45
    $region44: #{ican_v1_forward.1} parent=1 // pred_region
      %111 = dma.done [#allocation5], 16384
    $region45: #{ican_v1_forward.1} parent=1 // pred_fallthru
      _
    // Predicated region
    $region46: #{ican_v1_forward.1} parent=1 // pred_check
      _
    $region47: #{ican_v1_forward.1} parent=1 // pred_check_branch
      %113 = sbr.rel (0) target = $region49
    $region48: #{ican_v1_forward.1} parent=1 // pred_region
      %114 = dma.done [#allocation5], 16384
    $region49: #{ican_v1_forward.1} parent=1 // pred_fallthru
      _
    // Predicated region
    $region50: #{ican_v1_forward.1} parent=1 // pred_check
      _
    $region51: #{ican_v1_forward.1} parent=1 // pred_check_branch
      %116 = sbr.rel (0) target = $region53
    $region52: #{ican_v1_forward.1} parent=1 // pred_region
      %117 = dma.done [#allocation8], 32768
    $region53: #{ican_v1_forward.1} parent=1 // pred_fallthru
      _
    // Predicated region
    $region54: #{ican_v1_forward.1} parent=1 // pred_check
      _
    $region55: #{ican_v1_forward.1} parent=1 // pred_check_branch
      %119 = sbr.rel (0) target = $region57
    $region56: #{ican_v1_forward.1} parent=1 // pred_region
      %120 = dma.done [#allocation8], 32768
    $region57: #{ican_v1_forward.1} parent=1 // pred_fallthru
      _
    // Predicated region
    $region58: #{ican_v1_forward.1} parent=1 // pred_check
      _
    $region59: #{ican_v1_forward.1} parent=1 // pred_check_branch
      %122 = sbr.rel (0) target = $region61
    $region60: #{ican_v1_forward.1} parent=1 // pred_region
      %123 = dma.done [#allocation11], 12288
    $region61: #{ican_v1_forward.1} parent=1 // pred_fallthru
      _
    // Predicated region
    $region62: #{ican_v1_forward.1} parent=1 // pred_check
      _
    $region63: #{ican_v1_forward.1} parent=1 // pred_check_branch
      %125 = sbr.rel (0) target = $region65
    $region64: #{ican_v1_forward.1} parent=1 // pred_region
      %126 = dma.done [#allocation11], 3072
    $region65: #{ican_v1_forward.1} parent=1 // pred_fallthru
      _
    %v128 = vld [vmem:[%s0] sm:$0xf]
    %v129 = vld [vmem:[%s0 + $0x4] sm:$0x3]
    %v130 = vld [vmem:[#allocation2] sm:$0xff]
    %v131 = vld [vmem:[#allocation2 + $0x8] sm:$0xff]
    %v132 = vld [vmem:[#allocation2 + $0x10] sm:$0xff]
    %v133 = vld [vmem:[#allocation2 + $0x18] sm:$0xff]
    %v134 = vld [vmem:[#allocation2 + $0x20] sm:$0xff]
    %v135 = vld [vmem:[#allocation2 + $0x28] sm:$0xff]
    %v136 = vld [vmem:[#allocation2 + $0x30] sm:$0xff]
    %v137 = vld [vmem:[#allocation2 + $0x38] sm:$0xff]
    %v138 = vld [vmem:[#allocation2 + $0x40] sm:$0xff]
    %v139 = vld [vmem:[#allocation2 + $0x48] sm:$0xff]
    %v140 = vld [vmem:[#allocation2 + $0x50] sm:$0xff]
    %v141 = vld [vmem:[#allocation2 + $0x58] sm:$0xff]
    %v142 = vld [vmem:[#allocation2 + $0x60] sm:$0xff]
    %v143 = vld [vmem:[#allocation2 + $0x68] sm:$0xff]
    %v144 = vld [vmem:[#allocation2 + $0x70] sm:$0xff]
    %v145 = vld [vmem:[#allocation2 + $0x78] sm:$0xff]
    %v146 = vld [vmem:[#allocation2 + $0x80] sm:$0xff]
    %v147 = vld [vmem:[#allocation2 + $0x88] sm:$0xff]
    %v148 = vld [vmem:[#allocation2 + $0x90] sm:$0xff]
    %v149 = vld [vmem:[#allocation2 + $0x98] sm:$0xff]
    %v150 = vld [vmem:[#allocation2 + $0xa0] sm:$0xff]
    %v151 = vld [vmem:[#allocation2 + $0xa8] sm:$0xff]
    %v152 = vld [vmem:[#allocation2 + $0xb0] sm:$0xff]
    %v153 = vld [vmem:[#allocation2 + $0xb8] sm:$0xff]
    %v154 = vld [vmem:[#allocation2 + $0xc0] sm:$0xff]
    %v155 = vld [vmem:[#allocation2 + $0xc8] sm:$0xff]
    %v156 = vld [vmem:[#allocation2 + $0xd0] sm:$0xff]
    %v157 = vld [vmem:[#allocation2 + $0xd8] sm:$0xff]
    %v158 = vld [vmem:[#allocation2 + $0xe0] sm:$0xff]
    %v159 = vld [vmem:[#allocation2 + $0xe8] sm:$0xff]
    %v160 = vld [vmem:[#allocation2 + $0xf0] sm:$0xff]
    %v161 = vld [vmem:[#allocation2 + $0xf8] sm:$0xff]
    %v162 = vld [vmem:[#allocation2 + $0x100] sm:$0xff]
    %v163 = vld [vmem:[#allocation2 + $0x108] sm:$0xff]
    %v164 = vld [vmem:[#allocation2 + $0x110] sm:$0xff]
    %v165 = vld [vmem:[#allocation2 + $0x118] sm:$0xff]
    %v166 = vld [vmem:[#allocation2 + $0x120] sm:$0xff]
    %v167 = vld [vmem:[#allocation2 + $0x128] sm:$0xff]
    %v168 = vld [vmem:[#allocation2 + $0x130] sm:$0xff]
    %v169 = vld [vmem:[#allocation2 + $0x138] sm:$0xff]
    %v170 = vld [vmem:[#allocation2 + $0x140] sm:$0xff]
    %v171 = vld [vmem:[#allocation2 + $0x148] sm:$0xff]
    %v172 = vld [vmem:[#allocation2 + $0x150] sm:$0xff]
    %v173 = vld [vmem:[#allocation2 + $0x158] sm:$0xff]
    %v174 = vld [vmem:[#allocation2 + $0x160] sm:$0xff]
    %v175 = vld [vmem:[#allocation2 + $0x168] sm:$0xff]
    %v176 = vld [vmem:[#allocation2 + $0x170] sm:$0xff]
    %v177 = vld [vmem:[#allocation2 + $0x178] sm:$0xff]
    %v178 = vld [vmem:[#allocation2 + $0x180] sm:$0xff]
    %v179 = vld [vmem:[#allocation2 + $0x188] sm:$0xff]
    %v180 = vld [vmem:[#allocation2 + $0x190] sm:$0xff]
    %v181 = vld [vmem:[#allocation2 + $0x198] sm:$0xff]
    %v182 = vld [vmem:[#allocation2 + $0x1a0] sm:$0xff]
    %v183 = vld [vmem:[#allocation2 + $0x1a8] sm:$0xff]
    %v184 = vld [vmem:[#allocation2 + $0x1b0] sm:$0xff]
    %v185 = vld [vmem:[#allocation2 + $0x1b8] sm:$0xff]
    %v186 = vld [vmem:[#allocation2 + $0x1c0] sm:$0xff]
    %v187 = vld [vmem:[#allocation2 + $0x1c8] sm:$0xff]
    %v188 = vld [vmem:[#allocation2 + $0x1d0] sm:$0xff]
    %v189 = vld [vmem:[#allocation2 + $0x1d8] sm:$0xff]
    %v190 = vld [vmem:[#allocation2 + $0x1e0] sm:$0xff]
    %v191 = vld [vmem:[#allocation2 + $0x1e8] sm:$0xff]
    %v192 = vld [vmem:[#allocation2 + $0x1f0] sm:$0xff]
    %v193 = vld [vmem:[#allocation2 + $0x1f8] sm:$0xff]
    %v194 = vld [vmem:[#allocation2 + $0x200] sm:$0xff]
    %v195 = vld [vmem:[#allocation2 + $0x208] sm:$0xff]
    %v196 = vld [vmem:[#allocation2 + $0x210] sm:$0xff]
    %v197 = vld [vmem:[#allocation2 + $0x218] sm:$0xff]
    %v198 = vld [vmem:[#allocation2 + $0x220] sm:$0xff]
    %v199 = vld [vmem:[#allocation2 + $0x228] sm:$0xff]
    %v200 = vld [vmem:[#allocation2 + $0x230] sm:$0xff]
    %v201 = vld [vmem:[#allocation2 + $0x238] sm:$0xff]
    %v202 = vld [vmem:[#allocation2 + $0x240] sm:$0xff]
    %v203 = vld [vmem:[#allocation2 + $0x248] sm:$0xff]
    %v204 = vld [vmem:[#allocation2 + $0x250] sm:$0xff]
    %v205 = vld [vmem:[#allocation2 + $0x258] sm:$0xff]
    %v206 = vld [vmem:[#allocation2 + $0x260] sm:$0xff]
    %v207 = vld [vmem:[#allocation2 + $0x268] sm:$0xff]
    %v208 = vld [vmem:[#allocation2 + $0x270] sm:$0xff]
    %v209 = vld [vmem:[#allocation2 + $0x278] sm:$0xff]
    %v210 = vld [vmem:[#allocation2 + $0x280] sm:$0xff]
    %v211 = vld [vmem:[#allocation2 + $0x288] sm:$0xff]
    %v212 = vld [vmem:[#allocation2 + $0x290] sm:$0xff]
    %v213 = vld [vmem:[#allocation2 + $0x298] sm:$0xff]
    %v214 = vld [vmem:[#allocation2 + $0x2a0] sm:$0xff]
    %v215 = vld [vmem:[#allocation2 + $0x2a8] sm:$0xff]
    %v216 = vld [vmem:[#allocation2 + $0x2b0] sm:$0xff]
    %v217 = vld [vmem:[#allocation2 + $0x2b8] sm:$0xff]
    %v218 = vld [vmem:[#allocation2 + $0x2c0] sm:$0xff]
    %v219 = vld [vmem:[#allocation2 + $0x2c8] sm:$0xff]
    %v220 = vld [vmem:[#allocation2 + $0x2d0] sm:$0xff]
    %v221 = vld [vmem:[#allocation2 + $0x2d8] sm:$0xff]
    %v222 = vld [vmem:[#allocation2 + $0x2e0] sm:$0xff]
    %v223 = vld [vmem:[#allocation2 + $0x2e8] sm:$0xff]
    %v224 = vld [vmem:[#allocation2 + $0x2f0] sm:$0xff]
    %v225 = vld [vmem:[#allocation2 + $0x2f8] sm:$0xff]
    %v226 = vld [vmem:[#allocation2 + $0x300] sm:$0xff]
    %v227 = vld [vmem:[#allocation2 + $0x308] sm:$0xff]
    %v228 = vld [vmem:[#allocation2 + $0x310] sm:$0xff]
    %v229 = vld [vmem:[#allocation2 + $0x318] sm:$0xff]
    %v230 = vld [vmem:[#allocation2 + $0x320] sm:$0xff]
    %v231 = vld [vmem:[#allocation2 + $0x328] sm:$0xff]
    %v232 = vld [vmem:[#allocation2 + $0x330] sm:$0xff]
    %v233 = vld [vmem:[#allocation2 + $0x338] sm:$0xff]
    %v234 = vld [vmem:[#allocation2 + $0x340] sm:$0xff]
    %v235 = vld [vmem:[#allocation2 + $0x348] sm:$0xff]
    %v236 = vld [vmem:[#allocation2 + $0x350] sm:$0xff]
    %v237 = vld [vmem:[#allocation2 + $0x358] sm:$0xff]
    %v238 = vld [vmem:[#allocation2 + $0x360] sm:$0xff]
    %v239 = vld [vmem:[#allocation2 + $0x368] sm:$0xff]
    %v240 = vld [vmem:[#allocation2 + $0x370] sm:$0xff]
    %v241 = vld [vmem:[#allocation2 + $0x378] sm:$0xff]
    %v242 = vld [vmem:[#allocation2 + $0x380] sm:$0xff]
    %v243 = vld [vmem:[#allocation2 + $0x388] sm:$0xff]
    %v244 = vld [vmem:[#allocation2 + $0x390] sm:$0xff]
    %v245 = vld [vmem:[#allocation2 + $0x398] sm:$0xff]
    %v246 = vld [vmem:[#allocation2 + $0x3a0] sm:$0xff]
    %v247 = vld [vmem:[#allocation2 + $0x3a8] sm:$0xff]
    %v248 = vld [vmem:[#allocation2 + $0x3b0] sm:$0xff]
    %v249 = vld [vmem:[#allocation2 + $0x3b8] sm:$0xff]
    %v250 = vld [vmem:[#allocation2 + $0x3c0] sm:$0xff]
    %v251 = vld [vmem:[#allocation2 + $0x3c8] sm:$0xff]
    %v252 = vld [vmem:[#allocation2 + $0x3d0] sm:$0xff]
    %v253 = vld [vmem:[#allocation2 + $0x3d8] sm:$0xff]
    %v254 = vld [vmem:[#allocation2 + $0x3e0] sm:$0xff]
    %v255 = vld [vmem:[#allocation2 + $0x3e8] sm:$0xff]
    %v256 = vld [vmem:[#allocation2 + $0x3f0] sm:$0xff]
    %v257 = vld [vmem:[#allocation2 + $0x3f8] sm:$0xff]
    %v258 = vld [vmem:[%s8] sm:$0xf]
    %v260 = vlaneseq
    %v261 = vshrl.u32 %v260, 7
    %v262 = vsub.s32 0, %v261
    %v263 = vrot.slane %v258, %v262
    %v264 = vlaneseq
    %v265 = vshrl.u32 %v264, 7
    %v266 = vsub.s32 1, %v265
    %v267 = vrot.slane %v258, %v266
    %v268 = vlaneseq
    %v269 = vshrl.u32 %v268, 7
    %v270 = vsub.s32 2, %v269
    %v271 = vrot.slane %v258, %v270
    %v272 = vlaneseq
    %v273 = vshrl.u32 %v272, 7
    %v274 = vsub.s32 3, %v273
    %v275 = vrot.slane %v258, %v274
    %v282 = vunpack.c.l.s4 1966171168
    %v283 = vunpack.c.0.s8 %v282
    %v284 = vlaneseq
    %v285 = vshrl.u32 %v284, 7
    %v286 = vsub.s32 %v283, %v285
    %v287 = vrot.slane %v128, %v286
    %v288 = vcombine.high %v287, %v287
    %v290 = vunpack.c.l.s4 1966171168
    %v291 = vunpack.c.0.s8 %v290
    %v292 = vlaneseq
    %v293 = vshrl.u32 %v292, 7
    %v294 = vsub.s32 %v291, %v293
    %v295 = vrot.slane %v287, %v294
    %v297 = vunpack.c.l.s4 1966171168
    %v298 = vunpack.c.0.s8 %v297
    %v299 = vlaneseq
    %v300 = vshrl.u32 %v299, 7
    %v301 = vsub.s32 %v298, %v300
    %v302 = vrot.slane %v288, %v301
    %v303 = vcombine.high %v295, %v295
    %v304 = vcombine.high %v302, %v302
    %v437 = vunpack.c.l.b16 %v130
    %v438 = vunpack.c.h.b16 %v130
    %v439 = vunpack.c.l.b16 %v131
    %v440 = vunpack.c.h.b16 %v131
    %v441 = vunpack.c.l.b16 %v132
    %v442 = vunpack.c.h.b16 %v132
    %v443 = vunpack.c.l.b16 %v133
    %v444 = vunpack.c.h.b16 %v133
    %v445 = vunpack.c.l.b16 %v134
    %v446 = vunpack.c.h.b16 %v134
    %v447 = vunpack.c.l.b16 %v135
    %v448 = vunpack.c.h.b16 %v135
    %v449 = vunpack.c.l.b16 %v136
    %v450 = vunpack.c.h.b16 %v136
    %v451 = vunpack.c.l.b16 %v137
    %v452 = vunpack.c.h.b16 %v137
    %v453 = vunpack.c.l.b16 %v138
    %v454 = vunpack.c.h.b16 %v138
    %v455 = vunpack.c.l.b16 %v139
    %v456 = vunpack.c.h.b16 %v139
    %v457 = vunpack.c.l.b16 %v140
    %v458 = vunpack.c.h.b16 %v140
    %v459 = vunpack.c.l.b16 %v141
    %v460 = vunpack.c.h.b16 %v141
    %v461 = vunpack.c.l.b16 %v142
    %v462 = vunpack.c.h.b16 %v142
    %v463 = vunpack.c.l.b16 %v143
    %v464 = vunpack.c.h.b16 %v143
    %v465 = vunpack.c.l.b16 %v144
    %v466 = vunpack.c.h.b16 %v144
    %v467 = vunpack.c.l.b16 %v145
    %v468 = vunpack.c.h.b16 %v145
    %v469 = vunpack.c.l.b16 %v146
    %v470 = vunpack.c.h.b16 %v146
    %v471 = vunpack.c.l.b16 %v147
    %v472 = vunpack.c.h.b16 %v147
    %v473 = vunpack.c.l.b16 %v148
    %v474 = vunpack.c.h.b16 %v148
    %v475 = vunpack.c.l.b16 %v149
    %v476 = vunpack.c.h.b16 %v149
    %v477 = vunpack.c.l.b16 %v150
    %v478 = vunpack.c.h.b16 %v150
    %v479 = vunpack.c.l.b16 %v151
    %v480 = vunpack.c.h.b16 %v151
    %v481 = vunpack.c.l.b16 %v152
    %v482 = vunpack.c.h.b16 %v152
    %v483 = vunpack.c.l.b16 %v153
    %v484 = vunpack.c.h.b16 %v153
    %v485 = vunpack.c.l.b16 %v154
    %v486 = vunpack.c.h.b16 %v154
    %v487 = vunpack.c.l.b16 %v155
    %v488 = vunpack.c.h.b16 %v155
    %v489 = vunpack.c.l.b16 %v156
    %v490 = vunpack.c.h.b16 %v156
    %v491 = vunpack.c.l.b16 %v157
    %v492 = vunpack.c.h.b16 %v157
    %v493 = vunpack.c.l.b16 %v158
    %v494 = vunpack.c.h.b16 %v158
    %v495 = vunpack.c.l.b16 %v159
    %v496 = vunpack.c.h.b16 %v159
    %v497 = vunpack.c.l.b16 %v160
    %v498 = vunpack.c.h.b16 %v160
    %v499 = vunpack.c.l.b16 %v161
    %v500 = vunpack.c.h.b16 %v161
    %v501 = vunpack.c.l.b16 %v162
    %v502 = vunpack.c.h.b16 %v162
    %v503 = vunpack.c.l.b16 %v163
    %v504 = vunpack.c.h.b16 %v163
    %v505 = vunpack.c.l.b16 %v164
    %v506 = vunpack.c.h.b16 %v164
    %v507 = vunpack.c.l.b16 %v165
    %v508 = vunpack.c.h.b16 %v165
    %v509 = vunpack.c.l.b16 %v166
    %v510 = vunpack.c.h.b16 %v166
    %v511 = vunpack.c.l.b16 %v167
    %v512 = vunpack.c.h.b16 %v167
    %v513 = vunpack.c.l.b16 %v168
    %v514 = vunpack.c.h.b16 %v168
    %v515 = vunpack.c.l.b16 %v169
    %v516 = vunpack.c.h.b16 %v169
    %v517 = vunpack.c.l.b16 %v170
    %v518 = vunpack.c.h.b16 %v170
    %v519 = vunpack.c.l.b16 %v171
    %v520 = vunpack.c.h.b16 %v171
    %v521 = vunpack.c.l.b16 %v172
    %v522 = vunpack.c.h.b16 %v172
    %v523 = vunpack.c.l.b16 %v173
    %v524 = vunpack.c.h.b16 %v173
    %v525 = vunpack.c.l.b16 %v174
    %v526 = vunpack.c.h.b16 %v174
    %v527 = vunpack.c.l.b16 %v175
    %v528 = vunpack.c.h.b16 %v175
    %v529 = vunpack.c.l.b16 %v176
    %v530 = vunpack.c.h.b16 %v176
    %v531 = vunpack.c.l.b16 %v177
    %v532 = vunpack.c.h.b16 %v177
    %v533 = vunpack.c.l.b16 %v178
    %v534 = vunpack.c.h.b16 %v178
    %v535 = vunpack.c.l.b16 %v179
    %v536 = vunpack.c.h.b16 %v179
    %v537 = vunpack.c.l.b16 %v180
    %v538 = vunpack.c.h.b16 %v180
    %v539 = vunpack.c.l.b16 %v181
    %v540 = vunpack.c.h.b16 %v181
    %v541 = vunpack.c.l.b16 %v182
    %v542 = vunpack.c.h.b16 %v182
    %v543 = vunpack.c.l.b16 %v183
    %v544 = vunpack.c.h.b16 %v183
    %v545 = vunpack.c.l.b16 %v184
    %v546 = vunpack.c.h.b16 %v184
    %v547 = vunpack.c.l.b16 %v185
    %v548 = vunpack.c.h.b16 %v185
    %v549 = vunpack.c.l.b16 %v186
    %v550 = vunpack.c.h.b16 %v186
    %v551 = vunpack.c.l.b16 %v187
    %v552 = vunpack.c.h.b16 %v187
    %v553 = vunpack.c.l.b16 %v188
    %v554 = vunpack.c.h.b16 %v188
    %v555 = vunpack.c.l.b16 %v189
    %v556 = vunpack.c.h.b16 %v189
    %v557 = vunpack.c.l.b16 %v190
    %v558 = vunpack.c.h.b16 %v190
    %v559 = vunpack.c.l.b16 %v191
    %v560 = vunpack.c.h.b16 %v191
    %v561 = vunpack.c.l.b16 %v192
    %v562 = vunpack.c.h.b16 %v192
    %v563 = vunpack.c.l.b16 %v193
    %v564 = vunpack.c.h.b16 %v193
    %v565 = vunpack.c.l.b16 %v194
    %v566 = vunpack.c.h.b16 %v194
    %v567 = vunpack.c.l.b16 %v195
    %v568 = vunpack.c.h.b16 %v195
    %v569 = vunpack.c.l.b16 %v196
    %v570 = vunpack.c.h.b16 %v196
    %v571 = vunpack.c.l.b16 %v197
    %v572 = vunpack.c.h.b16 %v197
    %v573 = vunpack.c.l.b16 %v198
    %v574 = vunpack.c.h.b16 %v198
    %v575 = vunpack.c.l.b16 %v199
    %v576 = vunpack.c.h.b16 %v199
    %v577 = vunpack.c.l.b16 %v200
    %v578 = vunpack.c.h.b16 %v200
    %v579 = vunpack.c.l.b16 %v201
    %v580 = vunpack.c.h.b16 %v201
    %v581 = vunpack.c.l.b16 %v202
    %v582 = vunpack.c.h.b16 %v202
    %v583 = vunpack.c.l.b16 %v203
    %v584 = vunpack.c.h.b16 %v203
    %v585 = vunpack.c.l.b16 %v204
    %v586 = vunpack.c.h.b16 %v204
    %v587 = vunpack.c.l.b16 %v205
    %v588 = vunpack.c.h.b16 %v205
    %v589 = vunpack.c.l.b16 %v206
    %v590 = vunpack.c.h.b16 %v206
    %v591 = vunpack.c.l.b16 %v207
    %v592 = vunpack.c.h.b16 %v207
    %v593 = vunpack.c.l.b16 %v208
    %v594 = vunpack.c.h.b16 %v208
    %v595 = vunpack.c.l.b16 %v209
    %v596 = vunpack.c.h.b16 %v209
    %v597 = vunpack.c.l.b16 %v210
    %v598 = vunpack.c.h.b16 %v210
    %v599 = vunpack.c.l.b16 %v211
    %v600 = vunpack.c.h.b16 %v211
    %v601 = vunpack.c.l.b16 %v212
    %v602 = vunpack.c.h.b16 %v212
    %v603 = vunpack.c.l.b16 %v213
    %v604 = vunpack.c.h.b16 %v213
    %v605 = vunpack.c.l.b16 %v214
    %v606 = vunpack.c.h.b16 %v214
    %v607 = vunpack.c.l.b16 %v215
    %v608 = vunpack.c.h.b16 %v215
    %v609 = vunpack.c.l.b16 %v216
    %v610 = vunpack.c.h.b16 %v216
    %v611 = vunpack.c.l.b16 %v217
    %v612 = vunpack.c.h.b16 %v217
    %v613 = vunpack.c.l.b16 %v218
    %v614 = vunpack.c.h.b16 %v218
    %v615 = vunpack.c.l.b16 %v219
    %v616 = vunpack.c.h.b16 %v219
    %v617 = vunpack.c.l.b16 %v220
    %v618 = vunpack.c.h.b16 %v220
    %v619 = vunpack.c.l.b16 %v221
    %v620 = vunpack.c.h.b16 %v221
    %v621 = vunpack.c.l.b16 %v222
    %v622 = vunpack.c.h.b16 %v222
    %v623 = vunpack.c.l.b16 %v223
    %v624 = vunpack.c.h.b16 %v223
    %v625 = vunpack.c.l.b16 %v224
    %v626 = vunpack.c.h.b16 %v224
    %v627 = vunpack.c.l.b16 %v225
    %v628 = vunpack.c.h.b16 %v225
    %v629 = vunpack.c.l.b16 %v226
    %v630 = vunpack.c.h.b16 %v226
    %v631 = vunpack.c.l.b16 %v227
    %v632 = vunpack.c.h.b16 %v227
    %v633 = vunpack.c.l.b16 %v228
    %v634 = vunpack.c.h.b16 %v228
    %v635 = vunpack.c.l.b16 %v229
    %v636 = vunpack.c.h.b16 %v229
    %v637 = vunpack.c.l.b16 %v230
    %v638 = vunpack.c.h.b16 %v230
    %v639 = vunpack.c.l.b16 %v231
    %v640 = vunpack.c.h.b16 %v231
    %v641 = vunpack.c.l.b16 %v232
    %v642 = vunpack.c.h.b16 %v232
    %v643 = vunpack.c.l.b16 %v233
    %v644 = vunpack.c.h.b16 %v233
    %v645 = vunpack.c.l.b16 %v234
    %v646 = vunpack.c.h.b16 %v234
    %v647 = vunpack.c.l.b16 %v235
    %v648 = vunpack.c.h.b16 %v235
    %v649 = vunpack.c.l.b16 %v236
    %v650 = vunpack.c.h.b16 %v236
    %v651 = vunpack.c.l.b16 %v237
    %v652 = vunpack.c.h.b16 %v237
    %v653 = vunpack.c.l.b16 %v238
    %v654 = vunpack.c.h.b16 %v238
    %v655 = vunpack.c.l.b16 %v239
    %v656 = vunpack.c.h.b16 %v239
    %v657 = vunpack.c.l.b16 %v240
    %v658 = vunpack.c.h.b16 %v240
    %v659 = vunpack.c.l.b16 %v241
    %v660 = vunpack.c.h.b16 %v241
    %v661 = vunpack.c.l.b16 %v242
    %v662 = vunpack.c.h.b16 %v242
    %v663 = vunpack.c.l.b16 %v243
    %v664 = vunpack.c.h.b16 %v243
    %v665 = vunpack.c.l.b16 %v244
    %v666 = vunpack.c.h.b16 %v244
    %v667 = vunpack.c.l.b16 %v245
    %v668 = vunpack.c.h.b16 %v245
    %v669 = vunpack.c.l.b16 %v246
    %v670 = vunpack.c.h.b16 %v246
    %v671 = vunpack.c.l.b16 %v247
    %v672 = vunpack.c.h.b16 %v247
    %v673 = vunpack.c.l.b16 %v248
    %v674 = vunpack.c.h.b16 %v248
    %v675 = vunpack.c.l.b16 %v249
    %v676 = vunpack.c.h.b16 %v249
    %v677 = vunpack.c.l.b16 %v250
    %v678 = vunpack.c.h.b16 %v250
    %v679 = vunpack.c.l.b16 %v251
    %v680 = vunpack.c.h.b16 %v251
    %v681 = vunpack.c.l.b16 %v252
    %v682 = vunpack.c.h.b16 %v252
    %v683 = vunpack.c.l.b16 %v253
    %v684 = vunpack.c.h.b16 %v253
    %v685 = vunpack.c.l.b16 %v254
    %v686 = vunpack.c.h.b16 %v254
    %v687 = vunpack.c.l.b16 %v255
    %v688 = vunpack.c.h.b16 %v255
    %v689 = vunpack.c.l.b16 %v256
    %v690 = vunpack.c.h.b16 %v256
    %v691 = vunpack.c.l.b16 %v257
    %v692 = vunpack.c.h.b16 %v257
    %v693 = vpack.c.b16 %v441, %v437
    %v694 = vpack.c.b16 %v442, %v438
    %v695 = vpack.c.b16 %v443, %v439
    %v696 = vpack.c.b16 %v444, %v440
    %v697 = vpack.c.b16 %v449, %v445
    %v698 = vpack.c.b16 %v450, %v446
    %v699 = vpack.c.b16 %v451, %v447
    %v700 = vpack.c.b16 %v452, %v448
    %v701 = vpack.c.b16 %v457, %v453
    %v702 = vpack.c.b16 %v458, %v454
    %v703 = vpack.c.b16 %v459, %v455
    %v704 = vpack.c.b16 %v460, %v456
    %v705 = vpack.c.b16 %v465, %v461
    %v706 = vpack.c.b16 %v466, %v462
    %v707 = vpack.c.b16 %v467, %v463
    %v708 = vpack.c.b16 %v468, %v464
    %v709 = vpack.c.b16 %v473, %v469
    %v710 = vpack.c.b16 %v474, %v470
    %v711 = vpack.c.b16 %v475, %v471
    %v712 = vpack.c.b16 %v476, %v472
    %v713 = vpack.c.b16 %v481, %v477
    %v714 = vpack.c.b16 %v482, %v478
    %v715 = vpack.c.b16 %v483, %v479
    %v716 = vpack.c.b16 %v484, %v480
    %v717 = vpack.c.b16 %v489, %v485
    %v718 = vpack.c.b16 %v490, %v486
    %v719 = vpack.c.b16 %v491, %v487
    %v720 = vpack.c.b16 %v492, %v488
    %v721 = vpack.c.b16 %v497, %v493
    %v722 = vpack.c.b16 %v498, %v494
    %v723 = vpack.c.b16 %v499, %v495
    %v724 = vpack.c.b16 %v500, %v496
    %v725 = vpack.c.b16 %v505, %v501
    %v726 = vpack.c.b16 %v506, %v502
    %v727 = vpack.c.b16 %v507, %v503
    %v728 = vpack.c.b16 %v508, %v504
    %v729 = vpack.c.b16 %v513, %v509
    %v730 = vpack.c.b16 %v514, %v510
    %v731 = vpack.c.b16 %v515, %v511
    %v732 = vpack.c.b16 %v516, %v512
    %v733 = vpack.c.b16 %v521, %v517
    %v734 = vpack.c.b16 %v522, %v518
    %v735 = vpack.c.b16 %v523, %v519
    %v736 = vpack.c.b16 %v524, %v520
    %v737 = vpack.c.b16 %v529, %v525
    %v738 = vpack.c.b16 %v530, %v526
    %v739 = vpack.c.b16 %v531, %v527
    %v740 = vpack.c.b16 %v532, %v528
    %v741 = vpack.c.b16 %v537, %v533
    %v742 = vpack.c.b16 %v538, %v534
    %v743 = vpack.c.b16 %v539, %v535
    %v744 = vpack.c.b16 %v540, %v536
    %v745 = vpack.c.b16 %v545, %v541
    %v746 = vpack.c.b16 %v546, %v542
    %v747 = vpack.c.b16 %v547, %v543
    %v748 = vpack.c.b16 %v548, %v544
    %v749 = vpack.c.b16 %v553, %v549
    %v750 = vpack.c.b16 %v554, %v550
    %v751 = vpack.c.b16 %v555, %v551
    %v752 = vpack.c.b16 %v556, %v552
    %v753 = vpack.c.b16 %v561, %v557
    %v754 = vpack.c.b16 %v562, %v558
    %v755 = vpack.c.b16 %v563, %v559
    %v756 = vpack.c.b16 %v564, %v560
    %v757 = vpack.c.b16 %v569, %v565
    %v758 = vpack.c.b16 %v570, %v566
    %v759 = vpack.c.b16 %v571, %v567
    %v760 = vpack.c.b16 %v572, %v568
    %v761 = vpack.c.b16 %v577, %v573
    %v762 = vpack.c.b16 %v578, %v574
    %v763 = vpack.c.b16 %v579, %v575
    %v764 = vpack.c.b16 %v580, %v576
    %v765 = vpack.c.b16 %v585, %v581
    %v766 = vpack.c.b16 %v586, %v582
    %v767 = vpack.c.b16 %v587, %v583
    %v768 = vpack.c.b16 %v588, %v584
    %v769 = vpack.c.b16 %v593, %v589
    %v770 = vpack.c.b16 %v594, %v590
    %v771 = vpack.c.b16 %v595, %v591
    %v772 = vpack.c.b16 %v596, %v592
    %v773 = vpack.c.b16 %v601, %v597
    %v774 = vpack.c.b16 %v602, %v598
    %v775 = vpack.c.b16 %v603, %v599
    %v776 = vpack.c.b16 %v604, %v600
    %v777 = vpack.c.b16 %v609, %v605
    %v778 = vpack.c.b16 %v610, %v606
    %v779 = vpack.c.b16 %v611, %v607
    %v780 = vpack.c.b16 %v612, %v608
    %v781 = vpack.c.b16 %v617, %v613
    %v782 = vpack.c.b16 %v618, %v614
    %v783 = vpack.c.b16 %v619, %v615
    %v784 = vpack.c.b16 %v620, %v616
    %v785 = vpack.c.b16 %v625, %v621
    %v786 = vpack.c.b16 %v626, %v622
    %v787 = vpack.c.b16 %v627, %v623
    %v788 = vpack.c.b16 %v628, %v624
    %v789 = vpack.c.b16 %v633, %v629
    %v790 = vpack.c.b16 %v634, %v630
    %v791 = vpack.c.b16 %v635, %v631
    %v792 = vpack.c.b16 %v636, %v632
    %v793 = vpack.c.b16 %v641, %v637
    %v794 = vpack.c.b16 %v642, %v638
    %v795 = vpack.c.b16 %v643, %v639
    %v796 = vpack.c.b16 %v644, %v640
    %v797 = vpack.c.b16 %v649, %v645
    %v798 = vpack.c.b16 %v650, %v646
    %v799 = vpack.c.b16 %v651, %v647
    %v800 = vpack.c.b16 %v652, %v648
    %v801 = vpack.c.b16 %v657, %v653
    %v802 = vpack.c.b16 %v658, %v654
    %v803 = vpack.c.b16 %v659, %v655
    %v804 = vpack.c.b16 %v660, %v656
    %v805 = vpack.c.b16 %v665, %v661
    %v806 = vpack.c.b16 %v666, %v662
    %v807 = vpack.c.b16 %v667, %v663
    %v808 = vpack.c.b16 %v668, %v664
    %v809 = vpack.c.b16 %v673, %v669
    %v810 = vpack.c.b16 %v674, %v670
    %v811 = vpack.c.b16 %v675, %v671
    %v812 = vpack.c.b16 %v676, %v672
    %v813 = vpack.c.b16 %v681, %v677
    %v814 = vpack.c.b16 %v682, %v678
    %v815 = vpack.c.b16 %v683, %v679
    %v816 = vpack.c.b16 %v684, %v680
    %v817 = vpack.c.b16 %v689, %v685
    %v818 = vpack.c.b16 %v690, %v686
    %v819 = vpack.c.b16 %v691, %v687
    %v820 = vpack.c.b16 %v692, %v688
    %949 = vmatprep.subr.bf16.mxu0 %v694
    %950 = vmatpush1.bf16.msra.mxu0 %v693
    %951 = vmatprep.subr.bf16.mxu0 %v698
    %952 = vmatpush1.bf16.msra.mxu0 %v697
    %953 = vmatprep.subr.bf16.mxu0 %v702
    %954 = vmatpush1.bf16.msra.mxu0 %v701
    %955 = vmatprep.subr.bf16.mxu0 %v706
    %956 = vmatpush1.bf16.msra.mxu0 %v705
    %957 = vmatprep.subr.bf16.mxu0 %v710
    %958 = vmatpush1.bf16.msra.mxu0 %v709
    %959 = vmatprep.subr.bf16.mxu0 %v714
    %960 = vmatpush1.bf16.msra.mxu0 %v713
    %961 = vmatprep.subr.bf16.mxu0 %v718
    %962 = vmatpush1.bf16.msra.mxu0 %v717
    %963 = vmatprep.subr.bf16.mxu0 %v722
    %964 = vmatpush1.bf16.msra.mxu0 %v721
    %965 = vmatprep.subr.bf16.mxu0 %v726
    %966 = vmatpush1.bf16.msra.mxu0 %v725
    %967 = vmatprep.subr.bf16.mxu0 %v730
    %968 = vmatpush1.bf16.msra.mxu0 %v729
    %969 = vmatprep.subr.bf16.mxu0 %v734
    %970 = vmatpush1.bf16.msra.mxu0 %v733
    %971 = vmatprep.subr.bf16.mxu0 %v738
    %972 = vmatpush1.bf16.msra.mxu0 %v737
    %973 = vmatprep.subr.bf16.mxu0 %v742
    %974 = vmatpush1.bf16.msra.mxu0 %v741
    %975 = vmatprep.subr.bf16.mxu0 %v746
    %976 = vmatpush1.bf16.msra.mxu0 %v745
    %977 = vmatprep.subr.bf16.mxu0 %v750
    %978 = vmatpush1.bf16.msra.mxu0 %v749
    %979 = vmatprep.subr.bf16.mxu0 %v754
    %980 = vmatpush1.bf16.msra.mxu0 %v753
    %981 = vmatprep.mubr.bf16.mxu0 %v302
    %982 = vmatmul.mubr.bf16.gmra.mrb[0].mxu0 %v295
    %v983 = vpop.f32.mrb[0].mxu0
    %v984 = vadd.f32 %v263, %v983
    %v985 = vpop.f32.mrb[0].mxu0
    %v986 = vadd.f32 %v267, %v985
    %v987 = vpop.f32.mrb[0].mxu0
    %v988 = vpop.f32.mrb[0].mxu0
    %989 = vdwg.mxu0
    %990 = vmatprep.subr.bf16.mxu0 %v758
    %991 = vmatpush1.bf16.msra.mxu0 %v757
    %992 = vmatprep.subr.bf16.mxu0 %v762
    %993 = vmatpush1.bf16.msra.mxu0 %v761
    %994 = vmatprep.subr.bf16.mxu0 %v766
    %995 = vmatpush1.bf16.msra.mxu0 %v765
    %996 = vmatprep.subr.bf16.mxu0 %v770
    %997 = vmatpush1.bf16.msra.mxu0 %v769
    %998 = vmatprep.subr.bf16.mxu0 %v774
    %999 = vmatpush1.bf16.msra.mxu0 %v773
    %1000 = vmatprep.subr.bf16.mxu0 %v778
    %1001 = vmatpush1.bf16.msra.mxu0 %v777
    %1002 = vmatprep.subr.bf16.mxu0 %v782
    %1003 = vmatpush1.bf16.msra.mxu0 %v781
    %1004 = vmatprep.subr.bf16.mxu0 %v786
    %1005 = vmatpush1.bf16.msra.mxu0 %v785
    %1006 = vmatprep.subr.bf16.mxu0 %v790
    %1007 = vmatpush1.bf16.msra.mxu0 %v789
    %1008 = vmatprep.subr.bf16.mxu0 %v794
    %1009 = vmatpush1.bf16.msra.mxu0 %v793
    %1010 = vmatprep.subr.bf16.mxu0 %v798
    %1011 = vmatpush1.bf16.msra.mxu0 %v797
    %1012 = vmatprep.subr.bf16.mxu0 %v802
    %1013 = vmatpush1.bf16.msra.mxu0 %v801
    %1014 = vmatprep.subr.bf16.mxu0 %v806
    %1015 = vmatpush1.bf16.msra.mxu0 %v805
    %1016 = vmatprep.subr.bf16.mxu0 %v810
    %1017 = vmatpush1.bf16.msra.mxu0 %v809
    %1018 = vmatprep.subr.bf16.mxu0 %v814
    %1019 = vmatpush1.bf16.msra.mxu0 %v813
    %1020 = vmatprep.subr.bf16.mxu0 %v818
    %1021 = vmatpush1.bf16.msra.mxu0 %v817
    %1022 = vmatprep.mubr.bf16.mxu0 %v304
    %1023 = vmatmul.mubr.bf16.gmra.mrb[0].mxu0 %v303
    %v1024 = vpop.f32.mrb[0].mxu0
    %v1025 = vadd.f32 %v984, %v1024
    %v1026 = vpop.f32.mrb[0].mxu0
    %v1027 = vadd.f32 %v986, %v1026
    %v1028 = vpop.f32.mrb[0].mxu0
    %v1029 = vpop.f32.mrb[0].mxu0
    %1030 = vdwg.mxu0
    %1031 = vmatprep.subr.bf16.mxu0 %v696
    %1032 = vmatpush1.bf16.msra.mxu0 %v695
    %1033 = vmatprep.subr.bf16.mxu0 %v700
    %1034 = vmatpush1.bf16.msra.mxu0 %v699
    %1035 = vmatprep.subr.bf16.mxu0 %v704
    %1036 = vmatpush1.bf16.msra.mxu0 %v703
    %1037 = vmatprep.subr.bf16.mxu0 %v708
    %1038 = vmatpush1.bf16.msra.mxu0 %v707
    %1039 = vmatprep.subr.bf16.mxu0 %v712
    %1040 = vmatpush1.bf16.msra.mxu0 %v711
    %1041 = vmatprep.subr.bf16.mxu0 %v716
    %1042 = vmatpush1.bf16.msra.mxu0 %v715
    %1043 = vmatprep.subr.bf16.mxu0 %v720
    %1044 = vmatpush1.bf16.msra.mxu0 %v719
    %1045 = vmatprep.subr.bf16.mxu0 %v724
    %1046 = vmatpush1.bf16.msra.mxu0 %v723
    %1047 = vmatprep.subr.bf16.mxu0 %v728
    %1048 = vmatpush1.bf16.msra.mxu0 %v727
    %1049 = vmatprep.subr.bf16.mxu0 %v732
    %1050 = vmatpush1.bf16.msra.mxu0 %v731
    %1051 = vmatprep.subr.bf16.mxu0 %v736
    %1052 = vmatpush1.bf16.msra.mxu0 %v735
    %1053 = vmatprep.subr.bf16.mxu0 %v740
    %1054 = vmatpush1.bf16.msra.mxu0 %v739
    %1055 = vmatprep.subr.bf16.mxu0 %v744
    %1056 = vmatpush1.bf16.msra.mxu0 %v743
    %1057 = vmatprep.subr.bf16.mxu0 %v748
    %1058 = vmatpush1.bf16.msra.mxu0 %v747
    %1059 = vmatprep.subr.bf16.mxu0 %v752
    %1060 = vmatpush1.bf16.msra.mxu0 %v751
    %1061 = vmatprep.subr.bf16.mxu0 %v756
    %1062 = vmatpush1.bf16.msra.mxu0 %v755
    %1063 = vmatprep.mubr.bf16.mxu0 %v302
    %1064 = vmatmul.mubr.bf16.gmra.mrb[0].mxu0 %v295
    %v1065 = vpop.f32.mrb[0].mxu0
    %v1066 = vadd.f32 %v271, %v1065
    %v1067 = vpop.f32.mrb[0].mxu0
    %v1068 = vadd.f32 %v275, %v1067
    %v1069 = vpop.f32.mrb[0].mxu0
    %v1070 = vpop.f32.mrb[0].mxu0
    %1071 = vdwg.mxu0
    %1072 = vmatprep.subr.bf16.mxu0 %v760
    %1073 = vmatpush1.bf16.msra.mxu0 %v759
    %1074 = vmatprep.subr.bf16.mxu0 %v764
    %1075 = vmatpush1.bf16.msra.mxu0 %v763
    %1076 = vmatprep.subr.bf16.mxu0 %v768
    %1077 = vmatpush1.bf16.msra.mxu0 %v767
    %1078 = vmatprep.subr.bf16.mxu0 %v772
    %1079 = vmatpush1.bf16.msra.mxu0 %v771
    %1080 = vmatprep.subr.bf16.mxu0 %v776
    %1081 = vmatpush1.bf16.msra.mxu0 %v775
    %1082 = vmatprep.subr.bf16.mxu0 %v780
    %1083 = vmatpush1.bf16.msra.mxu0 %v779
    %1084 = vmatprep.subr.bf16.mxu0 %v784
    %1085 = vmatpush1.bf16.msra.mxu0 %v783
    %1086 = vmatprep.subr.bf16.mxu0 %v788
    %1087 = vmatpush1.bf16.msra.mxu0 %v787
    %1088 = vmatprep.subr.bf16.mxu0 %v792
    %1089 = vmatpush1.bf16.msra.mxu0 %v791
    %1090 = vmatprep.subr.bf16.mxu0 %v796
    %1091 = vmatpush1.bf16.msra.mxu0 %v795
    %1092 = vmatprep.subr.bf16.mxu0 %v800
    %1093 = vmatpush1.bf16.msra.mxu0 %v799
    %1094 = vmatprep.subr.bf16.mxu0 %v804
    %1095 = vmatpush1.bf16.msra.mxu0 %v803
    %1096 = vmatprep.subr.bf16.mxu0 %v808
    %1097 = vmatpush1.bf16.msra.mxu0 %v807
    %1098 = vmatprep.subr.bf16.mxu0 %v812
    %1099 = vmatpush1.bf16.msra.mxu0 %v811
    %1100 = vmatprep.subr.bf16.mxu0 %v816
    %1101 = vmatpush1.bf16.msra.mxu0 %v815
    %1102 = vmatprep.subr.bf16.mxu0 %v820
    %1103 = vmatpush1.bf16.msra.mxu0 %v819
    %1104 = vmatprep.mubr.bf16.mxu0 %v304
    %1105 = vmatmul.mubr.bf16.gmra.mrb[0].mxu0 %v303
    %v1106 = vpop.f32.mrb[0].mxu0
    %v1107 = vadd.f32 %v1066, %v1106
    %v1108 = vpop.f32.mrb[0].mxu0
    %v1109 = vadd.f32 %v1068, %v1108
    %v1110 = vpop.f32.mrb[0].mxu0
    %v1111 = vpop.f32.mrb[0].mxu0
    %1112 = vdwg.mxu0
    %v1113 = vmax.f32 %v1025, 0.0
    %v1114 = vmax.f32 %v1027, 0.0
    %v1115 = vmax.f32 %v1107, 0.0
    %v1116 = vmax.f32 %v1109, 0.0
    %v1117 = vpack.c.bf16 %v1113, %v1113
    %v1118 = vpack.c.bf16 %v1114, %v1114
    %v1119 = vpack.c.bf16 %v1115, %v1115
    %v1120 = vpack.c.bf16 %v1116, %v1116
    %v1121 = vld [vmem:[#allocation6] sm:$0xff]
    %v1122 = vld [vmem:[#allocation6 + $0x8] sm:$0xff]
    %v1123 = vld [vmem:[#allocation6 + $0x10] sm:$0xff]
    %v1124 = vld [vmem:[#allocation6 + $0x18] sm:$0xff]
    %v1125 = vld [vmem:[#allocation6 + $0x20] sm:$0xff]
    %v1126 = vld [vmem:[#allocation6 + $0x28] sm:$0xff]
    %v1127 = vld [vmem:[#allocation6 + $0x30] sm:$0xff]
    %v1128 = vld [vmem:[#allocation6 + $0x38] sm:$0xff]
    %v1129 = vld [vmem:[#allocation6 + $0x40] sm:$0xff]
    %v1130 = vld [vmem:[#allocation6 + $0x48] sm:$0xff]
    %v1131 = vld [vmem:[#allocation6 + $0x50] sm:$0xff]
    %v1132 = vld [vmem:[#allocation6 + $0x58] sm:$0xff]
    %v1133 = vld [vmem:[#allocation6 + $0x60] sm:$0xff]
    %v1134 = vld [vmem:[#allocation6 + $0x68] sm:$0xff]
    %v1135 = vld [vmem:[#allocation6 + $0x70] sm:$0xff]
    %v1136 = vld [vmem:[#allocation6 + $0x78] sm:$0xff]
    %v1137 = vld [vmem:[#allocation6 + $0x80] sm:$0xff]
    %v1138 = vld [vmem:[#allocation6 + $0x88] sm:$0xff]
    %v1139 = vld [vmem:[#allocation6 + $0x90] sm:$0xff]
    %v1140 = vld [vmem:[#allocation6 + $0x98] sm:$0xff]
    %v1141 = vld [vmem:[#allocation6 + $0xa0] sm:$0xff]
    %v1142 = vld [vmem:[#allocation6 + $0xa8] sm:$0xff]
    %v1143 = vld [vmem:[#allocation6 + $0xb0] sm:$0xff]
    %v1144 = vld [vmem:[#allocation6 + $0xb8] sm:$0xff]
    %v1145 = vld [vmem:[#allocation6 + $0xc0] sm:$0xff]
    %v1146 = vld [vmem:[#allocation6 + $0xc8] sm:$0xff]
    %v1147 = vld [vmem:[#allocation6 + $0xd0] sm:$0xff]
    %v1148 = vld [vmem:[#allocation6 + $0xd8] sm:$0xff]
    %v1149 = vld [vmem:[#allocation6 + $0xe0] sm:$0xff]
    %v1150 = vld [vmem:[#allocation6 + $0xe8] sm:$0xff]
    %v1151 = vld [vmem:[#allocation6 + $0xf0] sm:$0xff]
    %v1152 = vld [vmem:[#allocation6 + $0xf8] sm:$0xff]
    %v1153 = vld [vmem:[#allocation6 + $0x100] sm:$0xff]
    %v1154 = vld [vmem:[#allocation6 + $0x108] sm:$0xff]
    %v1155 = vld [vmem:[#allocation6 + $0x110] sm:$0xff]
    %v1156 = vld [vmem:[#allocation6 + $0x118] sm:$0xff]
    %v1157 = vld [vmem:[#allocation6 + $0x120] sm:$0xff]
    %v1158 = vld [vmem:[#allocation6 + $0x128] sm:$0xff]
    %v1159 = vld [vmem:[#allocation6 + $0x130] sm:$0xff]
    %v1160 = vld [vmem:[#allocation6 + $0x138] sm:$0xff]
    %v1161 = vld [vmem:[#allocation6 + $0x140] sm:$0xff]
    %v1162 = vld [vmem:[#allocation6 + $0x148] sm:$0xff]
    %v1163 = vld [vmem:[#allocation6 + $0x150] sm:$0xff]
    %v1164 = vld [vmem:[#allocation6 + $0x158] sm:$0xff]
    %v1165 = vld [vmem:[#allocation6 + $0x160] sm:$0xff]
    %v1166 = vld [vmem:[#allocation6 + $0x168] sm:$0xff]
    %v1167 = vld [vmem:[#allocation6 + $0x170] sm:$0xff]
    %v1168 = vld [vmem:[#allocation6 + $0x178] sm:$0xff]
    %v1169 = vld [vmem:[#allocation6 + $0x180] sm:$0xff]
    %v1170 = vld [vmem:[#allocation6 + $0x188] sm:$0xff]
    %v1171 = vld [vmem:[#allocation6 + $0x190] sm:$0xff]
    %v1172 = vld [vmem:[#allocation6 + $0x198] sm:$0xff]
    %v1173 = vld [vmem:[#allocation6 + $0x1a0] sm:$0xff]
    %v1174 = vld [vmem:[#allocation6 + $0x1a8] sm:$0xff]
    %v1175 = vld [vmem:[#allocation6 + $0x1b0] sm:$0xff]
    %v1176 = vld [vmem:[#allocation6 + $0x1b8] sm:$0xff]
    %v1177 = vld [vmem:[#allocation6 + $0x1c0] sm:$0xff]
    %v1178 = vld [vmem:[#allocation6 + $0x1c8] sm:$0xff]
    %v1179 = vld [vmem:[#allocation6 + $0x1d0] sm:$0xff]
    %v1180 = vld [vmem:[#allocation6 + $0x1d8] sm:$0xff]
    %v1181 = vld [vmem:[#allocation6 + $0x1e0] sm:$0xff]
    %v1182 = vld [vmem:[#allocation6 + $0x1e8] sm:$0xff]
    %v1183 = vld [vmem:[#allocation6 + $0x1f0] sm:$0xff]
    %v1184 = vld [vmem:[#allocation6 + $0x1f8] sm:$0xff]
    %v1185 = vld [vmem:[#allocation6 + $0x200] sm:$0xff]
    %v1186 = vld [vmem:[#allocation6 + $0x208] sm:$0xff]
    %v1187 = vld [vmem:[#allocation6 + $0x210] sm:$0xff]
    %v1188 = vld [vmem:[#allocation6 + $0x218] sm:$0xff]
    %v1189 = vld [vmem:[#allocation6 + $0x220] sm:$0xff]
    %v1190 = vld [vmem:[#allocation6 + $0x228] sm:$0xff]
    %v1191 = vld [vmem:[#allocation6 + $0x230] sm:$0xff]
    %v1192 = vld [vmem:[#allocation6 + $0x238] sm:$0xff]
    %v1193 = vld [vmem:[#allocation6 + $0x240] sm:$0xff]
    %v1194 = vld [vmem:[#allocation6 + $0x248] sm:$0xff]
    %v1195 = vld [vmem:[#allocation6 + $0x250] sm:$0xff]
    %v1196 = vld [vmem:[#allocation6 + $0x258] sm:$0xff]
    %v1197 = vld [vmem:[#allocation6 + $0x260] sm:$0xff]
    %v1198 = vld [vmem:[#allocation6 + $0x268] sm:$0xff]
    %v1199 = vld [vmem:[#allocation6 + $0x270] sm:$0xff]
    %v1200 = vld [vmem:[#allocation6 + $0x278] sm:$0xff]
    %v1201 = vld [vmem:[#allocation6 + $0x280] sm:$0xff]
    %v1202 = vld [vmem:[#allocation6 + $0x288] sm:$0xff]
    %v1203 = vld [vmem:[#allocation6 + $0x290] sm:$0xff]
    %v1204 = vld [vmem:[#allocation6 + $0x298] sm:$0xff]
    %v1205 = vld [vmem:[#allocation6 + $0x2a0] sm:$0xff]
    %v1206 = vld [vmem:[#allocation6 + $0x2a8] sm:$0xff]
    %v1207 = vld [vmem:[#allocation6 + $0x2b0] sm:$0xff]
    %v1208 = vld [vmem:[#allocation6 + $0x2b8] sm:$0xff]
    %v1209 = vld [vmem:[#allocation6 + $0x2c0] sm:$0xff]
    %v1210 = vld [vmem:[#allocation6 + $0x2c8] sm:$0xff]
    %v1211 = vld [vmem:[#allocation6 + $0x2d0] sm:$0xff]
    %v1212 = vld [vmem:[#allocation6 + $0x2d8] sm:$0xff]
    %v1213 = vld [vmem:[#allocation6 + $0x2e0] sm:$0xff]
    %v1214 = vld [vmem:[#allocation6 + $0x2e8] sm:$0xff]
    %v1215 = vld [vmem:[#allocation6 + $0x2f0] sm:$0xff]
    %v1216 = vld [vmem:[#allocation6 + $0x2f8] sm:$0xff]
    %v1217 = vld [vmem:[#allocation6 + $0x300] sm:$0xff]
    %v1218 = vld [vmem:[#allocation6 + $0x308] sm:$0xff]
    %v1219 = vld [vmem:[#allocation6 + $0x310] sm:$0xff]
    %v1220 = vld [vmem:[#allocation6 + $0x318] sm:$0xff]
    %v1221 = vld [vmem:[#allocation6 + $0x320] sm:$0xff]
    %v1222 = vld [vmem:[#allocation6 + $0x328] sm:$0xff]
    %v1223 = vld [vmem:[#allocation6 + $0x330] sm:$0xff]
    %v1224 = vld [vmem:[#allocation6 + $0x338] sm:$0xff]
    %v1225 = vld [vmem:[#allocation6 + $0x340] sm:$0xff]
    %v1226 = vld [vmem:[#allocation6 + $0x348] sm:$0xff]
    %v1227 = vld [vmem:[#allocation6 + $0x350] sm:$0xff]
    %v1228 = vld [vmem:[#allocation6 + $0x358] sm:$0xff]
    %v1229 = vld [vmem:[#allocation6 + $0x360] sm:$0xff]
    %v1230 = vld [vmem:[#allocation6 + $0x368] sm:$0xff]
    %v1231 = vld [vmem:[#allocation6 + $0x370] sm:$0xff]
    %v1232 = vld [vmem:[#allocation6 + $0x378] sm:$0xff]
    %v1233 = vld [vmem:[#allocation6 + $0x380] sm:$0xff]
    %v1234 = vld [vmem:[#allocation6 + $0x388] sm:$0xff]
    %v1235 = vld [vmem:[#allocation6 + $0x390] sm:$0xff]
    %v1236 = vld [vmem:[#allocation6 + $0x398] sm:$0xff]
    %v1237 = vld [vmem:[#allocation6 + $0x3a0] sm:$0xff]
    %v1238 = vld [vmem:[#allocation6 + $0x3a8] sm:$0xff]
    %v1239 = vld [vmem:[#allocation6 + $0x3b0] sm:$0xff]
    %v1240 = vld [vmem:[#allocation6 + $0x3b8] sm:$0xff]
    %v1241 = vld [vmem:[#allocation6 + $0x3c0] sm:$0xff]
    %v1242 = vld [vmem:[#allocation6 + $0x3c8] sm:$0xff]
    %v1243 = vld [vmem:[#allocation6 + $0x3d0] sm:$0xff]
    %v1244 = vld [vmem:[#allocation6 + $0x3d8] sm:$0xff]
    %v1245 = vld [vmem:[#allocation6 + $0x3e0] sm:$0xff]
    %v1246 = vld [vmem:[#allocation6 + $0x3e8] sm:$0xff]
    %v1247 = vld [vmem:[#allocation6 + $0x3f0] sm:$0xff]
    %v1248 = vld [vmem:[#allocation6 + $0x3f8] sm:$0xff]
    %v1249 = vld [vmem:[%s8 + $0xc] sm:$0xf]
    %v1251 = vlaneseq
    %v1252 = vshrl.u32 %v1251, 7
    %v1253 = vsub.s32 0, %v1252
    %v1254 = vrot.slane %v1249, %v1253
    %v1255 = vlaneseq
    %v1256 = vshrl.u32 %v1255, 7
    %v1257 = vsub.s32 1, %v1256
    %v1258 = vrot.slane %v1249, %v1257
    %v1259 = vlaneseq
    %v1260 = vshrl.u32 %v1259, 7
    %v1261 = vsub.s32 2, %v1260
    %v1262 = vrot.slane %v1249, %v1261
    %v1263 = vlaneseq
    %v1264 = vshrl.u32 %v1263, 7
    %v1265 = vsub.s32 3, %v1264
    %v1266 = vrot.slane %v1249, %v1265
    %v1399 = vunpack.c.l.b16 %v1121
    %v1400 = vunpack.c.h.b16 %v1121
    %v1401 = vunpack.c.l.b16 %v1122
    %v1402 = vunpack.c.h.b16 %v1122
    %v1403 = vunpack.c.l.b16 %v1123
    %v1404 = vunpack.c.h.b16 %v1123
    %v1405 = vunpack.c.l.b16 %v1124
    %v1406 = vunpack.c.h.b16 %v1124
    %v1407 = vunpack.c.l.b16 %v1125
    %v1408 = vunpack.c.h.b16 %v1125
    %v1409 = vunpack.c.l.b16 %v1126
    %v1410 = vunpack.c.h.b16 %v1126
    %v1411 = vunpack.c.l.b16 %v1127
    %v1412 = vunpack.c.h.b16 %v1127
    %v1413 = vunpack.c.l.b16 %v1128
    %v1414 = vunpack.c.h.b16 %v1128
    %v1415 = vunpack.c.l.b16 %v1129
    %v1416 = vunpack.c.h.b16 %v1129
    %v1417 = vunpack.c.l.b16 %v1130
    %v1418 = vunpack.c.h.b16 %v1130
    %v1419 = vunpack.c.l.b16 %v1131
    %v1420 = vunpack.c.h.b16 %v1131
    %v1421 = vunpack.c.l.b16 %v1132
    %v1422 = vunpack.c.h.b16 %v1132
    %v1423 = vunpack.c.l.b16 %v1133
    %v1424 = vunpack.c.h.b16 %v1133
    %v1425 = vunpack.c.l.b16 %v1134
    %v1426 = vunpack.c.h.b16 %v1134
    %v1427 = vunpack.c.l.b16 %v1135
    %v1428 = vunpack.c.h.b16 %v1135
    %v1429 = vunpack.c.l.b16 %v1136
    %v1430 = vunpack.c.h.b16 %v1136
    %v1431 = vunpack.c.l.b16 %v1137
    %v1432 = vunpack.c.h.b16 %v1137
    %v1433 = vunpack.c.l.b16 %v1138
    %v1434 = vunpack.c.h.b16 %v1138
    %v1435 = vunpack.c.l.b16 %v1139
    %v1436 = vunpack.c.h.b16 %v1139
    %v1437 = vunpack.c.l.b16 %v1140
    %v1438 = vunpack.c.h.b16 %v1140
    %v1439 = vunpack.c.l.b16 %v1141
    %v1440 = vunpack.c.h.b16 %v1141
    %v1441 = vunpack.c.l.b16 %v1142
    %v1442 = vunpack.c.h.b16 %v1142
    %v1443 = vunpack.c.l.b16 %v1143
    %v1444 = vunpack.c.h.b16 %v1143
    %v1445 = vunpack.c.l.b16 %v1144
    %v1446 = vunpack.c.h.b16 %v1144
    %v1447 = vunpack.c.l.b16 %v1145
    %v1448 = vunpack.c.h.b16 %v1145
    %v1449 = vunpack.c.l.b16 %v1146
    %v1450 = vunpack.c.h.b16 %v1146
    %v1451 = vunpack.c.l.b16 %v1147
    %v1452 = vunpack.c.h.b16 %v1147
    %v1453 = vunpack.c.l.b16 %v1148
    %v1454 = vunpack.c.h.b16 %v1148
    %v1455 = vunpack.c.l.b16 %v1149
    %v1456 = vunpack.c.h.b16 %v1149
    %v1457 = vunpack.c.l.b16 %v1150
    %v1458 = vunpack.c.h.b16 %v1150
    %v1459 = vunpack.c.l.b16 %v1151
    %v1460 = vunpack.c.h.b16 %v1151
    %v1461 = vunpack.c.l.b16 %v1152
    %v1462 = vunpack.c.h.b16 %v1152
    %v1463 = vunpack.c.l.b16 %v1153
    %v1464 = vunpack.c.h.b16 %v1153
    %v1465 = vunpack.c.l.b16 %v1154
    %v1466 = vunpack.c.h.b16 %v1154
    %v1467 = vunpack.c.l.b16 %v1155
    %v1468 = vunpack.c.h.b16 %v1155
    %v1469 = vunpack.c.l.b16 %v1156
    %v1470 = vunpack.c.h.b16 %v1156
    %v1471 = vunpack.c.l.b16 %v1157
    %v1472 = vunpack.c.h.b16 %v1157
    %v1473 = vunpack.c.l.b16 %v1158
    %v1474 = vunpack.c.h.b16 %v1158
    %v1475 = vunpack.c.l.b16 %v1159
    %v1476 = vunpack.c.h.b16 %v1159
    %v1477 = vunpack.c.l.b16 %v1160
    %v1478 = vunpack.c.h.b16 %v1160
    %v1479 = vunpack.c.l.b16 %v1161
    %v1480 = vunpack.c.h.b16 %v1161
    %v1481 = vunpack.c.l.b16 %v1162
    %v1482 = vunpack.c.h.b16 %v1162
    %v1483 = vunpack.c.l.b16 %v1163
    %v1484 = vunpack.c.h.b16 %v1163
    %v1485 = vunpack.c.l.b16 %v1164
    %v1486 = vunpack.c.h.b16 %v1164
    %v1487 = vunpack.c.l.b16 %v1165
    %v1488 = vunpack.c.h.b16 %v1165
    %v1489 = vunpack.c.l.b16 %v1166
    %v1490 = vunpack.c.h.b16 %v1166
    %v1491 = vunpack.c.l.b16 %v1167
    %v1492 = vunpack.c.h.b16 %v1167
    %v1493 = vunpack.c.l.b16 %v1168
    %v1494 = vunpack.c.h.b16 %v1168
    %v1495 = vunpack.c.l.b16 %v1169
    %v1496 = vunpack.c.h.b16 %v1169
    %v1497 = vunpack.c.l.b16 %v1170
    %v1498 = vunpack.c.h.b16 %v1170
    %v1499 = vunpack.c.l.b16 %v1171
    %v1500 = vunpack.c.h.b16 %v1171
    %v1501 = vunpack.c.l.b16 %v1172
    %v1502 = vunpack.c.h.b16 %v1172
    %v1503 = vunpack.c.l.b16 %v1173
    %v1504 = vunpack.c.h.b16 %v1173
    %v1505 = vunpack.c.l.b16 %v1174
    %v1506 = vunpack.c.h.b16 %v1174
    %v1507 = vunpack.c.l.b16 %v1175
    %v1508 = vunpack.c.h.b16 %v1175
    %v1509 = vunpack.c.l.b16 %v1176
    %v1510 = vunpack.c.h.b16 %v1176
    %v1511 = vunpack.c.l.b16 %v1177
    %v1512 = vunpack.c.h.b16 %v1177
    %v1513 = vunpack.c.l.b16 %v1178
    %v1514 = vunpack.c.h.b16 %v1178
    %v1515 = vunpack.c.l.b16 %v1179
    %v1516 = vunpack.c.h.b16 %v1179
    %v1517 = vunpack.c.l.b16 %v1180
    %v1518 = vunpack.c.h.b16 %v1180
    %v1519 = vunpack.c.l.b16 %v1181
    %v1520 = vunpack.c.h.b16 %v1181
    %v1521 = vunpack.c.l.b16 %v1182
    %v1522 = vunpack.c.h.b16 %v1182
    %v1523 = vunpack.c.l.b16 %v1183
    %v1524 = vunpack.c.h.b16 %v1183
    %v1525 = vunpack.c.l.b16 %v1184
    %v1526 = vunpack.c.h.b16 %v1184
    %v1527 = vunpack.c.l.b16 %v1185
    %v1528 = vunpack.c.h.b16 %v1185
    %v1529 = vunpack.c.l.b16 %v1186
    %v1530 = vunpack.c.h.b16 %v1186
    %v1531 = vunpack.c.l.b16 %v1187
    %v1532 = vunpack.c.h.b16 %v1187
    %v1533 = vunpack.c.l.b16 %v1188
    %v1534 = vunpack.c.h.b16 %v1188
    %v1535 = vunpack.c.l.b16 %v1189
    %v1536 = vunpack.c.h.b16 %v1189
    %v1537 = vunpack.c.l.b16 %v1190
    %v1538 = vunpack.c.h.b16 %v1190
    %v1539 = vunpack.c.l.b16 %v1191
    %v1540 = vunpack.c.h.b16 %v1191
    %v1541 = vunpack.c.l.b16 %v1192
    %v1542 = vunpack.c.h.b16 %v1192
    %v1543 = vunpack.c.l.b16 %v1193
    %v1544 = vunpack.c.h.b16 %v1193
    %v1545 = vunpack.c.l.b16 %v1194
    %v1546 = vunpack.c.h.b16 %v1194
    %v1547 = vunpack.c.l.b16 %v1195
    %v1548 = vunpack.c.h.b16 %v1195
    %v1549 = vunpack.c.l.b16 %v1196
    %v1550 = vunpack.c.h.b16 %v1196
    %v1551 = vunpack.c.l.b16 %v1197
    %v1552 = vunpack.c.h.b16 %v1197
    %v1553 = vunpack.c.l.b16 %v1198
    %v1554 = vunpack.c.h.b16 %v1198
    %v1555 = vunpack.c.l.b16 %v1199
    %v1556 = vunpack.c.h.b16 %v1199
    %v1557 = vunpack.c.l.b16 %v1200
    %v1558 = vunpack.c.h.b16 %v1200
    %v1559 = vunpack.c.l.b16 %v1201
    %v1560 = vunpack.c.h.b16 %v1201
    %v1561 = vunpack.c.l.b16 %v1202
    %v1562 = vunpack.c.h.b16 %v1202
    %v1563 = vunpack.c.l.b16 %v1203
    %v1564 = vunpack.c.h.b16 %v1203
    %v1565 = vunpack.c.l.b16 %v1204
    %v1566 = vunpack.c.h.b16 %v1204
    %v1567 = vunpack.c.l.b16 %v1205
    %v1568 = vunpack.c.h.b16 %v1205
    %v1569 = vunpack.c.l.b16 %v1206
    %v1570 = vunpack.c.h.b16 %v1206
    %v1571 = vunpack.c.l.b16 %v1207
    %v1572 = vunpack.c.h.b16 %v1207
    %v1573 = vunpack.c.l.b16 %v1208
    %v1574 = vunpack.c.h.b16 %v1208
    %v1575 = vunpack.c.l.b16 %v1209
    %v1576 = vunpack.c.h.b16 %v1209
    %v1577 = vunpack.c.l.b16 %v1210
    %v1578 = vunpack.c.h.b16 %v1210
    %v1579 = vunpack.c.l.b16 %v1211
    %v1580 = vunpack.c.h.b16 %v1211
    %v1581 = vunpack.c.l.b16 %v1212
    %v1582 = vunpack.c.h.b16 %v1212
    %v1583 = vunpack.c.l.b16 %v1213
    %v1584 = vunpack.c.h.b16 %v1213
    %v1585 = vunpack.c.l.b16 %v1214
    %v1586 = vunpack.c.h.b16 %v1214
    %v1587 = vunpack.c.l.b16 %v1215
    %v1588 = vunpack.c.h.b16 %v1215
    %v1589 = vunpack.c.l.b16 %v1216
    %v1590 = vunpack.c.h.b16 %v1216
    %v1591 = vunpack.c.l.b16 %v1217
    %v1592 = vunpack.c.h.b16 %v1217
    %v1593 = vunpack.c.l.b16 %v1218
    %v1594 = vunpack.c.h.b16 %v1218
    %v1595 = vunpack.c.l.b16 %v1219
    %v1596 = vunpack.c.h.b16 %v1219
    %v1597 = vunpack.c.l.b16 %v1220
    %v1598 = vunpack.c.h.b16 %v1220
    %v1599 = vunpack.c.l.b16 %v1221
    %v1600 = vunpack.c.h.b16 %v1221
    %v1601 = vunpack.c.l.b16 %v1222
    %v1602 = vunpack.c.h.b16 %v1222
    %v1603 = vunpack.c.l.b16 %v1223
    %v1604 = vunpack.c.h.b16 %v1223
    %v1605 = vunpack.c.l.b16 %v1224
    %v1606 = vunpack.c.h.b16 %v1224
    %v1607 = vunpack.c.l.b16 %v1225
    %v1608 = vunpack.c.h.b16 %v1225
    %v1609 = vunpack.c.l.b16 %v1226
    %v1610 = vunpack.c.h.b16 %v1226
    %v1611 = vunpack.c.l.b16 %v1227
    %v1612 = vunpack.c.h.b16 %v1227
    %v1613 = vunpack.c.l.b16 %v1228
    %v1614 = vunpack.c.h.b16 %v1228
    %v1615 = vunpack.c.l.b16 %v1229
    %v1616 = vunpack.c.h.b16 %v1229
    %v1617 = vunpack.c.l.b16 %v1230
    %v1618 = vunpack.c.h.b16 %v1230
    %v1619 = vunpack.c.l.b16 %v1231
    %v1620 = vunpack.c.h.b16 %v1231
    %v1621 = vunpack.c.l.b16 %v1232
    %v1622 = vunpack.c.h.b16 %v1232
    %v1623 = vunpack.c.l.b16 %v1233
    %v1624 = vunpack.c.h.b16 %v1233
    %v1625 = vunpack.c.l.b16 %v1234
    %v1626 = vunpack.c.h.b16 %v1234
    %v1627 = vunpack.c.l.b16 %v1235
    %v1628 = vunpack.c.h.b16 %v1235
    %v1629 = vunpack.c.l.b16 %v1236
    %v1630 = vunpack.c.h.b16 %v1236
    %v1631 = vunpack.c.l.b16 %v1237
    %v1632 = vunpack.c.h.b16 %v1237
    %v1633 = vunpack.c.l.b16 %v1238
    %v1634 = vunpack.c.h.b16 %v1238
    %v1635 = vunpack.c.l.b16 %v1239
    %v1636 = vunpack.c.h.b16 %v1239
    %v1637 = vunpack.c.l.b16 %v1240
    %v1638 = vunpack.c.h.b16 %v1240
    %v1639 = vunpack.c.l.b16 %v1241
    %v1640 = vunpack.c.h.b16 %v1241
    %v1641 = vunpack.c.l.b16 %v1242
    %v1642 = vunpack.c.h.b16 %v1242
    %v1643 = vunpack.c.l.b16 %v1243
    %v1644 = vunpack.c.h.b16 %v1243
    %v1645 = vunpack.c.l.b16 %v1244
    %v1646 = vunpack.c.h.b16 %v1244
    %v1647 = vunpack.c.l.b16 %v1245
    %v1648 = vunpack.c.h.b16 %v1245
    %v1649 = vunpack.c.l.b16 %v1246
    %v1650 = vunpack.c.h.b16 %v1246
    %v1651 = vunpack.c.l.b16 %v1247
    %v1652 = vunpack.c.h.b16 %v1247
    %v1653 = vunpack.c.l.b16 %v1248
    %v1654 = vunpack.c.h.b16 %v1248
    %v1655 = vpack.c.b16 %v1403, %v1399
    %v1656 = vpack.c.b16 %v1404, %v1400
    %v1657 = vpack.c.b16 %v1405, %v1401
    %v1658 = vpack.c.b16 %v1406, %v1402
    %v1659 = vpack.c.b16 %v1411, %v1407
    %v1660 = vpack.c.b16 %v1412, %v1408
    %v1661 = vpack.c.b16 %v1413, %v1409
    %v1662 = vpack.c.b16 %v1414, %v1410
    %v1663 = vpack.c.b16 %v1419, %v1415
    %v1664 = vpack.c.b16 %v1420, %v1416
    %v1665 = vpack.c.b16 %v1421, %v1417
    %v1666 = vpack.c.b16 %v1422, %v1418
    %v1667 = vpack.c.b16 %v1427, %v1423
    %v1668 = vpack.c.b16 %v1428, %v1424
    %v1669 = vpack.c.b16 %v1429, %v1425
    %v1670 = vpack.c.b16 %v1430, %v1426
    %v1671 = vpack.c.b16 %v1435, %v1431
    %v1672 = vpack.c.b16 %v1436, %v1432
    %v1673 = vpack.c.b16 %v1437, %v1433
    %v1674 = vpack.c.b16 %v1438, %v1434
    %v1675 = vpack.c.b16 %v1443, %v1439
    %v1676 = vpack.c.b16 %v1444, %v1440
    %v1677 = vpack.c.b16 %v1445, %v1441
    %v1678 = vpack.c.b16 %v1446, %v1442
    %v1679 = vpack.c.b16 %v1451, %v1447
    %v1680 = vpack.c.b16 %v1452, %v1448
    %v1681 = vpack.c.b16 %v1453, %v1449
    %v1682 = vpack.c.b16 %v1454, %v1450
    %v1683 = vpack.c.b16 %v1459, %v1455
    %v1684 = vpack.c.b16 %v1460, %v1456
    %v1685 = vpack.c.b16 %v1461, %v1457
    %v1686 = vpack.c.b16 %v1462, %v1458
    %v1687 = vpack.c.b16 %v1467, %v1463
    %v1688 = vpack.c.b16 %v1468, %v1464
    %v1689 = vpack.c.b16 %v1469, %v1465
    %v1690 = vpack.c.b16 %v1470, %v1466
    %v1691 = vpack.c.b16 %v1475, %v1471
    %v1692 = vpack.c.b16 %v1476, %v1472
    %v1693 = vpack.c.b16 %v1477, %v1473
    %v1694 = vpack.c.b16 %v1478, %v1474
    %v1695 = vpack.c.b16 %v1483, %v1479
    %v1696 = vpack.c.b16 %v1484, %v1480
    %v1697 = vpack.c.b16 %v1485, %v1481
    %v1698 = vpack.c.b16 %v1486, %v1482
    %v1699 = vpack.c.b16 %v1491, %v1487
    %v1700 = vpack.c.b16 %v1492, %v1488
    %v1701 = vpack.c.b16 %v1493, %v1489
    %v1702 = vpack.c.b16 %v1494, %v1490
    %v1703 = vpack.c.b16 %v1499, %v1495
    %v1704 = vpack.c.b16 %v1500, %v1496
    %v1705 = vpack.c.b16 %v1501, %v1497
    %v1706 = vpack.c.b16 %v1502, %v1498
    %v1707 = vpack.c.b16 %v1507, %v1503
    %v1708 = vpack.c.b16 %v1508, %v1504
    %v1709 = vpack.c.b16 %v1509, %v1505
    %v1710 = vpack.c.b16 %v1510, %v1506
    %v1711 = vpack.c.b16 %v1515, %v1511
    %v1712 = vpack.c.b16 %v1516, %v1512
    %v1713 = vpack.c.b16 %v1517, %v1513
    %v1714 = vpack.c.b16 %v1518, %v1514
    %v1715 = vpack.c.b16 %v1523, %v1519
    %v1716 = vpack.c.b16 %v1524, %v1520
    %v1717 = vpack.c.b16 %v1525, %v1521
    %v1718 = vpack.c.b16 %v1526, %v1522
    %v1719 = vpack.c.b16 %v1531, %v1527
    %v1720 = vpack.c.b16 %v1532, %v1528
    %v1721 = vpack.c.b16 %v1533, %v1529
    %v1722 = vpack.c.b16 %v1534, %v1530
    %v1723 = vpack.c.b16 %v1539, %v1535
    %v1724 = vpack.c.b16 %v1540, %v1536
    %v1725 = vpack.c.b16 %v1541, %v1537
    %v1726 = vpack.c.b16 %v1542, %v1538
    %v1727 = vpack.c.b16 %v1547, %v1543
    %v1728 = vpack.c.b16 %v1548, %v1544
    %v1729 = vpack.c.b16 %v1549, %v1545
    %v1730 = vpack.c.b16 %v1550, %v1546
    %v1731 = vpack.c.b16 %v1555, %v1551
    %v1732 = vpack.c.b16 %v1556, %v1552
    %v1733 = vpack.c.b16 %v1557, %v1553
    %v1734 = vpack.c.b16 %v1558, %v1554
    %v1735 = vpack.c.b16 %v1563, %v1559
    %v1736 = vpack.c.b16 %v1564, %v1560
    %v1737 = vpack.c.b16 %v1565, %v1561
    %v1738 = vpack.c.b16 %v1566, %v1562
    %v1739 = vpack.c.b16 %v1571, %v1567
    %v1740 = vpack.c.b16 %v1572, %v1568
    %v1741 = vpack.c.b16 %v1573, %v1569
    %v1742 = vpack.c.b16 %v1574, %v1570
    %v1743 = vpack.c.b16 %v1579, %v1575
    %v1744 = vpack.c.b16 %v1580, %v1576
    %v1745 = vpack.c.b16 %v1581, %v1577
    %v1746 = vpack.c.b16 %v1582, %v1578
    %v1747 = vpack.c.b16 %v1587, %v1583
    %v1748 = vpack.c.b16 %v1588, %v1584
    %v1749 = vpack.c.b16 %v1589, %v1585
    %v1750 = vpack.c.b16 %v1590, %v1586
    %v1751 = vpack.c.b16 %v1595, %v1591
    %v1752 = vpack.c.b16 %v1596, %v1592
    %v1753 = vpack.c.b16 %v1597, %v1593
    %v1754 = vpack.c.b16 %v1598, %v1594
    %v1755 = vpack.c.b16 %v1603, %v1599
    %v1756 = vpack.c.b16 %v1604, %v1600
    %v1757 = vpack.c.b16 %v1605, %v1601
    %v1758 = vpack.c.b16 %v1606, %v1602
    %v1759 = vpack.c.b16 %v1611, %v1607
    %v1760 = vpack.c.b16 %v1612, %v1608
    %v1761 = vpack.c.b16 %v1613, %v1609
    %v1762 = vpack.c.b16 %v1614, %v1610
    %v1763 = vpack.c.b16 %v1619, %v1615
    %v1764 = vpack.c.b16 %v1620, %v1616
    %v1765 = vpack.c.b16 %v1621, %v1617
    %v1766 = vpack.c.b16 %v1622, %v1618
    %v1767 = vpack.c.b16 %v1627, %v1623
    %v1768 = vpack.c.b16 %v1628, %v1624
    %v1769 = vpack.c.b16 %v1629, %v1625
    %v1770 = vpack.c.b16 %v1630, %v1626
    %v1771 = vpack.c.b16 %v1635, %v1631
    %v1772 = vpack.c.b16 %v1636, %v1632
    %v1773 = vpack.c.b16 %v1637, %v1633
    %v1774 = vpack.c.b16 %v1638, %v1634
    %v1775 = vpack.c.b16 %v1643, %v1639
    %v1776 = vpack.c.b16 %v1644, %v1640
    %v1777 = vpack.c.b16 %v1645, %v1641
    %v1778 = vpack.c.b16 %v1646, %v1642
    %v1779 = vpack.c.b16 %v1651, %v1647
    %v1780 = vpack.c.b16 %v1652, %v1648
    %v1781 = vpack.c.b16 %v1653, %v1649
    %v1782 = vpack.c.b16 %v1654, %v1650
    %1911 = vmatprep.subr.bf16.mxu0 %v1656
    %1912 = vmatpush1.bf16.msra.mxu0 %v1655
    %1913 = vmatprep.subr.bf16.mxu0 %v1660
    %1914 = vmatpush1.bf16.msra.mxu0 %v1659
    %1915 = vmatprep.subr.bf16.mxu0 %v1664
    %1916 = vmatpush1.bf16.msra.mxu0 %v1663
    %1917 = vmatprep.subr.bf16.mxu0 %v1668
    %1918 = vmatpush1.bf16.msra.mxu0 %v1667
    %1919 = vmatprep.subr.bf16.mxu0 %v1672
    %1920 = vmatpush1.bf16.msra.mxu0 %v1671
    %1921 = vmatprep.subr.bf16.mxu0 %v1676
    %1922 = vmatpush1.bf16.msra.mxu0 %v1675
    %1923 = vmatprep.subr.bf16.mxu0 %v1680
    %1924 = vmatpush1.bf16.msra.mxu0 %v1679
    %1925 = vmatprep.subr.bf16.mxu0 %v1684
    %1926 = vmatpush1.bf16.msra.mxu0 %v1683
    %1927 = vmatprep.subr.bf16.mxu0 %v1688
    %1928 = vmatpush1.bf16.msra.mxu0 %v1687
    %1929 = vmatprep.subr.bf16.mxu0 %v1692
    %1930 = vmatpush1.bf16.msra.mxu0 %v1691
    %1931 = vmatprep.subr.bf16.mxu0 %v1696
    %1932 = vmatpush1.bf16.msra.mxu0 %v1695
    %1933 = vmatprep.subr.bf16.mxu0 %v1700
    %1934 = vmatpush1.bf16.msra.mxu0 %v1699
    %1935 = vmatprep.subr.bf16.mxu0 %v1704
    %1936 = vmatpush1.bf16.msra.mxu0 %v1703
    %1937 = vmatprep.subr.bf16.mxu0 %v1708
    %1938 = vmatpush1.bf16.msra.mxu0 %v1707
    %1939 = vmatprep.subr.bf16.mxu0 %v1712
    %1940 = vmatpush1.bf16.msra.mxu0 %v1711
    %1941 = vmatprep.subr.bf16.mxu0 %v1716
    %1942 = vmatpush1.bf16.msra.mxu0 %v1715
    %1943 = vmatprep.mubr.bf16.mxu0 %v1118
    %1944 = vmatmul.mubr.bf16.gmra.mrb[0].mxu0 %v1117
    %v1945 = vpop.f32.mrb[0].mxu0
    %v1946 = vadd.f32 %v1254, %v1945
    %v1947 = vpop.f32.mrb[0].mxu0
    %v1948 = vadd.f32 %v1258, %v1947
    %v1949 = vpop.f32.mrb[0].mxu0
    %v1950 = vpop.f32.mrb[0].mxu0
    %1951 = vdwg.mxu0
    %1952 = vmatprep.subr.bf16.mxu0 %v1720
    %1953 = vmatpush1.bf16.msra.mxu0 %v1719
    %1954 = vmatprep.subr.bf16.mxu0 %v1724
    %1955 = vmatpush1.bf16.msra.mxu0 %v1723
    %1956 = vmatprep.subr.bf16.mxu0 %v1728
    %1957 = vmatpush1.bf16.msra.mxu0 %v1727
    %1958 = vmatprep.subr.bf16.mxu0 %v1732
    %1959 = vmatpush1.bf16.msra.mxu0 %v1731
    %1960 = vmatprep.subr.bf16.mxu0 %v1736
    %1961 = vmatpush1.bf16.msra.mxu0 %v1735
    %1962 = vmatprep.subr.bf16.mxu0 %v1740
    %1963 = vmatpush1.bf16.msra.mxu0 %v1739
    %1964 = vmatprep.subr.bf16.mxu0 %v1744
    %1965 = vmatpush1.bf16.msra.mxu0 %v1743
    %1966 = vmatprep.subr.bf16.mxu0 %v1748
    %1967 = vmatpush1.bf16.msra.mxu0 %v1747
    %1968 = vmatprep.subr.bf16.mxu0 %v1752
    %1969 = vmatpush1.bf16.msra.mxu0 %v1751
    %1970 = vmatprep.subr.bf16.mxu0 %v1756
    %1971 = vmatpush1.bf16.msra.mxu0 %v1755
    %1972 = vmatprep.subr.bf16.mxu0 %v1760
    %1973 = vmatpush1.bf16.msra.mxu0 %v1759
    %1974 = vmatprep.subr.bf16.mxu0 %v1764
    %1975 = vmatpush1.bf16.msra.mxu0 %v1763
    %1976 = vmatprep.subr.bf16.mxu0 %v1768
    %1977 = vmatpush1.bf16.msra.mxu0 %v1767
    %1978 = vmatprep.subr.bf16.mxu0 %v1772
    %1979 = vmatpush1.bf16.msra.mxu0 %v1771
    %1980 = vmatprep.subr.bf16.mxu0 %v1776
    %1981 = vmatpush1.bf16.msra.mxu0 %v1775
    %1982 = vmatprep.subr.bf16.mxu0 %v1780
    %1983 = vmatpush1.bf16.msra.mxu0 %v1779
    %1984 = vmatprep.mubr.bf16.mxu0 %v1120
    %1985 = vmatmul.mubr.bf16.gmra.mrb[0].mxu0 %v1119
    %v1986 = vpop.f32.mrb[0].mxu0
    %v1987 = vadd.f32 %v1946, %v1986
    %v1988 = vpop.f32.mrb[0].mxu0
    %v1989 = vadd.f32 %v1948, %v1988
    %v1990 = vpop.f32.mrb[0].mxu0
    %v1991 = vpop.f32.mrb[0].mxu0
    %1992 = vdwg.mxu0
    %1993 = vmatprep.subr.bf16.mxu0 %v1658
    %1994 = vmatpush1.bf16.msra.mxu0 %v1657
    %1995 = vmatprep.subr.bf16.mxu0 %v1662
    %1996 = vmatpush1.bf16.msra.mxu0 %v1661
    %1997 = vmatprep.subr.bf16.mxu0 %v1666
    %1998 = vmatpush1.bf16.msra.mxu0 %v1665
    %1999 = vmatprep.subr.bf16.mxu0 %v1670
    %2000 = vmatpush1.bf16.msra.mxu0 %v1669
    %2001 = vmatprep.subr.bf16.mxu0 %v1674
    %2002 = vmatpush1.bf16.msra.mxu0 %v1673
    %2003 = vmatprep.subr.bf16.mxu0 %v1678
    %2004 = vmatpush1.bf16.msra.mxu0 %v1677
    %2005 = vmatprep.subr.bf16.mxu0 %v1682
    %2006 = vmatpush1.bf16.msra.mxu0 %v1681
    %2007 = vmatprep.subr.bf16.mxu0 %v1686
    %2008 = vmatpush1.bf16.msra.mxu0 %v1685
    %2009 = vmatprep.subr.bf16.mxu0 %v1690
    %2010 = vmatpush1.bf16.msra.mxu0 %v1689
    %2011 = vmatprep.subr.bf16.mxu0 %v1694
    %2012 = vmatpush1.bf16.msra.mxu0 %v1693
    %2013 = vmatprep.subr.bf16.mxu0 %v1698
    %2014 = vmatpush1.bf16.msra.mxu0 %v1697
    %2015 = vmatprep.subr.bf16.mxu0 %v1702
    %2016 = vmatpush1.bf16.msra.mxu0 %v1701
    %2017 = vmatprep.subr.bf16.mxu0 %v1706
    %2018 = vmatpush1.bf16.msra.mxu0 %v1705
    %2019 = vmatprep.subr.bf16.mxu0 %v1710
    %2020 = vmatpush1.bf16.msra.mxu0 %v1709
    %2021 = vmatprep.subr.bf16.mxu0 %v1714
    %2022 = vmatpush1.bf16.msra.mxu0 %v1713
    %2023 = vmatprep.subr.bf16.mxu0 %v1718
    %2024 = vmatpush1.bf16.msra.mxu0 %v1717
    %2025 = vmatprep.mubr.bf16.mxu0 %v1118
    %2026 = vmatmul.mubr.bf16.gmra.mrb[0].mxu0 %v1117
    %v2027 = vpop.f32.mrb[0].mxu0
    %v2028 = vadd.f32 %v1262, %v2027
    %v2029 = vpop.f32.mrb[0].mxu0
    %v2030 = vadd.f32 %v1266, %v2029
    %v2031 = vpop.f32.mrb[0].mxu0
    %v2032 = vpop.f32.mrb[0].mxu0
    %2033 = vdwg.mxu0
    %2034 = vmatprep.subr.bf16.mxu0 %v1722
    %2035 = vmatpush1.bf16.msra.mxu0 %v1721
    %2036 = vmatprep.subr.bf16.mxu0 %v1726
    %2037 = vmatpush1.bf16.msra.mxu0 %v1725
    %2038 = vmatprep.subr.bf16.mxu0 %v1730
    %2039 = vmatpush1.bf16.msra.mxu0 %v1729
    %2040 = vmatprep.subr.bf16.mxu0 %v1734
    %2041 = vmatpush1.bf16.msra.mxu0 %v1733
    %2042 = vmatprep.subr.bf16.mxu0 %v1738
    %2043 = vmatpush1.bf16.msra.mxu0 %v1737
    %2044 = vmatprep.subr.bf16.mxu0 %v1742
    %2045 = vmatpush1.bf16.msra.mxu0 %v1741
    %2046 = vmatprep.subr.bf16.mxu0 %v1746
    %2047 = vmatpush1.bf16.msra.mxu0 %v1745
    %2048 = vmatprep.subr.bf16.mxu0 %v1750
    %2049 = vmatpush1.bf16.msra.mxu0 %v1749
    %2050 = vmatprep.subr.bf16.mxu0 %v1754
    %2051 = vmatpush1.bf16.msra.mxu0 %v1753
    %2052 = vmatprep.subr.bf16.mxu0 %v1758
    %2053 = vmatpush1.bf16.msra.mxu0 %v1757
    %2054 = vmatprep.subr.bf16.mxu0 %v1762
    %2055 = vmatpush1.bf16.msra.mxu0 %v1761
    %2056 = vmatprep.subr.bf16.mxu0 %v1766
    %2057 = vmatpush1.bf16.msra.mxu0 %v1765
    %2058 = vmatprep.subr.bf16.mxu0 %v1770
    %2059 = vmatpush1.bf16.msra.mxu0 %v1769
    %2060 = vmatprep.subr.bf16.mxu0 %v1774
    %2061 = vmatpush1.bf16.msra.mxu0 %v1773
    %2062 = vmatprep.subr.bf16.mxu0 %v1778
    %2063 = vmatpush1.bf16.msra.mxu0 %v1777
    %2064 = vmatprep.subr.bf16.mxu0 %v1782
    %2065 = vmatpush1.bf16.msra.mxu0 %v1781
    %2066 = vmatprep.mubr.bf16.mxu0 %v1120
    %2067 = vmatmul.mubr.bf16.gmra.mrb[0].mxu0 %v1119
    %v2068 = vpop.f32.mrb[0].mxu0
    %v2069 = vadd.f32 %v2028, %v2068
    %v2070 = vpop.f32.mrb[0].mxu0
    %v2071 = vadd.f32 %v2030, %v2070
    %v2072 = vpop.f32.mrb[0].mxu0
    %v2073 = vpop.f32.mrb[0].mxu0
    %2074 = vdwg.mxu0
    %v2075 = vmax.f32 %v1987, 0.0
    %v2076 = vmax.f32 %v1989, 0.0
    %v2077 = vmax.f32 %v2069, 0.0
    %v2078 = vmax.f32 %v2071, 0.0
    %v2079 = vld [vmem:[#allocation4] sm:$0xff]
    %v2080 = vld [vmem:[#allocation4 + $0x8] sm:$0xff]
    %v2081 = vld [vmem:[#allocation4 + $0x10] sm:$0xff]
    %v2082 = vld [vmem:[#allocation4 + $0x18] sm:$0xff]
    %v2083 = vld [vmem:[#allocation4 + $0x20] sm:$0xff]
    %v2084 = vld [vmem:[#allocation4 + $0x28] sm:$0xff]
    %v2085 = vld [vmem:[#allocation4 + $0x30] sm:$0xff]
    %v2086 = vld [vmem:[#allocation4 + $0x38] sm:$0xff]
    %v2087 = vld [vmem:[#allocation4 + $0x40] sm:$0xff]
    %v2088 = vld [vmem:[#allocation4 + $0x48] sm:$0xff]
    %v2089 = vld [vmem:[#allocation4 + $0x50] sm:$0xff]
    %v2090 = vld [vmem:[#allocation4 + $0x58] sm:$0xff]
    %v2091 = vld [vmem:[#allocation4 + $0x60] sm:$0xff]
    %v2092 = vld [vmem:[#allocation4 + $0x68] sm:$0xff]
    %v2093 = vld [vmem:[#allocation4 + $0x70] sm:$0xff]
    %v2094 = vld [vmem:[#allocation4 + $0x78] sm:$0xff]
    %v2095 = vld [vmem:[#allocation4 + $0x80] sm:$0xff]
    %v2096 = vld [vmem:[#allocation4 + $0x88] sm:$0xff]
    %v2097 = vld [vmem:[#allocation4 + $0x90] sm:$0xff]
    %v2098 = vld [vmem:[#allocation4 + $0x98] sm:$0xff]
    %v2099 = vld [vmem:[#allocation4 + $0xa0] sm:$0xff]
    %v2100 = vld [vmem:[#allocation4 + $0xa8] sm:$0xff]
    %v2101 = vld [vmem:[#allocation4 + $0xb0] sm:$0xff]
    %v2102 = vld [vmem:[#allocation4 + $0xb8] sm:$0xff]
    %v2103 = vld [vmem:[#allocation4 + $0xc0] sm:$0xff]
    %v2104 = vld [vmem:[#allocation4 + $0xc8] sm:$0xff]
    %v2105 = vld [vmem:[#allocation4 + $0xd0] sm:$0xff]
    %v2106 = vld [vmem:[#allocation4 + $0xd8] sm:$0xff]
    %v2107 = vld [vmem:[#allocation4 + $0xe0] sm:$0xff]
    %v2108 = vld [vmem:[#allocation4 + $0xe8] sm:$0xff]
    %v2109 = vld [vmem:[#allocation4 + $0xf0] sm:$0xff]
    %v2110 = vld [vmem:[#allocation4 + $0xf8] sm:$0xff]
    %v2111 = vld [vmem:[#allocation4 + $0x100] sm:$0xff]
    %v2112 = vld [vmem:[#allocation4 + $0x108] sm:$0xff]
    %v2113 = vld [vmem:[#allocation4 + $0x110] sm:$0xff]
    %v2114 = vld [vmem:[#allocation4 + $0x118] sm:$0xff]
    %v2115 = vld [vmem:[#allocation4 + $0x120] sm:$0xff]
    %v2116 = vld [vmem:[#allocation4 + $0x128] sm:$0xff]
    %v2117 = vld [vmem:[#allocation4 + $0x130] sm:$0xff]
    %v2118 = vld [vmem:[#allocation4 + $0x138] sm:$0xff]
    %v2119 = vld [vmem:[#allocation4 + $0x140] sm:$0xff]
    %v2120 = vld [vmem:[#allocation4 + $0x148] sm:$0xff]
    %v2121 = vld [vmem:[#allocation4 + $0x150] sm:$0xff]
    %v2122 = vld [vmem:[#allocation4 + $0x158] sm:$0xff]
    %v2123 = vld [vmem:[#allocation4 + $0x160] sm:$0xff]
    %v2124 = vld [vmem:[#allocation4 + $0x168] sm:$0xff]
    %v2125 = vld [vmem:[#allocation4 + $0x170] sm:$0xff]
    %v2126 = vld [vmem:[#allocation4 + $0x178] sm:$0xff]
    %v2127 = vld [vmem:[#allocation4 + $0x180] sm:$0xff]
    %v2128 = vld [vmem:[#allocation4 + $0x188] sm:$0xff]
    %v2129 = vld [vmem:[#allocation4 + $0x190] sm:$0xff]
    %v2130 = vld [vmem:[#allocation4 + $0x198] sm:$0xff]
    %v2131 = vld [vmem:[#allocation4 + $0x1a0] sm:$0xff]
    %v2132 = vld [vmem:[#allocation4 + $0x1a8] sm:$0xff]
    %v2133 = vld [vmem:[#allocation4 + $0x1b0] sm:$0xff]
    %v2134 = vld [vmem:[#allocation4 + $0x1b8] sm:$0xff]
    %v2135 = vld [vmem:[#allocation4 + $0x1c0] sm:$0xff]
    %v2136 = vld [vmem:[#allocation4 + $0x1c8] sm:$0xff]
    %v2137 = vld [vmem:[#allocation4 + $0x1d0] sm:$0xff]
    %v2138 = vld [vmem:[#allocation4 + $0x1d8] sm:$0xff]
    %v2139 = vld [vmem:[#allocation4 + $0x1e0] sm:$0xff]
    %v2140 = vld [vmem:[#allocation4 + $0x1e8] sm:$0xff]
    %v2141 = vld [vmem:[#allocation4 + $0x1f0] sm:$0xff]
    %v2142 = vld [vmem:[#allocation4 + $0x1f8] sm:$0xff]
    %v2143 = vld [vmem:[#allocation4 + $0x200] sm:$0xff]
    %v2144 = vld [vmem:[#allocation4 + $0x208] sm:$0xff]
    %v2145 = vld [vmem:[#allocation4 + $0x210] sm:$0xff]
    %v2146 = vld [vmem:[#allocation4 + $0x218] sm:$0xff]
    %v2147 = vld [vmem:[#allocation4 + $0x220] sm:$0xff]
    %v2148 = vld [vmem:[#allocation4 + $0x228] sm:$0xff]
    %v2149 = vld [vmem:[#allocation4 + $0x230] sm:$0xff]
    %v2150 = vld [vmem:[#allocation4 + $0x238] sm:$0xff]
    %v2151 = vld [vmem:[#allocation4 + $0x240] sm:$0xff]
    %v2152 = vld [vmem:[#allocation4 + $0x248] sm:$0xff]
    %v2153 = vld [vmem:[#allocation4 + $0x250] sm:$0xff]
    %v2154 = vld [vmem:[#allocation4 + $0x258] sm:$0xff]
    %v2155 = vld [vmem:[#allocation4 + $0x260] sm:$0xff]
    %v2156 = vld [vmem:[#allocation4 + $0x268] sm:$0xff]
    %v2157 = vld [vmem:[#allocation4 + $0x270] sm:$0xff]
    %v2158 = vld [vmem:[#allocation4 + $0x278] sm:$0xff]
    %v2159 = vld [vmem:[#allocation4 + $0x280] sm:$0xff]
    %v2160 = vld [vmem:[#allocation4 + $0x288] sm:$0xff]
    %v2161 = vld [vmem:[#allocation4 + $0x290] sm:$0xff]
    %v2162 = vld [vmem:[#allocation4 + $0x298] sm:$0xff]
    %v2163 = vld [vmem:[#allocation4 + $0x2a0] sm:$0xff]
    %v2164 = vld [vmem:[#allocation4 + $0x2a8] sm:$0xff]
    %v2165 = vld [vmem:[#allocation4 + $0x2b0] sm:$0xff]
    %v2166 = vld [vmem:[#allocation4 + $0x2b8] sm:$0xff]
    %v2167 = vld [vmem:[#allocation4 + $0x2c0] sm:$0xff]
    %v2168 = vld [vmem:[#allocation4 + $0x2c8] sm:$0xff]
    %v2169 = vld [vmem:[#allocation4 + $0x2d0] sm:$0xff]
    %v2170 = vld [vmem:[#allocation4 + $0x2d8] sm:$0xff]
    %v2171 = vld [vmem:[#allocation4 + $0x2e0] sm:$0xff]
    %v2172 = vld [vmem:[#allocation4 + $0x2e8] sm:$0xff]
    %v2173 = vld [vmem:[#allocation4 + $0x2f0] sm:$0xff]
    %v2174 = vld [vmem:[#allocation4 + $0x2f8] sm:$0xff]
    %v2175 = vld [vmem:[#allocation4 + $0x300] sm:$0xff]
    %v2176 = vld [vmem:[#allocation4 + $0x308] sm:$0xff]
    %v2177 = vld [vmem:[#allocation4 + $0x310] sm:$0xff]
    %v2178 = vld [vmem:[#allocation4 + $0x318] sm:$0xff]
    %v2179 = vld [vmem:[#allocation4 + $0x320] sm:$0xff]
    %v2180 = vld [vmem:[#allocation4 + $0x328] sm:$0xff]
    %v2181 = vld [vmem:[#allocation4 + $0x330] sm:$0xff]
    %v2182 = vld [vmem:[#allocation4 + $0x338] sm:$0xff]
    %v2183 = vld [vmem:[#allocation4 + $0x340] sm:$0xff]
    %v2184 = vld [vmem:[#allocation4 + $0x348] sm:$0xff]
    %v2185 = vld [vmem:[#allocation4 + $0x350] sm:$0xff]
    %v2186 = vld [vmem:[#allocation4 + $0x358] sm:$0xff]
    %v2187 = vld [vmem:[#allocation4 + $0x360] sm:$0xff]
    %v2188 = vld [vmem:[#allocation4 + $0x368] sm:$0xff]
    %v2189 = vld [vmem:[#allocation4 + $0x370] sm:$0xff]
    %v2190 = vld [vmem:[#allocation4 + $0x378] sm:$0xff]
    %v2191 = vld [vmem:[#allocation4 + $0x380] sm:$0xff]
    %v2192 = vld [vmem:[#allocation4 + $0x388] sm:$0xff]
    %v2193 = vld [vmem:[#allocation4 + $0x390] sm:$0xff]
    %v2194 = vld [vmem:[#allocation4 + $0x398] sm:$0xff]
    %v2195 = vld [vmem:[#allocation4 + $0x3a0] sm:$0xff]
    %v2196 = vld [vmem:[#allocation4 + $0x3a8] sm:$0xff]
    %v2197 = vld [vmem:[#allocation4 + $0x3b0] sm:$0xff]
    %v2198 = vld [vmem:[#allocation4 + $0x3b8] sm:$0xff]
    %v2199 = vld [vmem:[#allocation4 + $0x3c0] sm:$0xff]
    %v2200 = vld [vmem:[#allocation4 + $0x3c8] sm:$0xff]
    %v2201 = vld [vmem:[#allocation4 + $0x3d0] sm:$0xff]
    %v2202 = vld [vmem:[#allocation4 + $0x3d8] sm:$0xff]
    %v2203 = vld [vmem:[#allocation4 + $0x3e0] sm:$0xff]
    %v2204 = vld [vmem:[#allocation4 + $0x3e8] sm:$0xff]
    %v2205 = vld [vmem:[#allocation4 + $0x3f0] sm:$0xff]
    %v2206 = vld [vmem:[#allocation4 + $0x3f8] sm:$0xff]
    %v2207 = vld [vmem:[%s8 + $0x4] sm:$0xff]
    %v2209 = vlaneseq
    %v2210 = vshrl.u32 %v2209, 7
    %v2211 = vsub.s32 0, %v2210
    %v2212 = vrot.slane %v2207, %v2211
    %v2213 = vlaneseq
    %v2214 = vshrl.u32 %v2213, 7
    %v2215 = vsub.s32 1, %v2214
    %v2216 = vrot.slane %v2207, %v2215
    %v2217 = vlaneseq
    %v2218 = vshrl.u32 %v2217, 7
    %v2219 = vsub.s32 2, %v2218
    %v2220 = vrot.slane %v2207, %v2219
    %v2221 = vlaneseq
    %v2222 = vshrl.u32 %v2221, 7
    %v2223 = vsub.s32 3, %v2222
    %v2224 = vrot.slane %v2207, %v2223
    %v2225 = vlaneseq
    %v2226 = vshrl.u32 %v2225, 7
    %v2227 = vsub.s32 4, %v2226
    %v2228 = vrot.slane %v2207, %v2227
    %v2229 = vlaneseq
    %v2230 = vshrl.u32 %v2229, 7
    %v2231 = vsub.s32 5, %v2230
    %v2232 = vrot.slane %v2207, %v2231
    %v2233 = vlaneseq
    %v2234 = vshrl.u32 %v2233, 7
    %v2235 = vsub.s32 6, %v2234
    %v2236 = vrot.slane %v2207, %v2235
    %v2237 = vlaneseq
    %v2238 = vshrl.u32 %v2237, 7
    %v2239 = vsub.s32 7, %v2238
    %v2240 = vrot.slane %v2207, %v2239
    %v2251 = vunpack.c.l.s4 1966171168
    %v2252 = vunpack.c.0.s8 %v2251
    %v2253 = vlaneseq
    %v2254 = vshrl.u32 %v2253, 7
    %v2255 = vsub.s32 %v2252, %v2254
    %v2256 = vrot.slane %v129, %v2255
    %v2257 = vcombine.high %v2256, %v2256
    %v2259 = vunpack.c.l.s4 1966171168
    %v2260 = vunpack.c.0.s8 %v2259
    %v2261 = vlaneseq
    %v2262 = vshrl.u32 %v2261, 7
    %v2263 = vsub.s32 %v2260, %v2262
    %v2264 = vrot.slane %v2256, %v2263
    %v2266 = vunpack.c.l.s4 1966171168
    %v2267 = vunpack.c.0.s8 %v2266
    %v2268 = vlaneseq
    %v2269 = vshrl.u32 %v2268, 7
    %v2270 = vsub.s32 %v2267, %v2269
    %v2271 = vrot.slane %v2257, %v2270
    %v2402 = vunpack.c.l.b16 %v2079
    %v2403 = vunpack.c.h.b16 %v2079
    %v2404 = vunpack.c.l.b16 %v2080
    %v2405 = vunpack.c.h.b16 %v2080
    %v2406 = vunpack.c.l.b16 %v2081
    %v2407 = vunpack.c.h.b16 %v2081
    %v2408 = vunpack.c.l.b16 %v2082
    %v2409 = vunpack.c.h.b16 %v2082
    %v2410 = vunpack.c.l.b16 %v2083
    %v2411 = vunpack.c.h.b16 %v2083
    %v2412 = vunpack.c.l.b16 %v2084
    %v2413 = vunpack.c.h.b16 %v2084
    %v2414 = vunpack.c.l.b16 %v2085
    %v2415 = vunpack.c.h.b16 %v2085
    %v2416 = vunpack.c.l.b16 %v2086
    %v2417 = vunpack.c.h.b16 %v2086
    %v2418 = vunpack.c.l.b16 %v2087
    %v2419 = vunpack.c.h.b16 %v2087
    %v2420 = vunpack.c.l.b16 %v2088
    %v2421 = vunpack.c.h.b16 %v2088
    %v2422 = vunpack.c.l.b16 %v2089
    %v2423 = vunpack.c.h.b16 %v2089
    %v2424 = vunpack.c.l.b16 %v2090
    %v2425 = vunpack.c.h.b16 %v2090
    %v2426 = vunpack.c.l.b16 %v2091
    %v2427 = vunpack.c.h.b16 %v2091
    %v2428 = vunpack.c.l.b16 %v2092
    %v2429 = vunpack.c.h.b16 %v2092
    %v2430 = vunpack.c.l.b16 %v2093
    %v2431 = vunpack.c.h.b16 %v2093
    %v2432 = vunpack.c.l.b16 %v2094
    %v2433 = vunpack.c.h.b16 %v2094
    %v2434 = vunpack.c.l.b16 %v2095
    %v2435 = vunpack.c.h.b16 %v2095
    %v2436 = vunpack.c.l.b16 %v2096
    %v2437 = vunpack.c.h.b16 %v2096
    %v2438 = vunpack.c.l.b16 %v2097
    %v2439 = vunpack.c.h.b16 %v2097
    %v2440 = vunpack.c.l.b16 %v2098
    %v2441 = vunpack.c.h.b16 %v2098
    %v2442 = vunpack.c.l.b16 %v2099
    %v2443 = vunpack.c.h.b16 %v2099
    %v2444 = vunpack.c.l.b16 %v2100
    %v2445 = vunpack.c.h.b16 %v2100
    %v2446 = vunpack.c.l.b16 %v2101
    %v2447 = vunpack.c.h.b16 %v2101
    %v2448 = vunpack.c.l.b16 %v2102
    %v2449 = vunpack.c.h.b16 %v2102
    %v2450 = vunpack.c.l.b16 %v2103
    %v2451 = vunpack.c.h.b16 %v2103
    %v2452 = vunpack.c.l.b16 %v2104
    %v2453 = vunpack.c.h.b16 %v2104
    %v2454 = vunpack.c.l.b16 %v2105
    %v2455 = vunpack.c.h.b16 %v2105
    %v2456 = vunpack.c.l.b16 %v2106
    %v2457 = vunpack.c.h.b16 %v2106
    %v2458 = vunpack.c.l.b16 %v2107
    %v2459 = vunpack.c.h.b16 %v2107
    %v2460 = vunpack.c.l.b16 %v2108
    %v2461 = vunpack.c.h.b16 %v2108
    %v2462 = vunpack.c.l.b16 %v2109
    %v2463 = vunpack.c.h.b16 %v2109
    %v2464 = vunpack.c.l.b16 %v2110
    %v2465 = vunpack.c.h.b16 %v2110
    %v2466 = vunpack.c.l.b16 %v2111
    %v2467 = vunpack.c.h.b16 %v2111
    %v2468 = vunpack.c.l.b16 %v2112
    %v2469 = vunpack.c.h.b16 %v2112
    %v2470 = vunpack.c.l.b16 %v2113
    %v2471 = vunpack.c.h.b16 %v2113
    %v2472 = vunpack.c.l.b16 %v2114
    %v2473 = vunpack.c.h.b16 %v2114
    %v2474 = vunpack.c.l.b16 %v2115
    %v2475 = vunpack.c.h.b16 %v2115
    %v2476 = vunpack.c.l.b16 %v2116
    %v2477 = vunpack.c.h.b16 %v2116
    %v2478 = vunpack.c.l.b16 %v2117
    %v2479 = vunpack.c.h.b16 %v2117
    %v2480 = vunpack.c.l.b16 %v2118
    %v2481 = vunpack.c.h.b16 %v2118
    %v2482 = vunpack.c.l.b16 %v2119
    %v2483 = vunpack.c.h.b16 %v2119
    %v2484 = vunpack.c.l.b16 %v2120
    %v2485 = vunpack.c.h.b16 %v2120
    %v2486 = vunpack.c.l.b16 %v2121
    %v2487 = vunpack.c.h.b16 %v2121
    %v2488 = vunpack.c.l.b16 %v2122
    %v2489 = vunpack.c.h.b16 %v2122
    %v2490 = vunpack.c.l.b16 %v2123
    %v2491 = vunpack.c.h.b16 %v2123
    %v2492 = vunpack.c.l.b16 %v2124
    %v2493 = vunpack.c.h.b16 %v2124
    %v2494 = vunpack.c.l.b16 %v2125
    %v2495 = vunpack.c.h.b16 %v2125
    %v2496 = vunpack.c.l.b16 %v2126
    %v2497 = vunpack.c.h.b16 %v2126
    %v2498 = vunpack.c.l.b16 %v2127
    %v2499 = vunpack.c.h.b16 %v2127
    %v2500 = vunpack.c.l.b16 %v2128
    %v2501 = vunpack.c.h.b16 %v2128
    %v2502 = vunpack.c.l.b16 %v2129
    %v2503 = vunpack.c.h.b16 %v2129
    %v2504 = vunpack.c.l.b16 %v2130
    %v2505 = vunpack.c.h.b16 %v2130
    %v2506 = vunpack.c.l.b16 %v2131
    %v2507 = vunpack.c.h.b16 %v2131
    %v2508 = vunpack.c.l.b16 %v2132
    %v2509 = vunpack.c.h.b16 %v2132
    %v2510 = vunpack.c.l.b16 %v2133
    %v2511 = vunpack.c.h.b16 %v2133
    %v2512 = vunpack.c.l.b16 %v2134
    %v2513 = vunpack.c.h.b16 %v2134
    %v2514 = vunpack.c.l.b16 %v2135
    %v2515 = vunpack.c.h.b16 %v2135
    %v2516 = vunpack.c.l.b16 %v2136
    %v2517 = vunpack.c.h.b16 %v2136
    %v2518 = vunpack.c.l.b16 %v2137
    %v2519 = vunpack.c.h.b16 %v2137
    %v2520 = vunpack.c.l.b16 %v2138
    %v2521 = vunpack.c.h.b16 %v2138
    %v2522 = vunpack.c.l.b16 %v2139
    %v2523 = vunpack.c.h.b16 %v2139
    %v2524 = vunpack.c.l.b16 %v2140
    %v2525 = vunpack.c.h.b16 %v2140
    %v2526 = vunpack.c.l.b16 %v2141
    %v2527 = vunpack.c.h.b16 %v2141
    %v2528 = vunpack.c.l.b16 %v2142
    %v2529 = vunpack.c.h.b16 %v2142
    %v2530 = vunpack.c.l.b16 %v2143
    %v2531 = vunpack.c.h.b16 %v2143
    %v2532 = vunpack.c.l.b16 %v2144
    %v2533 = vunpack.c.h.b16 %v2144
    %v2534 = vunpack.c.l.b16 %v2145
    %v2535 = vunpack.c.h.b16 %v2145
    %v2536 = vunpack.c.l.b16 %v2146
    %v2537 = vunpack.c.h.b16 %v2146
    %v2538 = vunpack.c.l.b16 %v2147
    %v2539 = vunpack.c.h.b16 %v2147
    %v2540 = vunpack.c.l.b16 %v2148
    %v2541 = vunpack.c.h.b16 %v2148
    %v2542 = vunpack.c.l.b16 %v2149
    %v2543 = vunpack.c.h.b16 %v2149
    %v2544 = vunpack.c.l.b16 %v2150
    %v2545 = vunpack.c.h.b16 %v2150
    %v2546 = vunpack.c.l.b16 %v2151
    %v2547 = vunpack.c.h.b16 %v2151
    %v2548 = vunpack.c.l.b16 %v2152
    %v2549 = vunpack.c.h.b16 %v2152
    %v2550 = vunpack.c.l.b16 %v2153
    %v2551 = vunpack.c.h.b16 %v2153
    %v2552 = vunpack.c.l.b16 %v2154
    %v2553 = vunpack.c.h.b16 %v2154
    %v2554 = vunpack.c.l.b16 %v2155
    %v2555 = vunpack.c.h.b16 %v2155
    %v2556 = vunpack.c.l.b16 %v2156
    %v2557 = vunpack.c.h.b16 %v2156
    %v2558 = vunpack.c.l.b16 %v2157
    %v2559 = vunpack.c.h.b16 %v2157
    %v2560 = vunpack.c.l.b16 %v2158
    %v2561 = vunpack.c.h.b16 %v2158
    %v2562 = vunpack.c.l.b16 %v2159
    %v2563 = vunpack.c.h.b16 %v2159
    %v2564 = vunpack.c.l.b16 %v2160
    %v2565 = vunpack.c.h.b16 %v2160
    %v2566 = vunpack.c.l.b16 %v2161
    %v2567 = vunpack.c.h.b16 %v2161
    %v2568 = vunpack.c.l.b16 %v2162
    %v2569 = vunpack.c.h.b16 %v2162
    %v2570 = vunpack.c.l.b16 %v2163
    %v2571 = vunpack.c.h.b16 %v2163
    %v2572 = vunpack.c.l.b16 %v2164
    %v2573 = vunpack.c.h.b16 %v2164
    %v2574 = vunpack.c.l.b16 %v2165
    %v2575 = vunpack.c.h.b16 %v2165
    %v2576 = vunpack.c.l.b16 %v2166
    %v2577 = vunpack.c.h.b16 %v2166
    %v2578 = vunpack.c.l.b16 %v2167
    %v2579 = vunpack.c.h.b16 %v2167
    %v2580 = vunpack.c.l.b16 %v2168
    %v2581 = vunpack.c.h.b16 %v2168
    %v2582 = vunpack.c.l.b16 %v2169
    %v2583 = vunpack.c.h.b16 %v2169
    %v2584 = vunpack.c.l.b16 %v2170
    %v2585 = vunpack.c.h.b16 %v2170
    %v2586 = vunpack.c.l.b16 %v2171
    %v2587 = vunpack.c.h.b16 %v2171
    %v2588 = vunpack.c.l.b16 %v2172
    %v2589 = vunpack.c.h.b16 %v2172
    %v2590 = vunpack.c.l.b16 %v2173
    %v2591 = vunpack.c.h.b16 %v2173
    %v2592 = vunpack.c.l.b16 %v2174
    %v2593 = vunpack.c.h.b16 %v2174
    %v2594 = vunpack.c.l.b16 %v2175
    %v2595 = vunpack.c.h.b16 %v2175
    %v2596 = vunpack.c.l.b16 %v2176
    %v2597 = vunpack.c.h.b16 %v2176
    %v2598 = vunpack.c.l.b16 %v2177
    %v2599 = vunpack.c.h.b16 %v2177
    %v2600 = vunpack.c.l.b16 %v2178
    %v2601 = vunpack.c.h.b16 %v2178
    %v2602 = vunpack.c.l.b16 %v2179
    %v2603 = vunpack.c.h.b16 %v2179
    %v2604 = vunpack.c.l.b16 %v2180
    %v2605 = vunpack.c.h.b16 %v2180
    %v2606 = vunpack.c.l.b16 %v2181
    %v2607 = vunpack.c.h.b16 %v2181
    %v2608 = vunpack.c.l.b16 %v2182
    %v2609 = vunpack.c.h.b16 %v2182
    %v2610 = vunpack.c.l.b16 %v2183
    %v2611 = vunpack.c.h.b16 %v2183
    %v2612 = vunpack.c.l.b16 %v2184
    %v2613 = vunpack.c.h.b16 %v2184
    %v2614 = vunpack.c.l.b16 %v2185
    %v2615 = vunpack.c.h.b16 %v2185
    %v2616 = vunpack.c.l.b16 %v2186
    %v2617 = vunpack.c.h.b16 %v2186
    %v2618 = vunpack.c.l.b16 %v2187
    %v2619 = vunpack.c.h.b16 %v2187
    %v2620 = vunpack.c.l.b16 %v2188
    %v2621 = vunpack.c.h.b16 %v2188
    %v2622 = vunpack.c.l.b16 %v2189
    %v2623 = vunpack.c.h.b16 %v2189
    %v2624 = vunpack.c.l.b16 %v2190
    %v2625 = vunpack.c.h.b16 %v2190
    %v2626 = vunpack.c.l.b16 %v2191
    %v2627 = vunpack.c.h.b16 %v2191
    %v2628 = vunpack.c.l.b16 %v2192
    %v2629 = vunpack.c.h.b16 %v2192
    %v2630 = vunpack.c.l.b16 %v2193
    %v2631 = vunpack.c.h.b16 %v2193
    %v2632 = vunpack.c.l.b16 %v2194
    %v2633 = vunpack.c.h.b16 %v2194
    %v2634 = vunpack.c.l.b16 %v2195
    %v2635 = vunpack.c.h.b16 %v2195
    %v2636 = vunpack.c.l.b16 %v2196
    %v2637 = vunpack.c.h.b16 %v2196
    %v2638 = vunpack.c.l.b16 %v2197
    %v2639 = vunpack.c.h.b16 %v2197
    %v2640 = vunpack.c.l.b16 %v2198
    %v2641 = vunpack.c.h.b16 %v2198
    %v2642 = vunpack.c.l.b16 %v2199
    %v2643 = vunpack.c.h.b16 %v2199
    %v2644 = vunpack.c.l.b16 %v2200
    %v2645 = vunpack.c.h.b16 %v2200
    %v2646 = vunpack.c.l.b16 %v2201
    %v2647 = vunpack.c.h.b16 %v2201
    %v2648 = vunpack.c.l.b16 %v2202
    %v2649 = vunpack.c.h.b16 %v2202
    %v2650 = vunpack.c.l.b16 %v2203
    %v2651 = vunpack.c.h.b16 %v2203
    %v2652 = vunpack.c.l.b16 %v2204
    %v2653 = vunpack.c.h.b16 %v2204
    %v2654 = vunpack.c.l.b16 %v2205
    %v2655 = vunpack.c.h.b16 %v2205
    %v2656 = vunpack.c.l.b16 %v2206
    %v2657 = vunpack.c.h.b16 %v2206
    %v2658 = vpack.c.b16 %v2410, %v2402
    %v2659 = vpack.c.b16 %v2411, %v2403
    %v2660 = vpack.c.b16 %v2412, %v2404
    %v2661 = vpack.c.b16 %v2413, %v2405
    %v2662 = vpack.c.b16 %v2414, %v2406
    %v2663 = vpack.c.b16 %v2415, %v2407
    %v2664 = vpack.c.b16 %v2416, %v2408
    %v2665 = vpack.c.b16 %v2417, %v2409
    %v2666 = vpack.c.b16 %v2426, %v2418
    %v2667 = vpack.c.b16 %v2427, %v2419
    %v2668 = vpack.c.b16 %v2428, %v2420
    %v2669 = vpack.c.b16 %v2429, %v2421
    %v2670 = vpack.c.b16 %v2430, %v2422
    %v2671 = vpack.c.b16 %v2431, %v2423
    %v2672 = vpack.c.b16 %v2432, %v2424
    %v2673 = vpack.c.b16 %v2433, %v2425
    %v2674 = vpack.c.b16 %v2442, %v2434
    %v2675 = vpack.c.b16 %v2443, %v2435
    %v2676 = vpack.c.b16 %v2444, %v2436
    %v2677 = vpack.c.b16 %v2445, %v2437
    %v2678 = vpack.c.b16 %v2446, %v2438
    %v2679 = vpack.c.b16 %v2447, %v2439
    %v2680 = vpack.c.b16 %v2448, %v2440
    %v2681 = vpack.c.b16 %v2449, %v2441
    %v2682 = vpack.c.b16 %v2458, %v2450
    %v2683 = vpack.c.b16 %v2459, %v2451
    %v2684 = vpack.c.b16 %v2460, %v2452
    %v2685 = vpack.c.b16 %v2461, %v2453
    %v2686 = vpack.c.b16 %v2462, %v2454
    %v2687 = vpack.c.b16 %v2463, %v2455
    %v2688 = vpack.c.b16 %v2464, %v2456
    %v2689 = vpack.c.b16 %v2465, %v2457
    %v2690 = vpack.c.b16 %v2474, %v2466
    %v2691 = vpack.c.b16 %v2475, %v2467
    %v2692 = vpack.c.b16 %v2476, %v2468
    %v2693 = vpack.c.b16 %v2477, %v2469
    %v2694 = vpack.c.b16 %v2478, %v2470
    %v2695 = vpack.c.b16 %v2479, %v2471
    %v2696 = vpack.c.b16 %v2480, %v2472
    %v2697 = vpack.c.b16 %v2481, %v2473
    %v2698 = vpack.c.b16 %v2490, %v2482
    %v2699 = vpack.c.b16 %v2491, %v2483
    %v2700 = vpack.c.b16 %v2492, %v2484
    %v2701 = vpack.c.b16 %v2493, %v2485
    %v2702 = vpack.c.b16 %v2494, %v2486
    %v2703 = vpack.c.b16 %v2495, %v2487
    %v2704 = vpack.c.b16 %v2496, %v2488
    %v2705 = vpack.c.b16 %v2497, %v2489
    %v2706 = vpack.c.b16 %v2506, %v2498
    %v2707 = vpack.c.b16 %v2507, %v2499
    %v2708 = vpack.c.b16 %v2508, %v2500
    %v2709 = vpack.c.b16 %v2509, %v2501
    %v2710 = vpack.c.b16 %v2510, %v2502
    %v2711 = vpack.c.b16 %v2511, %v2503
    %v2712 = vpack.c.b16 %v2512, %v2504
    %v2713 = vpack.c.b16 %v2513, %v2505
    %v2714 = vpack.c.b16 %v2522, %v2514
    %v2715 = vpack.c.b16 %v2523, %v2515
    %v2716 = vpack.c.b16 %v2524, %v2516
    %v2717 = vpack.c.b16 %v2525, %v2517
    %v2718 = vpack.c.b16 %v2526, %v2518
    %v2719 = vpack.c.b16 %v2527, %v2519
    %v2720 = vpack.c.b16 %v2528, %v2520
    %v2721 = vpack.c.b16 %v2529, %v2521
    %v2722 = vpack.c.b16 %v2538, %v2530
    %v2723 = vpack.c.b16 %v2539, %v2531
    %v2724 = vpack.c.b16 %v2540, %v2532
    %v2725 = vpack.c.b16 %v2541, %v2533
    %v2726 = vpack.c.b16 %v2542, %v2534
    %v2727 = vpack.c.b16 %v2543, %v2535
    %v2728 = vpack.c.b16 %v2544, %v2536
    %v2729 = vpack.c.b16 %v2545, %v2537
    %v2730 = vpack.c.b16 %v2554, %v2546
    %v2731 = vpack.c.b16 %v2555, %v2547
    %v2732 = vpack.c.b16 %v2556, %v2548
    %v2733 = vpack.c.b16 %v2557, %v2549
    %v2734 = vpack.c.b16 %v2558, %v2550
    %v2735 = vpack.c.b16 %v2559, %v2551
    %v2736 = vpack.c.b16 %v2560, %v2552
    %v2737 = vpack.c.b16 %v2561, %v2553
    %v2738 = vpack.c.b16 %v2570, %v2562
    %v2739 = vpack.c.b16 %v2571, %v2563
    %v2740 = vpack.c.b16 %v2572, %v2564
    %v2741 = vpack.c.b16 %v2573, %v2565
    %v2742 = vpack.c.b16 %v2574, %v2566
    %v2743 = vpack.c.b16 %v2575, %v2567
    %v2744 = vpack.c.b16 %v2576, %v2568
    %v2745 = vpack.c.b16 %v2577, %v2569
    %v2746 = vpack.c.b16 %v2586, %v2578
    %v2747 = vpack.c.b16 %v2587, %v2579
    %v2748 = vpack.c.b16 %v2588, %v2580
    %v2749 = vpack.c.b16 %v2589, %v2581
    %v2750 = vpack.c.b16 %v2590, %v2582
    %v2751 = vpack.c.b16 %v2591, %v2583
    %v2752 = vpack.c.b16 %v2592, %v2584
    %v2753 = vpack.c.b16 %v2593, %v2585
    %v2754 = vpack.c.b16 %v2602, %v2594
    %v2755 = vpack.c.b16 %v2603, %v2595
    %v2756 = vpack.c.b16 %v2604, %v2596
    %v2757 = vpack.c.b16 %v2605, %v2597
    %v2758 = vpack.c.b16 %v2606, %v2598
    %v2759 = vpack.c.b16 %v2607, %v2599
    %v2760 = vpack.c.b16 %v2608, %v2600
    %v2761 = vpack.c.b16 %v2609, %v2601
    %v2762 = vpack.c.b16 %v2618, %v2610
    %v2763 = vpack.c.b16 %v2619, %v2611
    %v2764 = vpack.c.b16 %v2620, %v2612
    %v2765 = vpack.c.b16 %v2621, %v2613
    %v2766 = vpack.c.b16 %v2622, %v2614
    %v2767 = vpack.c.b16 %v2623, %v2615
    %v2768 = vpack.c.b16 %v2624, %v2616
    %v2769 = vpack.c.b16 %v2625, %v2617
    %v2770 = vpack.c.b16 %v2634, %v2626
    %v2771 = vpack.c.b16 %v2635, %v2627
    %v2772 = vpack.c.b16 %v2636, %v2628
    %v2773 = vpack.c.b16 %v2637, %v2629
    %v2774 = vpack.c.b16 %v2638, %v2630
    %v2775 = vpack.c.b16 %v2639, %v2631
    %v2776 = vpack.c.b16 %v2640, %v2632
    %v2777 = vpack.c.b16 %v2641, %v2633
    %v2778 = vpack.c.b16 %v2650, %v2642
    %v2779 = vpack.c.b16 %v2651, %v2643
    %v2780 = vpack.c.b16 %v2652, %v2644
    %v2781 = vpack.c.b16 %v2653, %v2645
    %v2782 = vpack.c.b16 %v2654, %v2646
    %v2783 = vpack.c.b16 %v2655, %v2647
    %v2784 = vpack.c.b16 %v2656, %v2648
    %v2785 = vpack.c.b16 %v2657, %v2649
    %2914 = vmatprep.subr.bf16.mxu0 %v2659
    %2915 = vmatpush1.bf16.msra.mxu0 %v2658
    %2916 = vmatprep.subr.bf16.mxu0 %v2667
    %2917 = vmatpush1.bf16.msra.mxu0 %v2666
    %2918 = vmatprep.subr.bf16.mxu0 %v2675
    %2919 = vmatpush1.bf16.msra.mxu0 %v2674
    %2920 = vmatprep.subr.bf16.mxu0 %v2683
    %2921 = vmatpush1.bf16.msra.mxu0 %v2682
    %2922 = vmatprep.subr.bf16.mxu0 %v2691
    %2923 = vmatpush1.bf16.msra.mxu0 %v2690
    %2924 = vmatprep.subr.bf16.mxu0 %v2699
    %2925 = vmatpush1.bf16.msra.mxu0 %v2698
    %2926 = vmatprep.subr.bf16.mxu0 %v2707
    %2927 = vmatpush1.bf16.msra.mxu0 %v2706
    %2928 = vmatprep.subr.bf16.mxu0 %v2715
    %2929 = vmatpush1.bf16.msra.mxu0 %v2714
    %2930 = vmatprep.subr.bf16.mxu0 %v2723
    %2931 = vmatpush1.bf16.msra.mxu0 %v2722
    %2932 = vmatprep.subr.bf16.mxu0 %v2731
    %2933 = vmatpush1.bf16.msra.mxu0 %v2730
    %2934 = vmatprep.subr.bf16.mxu0 %v2739
    %2935 = vmatpush1.bf16.msra.mxu0 %v2738
    %2936 = vmatprep.subr.bf16.mxu0 %v2747
    %2937 = vmatpush1.bf16.msra.mxu0 %v2746
    %2938 = vmatprep.subr.bf16.mxu0 %v2755
    %2939 = vmatpush1.bf16.msra.mxu0 %v2754
    %2940 = vmatprep.subr.bf16.mxu0 %v2763
    %2941 = vmatpush1.bf16.msra.mxu0 %v2762
    %2942 = vmatprep.subr.bf16.mxu0 %v2771
    %2943 = vmatpush1.bf16.msra.mxu0 %v2770
    %2944 = vmatprep.subr.bf16.mxu0 %v2779
    %2945 = vmatpush1.bf16.msra.mxu0 %v2778
    %2946 = vmatprep.mubr.bf16.mxu0 %v2271
    %2947 = vmatmul.mubr.bf16.gmra.mrb[0].mxu0 %v2264
    %v2948 = vpop.f32.mrb[0].mxu0
    %v2949 = vadd.f32 %v2212, %v2948
    %v2950 = vpop.f32.mrb[0].mxu0
    %v2951 = vadd.f32 %v2216, %v2950
    %v2952 = vpop.f32.mrb[0].mxu0
    %v2953 = vpop.f32.mrb[0].mxu0
    %2954 = vdwg.mxu0
    %2955 = vmatprep.subr.bf16.mxu0 %v2661
    %2956 = vmatpush1.bf16.msra.mxu0 %v2660
    %2957 = vmatprep.subr.bf16.mxu0 %v2669
    %2958 = vmatpush1.bf16.msra.mxu0 %v2668
    %2959 = vmatprep.subr.bf16.mxu0 %v2677
    %2960 = vmatpush1.bf16.msra.mxu0 %v2676
    %2961 = vmatprep.subr.bf16.mxu0 %v2685
    %2962 = vmatpush1.bf16.msra.mxu0 %v2684
    %2963 = vmatprep.subr.bf16.mxu0 %v2693
    %2964 = vmatpush1.bf16.msra.mxu0 %v2692
    %2965 = vmatprep.subr.bf16.mxu0 %v2701
    %2966 = vmatpush1.bf16.msra.mxu0 %v2700
    %2967 = vmatprep.subr.bf16.mxu0 %v2709
    %2968 = vmatpush1.bf16.msra.mxu0 %v2708
    %2969 = vmatprep.subr.bf16.mxu0 %v2717
    %2970 = vmatpush1.bf16.msra.mxu0 %v2716
    %2971 = vmatprep.subr.bf16.mxu0 %v2725
    %2972 = vmatpush1.bf16.msra.mxu0 %v2724
    %2973 = vmatprep.subr.bf16.mxu0 %v2733
    %2974 = vmatpush1.bf16.msra.mxu0 %v2732
    %2975 = vmatprep.subr.bf16.mxu0 %v2741
    %2976 = vmatpush1.bf16.msra.mxu0 %v2740
    %2977 = vmatprep.subr.bf16.mxu0 %v2749
    %2978 = vmatpush1.bf16.msra.mxu0 %v2748
    %2979 = vmatprep.subr.bf16.mxu0 %v2757
    %2980 = vmatpush1.bf16.msra.mxu0 %v2756
    %2981 = vmatprep.subr.bf16.mxu0 %v2765
    %2982 = vmatpush1.bf16.msra.mxu0 %v2764
    %2983 = vmatprep.subr.bf16.mxu0 %v2773
    %2984 = vmatpush1.bf16.msra.mxu0 %v2772
    %2985 = vmatprep.subr.bf16.mxu0 %v2781
    %2986 = vmatpush1.bf16.msra.mxu0 %v2780
    %2987 = vmatprep.mubr.bf16.mxu0 %v2271
    %2988 = vmatmul.mubr.bf16.gmra.mrb[0].mxu0 %v2264
    %v2989 = vpop.f32.mrb[0].mxu0
    %v2990 = vadd.f32 %v2220, %v2989
    %v2991 = vpop.f32.mrb[0].mxu0
    %v2992 = vadd.f32 %v2224, %v2991
    %v2993 = vpop.f32.mrb[0].mxu0
    %v2994 = vpop.f32.mrb[0].mxu0
    %2995 = vdwg.mxu0
    %2996 = vmatprep.subr.bf16.mxu0 %v2663
    %2997 = vmatpush1.bf16.msra.mxu0 %v2662
    %2998 = vmatprep.subr.bf16.mxu0 %v2671
    %2999 = vmatpush1.bf16.msra.mxu0 %v2670
    %3000 = vmatprep.subr.bf16.mxu0 %v2679
    %3001 = vmatpush1.bf16.msra.mxu0 %v2678
    %3002 = vmatprep.subr.bf16.mxu0 %v2687
    %3003 = vmatpush1.bf16.msra.mxu0 %v2686
    %3004 = vmatprep.subr.bf16.mxu0 %v2695
    %3005 = vmatpush1.bf16.msra.mxu0 %v2694
    %3006 = vmatprep.subr.bf16.mxu0 %v2703
    %3007 = vmatpush1.bf16.msra.mxu0 %v2702
    %3008 = vmatprep.subr.bf16.mxu0 %v2711
    %3009 = vmatpush1.bf16.msra.mxu0 %v2710
    %3010 = vmatprep.subr.bf16.mxu0 %v2719
    %3011 = vmatpush1.bf16.msra.mxu0 %v2718
    %3012 = vmatprep.subr.bf16.mxu0 %v2727
    %3013 = vmatpush1.bf16.msra.mxu0 %v2726
    %3014 = vmatprep.subr.bf16.mxu0 %v2735
    %3015 = vmatpush1.bf16.msra.mxu0 %v2734
    %3016 = vmatprep.subr.bf16.mxu0 %v2743
    %3017 = vmatpush1.bf16.msra.mxu0 %v2742
    %3018 = vmatprep.subr.bf16.mxu0 %v2751
    %3019 = vmatpush1.bf16.msra.mxu0 %v2750
    %3020 = vmatprep.subr.bf16.mxu0 %v2759
    %3021 = vmatpush1.bf16.msra.mxu0 %v2758
    %3022 = vmatprep.subr.bf16.mxu0 %v2767
    %3023 = vmatpush1.bf16.msra.mxu0 %v2766
    %3024 = vmatprep.subr.bf16.mxu0 %v2775
    %3025 = vmatpush1.bf16.msra.mxu0 %v2774
    %3026 = vmatprep.subr.bf16.mxu0 %v2783
    %3027 = vmatpush1.bf16.msra.mxu0 %v2782
    %3028 = vmatprep.mubr.bf16.mxu0 %v2271
    %3029 = vmatmul.mubr.bf16.gmra.mrb[0].mxu0 %v2264
    %v3030 = vpop.f32.mrb[0].mxu0
    %v3031 = vadd.f32 %v2228, %v3030
    %v3032 = vpop.f32.mrb[0].mxu0
    %v3033 = vadd.f32 %v2232, %v3032
    %v3034 = vpop.f32.mrb[0].mxu0
    %v3035 = vpop.f32.mrb[0].mxu0
    %3036 = vdwg.mxu0
    %3037 = vmatprep.subr.bf16.mxu0 %v2665
    %3038 = vmatpush1.bf16.msra.mxu0 %v2664
    %3039 = vmatprep.subr.bf16.mxu0 %v2673
    %3040 = vmatpush1.bf16.msra.mxu0 %v2672
    %3041 = vmatprep.subr.bf16.mxu0 %v2681
    %3042 = vmatpush1.bf16.msra.mxu0 %v2680
    %3043 = vmatprep.subr.bf16.mxu0 %v2689
    %3044 = vmatpush1.bf16.msra.mxu0 %v2688
    %3045 = vmatprep.subr.bf16.mxu0 %v2697
    %3046 = vmatpush1.bf16.msra.mxu0 %v2696
    %3047 = vmatprep.subr.bf16.mxu0 %v2705
    %3048 = vmatpush1.bf16.msra.mxu0 %v2704
    %3049 = vmatprep.subr.bf16.mxu0 %v2713
    %3050 = vmatpush1.bf16.msra.mxu0 %v2712
    %3051 = vmatprep.subr.bf16.mxu0 %v2721
    %3052 = vmatpush1.bf16.msra.mxu0 %v2720
    %3053 = vmatprep.subr.bf16.mxu0 %v2729
    %3054 = vmatpush1.bf16.msra.mxu0 %v2728
    %3055 = vmatprep.subr.bf16.mxu0 %v2737
    %3056 = vmatpush1.bf16.msra.mxu0 %v2736
    %3057 = vmatprep.subr.bf16.mxu0 %v2745
    %3058 = vmatpush1.bf16.msra.mxu0 %v2744
    %3059 = vmatprep.subr.bf16.mxu0 %v2753
    %3060 = vmatpush1.bf16.msra.mxu0 %v2752
    %3061 = vmatprep.subr.bf16.mxu0 %v2761
    %3062 = vmatpush1.bf16.msra.mxu0 %v2760
    %3063 = vmatprep.subr.bf16.mxu0 %v2769
    %3064 = vmatpush1.bf16.msra.mxu0 %v2768
    %3065 = vmatprep.subr.bf16.mxu0 %v2777
    %3066 = vmatpush1.bf16.msra.mxu0 %v2776
    %3067 = vmatprep.subr.bf16.mxu0 %v2785
    %3068 = vmatpush1.bf16.msra.mxu0 %v2784
    %3069 = vmatprep.mubr.bf16.mxu0 %v2271
    %3070 = vmatmul.mubr.bf16.gmra.mrb[0].mxu0 %v2264
    %v3071 = vpop.f32.mrb[0].mxu0
    %v3072 = vadd.f32 %v2236, %v3071
    %v3073 = vpop.f32.mrb[0].mxu0
    %v3074 = vadd.f32 %v2240, %v3073
    %v3075 = vpop.f32.mrb[0].mxu0
    %v3076 = vpop.f32.mrb[0].mxu0
    %3077 = vdwg.mxu0
    %v3078 = vmax.f32 %v2949, 0.0
    %v3079 = vmax.f32 %v2951, 0.0
    %v3080 = vmax.f32 %v2990, 0.0
    %v3081 = vmax.f32 %v2992, 0.0
    %v3082 = vmax.f32 %v3031, 0.0
    %v3083 = vmax.f32 %v3033, 0.0
    %v3084 = vmax.f32 %v3072, 0.0
    %v3085 = vmax.f32 %v3074, 0.0
    %v3086 = vpack.c.bf16 %v3078, %v3078
    %v3087 = vpack.c.bf16 %v3079, %v3079
    %v3088 = vpack.c.bf16 %v3080, %v3080
    %v3089 = vpack.c.bf16 %v3081, %v3081
    %v3090 = vpack.c.bf16 %v3082, %v3082
    %v3091 = vpack.c.bf16 %v3083, %v3083
    %v3092 = vpack.c.bf16 %v3084, %v3084
    %v3093 = vpack.c.bf16 %v3085, %v3085
    %v3094 = vld [vmem:[#allocation7] sm:$0xff]
    %v3095 = vld [vmem:[#allocation7 + $0x8] sm:$0xff]
    %v3096 = vld [vmem:[#allocation7 + $0x10] sm:$0xff]
    %v3097 = vld [vmem:[#allocation7 + $0x18] sm:$0xff]
    %v3098 = vld [vmem:[#allocation7 + $0x20] sm:$0xff]
    %v3099 = vld [vmem:[#allocation7 + $0x28] sm:$0xff]
    %v3100 = vld [vmem:[#allocation7 + $0x30] sm:$0xff]
    %v3101 = vld [vmem:[#allocation7 + $0x38] sm:$0xff]
    %v3102 = vld [vmem:[#allocation7 + $0x40] sm:$0xff]
    %v3103 = vld [vmem:[#allocation7 + $0x48] sm:$0xff]
    %v3104 = vld [vmem:[#allocation7 + $0x50] sm:$0xff]
    %v3105 = vld [vmem:[#allocation7 + $0x58] sm:$0xff]
    %v3106 = vld [vmem:[#allocation7 + $0x60] sm:$0xff]
    %v3107 = vld [vmem:[#allocation7 + $0x68] sm:$0xff]
    %v3108 = vld [vmem:[#allocation7 + $0x70] sm:$0xff]
    %v3109 = vld [vmem:[#allocation7 + $0x78] sm:$0xff]
    %v3110 = vld [vmem:[#allocation7 + $0x80] sm:$0xff]
    %v3111 = vld [vmem:[#allocation7 + $0x88] sm:$0xff]
    %v3112 = vld [vmem:[#allocation7 + $0x90] sm:$0xff]
    %v3113 = vld [vmem:[#allocation7 + $0x98] sm:$0xff]
    %v3114 = vld [vmem:[#allocation7 + $0xa0] sm:$0xff]
    %v3115 = vld [vmem:[#allocation7 + $0xa8] sm:$0xff]
    %v3116 = vld [vmem:[#allocation7 + $0xb0] sm:$0xff]
    %v3117 = vld [vmem:[#allocation7 + $0xb8] sm:$0xff]
    %v3118 = vld [vmem:[#allocation7 + $0xc0] sm:$0xff]
    %v3119 = vld [vmem:[#allocation7 + $0xc8] sm:$0xff]
    %v3120 = vld [vmem:[#allocation7 + $0xd0] sm:$0xff]
    %v3121 = vld [vmem:[#allocation7 + $0xd8] sm:$0xff]
    %v3122 = vld [vmem:[#allocation7 + $0xe0] sm:$0xff]
    %v3123 = vld [vmem:[#allocation7 + $0xe8] sm:$0xff]
    %v3124 = vld [vmem:[#allocation7 + $0xf0] sm:$0xff]
    %v3125 = vld [vmem:[#allocation7 + $0xf8] sm:$0xff]
    %v3126 = vld [vmem:[#allocation7 + $0x100] sm:$0xff]
    %v3127 = vld [vmem:[#allocation7 + $0x108] sm:$0xff]
    %v3128 = vld [vmem:[#allocation7 + $0x110] sm:$0xff]
    %v3129 = vld [vmem:[#allocation7 + $0x118] sm:$0xff]
    %v3130 = vld [vmem:[#allocation7 + $0x120] sm:$0xff]
    %v3131 = vld [vmem:[#allocation7 + $0x128] sm:$0xff]
    %v3132 = vld [vmem:[#allocation7 + $0x130] sm:$0xff]
    %v3133 = vld [vmem:[#allocation7 + $0x138] sm:$0xff]
    %v3134 = vld [vmem:[#allocation7 + $0x140] sm:$0xff]
    %v3135 = vld [vmem:[#allocation7 + $0x148] sm:$0xff]
    %v3136 = vld [vmem:[#allocation7 + $0x150] sm:$0xff]
    %v3137 = vld [vmem:[#allocation7 + $0x158] sm:$0xff]
    %v3138 = vld [vmem:[#allocation7 + $0x160] sm:$0xff]
    %v3139 = vld [vmem:[#allocation7 + $0x168] sm:$0xff]
    %v3140 = vld [vmem:[#allocation7 + $0x170] sm:$0xff]
    %v3141 = vld [vmem:[#allocation7 + $0x178] sm:$0xff]
    %v3142 = vld [vmem:[#allocation7 + $0x180] sm:$0xff]
    %v3143 = vld [vmem:[#allocation7 + $0x188] sm:$0xff]
    %v3144 = vld [vmem:[#allocation7 + $0x190] sm:$0xff]
    %v3145 = vld [vmem:[#allocation7 + $0x198] sm:$0xff]
    %v3146 = vld [vmem:[#allocation7 + $0x1a0] sm:$0xff]
    %v3147 = vld [vmem:[#allocation7 + $0x1a8] sm:$0xff]
    %v3148 = vld [vmem:[#allocation7 + $0x1b0] sm:$0xff]
    %v3149 = vld [vmem:[#allocation7 + $0x1b8] sm:$0xff]
    %v3150 = vld [vmem:[#allocation7 + $0x1c0] sm:$0xff]
    %v3151 = vld [vmem:[#allocation7 + $0x1c8] sm:$0xff]
    %v3152 = vld [vmem:[#allocation7 + $0x1d0] sm:$0xff]
    %v3153 = vld [vmem:[#allocation7 + $0x1d8] sm:$0xff]
    %v3154 = vld [vmem:[#allocation7 + $0x1e0] sm:$0xff]
    %v3155 = vld [vmem:[#allocation7 + $0x1e8] sm:$0xff]
    %v3156 = vld [vmem:[#allocation7 + $0x1f0] sm:$0xff]
    %v3157 = vld [vmem:[#allocation7 + $0x1f8] sm:$0xff]
    %v3158 = vld [vmem:[#allocation7 + $0x200] sm:$0xff]
    %v3159 = vld [vmem:[#allocation7 + $0x208] sm:$0xff]
    %v3160 = vld [vmem:[#allocation7 + $0x210] sm:$0xff]
    %v3161 = vld [vmem:[#allocation7 + $0x218] sm:$0xff]
    %v3162 = vld [vmem:[#allocation7 + $0x220] sm:$0xff]
    %v3163 = vld [vmem:[#allocation7 + $0x228] sm:$0xff]
    %v3164 = vld [vmem:[#allocation7 + $0x230] sm:$0xff]
    %v3165 = vld [vmem:[#allocation7 + $0x238] sm:$0xff]
    %v3166 = vld [vmem:[#allocation7 + $0x240] sm:$0xff]
    %v3167 = vld [vmem:[#allocation7 + $0x248] sm:$0xff]
    %v3168 = vld [vmem:[#allocation7 + $0x250] sm:$0xff]
    %v3169 = vld [vmem:[#allocation7 + $0x258] sm:$0xff]
    %v3170 = vld [vmem:[#allocation7 + $0x260] sm:$0xff]
    %v3171 = vld [vmem:[#allocation7 + $0x268] sm:$0xff]
    %v3172 = vld [vmem:[#allocation7 + $0x270] sm:$0xff]
    %v3173 = vld [vmem:[#allocation7 + $0x278] sm:$0xff]
    %v3174 = vld [vmem:[#allocation7 + $0x280] sm:$0xff]
    %v3175 = vld [vmem:[#allocation7 + $0x288] sm:$0xff]
    %v3176 = vld [vmem:[#allocation7 + $0x290] sm:$0xff]
    %v3177 = vld [vmem:[#allocation7 + $0x298] sm:$0xff]
    %v3178 = vld [vmem:[#allocation7 + $0x2a0] sm:$0xff]
    %v3179 = vld [vmem:[#allocation7 + $0x2a8] sm:$0xff]
    %v3180 = vld [vmem:[#allocation7 + $0x2b0] sm:$0xff]
    %v3181 = vld [vmem:[#allocation7 + $0x2b8] sm:$0xff]
    %v3182 = vld [vmem:[#allocation7 + $0x2c0] sm:$0xff]
    %v3183 = vld [vmem:[#allocation7 + $0x2c8] sm:$0xff]
    %v3184 = vld [vmem:[#allocation7 + $0x2d0] sm:$0xff]
    %v3185 = vld [vmem:[#allocation7 + $0x2d8] sm:$0xff]
    %v3186 = vld [vmem:[#allocation7 + $0x2e0] sm:$0xff]
    %v3187 = vld [vmem:[#allocation7 + $0x2e8] sm:$0xff]
    %v3188 = vld [vmem:[#allocation7 + $0x2f0] sm:$0xff]
    %v3189 = vld [vmem:[#allocation7 + $0x2f8] sm:$0xff]
    %v3190 = vld [vmem:[#allocation7 + $0x300] sm:$0xff]
    %v3191 = vld [vmem:[#allocation7 + $0x308] sm:$0xff]
    %v3192 = vld [vmem:[#allocation7 + $0x310] sm:$0xff]
    %v3193 = vld [vmem:[#allocation7 + $0x318] sm:$0xff]
    %v3194 = vld [vmem:[#allocation7 + $0x320] sm:$0xff]
    %v3195 = vld [vmem:[#allocation7 + $0x328] sm:$0xff]
    %v3196 = vld [vmem:[#allocation7 + $0x330] sm:$0xff]
    %v3197 = vld [vmem:[#allocation7 + $0x338] sm:$0xff]
    %v3198 = vld [vmem:[#allocation7 + $0x340] sm:$0xff]
    %v3199 = vld [vmem:[#allocation7 + $0x348] sm:$0xff]
    %v3200 = vld [vmem:[#allocation7 + $0x350] sm:$0xff]
    %v3201 = vld [vmem:[#allocation7 + $0x358] sm:$0xff]
    %v3202 = vld [vmem:[#allocation7 + $0x360] sm:$0xff]
    %v3203 = vld [vmem:[#allocation7 + $0x368] sm:$0xff]
    %v3204 = vld [vmem:[#allocation7 + $0x370] sm:$0xff]
    %v3205 = vld [vmem:[#allocation7 + $0x378] sm:$0xff]
    %v3206 = vld [vmem:[#allocation7 + $0x380] sm:$0xff]
    %v3207 = vld [vmem:[#allocation7 + $0x388] sm:$0xff]
    %v3208 = vld [vmem:[#allocation7 + $0x390] sm:$0xff]
    %v3209 = vld [vmem:[#allocation7 + $0x398] sm:$0xff]
    %v3210 = vld [vmem:[#allocation7 + $0x3a0] sm:$0xff]
    %v3211 = vld [vmem:[#allocation7 + $0x3a8] sm:$0xff]
    %v3212 = vld [vmem:[#allocation7 + $0x3b0] sm:$0xff]
    %v3213 = vld [vmem:[#allocation7 + $0x3b8] sm:$0xff]
    %v3214 = vld [vmem:[#allocation7 + $0x3c0] sm:$0xff]
    %v3215 = vld [vmem:[#allocation7 + $0x3c8] sm:$0xff]
    %v3216 = vld [vmem:[#allocation7 + $0x3d0] sm:$0xff]
    %v3217 = vld [vmem:[#allocation7 + $0x3d8] sm:$0xff]
    %v3218 = vld [vmem:[#allocation7 + $0x3e0] sm:$0xff]
    %v3219 = vld [vmem:[#allocation7 + $0x3e8] sm:$0xff]
    %v3220 = vld [vmem:[#allocation7 + $0x3f0] sm:$0xff]
    %v3221 = vld [vmem:[#allocation7 + $0x3f8] sm:$0xff]
    %v3222 = vld [vmem:[#allocation7 + $0x400] sm:$0xff]
    %v3223 = vld [vmem:[#allocation7 + $0x408] sm:$0xff]
    %v3224 = vld [vmem:[#allocation7 + $0x410] sm:$0xff]
    %v3225 = vld [vmem:[#allocation7 + $0x418] sm:$0xff]
    %v3226 = vld [vmem:[#allocation7 + $0x420] sm:$0xff]
    %v3227 = vld [vmem:[#allocation7 + $0x428] sm:$0xff]
    %v3228 = vld [vmem:[#allocation7 + $0x430] sm:$0xff]
    %v3229 = vld [vmem:[#allocation7 + $0x438] sm:$0xff]
    %v3230 = vld [vmem:[#allocation7 + $0x440] sm:$0xff]
    %v3231 = vld [vmem:[#allocation7 + $0x448] sm:$0xff]
    %v3232 = vld [vmem:[#allocation7 + $0x450] sm:$0xff]
    %v3233 = vld [vmem:[#allocation7 + $0x458] sm:$0xff]
    %v3234 = vld [vmem:[#allocation7 + $0x460] sm:$0xff]
    %v3235 = vld [vmem:[#allocation7 + $0x468] sm:$0xff]
    %v3236 = vld [vmem:[#allocation7 + $0x470] sm:$0xff]
    %v3237 = vld [vmem:[#allocation7 + $0x478] sm:$0xff]
    %v3238 = vld [vmem:[#allocation7 + $0x480] sm:$0xff]
    %v3239 = vld [vmem:[#allocation7 + $0x488] sm:$0xff]
    %v3240 = vld [vmem:[#allocation7 + $0x490] sm:$0xff]
    %v3241 = vld [vmem:[#allocation7 + $0x498] sm:$0xff]
    %v3242 = vld [vmem:[#allocation7 + $0x4a0] sm:$0xff]
    %v3243 = vld [vmem:[#allocation7 + $0x4a8] sm:$0xff]
    %v3244 = vld [vmem:[#allocation7 + $0x4b0] sm:$0xff]
    %v3245 = vld [vmem:[#allocation7 + $0x4b8] sm:$0xff]
    %v3246 = vld [vmem:[#allocation7 + $0x4c0] sm:$0xff]
    %v3247 = vld [vmem:[#allocation7 + $0x4c8] sm:$0xff]
    %v3248 = vld [vmem:[#allocation7 + $0x4d0] sm:$0xff]
    %v3249 = vld [vmem:[#allocation7 + $0x4d8] sm:$0xff]
    %v3250 = vld [vmem:[#allocation7 + $0x4e0] sm:$0xff]
    %v3251 = vld [vmem:[#allocation7 + $0x4e8] sm:$0xff]
    %v3252 = vld [vmem:[#allocation7 + $0x4f0] sm:$0xff]
    %v3253 = vld [vmem:[#allocation7 + $0x4f8] sm:$0xff]
    %v3254 = vld [vmem:[#allocation7 + $0x500] sm:$0xff]
    %v3255 = vld [vmem:[#allocation7 + $0x508] sm:$0xff]
    %v3256 = vld [vmem:[#allocation7 + $0x510] sm:$0xff]
    %v3257 = vld [vmem:[#allocation7 + $0x518] sm:$0xff]
    %v3258 = vld [vmem:[#allocation7 + $0x520] sm:$0xff]
    %v3259 = vld [vmem:[#allocation7 + $0x528] sm:$0xff]
    %v3260 = vld [vmem:[#allocation7 + $0x530] sm:$0xff]
    %v3261 = vld [vmem:[#allocation7 + $0x538] sm:$0xff]
    %v3262 = vld [vmem:[#allocation7 + $0x540] sm:$0xff]
    %v3263 = vld [vmem:[#allocation7 + $0x548] sm:$0xff]
    %v3264 = vld [vmem:[#allocation7 + $0x550] sm:$0xff]
    %v3265 = vld [vmem:[#allocation7 + $0x558] sm:$0xff]
    %v3266 = vld [vmem:[#allocation7 + $0x560] sm:$0xff]
    %v3267 = vld [vmem:[#allocation7 + $0x568] sm:$0xff]
    %v3268 = vld [vmem:[#allocation7 + $0x570] sm:$0xff]
    %v3269 = vld [vmem:[#allocation7 + $0x578] sm:$0xff]
    %v3270 = vld [vmem:[#allocation7 + $0x580] sm:$0xff]
    %v3271 = vld [vmem:[#allocation7 + $0x588] sm:$0xff]
    %v3272 = vld [vmem:[#allocation7 + $0x590] sm:$0xff]
    %v3273 = vld [vmem:[#allocation7 + $0x598] sm:$0xff]
    %v3274 = vld [vmem:[#allocation7 + $0x5a0] sm:$0xff]
    %v3275 = vld [vmem:[#allocation7 + $0x5a8] sm:$0xff]
    %v3276 = vld [vmem:[#allocation7 + $0x5b0] sm:$0xff]
    %v3277 = vld [vmem:[#allocation7 + $0x5b8] sm:$0xff]
    %v3278 = vld [vmem:[#allocation7 + $0x5c0] sm:$0xff]
    %v3279 = vld [vmem:[#allocation7 + $0x5c8] sm:$0xff]
    %v3280 = vld [vmem:[#allocation7 + $0x5d0] sm:$0xff]
    %v3281 = vld [vmem:[#allocation7 + $0x5d8] sm:$0xff]
    %v3282 = vld [vmem:[#allocation7 + $0x5e0] sm:$0xff]
    %v3283 = vld [vmem:[#allocation7 + $0x5e8] sm:$0xff]
    %v3284 = vld [vmem:[#allocation7 + $0x5f0] sm:$0xff]
    %v3285 = vld [vmem:[#allocation7 + $0x5f8] sm:$0xff]
    %v3286 = vld [vmem:[#allocation7 + $0x600] sm:$0xff]
    %v3287 = vld [vmem:[#allocation7 + $0x608] sm:$0xff]
    %v3288 = vld [vmem:[#allocation7 + $0x610] sm:$0xff]
    %v3289 = vld [vmem:[#allocation7 + $0x618] sm:$0xff]
    %v3290 = vld [vmem:[#allocation7 + $0x620] sm:$0xff]
    %v3291 = vld [vmem:[#allocation7 + $0x628] sm:$0xff]
    %v3292 = vld [vmem:[#allocation7 + $0x630] sm:$0xff]
    %v3293 = vld [vmem:[#allocation7 + $0x638] sm:$0xff]
    %v3294 = vld [vmem:[#allocation7 + $0x640] sm:$0xff]
    %v3295 = vld [vmem:[#allocation7 + $0x648] sm:$0xff]
    %v3296 = vld [vmem:[#allocation7 + $0x650] sm:$0xff]
    %v3297 = vld [vmem:[#allocation7 + $0x658] sm:$0xff]
    %v3298 = vld [vmem:[#allocation7 + $0x660] sm:$0xff]
    %v3299 = vld [vmem:[#allocation7 + $0x668] sm:$0xff]
    %v3300 = vld [vmem:[#allocation7 + $0x670] sm:$0xff]
    %v3301 = vld [vmem:[#allocation7 + $0x678] sm:$0xff]
    %v3302 = vld [vmem:[#allocation7 + $0x680] sm:$0xff]
    %v3303 = vld [vmem:[#allocation7 + $0x688] sm:$0xff]
    %v3304 = vld [vmem:[#allocation7 + $0x690] sm:$0xff]
    %v3305 = vld [vmem:[#allocation7 + $0x698] sm:$0xff]
    %v3306 = vld [vmem:[#allocation7 + $0x6a0] sm:$0xff]
    %v3307 = vld [vmem:[#allocation7 + $0x6a8] sm:$0xff]
    %v3308 = vld [vmem:[#allocation7 + $0x6b0] sm:$0xff]
    %v3309 = vld [vmem:[#allocation7 + $0x6b8] sm:$0xff]
    %v3310 = vld [vmem:[#allocation7 + $0x6c0] sm:$0xff]
    %v3311 = vld [vmem:[#allocation7 + $0x6c8] sm:$0xff]
    %v3312 = vld [vmem:[#allocation7 + $0x6d0] sm:$0xff]
    %v3313 = vld [vmem:[#allocation7 + $0x6d8] sm:$0xff]
    %v3314 = vld [vmem:[#allocation7 + $0x6e0] sm:$0xff]
    %v3315 = vld [vmem:[#allocation7 + $0x6e8] sm:$0xff]
    %v3316 = vld [vmem:[#allocation7 + $0x6f0] sm:$0xff]
    %v3317 = vld [vmem:[#allocation7 + $0x6f8] sm:$0xff]
    %v3318 = vld [vmem:[#allocation7 + $0x700] sm:$0xff]
    %v3319 = vld [vmem:[#allocation7 + $0x708] sm:$0xff]
    %v3320 = vld [vmem:[#allocation7 + $0x710] sm:$0xff]
    %v3321 = vld [vmem:[#allocation7 + $0x718] sm:$0xff]
    %v3322 = vld [vmem:[#allocation7 + $0x720] sm:$0xff]
    %v3323 = vld [vmem:[#allocation7 + $0x728] sm:$0xff]
    %v3324 = vld [vmem:[#allocation7 + $0x730] sm:$0xff]
    %v3325 = vld [vmem:[#allocation7 + $0x738] sm:$0xff]
    %v3326 = vld [vmem:[#allocation7 + $0x740] sm:$0xff]
    %v3327 = vld [vmem:[#allocation7 + $0x748] sm:$0xff]
    %v3328 = vld [vmem:[#allocation7 + $0x750] sm:$0xff]
    %v3329 = vld [vmem:[#allocation7 + $0x758] sm:$0xff]
    %v3330 = vld [vmem:[#allocation7 + $0x760] sm:$0xff]
    %v3331 = vld [vmem:[#allocation7 + $0x768] sm:$0xff]
    %v3332 = vld [vmem:[#allocation7 + $0x770] sm:$0xff]
    %v3333 = vld [vmem:[#allocation7 + $0x778] sm:$0xff]
    %v3334 = vld [vmem:[#allocation7 + $0x780] sm:$0xff]
    %v3335 = vld [vmem:[#allocation7 + $0x788] sm:$0xff]
    %v3336 = vld [vmem:[#allocation7 + $0x790] sm:$0xff]
    %v3337 = vld [vmem:[#allocation7 + $0x798] sm:$0xff]
    %v3338 = vld [vmem:[#allocation7 + $0x7a0] sm:$0xff]
    %v3339 = vld [vmem:[#allocation7 + $0x7a8] sm:$0xff]
    %v3340 = vld [vmem:[#allocation7 + $0x7b0] sm:$0xff]
    %v3341 = vld [vmem:[#allocation7 + $0x7b8] sm:$0xff]
    %v3342 = vld [vmem:[#allocation7 + $0x7c0] sm:$0xff]
    %v3343 = vld [vmem:[#allocation7 + $0x7c8] sm:$0xff]
    %v3344 = vld [vmem:[#allocation7 + $0x7d0] sm:$0xff]
    %v3345 = vld [vmem:[#allocation7 + $0x7d8] sm:$0xff]
    %v3346 = vld [vmem:[#allocation7 + $0x7e0] sm:$0xff]
    %v3347 = vld [vmem:[#allocation7 + $0x7e8] sm:$0xff]
    %v3348 = vld [vmem:[#allocation7 + $0x7f0] sm:$0xff]
    %v3349 = vld [vmem:[#allocation7 + $0x7f8] sm:$0xff]
    %v3350 = vld [vmem:[%s8 + $0x10] sm:$0xf]
    %v3352 = vlaneseq
    %v3353 = vshrl.u32 %v3352, 7
    %v3354 = vsub.s32 0, %v3353
    %v3355 = vrot.slane %v3350, %v3354
    %v3356 = vlaneseq
    %v3357 = vshrl.u32 %v3356, 7
    %v3358 = vsub.s32 1, %v3357
    %v3359 = vrot.slane %v3350, %v3358
    %v3360 = vlaneseq
    %v3361 = vshrl.u32 %v3360, 7
    %v3362 = vsub.s32 2, %v3361
    %v3363 = vrot.slane %v3350, %v3362
    %v3364 = vlaneseq
    %v3365 = vshrl.u32 %v3364, 7
    %v3366 = vsub.s32 3, %v3365
    %v3367 = vrot.slane %v3350, %v3366
    %v3628 = vunpack.c.l.b16 %v3094
    %v3629 = vunpack.c.h.b16 %v3094
    %v3630 = vunpack.c.l.b16 %v3095
    %v3631 = vunpack.c.h.b16 %v3095
    %v3632 = vunpack.c.l.b16 %v3096
    %v3633 = vunpack.c.h.b16 %v3096
    %v3634 = vunpack.c.l.b16 %v3097
    %v3635 = vunpack.c.h.b16 %v3097
    %v3636 = vunpack.c.l.b16 %v3098
    %v3637 = vunpack.c.h.b16 %v3098
    %v3638 = vunpack.c.l.b16 %v3099
    %v3639 = vunpack.c.h.b16 %v3099
    %v3640 = vunpack.c.l.b16 %v3100
    %v3641 = vunpack.c.h.b16 %v3100
    %v3642 = vunpack.c.l.b16 %v3101
    %v3643 = vunpack.c.h.b16 %v3101
    %v3644 = vunpack.c.l.b16 %v3102
    %v3645 = vunpack.c.h.b16 %v3102
    %v3646 = vunpack.c.l.b16 %v3103
    %v3647 = vunpack.c.h.b16 %v3103
    %v3648 = vunpack.c.l.b16 %v3104
    %v3649 = vunpack.c.h.b16 %v3104
    %v3650 = vunpack.c.l.b16 %v3105
    %v3651 = vunpack.c.h.b16 %v3105
    %v3652 = vunpack.c.l.b16 %v3106
    %v3653 = vunpack.c.h.b16 %v3106
    %v3654 = vunpack.c.l.b16 %v3107
    %v3655 = vunpack.c.h.b16 %v3107
    %v3656 = vunpack.c.l.b16 %v3108
    %v3657 = vunpack.c.h.b16 %v3108
    %v3658 = vunpack.c.l.b16 %v3109
    %v3659 = vunpack.c.h.b16 %v3109
    %v3660 = vunpack.c.l.b16 %v3110
    %v3661 = vunpack.c.h.b16 %v3110
    %v3662 = vunpack.c.l.b16 %v3111
    %v3663 = vunpack.c.h.b16 %v3111
    %v3664 = vunpack.c.l.b16 %v3112
    %v3665 = vunpack.c.h.b16 %v3112
    %v3666 = vunpack.c.l.b16 %v3113
    %v3667 = vunpack.c.h.b16 %v3113
    %v3668 = vunpack.c.l.b16 %v3114
    %v3669 = vunpack.c.h.b16 %v3114
    %v3670 = vunpack.c.l.b16 %v3115
    %v3671 = vunpack.c.h.b16 %v3115
    %v3672 = vunpack.c.l.b16 %v3116
    %v3673 = vunpack.c.h.b16 %v3116
    %v3674 = vunpack.c.l.b16 %v3117
    %v3675 = vunpack.c.h.b16 %v3117
    %v3676 = vunpack.c.l.b16 %v3118
    %v3677 = vunpack.c.h.b16 %v3118
    %v3678 = vunpack.c.l.b16 %v3119
    %v3679 = vunpack.c.h.b16 %v3119
    %v3680 = vunpack.c.l.b16 %v3120
    %v3681 = vunpack.c.h.b16 %v3120
    %v3682 = vunpack.c.l.b16 %v3121
    %v3683 = vunpack.c.h.b16 %v3121
    %v3684 = vunpack.c.l.b16 %v3122
    %v3685 = vunpack.c.h.b16 %v3122
    %v3686 = vunpack.c.l.b16 %v3123
    %v3687 = vunpack.c.h.b16 %v3123
    %v3688 = vunpack.c.l.b16 %v3124
    %v3689 = vunpack.c.h.b16 %v3124
    %v3690 = vunpack.c.l.b16 %v3125
    %v3691 = vunpack.c.h.b16 %v3125
    %v3692 = vunpack.c.l.b16 %v3126
    %v3693 = vunpack.c.h.b16 %v3126
    %v3694 = vunpack.c.l.b16 %v3127
    %v3695 = vunpack.c.h.b16 %v3127
    %v3696 = vunpack.c.l.b16 %v3128
    %v3697 = vunpack.c.h.b16 %v3128
    %v3698 = vunpack.c.l.b16 %v3129
    %v3699 = vunpack.c.h.b16 %v3129
    %v3700 = vunpack.c.l.b16 %v3130
    %v3701 = vunpack.c.h.b16 %v3130
    %v3702 = vunpack.c.l.b16 %v3131
    %v3703 = vunpack.c.h.b16 %v3131
    %v3704 = vunpack.c.l.b16 %v3132
    %v3705 = vunpack.c.h.b16 %v3132
    %v3706 = vunpack.c.l.b16 %v3133
    %v3707 = vunpack.c.h.b16 %v3133
    %v3708 = vunpack.c.l.b16 %v3134
    %v3709 = vunpack.c.h.b16 %v3134
    %v3710 = vunpack.c.l.b16 %v3135
    %v3711 = vunpack.c.h.b16 %v3135
    %v3712 = vunpack.c.l.b16 %v3136
    %v3713 = vunpack.c.h.b16 %v3136
    %v3714 = vunpack.c.l.b16 %v3137
    %v3715 = vunpack.c.h.b16 %v3137
    %v3716 = vunpack.c.l.b16 %v3138
    %v3717 = vunpack.c.h.b16 %v3138
    %v3718 = vunpack.c.l.b16 %v3139
    %v3719 = vunpack.c.h.b16 %v3139
    %v3720 = vunpack.c.l.b16 %v3140
    %v3721 = vunpack.c.h.b16 %v3140
    %v3722 = vunpack.c.l.b16 %v3141
    %v3723 = vunpack.c.h.b16 %v3141
    %v3724 = vunpack.c.l.b16 %v3142
    %v3725 = vunpack.c.h.b16 %v3142
    %v3726 = vunpack.c.l.b16 %v3143
    %v3727 = vunpack.c.h.b16 %v3143
    %v3728 = vunpack.c.l.b16 %v3144
    %v3729 = vunpack.c.h.b16 %v3144
    %v3730 = vunpack.c.l.b16 %v3145
    %v3731 = vunpack.c.h.b16 %v3145
    %v3732 = vunpack.c.l.b16 %v3146
    %v3733 = vunpack.c.h.b16 %v3146
    %v3734 = vunpack.c.l.b16 %v3147
    %v3735 = vunpack.c.h.b16 %v3147
    %v3736 = vunpack.c.l.b16 %v3148
    %v3737 = vunpack.c.h.b16 %v3148
    %v3738 = vunpack.c.l.b16 %v3149
    %v3739 = vunpack.c.h.b16 %v3149
    %v3740 = vunpack.c.l.b16 %v3150
    %v3741 = vunpack.c.h.b16 %v3150
    %v3742 = vunpack.c.l.b16 %v3151
    %v3743 = vunpack.c.h.b16 %v3151
    %v3744 = vunpack.c.l.b16 %v3152
    %v3745 = vunpack.c.h.b16 %v3152
    %v3746 = vunpack.c.l.b16 %v3153
    %v3747 = vunpack.c.h.b16 %v3153
    %v3748 = vunpack.c.l.b16 %v3154
    %v3749 = vunpack.c.h.b16 %v3154
    %v3750 = vunpack.c.l.b16 %v3155
    %v3751 = vunpack.c.h.b16 %v3155
    %v3752 = vunpack.c.l.b16 %v3156
    %v3753 = vunpack.c.h.b16 %v3156
    %v3754 = vunpack.c.l.b16 %v3157
    %v3755 = vunpack.c.h.b16 %v3157
    %v3756 = vunpack.c.l.b16 %v3158
    %v3757 = vunpack.c.h.b16 %v3158
    %v3758 = vunpack.c.l.b16 %v3159
    %v3759 = vunpack.c.h.b16 %v3159
    %v3760 = vunpack.c.l.b16 %v3160
    %v3761 = vunpack.c.h.b16 %v3160
    %v3762 = vunpack.c.l.b16 %v3161
    %v3763 = vunpack.c.h.b16 %v3161
    %v3764 = vunpack.c.l.b16 %v3162
    %v3765 = vunpack.c.h.b16 %v3162
    %v3766 = vunpack.c.l.b16 %v3163
    %v3767 = vunpack.c.h.b16 %v3163
    %v3768 = vunpack.c.l.b16 %v3164
    %v3769 = vunpack.c.h.b16 %v3164
    %v3770 = vunpack.c.l.b16 %v3165
    %v3771 = vunpack.c.h.b16 %v3165
    %v3772 = vunpack.c.l.b16 %v3166
    %v3773 = vunpack.c.h.b16 %v3166
    %v3774 = vunpack.c.l.b16 %v3167
    %v3775 = vunpack.c.h.b16 %v3167
    %v3776 = vunpack.c.l.b16 %v3168
    %v3777 = vunpack.c.h.b16 %v3168
    %v3778 = vunpack.c.l.b16 %v3169
    %v3779 = vunpack.c.h.b16 %v3169
    %v3780 = vunpack.c.l.b16 %v3170
    %v3781 = vunpack.c.h.b16 %v3170
    %v3782 = vunpack.c.l.b16 %v3171
    %v3783 = vunpack.c.h.b16 %v3171
    %v3784 = vunpack.c.l.b16 %v3172
    %v3785 = vunpack.c.h.b16 %v3172
    %v3786 = vunpack.c.l.b16 %v3173
    %v3787 = vunpack.c.h.b16 %v3173
    %v3788 = vunpack.c.l.b16 %v3174
    %v3789 = vunpack.c.h.b16 %v3174
    %v3790 = vunpack.c.l.b16 %v3175
    %v3791 = vunpack.c.h.b16 %v3175
    %v3792 = vunpack.c.l.b16 %v3176
    %v3793 = vunpack.c.h.b16 %v3176
    %v3794 = vunpack.c.l.b16 %v3177
    %v3795 = vunpack.c.h.b16 %v3177
    %v3796 = vunpack.c.l.b16 %v3178
    %v3797 = vunpack.c.h.b16 %v3178
    %v3798 = vunpack.c.l.b16 %v3179
    %v3799 = vunpack.c.h.b16 %v3179
    %v3800 = vunpack.c.l.b16 %v3180
    %v3801 = vunpack.c.h.b16 %v3180
    %v3802 = vunpack.c.l.b16 %v3181
    %v3803 = vunpack.c.h.b16 %v3181
    %v3804 = vunpack.c.l.b16 %v3182
    %v3805 = vunpack.c.h.b16 %v3182
    %v3806 = vunpack.c.l.b16 %v3183
    %v3807 = vunpack.c.h.b16 %v3183
    %v3808 = vunpack.c.l.b16 %v3184
    %v3809 = vunpack.c.h.b16 %v3184
    %v3810 = vunpack.c.l.b16 %v3185
    %v3811 = vunpack.c.h.b16 %v3185
    %v3812 = vunpack.c.l.b16 %v3186
    %v3813 = vunpack.c.h.b16 %v3186
    %v3814 = vunpack.c.l.b16 %v3187
    %v3815 = vunpack.c.h.b16 %v3187
    %v3816 = vunpack.c.l.b16 %v3188
    %v3817 = vunpack.c.h.b16 %v3188
    %v3818 = vunpack.c.l.b16 %v3189
    %v3819 = vunpack.c.h.b16 %v3189
    %v3820 = vunpack.c.l.b16 %v3190
    %v3821 = vunpack.c.h.b16 %v3190
    %v3822 = vunpack.c.l.b16 %v3191
    %v3823 = vunpack.c.h.b16 %v3191
    %v3824 = vunpack.c.l.b16 %v3192
    %v3825 = vunpack.c.h.b16 %v3192
    %v3826 = vunpack.c.l.b16 %v3193
    %v3827 = vunpack.c.h.b16 %v3193
    %v3828 = vunpack.c.l.b16 %v3194
    %v3829 = vunpack.c.h.b16 %v3194
    %v3830 = vunpack.c.l.b16 %v3195
    %v3831 = vunpack.c.h.b16 %v3195
    %v3832 = vunpack.c.l.b16 %v3196
    %v3833 = vunpack.c.h.b16 %v3196
    %v3834 = vunpack.c.l.b16 %v3197
    %v3835 = vunpack.c.h.b16 %v3197
    %v3836 = vunpack.c.l.b16 %v3198
    %v3837 = vunpack.c.h.b16 %v3198
    %v3838 = vunpack.c.l.b16 %v3199
    %v3839 = vunpack.c.h.b16 %v3199
    %v3840 = vunpack.c.l.b16 %v3200
    %v3841 = vunpack.c.h.b16 %v3200
    %v3842 = vunpack.c.l.b16 %v3201
    %v3843 = vunpack.c.h.b16 %v3201
    %v3844 = vunpack.c.l.b16 %v3202
    %v3845 = vunpack.c.h.b16 %v3202
    %v3846 = vunpack.c.l.b16 %v3203
    %v3847 = vunpack.c.h.b16 %v3203
    %v3848 = vunpack.c.l.b16 %v3204
    %v3849 = vunpack.c.h.b16 %v3204
    %v3850 = vunpack.c.l.b16 %v3205
    %v3851 = vunpack.c.h.b16 %v3205
    %v3852 = vunpack.c.l.b16 %v3206
    %v3853 = vunpack.c.h.b16 %v3206
    %v3854 = vunpack.c.l.b16 %v3207
    %v3855 = vunpack.c.h.b16 %v3207
    %v3856 = vunpack.c.l.b16 %v3208
    %v3857 = vunpack.c.h.b16 %v3208
    %v3858 = vunpack.c.l.b16 %v3209
    %v3859 = vunpack.c.h.b16 %v3209
    %v3860 = vunpack.c.l.b16 %v3210
    %v3861 = vunpack.c.h.b16 %v3210
    %v3862 = vunpack.c.l.b16 %v3211
    %v3863 = vunpack.c.h.b16 %v3211
    %v3864 = vunpack.c.l.b16 %v3212
    %v3865 = vunpack.c.h.b16 %v3212
    %v3866 = vunpack.c.l.b16 %v3213
    %v3867 = vunpack.c.h.b16 %v3213
    %v3868 = vunpack.c.l.b16 %v3214
    %v3869 = vunpack.c.h.b16 %v3214
    %v3870 = vunpack.c.l.b16 %v3215
    %v3871 = vunpack.c.h.b16 %v3215
    %v3872 = vunpack.c.l.b16 %v3216
    %v3873 = vunpack.c.h.b16 %v3216
    %v3874 = vunpack.c.l.b16 %v3217
    %v3875 = vunpack.c.h.b16 %v3217
    %v3876 = vunpack.c.l.b16 %v3218
    %v3877 = vunpack.c.h.b16 %v3218
    %v3878 = vunpack.c.l.b16 %v3219
    %v3879 = vunpack.c.h.b16 %v3219
    %v3880 = vunpack.c.l.b16 %v3220
    %v3881 = vunpack.c.h.b16 %v3220
    %v3882 = vunpack.c.l.b16 %v3221
    %v3883 = vunpack.c.h.b16 %v3221
    %v3884 = vunpack.c.l.b16 %v3222
    %v3885 = vunpack.c.h.b16 %v3222
    %v3886 = vunpack.c.l.b16 %v3223
    %v3887 = vunpack.c.h.b16 %v3223
    %v3888 = vunpack.c.l.b16 %v3224
    %v3889 = vunpack.c.h.b16 %v3224
    %v3890 = vunpack.c.l.b16 %v3225
    %v3891 = vunpack.c.h.b16 %v3225
    %v3892 = vunpack.c.l.b16 %v3226
    %v3893 = vunpack.c.h.b16 %v3226
    %v3894 = vunpack.c.l.b16 %v3227
    %v3895 = vunpack.c.h.b16 %v3227
    %v3896 = vunpack.c.l.b16 %v3228
    %v3897 = vunpack.c.h.b16 %v3228
    %v3898 = vunpack.c.l.b16 %v3229
    %v3899 = vunpack.c.h.b16 %v3229
    %v3900 = vunpack.c.l.b16 %v3230
    %v3901 = vunpack.c.h.b16 %v3230
    %v3902 = vunpack.c.l.b16 %v3231
    %v3903 = vunpack.c.h.b16 %v3231
    %v3904 = vunpack.c.l.b16 %v3232
    %v3905 = vunpack.c.h.b16 %v3232
    %v3906 = vunpack.c.l.b16 %v3233
    %v3907 = vunpack.c.h.b16 %v3233
    %v3908 = vunpack.c.l.b16 %v3234
    %v3909 = vunpack.c.h.b16 %v3234
    %v3910 = vunpack.c.l.b16 %v3235
    %v3911 = vunpack.c.h.b16 %v3235
    %v3912 = vunpack.c.l.b16 %v3236
    %v3913 = vunpack.c.h.b16 %v3236
    %v3914 = vunpack.c.l.b16 %v3237
    %v3915 = vunpack.c.h.b16 %v3237
    %v3916 = vunpack.c.l.b16 %v3238
    %v3917 = vunpack.c.h.b16 %v3238
    %v3918 = vunpack.c.l.b16 %v3239
    %v3919 = vunpack.c.h.b16 %v3239
    %v3920 = vunpack.c.l.b16 %v3240
    %v3921 = vunpack.c.h.b16 %v3240
    %v3922 = vunpack.c.l.b16 %v3241
    %v3923 = vunpack.c.h.b16 %v3241
    %v3924 = vunpack.c.l.b16 %v3242
    %v3925 = vunpack.c.h.b16 %v3242
    %v3926 = vunpack.c.l.b16 %v3243
    %v3927 = vunpack.c.h.b16 %v3243
    %v3928 = vunpack.c.l.b16 %v3244
    %v3929 = vunpack.c.h.b16 %v3244
    %v3930 = vunpack.c.l.b16 %v3245
    %v3931 = vunpack.c.h.b16 %v3245
    %v3932 = vunpack.c.l.b16 %v3246
    %v3933 = vunpack.c.h.b16 %v3246
    %v3934 = vunpack.c.l.b16 %v3247
    %v3935 = vunpack.c.h.b16 %v3247
    %v3936 = vunpack.c.l.b16 %v3248
    %v3937 = vunpack.c.h.b16 %v3248
    %v3938 = vunpack.c.l.b16 %v3249
    %v3939 = vunpack.c.h.b16 %v3249
    %v3940 = vunpack.c.l.b16 %v3250
    %v3941 = vunpack.c.h.b16 %v3250
    %v3942 = vunpack.c.l.b16 %v3251
    %v3943 = vunpack.c.h.b16 %v3251
    %v3944 = vunpack.c.l.b16 %v3252
    %v3945 = vunpack.c.h.b16 %v3252
    %v3946 = vunpack.c.l.b16 %v3253
    %v3947 = vunpack.c.h.b16 %v3253
    %v3948 = vunpack.c.l.b16 %v3254
    %v3949 = vunpack.c.h.b16 %v3254
    %v3950 = vunpack.c.l.b16 %v3255
    %v3951 = vunpack.c.h.b16 %v3255
    %v3952 = vunpack.c.l.b16 %v3256
    %v3953 = vunpack.c.h.b16 %v3256
    %v3954 = vunpack.c.l.b16 %v3257
    %v3955 = vunpack.c.h.b16 %v3257
    %v3956 = vunpack.c.l.b16 %v3258
    %v3957 = vunpack.c.h.b16 %v3258
    %v3958 = vunpack.c.l.b16 %v3259
    %v3959 = vunpack.c.h.b16 %v3259
    %v3960 = vunpack.c.l.b16 %v3260
    %v3961 = vunpack.c.h.b16 %v3260
    %v3962 = vunpack.c.l.b16 %v3261
    %v3963 = vunpack.c.h.b16 %v3261
    %v3964 = vunpack.c.l.b16 %v3262
    %v3965 = vunpack.c.h.b16 %v3262
    %v3966 = vunpack.c.l.b16 %v3263
    %v3967 = vunpack.c.h.b16 %v3263
    %v3968 = vunpack.c.l.b16 %v3264
    %v3969 = vunpack.c.h.b16 %v3264
    %v3970 = vunpack.c.l.b16 %v3265
    %v3971 = vunpack.c.h.b16 %v3265
    %v3972 = vunpack.c.l.b16 %v3266
    %v3973 = vunpack.c.h.b16 %v3266
    %v3974 = vunpack.c.l.b16 %v3267
    %v3975 = vunpack.c.h.b16 %v3267
    %v3976 = vunpack.c.l.b16 %v3268
    %v3977 = vunpack.c.h.b16 %v3268
    %v3978 = vunpack.c.l.b16 %v3269
    %v3979 = vunpack.c.h.b16 %v3269
    %v3980 = vunpack.c.l.b16 %v3270
    %v3981 = vunpack.c.h.b16 %v3270
    %v3982 = vunpack.c.l.b16 %v3271
    %v3983 = vunpack.c.h.b16 %v3271
    %v3984 = vunpack.c.l.b16 %v3272
    %v3985 = vunpack.c.h.b16 %v3272
    %v3986 = vunpack.c.l.b16 %v3273
    %v3987 = vunpack.c.h.b16 %v3273
    %v3988 = vunpack.c.l.b16 %v3274
    %v3989 = vunpack.c.h.b16 %v3274
    %v3990 = vunpack.c.l.b16 %v3275
    %v3991 = vunpack.c.h.b16 %v3275
    %v3992 = vunpack.c.l.b16 %v3276
    %v3993 = vunpack.c.h.b16 %v3276
    %v3994 = vunpack.c.l.b16 %v3277
    %v3995 = vunpack.c.h.b16 %v3277
    %v3996 = vunpack.c.l.b16 %v3278
    %v3997 = vunpack.c.h.b16 %v3278
    %v3998 = vunpack.c.l.b16 %v3279
    %v3999 = vunpack.c.h.b16 %v3279
    %v4000 = vunpack.c.l.b16 %v3280
    %v4001 = vunpack.c.h.b16 %v3280
    %v4002 = vunpack.c.l.b16 %v3281
    %v4003 = vunpack.c.h.b16 %v3281
    %v4004 = vunpack.c.l.b16 %v3282
    %v4005 = vunpack.c.h.b16 %v3282
    %v4006 = vunpack.c.l.b16 %v3283
    %v4007 = vunpack.c.h.b16 %v3283
    %v4008 = vunpack.c.l.b16 %v3284
    %v4009 = vunpack.c.h.b16 %v3284
    %v4010 = vunpack.c.l.b16 %v3285
    %v4011 = vunpack.c.h.b16 %v3285
    %v4012 = vunpack.c.l.b16 %v3286
    %v4013 = vunpack.c.h.b16 %v3286
    %v4014 = vunpack.c.l.b16 %v3287
    %v4015 = vunpack.c.h.b16 %v3287
    %v4016 = vunpack.c.l.b16 %v3288
    %v4017 = vunpack.c.h.b16 %v3288
    %v4018 = vunpack.c.l.b16 %v3289
    %v4019 = vunpack.c.h.b16 %v3289
    %v4020 = vunpack.c.l.b16 %v3290
    %v4021 = vunpack.c.h.b16 %v3290
    %v4022 = vunpack.c.l.b16 %v3291
    %v4023 = vunpack.c.h.b16 %v3291
    %v4024 = vunpack.c.l.b16 %v3292
    %v4025 = vunpack.c.h.b16 %v3292
    %v4026 = vunpack.c.l.b16 %v3293
    %v4027 = vunpack.c.h.b16 %v3293
    %v4028 = vunpack.c.l.b16 %v3294
    %v4029 = vunpack.c.h.b16 %v3294
    %v4030 = vunpack.c.l.b16 %v3295
    %v4031 = vunpack.c.h.b16 %v3295
    %v4032 = vunpack.c.l.b16 %v3296
    %v4033 = vunpack.c.h.b16 %v3296
    %v4034 = vunpack.c.l.b16 %v3297
    %v4035 = vunpack.c.h.b16 %v3297
    %v4036 = vunpack.c.l.b16 %v3298
    %v4037 = vunpack.c.h.b16 %v3298
    %v4038 = vunpack.c.l.b16 %v3299
    %v4039 = vunpack.c.h.b16 %v3299
    %v4040 = vunpack.c.l.b16 %v3300
    %v4041 = vunpack.c.h.b16 %v3300
    %v4042 = vunpack.c.l.b16 %v3301
    %v4043 = vunpack.c.h.b16 %v3301
    %v4044 = vunpack.c.l.b16 %v3302
    %v4045 = vunpack.c.h.b16 %v3302
    %v4046 = vunpack.c.l.b16 %v3303
    %v4047 = vunpack.c.h.b16 %v3303
    %v4048 = vunpack.c.l.b16 %v3304
    %v4049 = vunpack.c.h.b16 %v3304
    %v4050 = vunpack.c.l.b16 %v3305
    %v4051 = vunpack.c.h.b16 %v3305
    %v4052 = vunpack.c.l.b16 %v3306
    %v4053 = vunpack.c.h.b16 %v3306
    %v4054 = vunpack.c.l.b16 %v3307
    %v4055 = vunpack.c.h.b16 %v3307
    %v4056 = vunpack.c.l.b16 %v3308
    %v4057 = vunpack.c.h.b16 %v3308
    %v4058 = vunpack.c.l.b16 %v3309
    %v4059 = vunpack.c.h.b16 %v3309
    %v4060 = vunpack.c.l.b16 %v3310
    %v4061 = vunpack.c.h.b16 %v3310
    %v4062 = vunpack.c.l.b16 %v3311
    %v4063 = vunpack.c.h.b16 %v3311
    %v4064 = vunpack.c.l.b16 %v3312
    %v4065 = vunpack.c.h.b16 %v3312
    %v4066 = vunpack.c.l.b16 %v3313
    %v4067 = vunpack.c.h.b16 %v3313
    %v4068 = vunpack.c.l.b16 %v3314
    %v4069 = vunpack.c.h.b16 %v3314
    %v4070 = vunpack.c.l.b16 %v3315
    %v4071 = vunpack.c.h.b16 %v3315
    %v4072 = vunpack.c.l.b16 %v3316
    %v4073 = vunpack.c.h.b16 %v3316
    %v4074 = vunpack.c.l.b16 %v3317
    %v4075 = vunpack.c.h.b16 %v3317
    %v4076 = vunpack.c.l.b16 %v3318
    %v4077 = vunpack.c.h.b16 %v3318
    %v4078 = vunpack.c.l.b16 %v3319
    %v4079 = vunpack.c.h.b16 %v3319
    %v4080 = vunpack.c.l.b16 %v3320
    %v4081 = vunpack.c.h.b16 %v3320
    %v4082 = vunpack.c.l.b16 %v3321
    %v4083 = vunpack.c.h.b16 %v3321
    %v4084 = vunpack.c.l.b16 %v3322
    %v4085 = vunpack.c.h.b16 %v3322
    %v4086 = vunpack.c.l.b16 %v3323
    %v4087 = vunpack.c.h.b16 %v3323
    %v4088 = vunpack.c.l.b16 %v3324
    %v4089 = vunpack.c.h.b16 %v3324
    %v4090 = vunpack.c.l.b16 %v3325
    %v4091 = vunpack.c.h.b16 %v3325
    %v4092 = vunpack.c.l.b16 %v3326
    %v4093 = vunpack.c.h.b16 %v3326
    %v4094 = vunpack.c.l.b16 %v3327
    %v4095 = vunpack.c.h.b16 %v3327
    %v4096 = vunpack.c.l.b16 %v3328
    %v4097 = vunpack.c.h.b16 %v3328
    %v4098 = vunpack.c.l.b16 %v3329
    %v4099 = vunpack.c.h.b16 %v3329
    %v4100 = vunpack.c.l.b16 %v3330
    %v4101 = vunpack.c.h.b16 %v3330
    %v4102 = vunpack.c.l.b16 %v3331
    %v4103 = vunpack.c.h.b16 %v3331
    %v4104 = vunpack.c.l.b16 %v3332
    %v4105 = vunpack.c.h.b16 %v3332
    %v4106 = vunpack.c.l.b16 %v3333
    %v4107 = vunpack.c.h.b16 %v3333
    %v4108 = vunpack.c.l.b16 %v3334
    %v4109 = vunpack.c.h.b16 %v3334
    %v4110 = vunpack.c.l.b16 %v3335
    %v4111 = vunpack.c.h.b16 %v3335
    %v4112 = vunpack.c.l.b16 %v3336
    %v4113 = vunpack.c.h.b16 %v3336
    %v4114 = vunpack.c.l.b16 %v3337
    %v4115 = vunpack.c.h.b16 %v3337
    %v4116 = vunpack.c.l.b16 %v3338
    %v4117 = vunpack.c.h.b16 %v3338
    %v4118 = vunpack.c.l.b16 %v3339
    %v4119 = vunpack.c.h.b16 %v3339
    %v4120 = vunpack.c.l.b16 %v3340
    %v4121 = vunpack.c.h.b16 %v3340
    %v4122 = vunpack.c.l.b16 %v3341
    %v4123 = vunpack.c.h.b16 %v3341
    %v4124 = vunpack.c.l.b16 %v3342
    %v4125 = vunpack.c.h.b16 %v3342
    %v4126 = vunpack.c.l.b16 %v3343
    %v4127 = vunpack.c.h.b16 %v3343
    %v4128 = vunpack.c.l.b16 %v3344
    %v4129 = vunpack.c.h.b16 %v3344
    %v4130 = vunpack.c.l.b16 %v3345
    %v4131 = vunpack.c.h.b16 %v3345
    %v4132 = vunpack.c.l.b16 %v3346
    %v4133 = vunpack.c.h.b16 %v3346
    %v4134 = vunpack.c.l.b16 %v3347
    %v4135 = vunpack.c.h.b16 %v3347
    %v4136 = vunpack.c.l.b16 %v3348
    %v4137 = vunpack.c.h.b16 %v3348
    %v4138 = vunpack.c.l.b16 %v3349
    %v4139 = vunpack.c.h.b16 %v3349
    %v4140 = vpack.c.b16 %v3632, %v3628
    %v4141 = vpack.c.b16 %v3633, %v3629
    %v4142 = vpack.c.b16 %v3634, %v3630
    %v4143 = vpack.c.b16 %v3635, %v3631
    %v4144 = vpack.c.b16 %v3640, %v3636
    %v4145 = vpack.c.b16 %v3641, %v3637
    %v4146 = vpack.c.b16 %v3642, %v3638
    %v4147 = vpack.c.b16 %v3643, %v3639
    %v4148 = vpack.c.b16 %v3648, %v3644
    %v4149 = vpack.c.b16 %v3649, %v3645
    %v4150 = vpack.c.b16 %v3650, %v3646
    %v4151 = vpack.c.b16 %v3651, %v3647
    %v4152 = vpack.c.b16 %v3656, %v3652
    %v4153 = vpack.c.b16 %v3657, %v3653
    %v4154 = vpack.c.b16 %v3658, %v3654
    %v4155 = vpack.c.b16 %v3659, %v3655
    %v4156 = vpack.c.b16 %v3664, %v3660
    %v4157 = vpack.c.b16 %v3665, %v3661
    %v4158 = vpack.c.b16 %v3666, %v3662
    %v4159 = vpack.c.b16 %v3667, %v3663
    %v4160 = vpack.c.b16 %v3672, %v3668
    %v4161 = vpack.c.b16 %v3673, %v3669
    %v4162 = vpack.c.b16 %v3674, %v3670
    %v4163 = vpack.c.b16 %v3675, %v3671
    %v4164 = vpack.c.b16 %v3680, %v3676
    %v4165 = vpack.c.b16 %v3681, %v3677
    %v4166 = vpack.c.b16 %v3682, %v3678
    %v4167 = vpack.c.b16 %v3683, %v3679
    %v4168 = vpack.c.b16 %v3688, %v3684
    %v4169 = vpack.c.b16 %v3689, %v3685
    %v4170 = vpack.c.b16 %v3690, %v3686
    %v4171 = vpack.c.b16 %v3691, %v3687
    %v4172 = vpack.c.b16 %v3696, %v3692
    %v4173 = vpack.c.b16 %v3697, %v3693
    %v4174 = vpack.c.b16 %v3698, %v3694
    %v4175 = vpack.c.b16 %v3699, %v3695
    %v4176 = vpack.c.b16 %v3704, %v3700
    %v4177 = vpack.c.b16 %v3705, %v3701
    %v4178 = vpack.c.b16 %v3706, %v3702
    %v4179 = vpack.c.b16 %v3707, %v3703
    %v4180 = vpack.c.b16 %v3712, %v3708
    %v4181 = vpack.c.b16 %v3713, %v3709
    %v4182 = vpack.c.b16 %v3714, %v3710
    %v4183 = vpack.c.b16 %v3715, %v3711
    %v4184 = vpack.c.b16 %v3720, %v3716
    %v4185 = vpack.c.b16 %v3721, %v3717
    %v4186 = vpack.c.b16 %v3722, %v3718
    %v4187 = vpack.c.b16 %v3723, %v3719
    %v4188 = vpack.c.b16 %v3728, %v3724
    %v4189 = vpack.c.b16 %v3729, %v3725
    %v4190 = vpack.c.b16 %v3730, %v3726
    %v4191 = vpack.c.b16 %v3731, %v3727
    %v4192 = vpack.c.b16 %v3736, %v3732
    %v4193 = vpack.c.b16 %v3737, %v3733
    %v4194 = vpack.c.b16 %v3738, %v3734
    %v4195 = vpack.c.b16 %v3739, %v3735
    %v4196 = vpack.c.b16 %v3744, %v3740
    %v4197 = vpack.c.b16 %v3745, %v3741
    %v4198 = vpack.c.b16 %v3746, %v3742
    %v4199 = vpack.c.b16 %v3747, %v3743
    %v4200 = vpack.c.b16 %v3752, %v3748
    %v4201 = vpack.c.b16 %v3753, %v3749
    %v4202 = vpack.c.b16 %v3754, %v3750
    %v4203 = vpack.c.b16 %v3755, %v3751
    %v4204 = vpack.c.b16 %v3760, %v3756
    %v4205 = vpack.c.b16 %v3761, %v3757
    %v4206 = vpack.c.b16 %v3762, %v3758
    %v4207 = vpack.c.b16 %v3763, %v3759
    %v4208 = vpack.c.b16 %v3768, %v3764
    %v4209 = vpack.c.b16 %v3769, %v3765
    %v4210 = vpack.c.b16 %v3770, %v3766
    %v4211 = vpack.c.b16 %v3771, %v3767
    %v4212 = vpack.c.b16 %v3776, %v3772
    %v4213 = vpack.c.b16 %v3777, %v3773
    %v4214 = vpack.c.b16 %v3778, %v3774
    %v4215 = vpack.c.b16 %v3779, %v3775
    %v4216 = vpack.c.b16 %v3784, %v3780
    %v4217 = vpack.c.b16 %v3785, %v3781
    %v4218 = vpack.c.b16 %v3786, %v3782
    %v4219 = vpack.c.b16 %v3787, %v3783
    %v4220 = vpack.c.b16 %v3792, %v3788
    %v4221 = vpack.c.b16 %v3793, %v3789
    %v4222 = vpack.c.b16 %v3794, %v3790
    %v4223 = vpack.c.b16 %v3795, %v3791
    %v4224 = vpack.c.b16 %v3800, %v3796
    %v4225 = vpack.c.b16 %v3801, %v3797
    %v4226 = vpack.c.b16 %v3802, %v3798
    %v4227 = vpack.c.b16 %v3803, %v3799
    %v4228 = vpack.c.b16 %v3808, %v3804
    %v4229 = vpack.c.b16 %v3809, %v3805
    %v4230 = vpack.c.b16 %v3810, %v3806
    %v4231 = vpack.c.b16 %v3811, %v3807
    %v4232 = vpack.c.b16 %v3816, %v3812
    %v4233 = vpack.c.b16 %v3817, %v3813
    %v4234 = vpack.c.b16 %v3818, %v3814
    %v4235 = vpack.c.b16 %v3819, %v3815
    %v4236 = vpack.c.b16 %v3824, %v3820
    %v4237 = vpack.c.b16 %v3825, %v3821
    %v4238 = vpack.c.b16 %v3826, %v3822
    %v4239 = vpack.c.b16 %v3827, %v3823
    %v4240 = vpack.c.b16 %v3832, %v3828
    %v4241 = vpack.c.b16 %v3833, %v3829
    %v4242 = vpack.c.b16 %v3834, %v3830
    %v4243 = vpack.c.b16 %v3835, %v3831
    %v4244 = vpack.c.b16 %v3840, %v3836
    %v4245 = vpack.c.b16 %v3841, %v3837
    %v4246 = vpack.c.b16 %v3842, %v3838
    %v4247 = vpack.c.b16 %v3843, %v3839
    %v4248 = vpack.c.b16 %v3848, %v3844
    %v4249 = vpack.c.b16 %v3849, %v3845
    %v4250 = vpack.c.b16 %v3850, %v3846
    %v4251 = vpack.c.b16 %v3851, %v3847
    %v4252 = vpack.c.b16 %v3856, %v3852
    %v4253 = vpack.c.b16 %v3857, %v3853
    %v4254 = vpack.c.b16 %v3858, %v3854
    %v4255 = vpack.c.b16 %v3859, %v3855
    %v4256 = vpack.c.b16 %v3864, %v3860
    %v4257 = vpack.c.b16 %v3865, %v3861
    %v4258 = vpack.c.b16 %v3866, %v3862
    %v4259 = vpack.c.b16 %v3867, %v3863
    %v4260 = vpack.c.b16 %v3872, %v3868
    %v4261 = vpack.c.b16 %v3873, %v3869
    %v4262 = vpack.c.b16 %v3874, %v3870
    %v4263 = vpack.c.b16 %v3875, %v3871
    %v4264 = vpack.c.b16 %v3880, %v3876
    %v4265 = vpack.c.b16 %v3881, %v3877
    %v4266 = vpack.c.b16 %v3882, %v3878
    %v4267 = vpack.c.b16 %v3883, %v3879
    %v4268 = vpack.c.b16 %v3888, %v3884
    %v4269 = vpack.c.b16 %v3889, %v3885
    %v4270 = vpack.c.b16 %v3890, %v3886
    %v4271 = vpack.c.b16 %v3891, %v3887
    %v4272 = vpack.c.b16 %v3896, %v3892
    %v4273 = vpack.c.b16 %v3897, %v3893
    %v4274 = vpack.c.b16 %v3898, %v3894
    %v4275 = vpack.c.b16 %v3899, %v3895
    %v4276 = vpack.c.b16 %v3904, %v3900
    %v4277 = vpack.c.b16 %v3905, %v3901
    %v4278 = vpack.c.b16 %v3906, %v3902
    %v4279 = vpack.c.b16 %v3907, %v3903
    %v4280 = vpack.c.b16 %v3912, %v3908
    %v4281 = vpack.c.b16 %v3913, %v3909
    %v4282 = vpack.c.b16 %v3914, %v3910
    %v4283 = vpack.c.b16 %v3915, %v3911
    %v4284 = vpack.c.b16 %v3920, %v3916
    %v4285 = vpack.c.b16 %v3921, %v3917
    %v4286 = vpack.c.b16 %v3922, %v3918
    %v4287 = vpack.c.b16 %v3923, %v3919
    %v4288 = vpack.c.b16 %v3928, %v3924
    %v4289 = vpack.c.b16 %v3929, %v3925
    %v4290 = vpack.c.b16 %v3930, %v3926
    %v4291 = vpack.c.b16 %v3931, %v3927
    %v4292 = vpack.c.b16 %v3936, %v3932
    %v4293 = vpack.c.b16 %v3937, %v3933
    %v4294 = vpack.c.b16 %v3938, %v3934
    %v4295 = vpack.c.b16 %v3939, %v3935
    %v4296 = vpack.c.b16 %v3944, %v3940
    %v4297 = vpack.c.b16 %v3945, %v3941
    %v4298 = vpack.c.b16 %v3946, %v3942
    %v4299 = vpack.c.b16 %v3947, %v3943
    %v4300 = vpack.c.b16 %v3952, %v3948
    %v4301 = vpack.c.b16 %v3953, %v3949
    %v4302 = vpack.c.b16 %v3954, %v3950
    %v4303 = vpack.c.b16 %v3955, %v3951
    %v4304 = vpack.c.b16 %v3960, %v3956
    %v4305 = vpack.c.b16 %v3961, %v3957
    %v4306 = vpack.c.b16 %v3962, %v3958
    %v4307 = vpack.c.b16 %v3963, %v3959
    %v4308 = vpack.c.b16 %v3968, %v3964
    %v4309 = vpack.c.b16 %v3969, %v3965
    %v4310 = vpack.c.b16 %v3970, %v3966
    %v4311 = vpack.c.b16 %v3971, %v3967
    %v4312 = vpack.c.b16 %v3976, %v3972
    %v4313 = vpack.c.b16 %v3977, %v3973
    %v4314 = vpack.c.b16 %v3978, %v3974
    %v4315 = vpack.c.b16 %v3979, %v3975
    %v4316 = vpack.c.b16 %v3984, %v3980
    %v4317 = vpack.c.b16 %v3985, %v3981
    %v4318 = vpack.c.b16 %v3986, %v3982
    %v4319 = vpack.c.b16 %v3987, %v3983
    %v4320 = vpack.c.b16 %v3992, %v3988
    %v4321 = vpack.c.b16 %v3993, %v3989
    %v4322 = vpack.c.b16 %v3994, %v3990
    %v4323 = vpack.c.b16 %v3995, %v3991
    %v4324 = vpack.c.b16 %v4000, %v3996
    %v4325 = vpack.c.b16 %v4001, %v3997
    %v4326 = vpack.c.b16 %v4002, %v3998
    %v4327 = vpack.c.b16 %v4003, %v3999
    %v4328 = vpack.c.b16 %v4008, %v4004
    %v4329 = vpack.c.b16 %v4009, %v4005
    %v4330 = vpack.c.b16 %v4010, %v4006
    %v4331 = vpack.c.b16 %v4011, %v4007
    %v4332 = vpack.c.b16 %v4016, %v4012
    %v4333 = vpack.c.b16 %v4017, %v4013
    %v4334 = vpack.c.b16 %v4018, %v4014
    %v4335 = vpack.c.b16 %v4019, %v4015
    %v4336 = vpack.c.b16 %v4024, %v4020
    %v4337 = vpack.c.b16 %v4025, %v4021
    %v4338 = vpack.c.b16 %v4026, %v4022
    %v4339 = vpack.c.b16 %v4027, %v4023
    %v4340 = vpack.c.b16 %v4032, %v4028
    %v4341 = vpack.c.b16 %v4033, %v4029
    %v4342 = vpack.c.b16 %v4034, %v4030
    %v4343 = vpack.c.b16 %v4035, %v4031
    %v4344 = vpack.c.b16 %v4040, %v4036
    %v4345 = vpack.c.b16 %v4041, %v4037
    %v4346 = vpack.c.b16 %v4042, %v4038
    %v4347 = vpack.c.b16 %v4043, %v4039
    %v4348 = vpack.c.b16 %v4048, %v4044
    %v4349 = vpack.c.b16 %v4049, %v4045
    %v4350 = vpack.c.b16 %v4050, %v4046
    %v4351 = vpack.c.b16 %v4051, %v4047
    %v4352 = vpack.c.b16 %v4056, %v4052
    %v4353 = vpack.c.b16 %v4057, %v4053
    %v4354 = vpack.c.b16 %v4058, %v4054
    %v4355 = vpack.c.b16 %v4059, %v4055
    %v4356 = vpack.c.b16 %v4064, %v4060
    %v4357 = vpack.c.b16 %v4065, %v4061
    %v4358 = vpack.c.b16 %v4066, %v4062
    %v4359 = vpack.c.b16 %v4067, %v4063
    %v4360 = vpack.c.b16 %v4072, %v4068
    %v4361 = vpack.c.b16 %v4073, %v4069
    %v4362 = vpack.c.b16 %v4074, %v4070
    %v4363 = vpack.c.b16 %v4075, %v4071
    %v4364 = vpack.c.b16 %v4080, %v4076
    %v4365 = vpack.c.b16 %v4081, %v4077
    %v4366 = vpack.c.b16 %v4082, %v4078
    %v4367 = vpack.c.b16 %v4083, %v4079
    %v4368 = vpack.c.b16 %v4088, %v4084
    %v4369 = vpack.c.b16 %v4089, %v4085
    %v4370 = vpack.c.b16 %v4090, %v4086
    %v4371 = vpack.c.b16 %v4091, %v4087
    %v4372 = vpack.c.b16 %v4096, %v4092
    %v4373 = vpack.c.b16 %v4097, %v4093
    %v4374 = vpack.c.b16 %v4098, %v4094
    %v4375 = vpack.c.b16 %v4099, %v4095
    %v4376 = vpack.c.b16 %v4104, %v4100
    %v4377 = vpack.c.b16 %v4105, %v4101
    %v4378 = vpack.c.b16 %v4106, %v4102
    %v4379 = vpack.c.b16 %v4107, %v4103
    %v4380 = vpack.c.b16 %v4112, %v4108
    %v4381 = vpack.c.b16 %v4113, %v4109
    %v4382 = vpack.c.b16 %v4114, %v4110
    %v4383 = vpack.c.b16 %v4115, %v4111
    %v4384 = vpack.c.b16 %v4120, %v4116
    %v4385 = vpack.c.b16 %v4121, %v4117
    %v4386 = vpack.c.b16 %v4122, %v4118
    %v4387 = vpack.c.b16 %v4123, %v4119
    %v4388 = vpack.c.b16 %v4128, %v4124
    %v4389 = vpack.c.b16 %v4129, %v4125
    %v4390 = vpack.c.b16 %v4130, %v4126
    %v4391 = vpack.c.b16 %v4131, %v4127
    %v4392 = vpack.c.b16 %v4136, %v4132
    %v4393 = vpack.c.b16 %v4137, %v4133
    %v4394 = vpack.c.b16 %v4138, %v4134
    %v4395 = vpack.c.b16 %v4139, %v4135
    %4652 = vmatprep.subr.bf16.mxu0 %v4141
    %4653 = vmatpush1.bf16.msra.mxu0 %v4140
    %4654 = vmatprep.subr.bf16.mxu0 %v4145
    %4655 = vmatpush1.bf16.msra.mxu0 %v4144
    %4656 = vmatprep.subr.bf16.mxu0 %v4149
    %4657 = vmatpush1.bf16.msra.mxu0 %v4148
    %4658 = vmatprep.subr.bf16.mxu0 %v4153
    %4659 = vmatpush1.bf16.msra.mxu0 %v4152
    %4660 = vmatprep.subr.bf16.mxu0 %v4157
    %4661 = vmatpush1.bf16.msra.mxu0 %v4156
    %4662 = vmatprep.subr.bf16.mxu0 %v4161
    %4663 = vmatpush1.bf16.msra.mxu0 %v4160
    %4664 = vmatprep.subr.bf16.mxu0 %v4165
    %4665 = vmatpush1.bf16.msra.mxu0 %v4164
    %4666 = vmatprep.subr.bf16.mxu0 %v4169
    %4667 = vmatpush1.bf16.msra.mxu0 %v4168
    %4668 = vmatprep.subr.bf16.mxu0 %v4173
    %4669 = vmatpush1.bf16.msra.mxu0 %v4172
    %4670 = vmatprep.subr.bf16.mxu0 %v4177
    %4671 = vmatpush1.bf16.msra.mxu0 %v4176
    %4672 = vmatprep.subr.bf16.mxu0 %v4181
    %4673 = vmatpush1.bf16.msra.mxu0 %v4180
    %4674 = vmatprep.subr.bf16.mxu0 %v4185
    %4675 = vmatpush1.bf16.msra.mxu0 %v4184
    %4676 = vmatprep.subr.bf16.mxu0 %v4189
    %4677 = vmatpush1.bf16.msra.mxu0 %v4188
    %4678 = vmatprep.subr.bf16.mxu0 %v4193
    %4679 = vmatpush1.bf16.msra.mxu0 %v4192
    %4680 = vmatprep.subr.bf16.mxu0 %v4197
    %4681 = vmatpush1.bf16.msra.mxu0 %v4196
    %4682 = vmatprep.subr.bf16.mxu0 %v4201
    %4683 = vmatpush1.bf16.msra.mxu0 %v4200
    %4684 = vmatprep.mubr.bf16.mxu0 %v3087
    %4685 = vmatmul.mubr.bf16.gmra.mrb[0].mxu0 %v3086
    %v4686 = vpop.f32.mrb[0].mxu0
    %v4687 = vadd.f32 %v3355, %v4686
    %v4688 = vpop.f32.mrb[0].mxu0
    %v4689 = vadd.f32 %v3359, %v4688
    %v4690 = vpop.f32.mrb[0].mxu0
    %v4691 = vpop.f32.mrb[0].mxu0
    %4692 = vdwg.mxu0
    %4693 = vmatprep.subr.bf16.mxu0 %v4205
    %4694 = vmatpush1.bf16.msra.mxu0 %v4204
    %4695 = vmatprep.subr.bf16.mxu0 %v4209
    %4696 = vmatpush1.bf16.msra.mxu0 %v4208
    %4697 = vmatprep.subr.bf16.mxu0 %v4213
    %4698 = vmatpush1.bf16.msra.mxu0 %v4212
    %4699 = vmatprep.subr.bf16.mxu0 %v4217
    %4700 = vmatpush1.bf16.msra.mxu0 %v4216
    %4701 = vmatprep.subr.bf16.mxu0 %v4221
    %4702 = vmatpush1.bf16.msra.mxu0 %v4220
    %4703 = vmatprep.subr.bf16.mxu0 %v4225
    %4704 = vmatpush1.bf16.msra.mxu0 %v4224
    %4705 = vmatprep.subr.bf16.mxu0 %v4229
    %4706 = vmatpush1.bf16.msra.mxu0 %v4228
    %4707 = vmatprep.subr.bf16.mxu0 %v4233
    %4708 = vmatpush1.bf16.msra.mxu0 %v4232
    %4709 = vmatprep.subr.bf16.mxu0 %v4237
    %4710 = vmatpush1.bf16.msra.mxu0 %v4236
    %4711 = vmatprep.subr.bf16.mxu0 %v4241
    %4712 = vmatpush1.bf16.msra.mxu0 %v4240
    %4713 = vmatprep.subr.bf16.mxu0 %v4245
    %4714 = vmatpush1.bf16.msra.mxu0 %v4244
    %4715 = vmatprep.subr.bf16.mxu0 %v4249
    %4716 = vmatpush1.bf16.msra.mxu0 %v4248
    %4717 = vmatprep.subr.bf16.mxu0 %v4253
    %4718 = vmatpush1.bf16.msra.mxu0 %v4252
    %4719 = vmatprep.subr.bf16.mxu0 %v4257
    %4720 = vmatpush1.bf16.msra.mxu0 %v4256
    %4721 = vmatprep.subr.bf16.mxu0 %v4261
    %4722 = vmatpush1.bf16.msra.mxu0 %v4260
    %4723 = vmatprep.subr.bf16.mxu0 %v4265
    %4724 = vmatpush1.bf16.msra.mxu0 %v4264
    %4725 = vmatprep.mubr.bf16.mxu0 %v3089
    %4726 = vmatmul.mubr.bf16.gmra.mrb[0].mxu0 %v3088
    %v4727 = vpop.f32.mrb[0].mxu0
    %v4728 = vadd.f32 %v4687, %v4727
    %v4729 = vpop.f32.mrb[0].mxu0
    %v4730 = vadd.f32 %v4689, %v4729
    %v4731 = vpop.f32.mrb[0].mxu0
    %v4732 = vpop.f32.mrb[0].mxu0
    %4733 = vdwg.mxu0
    %4734 = vmatprep.subr.bf16.mxu0 %v4269
    %4735 = vmatpush1.bf16.msra.mxu0 %v4268
    %4736 = vmatprep.subr.bf16.mxu0 %v4273
    %4737 = vmatpush1.bf16.msra.mxu0 %v4272
    %4738 = vmatprep.subr.bf16.mxu0 %v4277
    %4739 = vmatpush1.bf16.msra.mxu0 %v4276
    %4740 = vmatprep.subr.bf16.mxu0 %v4281
    %4741 = vmatpush1.bf16.msra.mxu0 %v4280
    %4742 = vmatprep.subr.bf16.mxu0 %v4285
    %4743 = vmatpush1.bf16.msra.mxu0 %v4284
    %4744 = vmatprep.subr.bf16.mxu0 %v4289
    %4745 = vmatpush1.bf16.msra.mxu0 %v4288
    %4746 = vmatprep.subr.bf16.mxu0 %v4293
    %4747 = vmatpush1.bf16.msra.mxu0 %v4292
    %4748 = vmatprep.subr.bf16.mxu0 %v4297
    %4749 = vmatpush1.bf16.msra.mxu0 %v4296
    %4750 = vmatprep.subr.bf16.mxu0 %v4301
    %4751 = vmatpush1.bf16.msra.mxu0 %v4300
    %4752 = vmatprep.subr.bf16.mxu0 %v4305
    %4753 = vmatpush1.bf16.msra.mxu0 %v4304
    %4754 = vmatprep.subr.bf16.mxu0 %v4309
    %4755 = vmatpush1.bf16.msra.mxu0 %v4308
    %4756 = vmatprep.subr.bf16.mxu0 %v4313
    %4757 = vmatpush1.bf16.msra.mxu0 %v4312
    %4758 = vmatprep.subr.bf16.mxu0 %v4317
    %4759 = vmatpush1.bf16.msra.mxu0 %v4316
    %4760 = vmatprep.subr.bf16.mxu0 %v4321
    %4761 = vmatpush1.bf16.msra.mxu0 %v4320
    %4762 = vmatprep.subr.bf16.mxu0 %v4325
    %4763 = vmatpush1.bf16.msra.mxu0 %v4324
    %4764 = vmatprep.subr.bf16.mxu0 %v4329
    %4765 = vmatpush1.bf16.msra.mxu0 %v4328
    %4766 = vmatprep.mubr.bf16.mxu0 %v3091
    %4767 = vmatmul.mubr.bf16.gmra.mrb[0].mxu0 %v3090
    %v4768 = vpop.f32.mrb[0].mxu0
    %v4769 = vadd.f32 %v4728, %v4768
    %v4770 = vpop.f32.mrb[0].mxu0
    %v4771 = vadd.f32 %v4730, %v4770
    %v4772 = vpop.f32.mrb[0].mxu0
    %v4773 = vpop.f32.mrb[0].mxu0
    %4774 = vdwg.mxu0
    %4775 = vmatprep.subr.bf16.mxu0 %v4333
    %4776 = vmatpush1.bf16.msra.mxu0 %v4332
    %4777 = vmatprep.subr.bf16.mxu0 %v4337
    %4778 = vmatpush1.bf16.msra.mxu0 %v4336
    %4779 = vmatprep.subr.bf16.mxu0 %v4341
    %4780 = vmatpush1.bf16.msra.mxu0 %v4340
    %4781 = vmatprep.subr.bf16.mxu0 %v4345
    %4782 = vmatpush1.bf16.msra.mxu0 %v4344
    %4783 = vmatprep.subr.bf16.mxu0 %v4349
    %4784 = vmatpush1.bf16.msra.mxu0 %v4348
    %4785 = vmatprep.subr.bf16.mxu0 %v4353
    %4786 = vmatpush1.bf16.msra.mxu0 %v4352
    %4787 = vmatprep.subr.bf16.mxu0 %v4357
    %4788 = vmatpush1.bf16.msra.mxu0 %v4356
    %4789 = vmatprep.subr.bf16.mxu0 %v4361
    %4790 = vmatpush1.bf16.msra.mxu0 %v4360
    %4791 = vmatprep.subr.bf16.mxu0 %v4365
    %4792 = vmatpush1.bf16.msra.mxu0 %v4364
    %4793 = vmatprep.subr.bf16.mxu0 %v4369
    %4794 = vmatpush1.bf16.msra.mxu0 %v4368
    %4795 = vmatprep.subr.bf16.mxu0 %v4373
    %4796 = vmatpush1.bf16.msra.mxu0 %v4372
    %4797 = vmatprep.subr.bf16.mxu0 %v4377
    %4798 = vmatpush1.bf16.msra.mxu0 %v4376
    %4799 = vmatprep.subr.bf16.mxu0 %v4381
    %4800 = vmatpush1.bf16.msra.mxu0 %v4380
    %4801 = vmatprep.subr.bf16.mxu0 %v4385
    %4802 = vmatpush1.bf16.msra.mxu0 %v4384
    %4803 = vmatprep.subr.bf16.mxu0 %v4389
    %4804 = vmatpush1.bf16.msra.mxu0 %v4388
    %4805 = vmatprep.subr.bf16.mxu0 %v4393
    %4806 = vmatpush1.bf16.msra.mxu0 %v4392
    %4807 = vmatprep.mubr.bf16.mxu0 %v3093
    %4808 = vmatmul.mubr.bf16.gmra.mrb[0].mxu0 %v3092
    %v4809 = vpop.f32.mrb[0].mxu0
    %v4810 = vadd.f32 %v4769, %v4809
    %v4811 = vpop.f32.mrb[0].mxu0
    %v4812 = vadd.f32 %v4771, %v4811
    %v4813 = vpop.f32.mrb[0].mxu0
    %v4814 = vpop.f32.mrb[0].mxu0
    %4815 = vdwg.mxu0
    %4816 = vmatprep.subr.bf16.mxu0 %v4143
    %4817 = vmatpush1.bf16.msra.mxu0 %v4142
    %4818 = vmatprep.subr.bf16.mxu0 %v4147
    %4819 = vmatpush1.bf16.msra.mxu0 %v4146
    %4820 = vmatprep.subr.bf16.mxu0 %v4151
    %4821 = vmatpush1.bf16.msra.mxu0 %v4150
    %4822 = vmatprep.subr.bf16.mxu0 %v4155
    %4823 = vmatpush1.bf16.msra.mxu0 %v4154
    %4824 = vmatprep.subr.bf16.mxu0 %v4159
    %4825 = vmatpush1.bf16.msra.mxu0 %v4158
    %4826 = vmatprep.subr.bf16.mxu0 %v4163
    %4827 = vmatpush1.bf16.msra.mxu0 %v4162
    %4828 = vmatprep.subr.bf16.mxu0 %v4167
    %4829 = vmatpush1.bf16.msra.mxu0 %v4166
    %4830 = vmatprep.subr.bf16.mxu0 %v4171
    %4831 = vmatpush1.bf16.msra.mxu0 %v4170
    %4832 = vmatprep.subr.bf16.mxu0 %v4175
    %4833 = vmatpush1.bf16.msra.mxu0 %v4174
    %4834 = vmatprep.subr.bf16.mxu0 %v4179
    %4835 = vmatpush1.bf16.msra.mxu0 %v4178
    %4836 = vmatprep.subr.bf16.mxu0 %v4183
    %4837 = vmatpush1.bf16.msra.mxu0 %v4182
    %4838 = vmatprep.subr.bf16.mxu0 %v4187
    %4839 = vmatpush1.bf16.msra.mxu0 %v4186
    %4840 = vmatprep.subr.bf16.mxu0 %v4191
    %4841 = vmatpush1.bf16.msra.mxu0 %v4190
    %4842 = vmatprep.subr.bf16.mxu0 %v4195
    %4843 = vmatpush1.bf16.msra.mxu0 %v4194
    %4844 = vmatprep.subr.bf16.mxu0 %v4199
    %4845 = vmatpush1.bf16.msra.mxu0 %v4198
    %4846 = vmatprep.subr.bf16.mxu0 %v4203
    %4847 = vmatpush1.bf16.msra.mxu0 %v4202
    %4848 = vmatprep.mubr.bf16.mxu0 %v3087
    %4849 = vmatmul.mubr.bf16.gmra.mrb[0].mxu0 %v3086
    %v4850 = vpop.f32.mrb[0].mxu0
    %v4851 = vadd.f32 %v3363, %v4850
    %v4852 = vpop.f32.mrb[0].mxu0
    %v4853 = vadd.f32 %v3367, %v4852
    %v4854 = vpop.f32.mrb[0].mxu0
    %v4855 = vpop.f32.mrb[0].mxu0
    %4856 = vdwg.mxu0
    %4857 = vmatprep.subr.bf16.mxu0 %v4207
    %4858 = vmatpush1.bf16.msra.mxu0 %v4206
    %4859 = vmatprep.subr.bf16.mxu0 %v4211
    %4860 = vmatpush1.bf16.msra.mxu0 %v4210
    %4861 = vmatprep.subr.bf16.mxu0 %v4215
    %4862 = vmatpush1.bf16.msra.mxu0 %v4214
    %4863 = vmatprep.subr.bf16.mxu0 %v4219
    %4864 = vmatpush1.bf16.msra.mxu0 %v4218
    %4865 = vmatprep.subr.bf16.mxu0 %v4223
    %4866 = vmatpush1.bf16.msra.mxu0 %v4222
    %4867 = vmatprep.subr.bf16.mxu0 %v4227
    %4868 = vmatpush1.bf16.msra.mxu0 %v4226
    %4869 = vmatprep.subr.bf16.mxu0 %v4231
    %4870 = vmatpush1.bf16.msra.mxu0 %v4230
    %4871 = vmatprep.subr.bf16.mxu0 %v4235
    %4872 = vmatpush1.bf16.msra.mxu0 %v4234
    %4873 = vmatprep.subr.bf16.mxu0 %v4239
    %4874 = vmatpush1.bf16.msra.mxu0 %v4238
    %4875 = vmatprep.subr.bf16.mxu0 %v4243
    %4876 = vmatpush1.bf16.msra.mxu0 %v4242
    %4877 = vmatprep.subr.bf16.mxu0 %v4247
    %4878 = vmatpush1.bf16.msra.mxu0 %v4246
    %4879 = vmatprep.subr.bf16.mxu0 %v4251
    %4880 = vmatpush1.bf16.msra.mxu0 %v4250
    %4881 = vmatprep.subr.bf16.mxu0 %v4255
    %4882 = vmatpush1.bf16.msra.mxu0 %v4254
    %4883 = vmatprep.subr.bf16.mxu0 %v4259
    %4884 = vmatpush1.bf16.msra.mxu0 %v4258
    %4885 = vmatprep.subr.bf16.mxu0 %v4263
    %4886 = vmatpush1.bf16.msra.mxu0 %v4262
    %4887 = vmatprep.subr.bf16.mxu0 %v4267
    %4888 = vmatpush1.bf16.msra.mxu0 %v4266
    %4889 = vmatprep.mubr.bf16.mxu0 %v3089
    %4890 = vmatmul.mubr.bf16.gmra.mrb[0].mxu0 %v3088
    %v4891 = vpop.f32.mrb[0].mxu0
    %v4892 = vadd.f32 %v4851, %v4891
    %v4893 = vpop.f32.mrb[0].mxu0
    %v4894 = vadd.f32 %v4853, %v4893
    %v4895 = vpop.f32.mrb[0].mxu0
    %v4896 = vpop.f32.mrb[0].mxu0
    %4897 = vdwg.mxu0
    %4898 = vmatprep.subr.bf16.mxu0 %v4271
    %4899 = vmatpush1.bf16.msra.mxu0 %v4270
    %4900 = vmatprep.subr.bf16.mxu0 %v4275
    %4901 = vmatpush1.bf16.msra.mxu0 %v4274
    %4902 = vmatprep.subr.bf16.mxu0 %v4279
    %4903 = vmatpush1.bf16.msra.mxu0 %v4278
    %4904 = vmatprep.subr.bf16.mxu0 %v4283
    %4905 = vmatpush1.bf16.msra.mxu0 %v4282
    %4906 = vmatprep.subr.bf16.mxu0 %v4287
    %4907 = vmatpush1.bf16.msra.mxu0 %v4286
    %4908 = vmatprep.subr.bf16.mxu0 %v4291
    %4909 = vmatpush1.bf16.msra.mxu0 %v4290
    %4910 = vmatprep.subr.bf16.mxu0 %v4295
    %4911 = vmatpush1.bf16.msra.mxu0 %v4294
    %4912 = vmatprep.subr.bf16.mxu0 %v4299
    %4913 = vmatpush1.bf16.msra.mxu0 %v4298
    %4914 = vmatprep.subr.bf16.mxu0 %v4303
    %4915 = vmatpush1.bf16.msra.mxu0 %v4302
    %4916 = vmatprep.subr.bf16.mxu0 %v4307
    %4917 = vmatpush1.bf16.msra.mxu0 %v4306
    %4918 = vmatprep.subr.bf16.mxu0 %v4311
    %4919 = vmatpush1.bf16.msra.mxu0 %v4310
    %4920 = vmatprep.subr.bf16.mxu0 %v4315
    %4921 = vmatpush1.bf16.msra.mxu0 %v4314
    %4922 = vmatprep.subr.bf16.mxu0 %v4319
    %4923 = vmatpush1.bf16.msra.mxu0 %v4318
    %4924 = vmatprep.subr.bf16.mxu0 %v4323
    %4925 = vmatpush1.bf16.msra.mxu0 %v4322
    %4926 = vmatprep.subr.bf16.mxu0 %v4327
    %4927 = vmatpush1.bf16.msra.mxu0 %v4326
    %4928 = vmatprep.subr.bf16.mxu0 %v4331
    %4929 = vmatpush1.bf16.msra.mxu0 %v4330
    %4930 = vmatprep.mubr.bf16.mxu0 %v3091
    %4931 = vmatmul.mubr.bf16.gmra.mrb[0].mxu0 %v3090
    %v4932 = vpop.f32.mrb[0].mxu0
    %v4933 = vadd.f32 %v4892, %v4932
    %v4934 = vpop.f32.mrb[0].mxu0
    %v4935 = vadd.f32 %v4894, %v4934
    %v4936 = vpop.f32.mrb[0].mxu0
    %v4937 = vpop.f32.mrb[0].mxu0
    %4938 = vdwg.mxu0
    %4939 = vmatprep.subr.bf16.mxu0 %v4335
    %4940 = vmatpush1.bf16.msra.mxu0 %v4334
    %4941 = vmatprep.subr.bf16.mxu0 %v4339
    %4942 = vmatpush1.bf16.msra.mxu0 %v4338
    %4943 = vmatprep.subr.bf16.mxu0 %v4343
    %4944 = vmatpush1.bf16.msra.mxu0 %v4342
    %4945 = vmatprep.subr.bf16.mxu0 %v4347
    %4946 = vmatpush1.bf16.msra.mxu0 %v4346
    %4947 = vmatprep.subr.bf16.mxu0 %v4351
    %4948 = vmatpush1.bf16.msra.mxu0 %v4350
    %4949 = vmatprep.subr.bf16.mxu0 %v4355
    %4950 = vmatpush1.bf16.msra.mxu0 %v4354
    %4951 = vmatprep.subr.bf16.mxu0 %v4359
    %4952 = vmatpush1.bf16.msra.mxu0 %v4358
    %4953 = vmatprep.subr.bf16.mxu0 %v4363
    %4954 = vmatpush1.bf16.msra.mxu0 %v4362
    %4955 = vmatprep.subr.bf16.mxu0 %v4367
    %4956 = vmatpush1.bf16.msra.mxu0 %v4366
    %4957 = vmatprep.subr.bf16.mxu0 %v4371
    %4958 = vmatpush1.bf16.msra.mxu0 %v4370
    %4959 = vmatprep.subr.bf16.mxu0 %v4375
    %4960 = vmatpush1.bf16.msra.mxu0 %v4374
    %4961 = vmatprep.subr.bf16.mxu0 %v4379
    %4962 = vmatpush1.bf16.msra.mxu0 %v4378
    %4963 = vmatprep.subr.bf16.mxu0 %v4383
    %4964 = vmatpush1.bf16.msra.mxu0 %v4382
    %4965 = vmatprep.subr.bf16.mxu0 %v4387
    %4966 = vmatpush1.bf16.msra.mxu0 %v4386
    %4967 = vmatprep.subr.bf16.mxu0 %v4391
    %4968 = vmatpush1.bf16.msra.mxu0 %v4390
    %4969 = vmatprep.subr.bf16.mxu0 %v4395
    %4970 = vmatpush1.bf16.msra.mxu0 %v4394
    %4971 = vmatprep.mubr.bf16.mxu0 %v3093
    %4972 = vmatmul.mubr.bf16.gmra.mrb[0].mxu0 %v3092
    %v4973 = vpop.f32.mrb[0].mxu0
    %v4974 = vadd.f32 %v4933, %v4973
    %v4975 = vpop.f32.mrb[0].mxu0
    %v4976 = vadd.f32 %v4935, %v4975
    %v4977 = vpop.f32.mrb[0].mxu0
    %v4978 = vpop.f32.mrb[0].mxu0
    %4979 = vdwg.mxu0
    %v4980 = vmax.f32 %v4810, 0.0
    %v4981 = vmax.f32 %v4812, 0.0
    %v4982 = vmax.f32 %v4974, 0.0
    %v4983 = vmax.f32 %v4976, 0.0
    %v4984 = vpack.c.bf16 %v2075, %v2075
    %v4985 = vpack.c.bf16 %v2076, %v2076
    %v4986 = vpack.c.bf16 %v2077, %v2077
    %v4987 = vpack.c.bf16 %v2078, %v2078
    %v4988 = vld [vmem:[#allocation9] sm:$0xff]
    %v4989 = vld [vmem:[#allocation9 + $0x8] sm:$0xff]
    %v4990 = vld [vmem:[#allocation9 + $0x10] sm:$0xff]
    %v4991 = vld [vmem:[#allocation9 + $0x18] sm:$0xff]
    %v4992 = vld [vmem:[#allocation9 + $0x20] sm:$0xff]
    %v4993 = vld [vmem:[#allocation9 + $0x28] sm:$0xff]
    %v4994 = vld [vmem:[#allocation9 + $0x30] sm:$0xff]
    %v4995 = vld [vmem:[#allocation9 + $0x38] sm:$0xff]
    %v4996 = vld [vmem:[#allocation9 + $0x40] sm:$0xff]
    %v4997 = vld [vmem:[#allocation9 + $0x48] sm:$0xff]
    %v4998 = vld [vmem:[#allocation9 + $0x50] sm:$0xff]
    %v4999 = vld [vmem:[#allocation9 + $0x58] sm:$0xff]
    %v5000 = vld [vmem:[#allocation9 + $0x60] sm:$0xff]
    %v5001 = vld [vmem:[#allocation9 + $0x68] sm:$0xff]
    %v5002 = vld [vmem:[#allocation9 + $0x70] sm:$0xff]
    %v5003 = vld [vmem:[#allocation9 + $0x78] sm:$0xff]
    %v5004 = vld [vmem:[#allocation9 + $0x80] sm:$0xff]
    %v5005 = vld [vmem:[#allocation9 + $0x88] sm:$0xff]
    %v5006 = vld [vmem:[#allocation9 + $0x90] sm:$0xff]
    %v5007 = vld [vmem:[#allocation9 + $0x98] sm:$0xff]
    %v5008 = vld [vmem:[#allocation9 + $0xa0] sm:$0xff]
    %v5009 = vld [vmem:[#allocation9 + $0xa8] sm:$0xff]
    %v5010 = vld [vmem:[#allocation9 + $0xb0] sm:$0xff]
    %v5011 = vld [vmem:[#allocation9 + $0xb8] sm:$0xff]
    %v5012 = vld [vmem:[#allocation9 + $0xc0] sm:$0xff]
    %v5013 = vld [vmem:[#allocation9 + $0xc8] sm:$0xff]
    %v5014 = vld [vmem:[#allocation9 + $0xd0] sm:$0xff]
    %v5015 = vld [vmem:[#allocation9 + $0xd8] sm:$0xff]
    %v5016 = vld [vmem:[#allocation9 + $0xe0] sm:$0xff]
    %v5017 = vld [vmem:[#allocation9 + $0xe8] sm:$0xff]
    %v5018 = vld [vmem:[#allocation9 + $0xf0] sm:$0xff]
    %v5019 = vld [vmem:[#allocation9 + $0xf8] sm:$0xff]
    %v5020 = vld [vmem:[#allocation9 + $0x100] sm:$0xff]
    %v5021 = vld [vmem:[#allocation9 + $0x108] sm:$0xff]
    %v5022 = vld [vmem:[#allocation9 + $0x110] sm:$0xff]
    %v5023 = vld [vmem:[#allocation9 + $0x118] sm:$0xff]
    %v5024 = vld [vmem:[#allocation9 + $0x120] sm:$0xff]
    %v5025 = vld [vmem:[#allocation9 + $0x128] sm:$0xff]
    %v5026 = vld [vmem:[#allocation9 + $0x130] sm:$0xff]
    %v5027 = vld [vmem:[#allocation9 + $0x138] sm:$0xff]
    %v5028 = vld [vmem:[#allocation9 + $0x140] sm:$0xff]
    %v5029 = vld [vmem:[#allocation9 + $0x148] sm:$0xff]
    %v5030 = vld [vmem:[#allocation9 + $0x150] sm:$0xff]
    %v5031 = vld [vmem:[#allocation9 + $0x158] sm:$0xff]
    %v5032 = vld [vmem:[#allocation9 + $0x160] sm:$0xff]
    %v5033 = vld [vmem:[#allocation9 + $0x168] sm:$0xff]
    %v5034 = vld [vmem:[#allocation9 + $0x170] sm:$0xff]
    %v5035 = vld [vmem:[#allocation9 + $0x178] sm:$0xff]
    %v5036 = vld [vmem:[#allocation9 + $0x180] sm:$0xff]
    %v5037 = vld [vmem:[#allocation9 + $0x188] sm:$0xff]
    %v5038 = vld [vmem:[#allocation9 + $0x190] sm:$0xff]
    %v5039 = vld [vmem:[#allocation9 + $0x198] sm:$0xff]
    %v5040 = vld [vmem:[#allocation9 + $0x1a0] sm:$0xff]
    %v5041 = vld [vmem:[#allocation9 + $0x1a8] sm:$0xff]
    %v5042 = vld [vmem:[#allocation9 + $0x1b0] sm:$0xff]
    %v5043 = vld [vmem:[#allocation9 + $0x1b8] sm:$0xff]
    %v5044 = vld [vmem:[#allocation9 + $0x1c0] sm:$0xff]
    %v5045 = vld [vmem:[#allocation9 + $0x1c8] sm:$0xff]
    %v5046 = vld [vmem:[#allocation9 + $0x1d0] sm:$0xff]
    %v5047 = vld [vmem:[#allocation9 + $0x1d8] sm:$0xff]
    %v5048 = vld [vmem:[#allocation9 + $0x1e0] sm:$0xff]
    %v5049 = vld [vmem:[#allocation9 + $0x1e8] sm:$0xff]
    %v5050 = vld [vmem:[#allocation9 + $0x1f0] sm:$0xff]
    %v5051 = vld [vmem:[#allocation9 + $0x1f8] sm:$0xff]
    %v5052 = vld [vmem:[#allocation9 + $0x200] sm:$0xff]
    %v5053 = vld [vmem:[#allocation9 + $0x208] sm:$0xff]
    %v5054 = vld [vmem:[#allocation9 + $0x210] sm:$0xff]
    %v5055 = vld [vmem:[#allocation9 + $0x218] sm:$0xff]
    %v5056 = vld [vmem:[#allocation9 + $0x220] sm:$0xff]
    %v5057 = vld [vmem:[#allocation9 + $0x228] sm:$0xff]
    %v5058 = vld [vmem:[#allocation9 + $0x230] sm:$0xff]
    %v5059 = vld [vmem:[#allocation9 + $0x238] sm:$0xff]
    %v5060 = vld [vmem:[#allocation9 + $0x240] sm:$0xff]
    %v5061 = vld [vmem:[#allocation9 + $0x248] sm:$0xff]
    %v5062 = vld [vmem:[#allocation9 + $0x250] sm:$0xff]
    %v5063 = vld [vmem:[#allocation9 + $0x258] sm:$0xff]
    %v5064 = vld [vmem:[#allocation9 + $0x260] sm:$0xff]
    %v5065 = vld [vmem:[#allocation9 + $0x268] sm:$0xff]
    %v5066 = vld [vmem:[#allocation9 + $0x270] sm:$0xff]
    %v5067 = vld [vmem:[#allocation9 + $0x278] sm:$0xff]
    %v5068 = vld [vmem:[#allocation9 + $0x280] sm:$0xff]
    %v5069 = vld [vmem:[#allocation9 + $0x288] sm:$0xff]
    %v5070 = vld [vmem:[#allocation9 + $0x290] sm:$0xff]
    %v5071 = vld [vmem:[#allocation9 + $0x298] sm:$0xff]
    %v5072 = vld [vmem:[#allocation9 + $0x2a0] sm:$0xff]
    %v5073 = vld [vmem:[#allocation9 + $0x2a8] sm:$0xff]
    %v5074 = vld [vmem:[#allocation9 + $0x2b0] sm:$0xff]
    %v5075 = vld [vmem:[#allocation9 + $0x2b8] sm:$0xff]
    %v5076 = vld [vmem:[#allocation9 + $0x2c0] sm:$0xff]
    %v5077 = vld [vmem:[#allocation9 + $0x2c8] sm:$0xff]
    %v5078 = vld [vmem:[#allocation9 + $0x2d0] sm:$0xff]
    %v5079 = vld [vmem:[#allocation9 + $0x2d8] sm:$0xff]
    %v5080 = vld [vmem:[#allocation9 + $0x2e0] sm:$0xff]
    %v5081 = vld [vmem:[#allocation9 + $0x2e8] sm:$0xff]
    %v5082 = vld [vmem:[#allocation9 + $0x2f0] sm:$0xff]
    %v5083 = vld [vmem:[#allocation9 + $0x2f8] sm:$0xff]
    %v5084 = vld [vmem:[#allocation9 + $0x300] sm:$0xff]
    %v5085 = vld [vmem:[#allocation9 + $0x308] sm:$0xff]
    %v5086 = vld [vmem:[#allocation9 + $0x310] sm:$0xff]
    %v5087 = vld [vmem:[#allocation9 + $0x318] sm:$0xff]
    %v5088 = vld [vmem:[#allocation9 + $0x320] sm:$0xff]
    %v5089 = vld [vmem:[#allocation9 + $0x328] sm:$0xff]
    %v5090 = vld [vmem:[#allocation9 + $0x330] sm:$0xff]
    %v5091 = vld [vmem:[#allocation9 + $0x338] sm:$0xff]
    %v5092 = vld [vmem:[#allocation9 + $0x340] sm:$0xff]
    %v5093 = vld [vmem:[#allocation9 + $0x348] sm:$0xff]
    %v5094 = vld [vmem:[#allocation9 + $0x350] sm:$0xff]
    %v5095 = vld [vmem:[#allocation9 + $0x358] sm:$0xff]
    %v5096 = vld [vmem:[#allocation9 + $0x360] sm:$0xff]
    %v5097 = vld [vmem:[#allocation9 + $0x368] sm:$0xff]
    %v5098 = vld [vmem:[#allocation9 + $0x370] sm:$0xff]
    %v5099 = vld [vmem:[#allocation9 + $0x378] sm:$0xff]
    %v5100 = vld [vmem:[#allocation9 + $0x380] sm:$0xff]
    %v5101 = vld [vmem:[#allocation9 + $0x388] sm:$0xff]
    %v5102 = vld [vmem:[#allocation9 + $0x390] sm:$0xff]
    %v5103 = vld [vmem:[#allocation9 + $0x398] sm:$0xff]
    %v5104 = vld [vmem:[#allocation9 + $0x3a0] sm:$0xff]
    %v5105 = vld [vmem:[#allocation9 + $0x3a8] sm:$0xff]
    %v5106 = vld [vmem:[#allocation9 + $0x3b0] sm:$0xff]
    %v5107 = vld [vmem:[#allocation9 + $0x3b8] sm:$0xff]
    %v5108 = vld [vmem:[#allocation9 + $0x3c0] sm:$0xff]
    %v5109 = vld [vmem:[#allocation9 + $0x3c8] sm:$0xff]
    %v5110 = vld [vmem:[#allocation9 + $0x3d0] sm:$0xff]
    %v5111 = vld [vmem:[#allocation9 + $0x3d8] sm:$0xff]
    %v5112 = vld [vmem:[#allocation9 + $0x3e0] sm:$0xff]
    %v5113 = vld [vmem:[#allocation9 + $0x3e8] sm:$0xff]
    %v5114 = vld [vmem:[#allocation9 + $0x3f0] sm:$0xff]
    %v5115 = vld [vmem:[#allocation9 + $0x3f8] sm:$0xff]
    %v5116 = vpack.c.bf16 %v4980, %v4980
    %v5117 = vpack.c.bf16 %v4981, %v4981
    %v5118 = vpack.c.bf16 %v4982, %v4982
    %v5119 = vpack.c.bf16 %v4983, %v4983
    %v5120 = vld [vmem:[#allocation9 + $0x400] sm:$0xff]
    %v5121 = vld [vmem:[#allocation9 + $0x408] sm:$0xff]
    %v5122 = vld [vmem:[#allocation9 + $0x410] sm:$0xff]
    %v5123 = vld [vmem:[#allocation9 + $0x418] sm:$0xff]
    %v5124 = vld [vmem:[#allocation9 + $0x420] sm:$0xff]
    %v5125 = vld [vmem:[#allocation9 + $0x428] sm:$0xff]
    %v5126 = vld [vmem:[#allocation9 + $0x430] sm:$0xff]
    %v5127 = vld [vmem:[#allocation9 + $0x438] sm:$0xff]
    %v5128 = vld [vmem:[#allocation9 + $0x440] sm:$0xff]
    %v5129 = vld [vmem:[#allocation9 + $0x448] sm:$0xff]
    %v5130 = vld [vmem:[#allocation9 + $0x450] sm:$0xff]
    %v5131 = vld [vmem:[#allocation9 + $0x458] sm:$0xff]
    %v5132 = vld [vmem:[#allocation9 + $0x460] sm:$0xff]
    %v5133 = vld [vmem:[#allocation9 + $0x468] sm:$0xff]
    %v5134 = vld [vmem:[#allocation9 + $0x470] sm:$0xff]
    %v5135 = vld [vmem:[#allocation9 + $0x478] sm:$0xff]
    %v5136 = vld [vmem:[#allocation9 + $0x480] sm:$0xff]
    %v5137 = vld [vmem:[#allocation9 + $0x488] sm:$0xff]
    %v5138 = vld [vmem:[#allocation9 + $0x490] sm:$0xff]
    %v5139 = vld [vmem:[#allocation9 + $0x498] sm:$0xff]
    %v5140 = vld [vmem:[#allocation9 + $0x4a0] sm:$0xff]
    %v5141 = vld [vmem:[#allocation9 + $0x4a8] sm:$0xff]
    %v5142 = vld [vmem:[#allocation9 + $0x4b0] sm:$0xff]
    %v5143 = vld [vmem:[#allocation9 + $0x4b8] sm:$0xff]
    %v5144 = vld [vmem:[#allocation9 + $0x4c0] sm:$0xff]
    %v5145 = vld [vmem:[#allocation9 + $0x4c8] sm:$0xff]
    %v5146 = vld [vmem:[#allocation9 + $0x4d0] sm:$0xff]
    %v5147 = vld [vmem:[#allocation9 + $0x4d8] sm:$0xff]
    %v5148 = vld [vmem:[#allocation9 + $0x4e0] sm:$0xff]
    %v5149 = vld [vmem:[#allocation9 + $0x4e8] sm:$0xff]
    %v5150 = vld [vmem:[#allocation9 + $0x4f0] sm:$0xff]
    %v5151 = vld [vmem:[#allocation9 + $0x4f8] sm:$0xff]
    %v5152 = vld [vmem:[#allocation9 + $0x500] sm:$0xff]
    %v5153 = vld [vmem:[#allocation9 + $0x508] sm:$0xff]
    %v5154 = vld [vmem:[#allocation9 + $0x510] sm:$0xff]
    %v5155 = vld [vmem:[#allocation9 + $0x518] sm:$0xff]
    %v5156 = vld [vmem:[#allocation9 + $0x520] sm:$0xff]
    %v5157 = vld [vmem:[#allocation9 + $0x528] sm:$0xff]
    %v5158 = vld [vmem:[#allocation9 + $0x530] sm:$0xff]
    %v5159 = vld [vmem:[#allocation9 + $0x538] sm:$0xff]
    %v5160 = vld [vmem:[#allocation9 + $0x540] sm:$0xff]
    %v5161 = vld [vmem:[#allocation9 + $0x548] sm:$0xff]
    %v5162 = vld [vmem:[#allocation9 + $0x550] sm:$0xff]
    %v5163 = vld [vmem:[#allocation9 + $0x558] sm:$0xff]
    %v5164 = vld [vmem:[#allocation9 + $0x560] sm:$0xff]
    %v5165 = vld [vmem:[#allocation9 + $0x568] sm:$0xff]
    %v5166 = vld [vmem:[#allocation9 + $0x570] sm:$0xff]
    %v5167 = vld [vmem:[#allocation9 + $0x578] sm:$0xff]
    %v5168 = vld [vmem:[#allocation9 + $0x580] sm:$0xff]
    %v5169 = vld [vmem:[#allocation9 + $0x588] sm:$0xff]
    %v5170 = vld [vmem:[#allocation9 + $0x590] sm:$0xff]
    %v5171 = vld [vmem:[#allocation9 + $0x598] sm:$0xff]
    %v5172 = vld [vmem:[#allocation9 + $0x5a0] sm:$0xff]
    %v5173 = vld [vmem:[#allocation9 + $0x5a8] sm:$0xff]
    %v5174 = vld [vmem:[#allocation9 + $0x5b0] sm:$0xff]
    %v5175 = vld [vmem:[#allocation9 + $0x5b8] sm:$0xff]
    %v5176 = vld [vmem:[#allocation9 + $0x5c0] sm:$0xff]
    %v5177 = vld [vmem:[#allocation9 + $0x5c8] sm:$0xff]
    %v5178 = vld [vmem:[#allocation9 + $0x5d0] sm:$0xff]
    %v5179 = vld [vmem:[#allocation9 + $0x5d8] sm:$0xff]
    %v5180 = vld [vmem:[#allocation9 + $0x5e0] sm:$0xff]
    %v5181 = vld [vmem:[#allocation9 + $0x5e8] sm:$0xff]
    %v5182 = vld [vmem:[#allocation9 + $0x5f0] sm:$0xff]
    %v5183 = vld [vmem:[#allocation9 + $0x5f8] sm:$0xff]
    %v5184 = vld [vmem:[#allocation9 + $0x600] sm:$0xff]
    %v5185 = vld [vmem:[#allocation9 + $0x608] sm:$0xff]
    %v5186 = vld [vmem:[#allocation9 + $0x610] sm:$0xff]
    %v5187 = vld [vmem:[#allocation9 + $0x618] sm:$0xff]
    %v5188 = vld [vmem:[#allocation9 + $0x620] sm:$0xff]
    %v5189 = vld [vmem:[#allocation9 + $0x628] sm:$0xff]
    %v5190 = vld [vmem:[#allocation9 + $0x630] sm:$0xff]
    %v5191 = vld [vmem:[#allocation9 + $0x638] sm:$0xff]
    %v5192 = vld [vmem:[#allocation9 + $0x640] sm:$0xff]
    %v5193 = vld [vmem:[#allocation9 + $0x648] sm:$0xff]
    %v5194 = vld [vmem:[#allocation9 + $0x650] sm:$0xff]
    %v5195 = vld [vmem:[#allocation9 + $0x658] sm:$0xff]
    %v5196 = vld [vmem:[#allocation9 + $0x660] sm:$0xff]
    %v5197 = vld [vmem:[#allocation9 + $0x668] sm:$0xff]
    %v5198 = vld [vmem:[#allocation9 + $0x670] sm:$0xff]
    %v5199 = vld [vmem:[#allocation9 + $0x678] sm:$0xff]
    %v5200 = vld [vmem:[#allocation9 + $0x680] sm:$0xff]
    %v5201 = vld [vmem:[#allocation9 + $0x688] sm:$0xff]
    %v5202 = vld [vmem:[#allocation9 + $0x690] sm:$0xff]
    %v5203 = vld [vmem:[#allocation9 + $0x698] sm:$0xff]
    %v5204 = vld [vmem:[#allocation9 + $0x6a0] sm:$0xff]
    %v5205 = vld [vmem:[#allocation9 + $0x6a8] sm:$0xff]
    %v5206 = vld [vmem:[#allocation9 + $0x6b0] sm:$0xff]
    %v5207 = vld [vmem:[#allocation9 + $0x6b8] sm:$0xff]
    %v5208 = vld [vmem:[#allocation9 + $0x6c0] sm:$0xff]
    %v5209 = vld [vmem:[#allocation9 + $0x6c8] sm:$0xff]
    %v5210 = vld [vmem:[#allocation9 + $0x6d0] sm:$0xff]
    %v5211 = vld [vmem:[#allocation9 + $0x6d8] sm:$0xff]
    %v5212 = vld [vmem:[#allocation9 + $0x6e0] sm:$0xff]
    %v5213 = vld [vmem:[#allocation9 + $0x6e8] sm:$0xff]
    %v5214 = vld [vmem:[#allocation9 + $0x6f0] sm:$0xff]
    %v5215 = vld [vmem:[#allocation9 + $0x6f8] sm:$0xff]
    %v5216 = vld [vmem:[#allocation9 + $0x700] sm:$0xff]
    %v5217 = vld [vmem:[#allocation9 + $0x708] sm:$0xff]
    %v5218 = vld [vmem:[#allocation9 + $0x710] sm:$0xff]
    %v5219 = vld [vmem:[#allocation9 + $0x718] sm:$0xff]
    %v5220 = vld [vmem:[#allocation9 + $0x720] sm:$0xff]
    %v5221 = vld [vmem:[#allocation9 + $0x728] sm:$0xff]
    %v5222 = vld [vmem:[#allocation9 + $0x730] sm:$0xff]
    %v5223 = vld [vmem:[#allocation9 + $0x738] sm:$0xff]
    %v5224 = vld [vmem:[#allocation9 + $0x740] sm:$0xff]
    %v5225 = vld [vmem:[#allocation9 + $0x748] sm:$0xff]
    %v5226 = vld [vmem:[#allocation9 + $0x750] sm:$0xff]
    %v5227 = vld [vmem:[#allocation9 + $0x758] sm:$0xff]
    %v5228 = vld [vmem:[#allocation9 + $0x760] sm:$0xff]
    %v5229 = vld [vmem:[#allocation9 + $0x768] sm:$0xff]
    %v5230 = vld [vmem:[#allocation9 + $0x770] sm:$0xff]
    %v5231 = vld [vmem:[#allocation9 + $0x778] sm:$0xff]
    %v5232 = vld [vmem:[#allocation9 + $0x780] sm:$0xff]
    %v5233 = vld [vmem:[#allocation9 + $0x788] sm:$0xff]
    %v5234 = vld [vmem:[#allocation9 + $0x790] sm:$0xff]
    %v5235 = vld [vmem:[#allocation9 + $0x798] sm:$0xff]
    %v5236 = vld [vmem:[#allocation9 + $0x7a0] sm:$0xff]
    %v5237 = vld [vmem:[#allocation9 + $0x7a8] sm:$0xff]
    %v5238 = vld [vmem:[#allocation9 + $0x7b0] sm:$0xff]
    %v5239 = vld [vmem:[#allocation9 + $0x7b8] sm:$0xff]
    %v5240 = vld [vmem:[#allocation9 + $0x7c0] sm:$0xff]
    %v5241 = vld [vmem:[#allocation9 + $0x7c8] sm:$0xff]
    %v5242 = vld [vmem:[#allocation9 + $0x7d0] sm:$0xff]
    %v5243 = vld [vmem:[#allocation9 + $0x7d8] sm:$0xff]
    %v5244 = vld [vmem:[#allocation9 + $0x7e0] sm:$0xff]
    %v5245 = vld [vmem:[#allocation9 + $0x7e8] sm:$0xff]
    %v5246 = vld [vmem:[#allocation9 + $0x7f0] sm:$0xff]
    %v5247 = vld [vmem:[#allocation9 + $0x7f8] sm:$0xff]
    %v5376 = vunpack.c.l.b16 %v5120
    %v5377 = vunpack.c.h.b16 %v5120
    %v5378 = vunpack.c.l.b16 %v5121
    %v5379 = vunpack.c.h.b16 %v5121
    %v5380 = vunpack.c.l.b16 %v5122
    %v5381 = vunpack.c.h.b16 %v5122
    %v5382 = vunpack.c.l.b16 %v5123
    %v5383 = vunpack.c.h.b16 %v5123
    %v5384 = vunpack.c.l.b16 %v5124
    %v5385 = vunpack.c.h.b16 %v5124
    %v5386 = vunpack.c.l.b16 %v5125
    %v5387 = vunpack.c.h.b16 %v5125
    %v5388 = vunpack.c.l.b16 %v5126
    %v5389 = vunpack.c.h.b16 %v5126
    %v5390 = vunpack.c.l.b16 %v5127
    %v5391 = vunpack.c.h.b16 %v5127
    %v5392 = vunpack.c.l.b16 %v5128
    %v5393 = vunpack.c.h.b16 %v5128
    %v5394 = vunpack.c.l.b16 %v5129
    %v5395 = vunpack.c.h.b16 %v5129
    %v5396 = vunpack.c.l.b16 %v5130
    %v5397 = vunpack.c.h.b16 %v5130
    %v5398 = vunpack.c.l.b16 %v5131
    %v5399 = vunpack.c.h.b16 %v5131
    %v5400 = vunpack.c.l.b16 %v5132
    %v5401 = vunpack.c.h.b16 %v5132
    %v5402 = vunpack.c.l.b16 %v5133
    %v5403 = vunpack.c.h.b16 %v5133
    %v5404 = vunpack.c.l.b16 %v5134
    %v5405 = vunpack.c.h.b16 %v5134
    %v5406 = vunpack.c.l.b16 %v5135
    %v5407 = vunpack.c.h.b16 %v5135
    %v5408 = vunpack.c.l.b16 %v5136
    %v5409 = vunpack.c.h.b16 %v5136
    %v5410 = vunpack.c.l.b16 %v5137
    %v5411 = vunpack.c.h.b16 %v5137
    %v5412 = vunpack.c.l.b16 %v5138
    %v5413 = vunpack.c.h.b16 %v5138
    %v5414 = vunpack.c.l.b16 %v5139
    %v5415 = vunpack.c.h.b16 %v5139
    %v5416 = vunpack.c.l.b16 %v5140
    %v5417 = vunpack.c.h.b16 %v5140
    %v5418 = vunpack.c.l.b16 %v5141
    %v5419 = vunpack.c.h.b16 %v5141
    %v5420 = vunpack.c.l.b16 %v5142
    %v5421 = vunpack.c.h.b16 %v5142
    %v5422 = vunpack.c.l.b16 %v5143
    %v5423 = vunpack.c.h.b16 %v5143
    %v5424 = vunpack.c.l.b16 %v5144
    %v5425 = vunpack.c.h.b16 %v5144
    %v5426 = vunpack.c.l.b16 %v5145
    %v5427 = vunpack.c.h.b16 %v5145
    %v5428 = vunpack.c.l.b16 %v5146
    %v5429 = vunpack.c.h.b16 %v5146
    %v5430 = vunpack.c.l.b16 %v5147
    %v5431 = vunpack.c.h.b16 %v5147
    %v5432 = vunpack.c.l.b16 %v5148
    %v5433 = vunpack.c.h.b16 %v5148
    %v5434 = vunpack.c.l.b16 %v5149
    %v5435 = vunpack.c.h.b16 %v5149
    %v5436 = vunpack.c.l.b16 %v5150
    %v5437 = vunpack.c.h.b16 %v5150
    %v5438 = vunpack.c.l.b16 %v5151
    %v5439 = vunpack.c.h.b16 %v5151
    %v5440 = vunpack.c.l.b16 %v5152
    %v5441 = vunpack.c.h.b16 %v5152
    %v5442 = vunpack.c.l.b16 %v5153
    %v5443 = vunpack.c.h.b16 %v5153
    %v5444 = vunpack.c.l.b16 %v5154
    %v5445 = vunpack.c.h.b16 %v5154
    %v5446 = vunpack.c.l.b16 %v5155
    %v5447 = vunpack.c.h.b16 %v5155
    %v5448 = vunpack.c.l.b16 %v5156
    %v5449 = vunpack.c.h.b16 %v5156
    %v5450 = vunpack.c.l.b16 %v5157
    %v5451 = vunpack.c.h.b16 %v5157
    %v5452 = vunpack.c.l.b16 %v5158
    %v5453 = vunpack.c.h.b16 %v5158
    %v5454 = vunpack.c.l.b16 %v5159
    %v5455 = vunpack.c.h.b16 %v5159
    %v5456 = vunpack.c.l.b16 %v5160
    %v5457 = vunpack.c.h.b16 %v5160
    %v5458 = vunpack.c.l.b16 %v5161
    %v5459 = vunpack.c.h.b16 %v5161
    %v5460 = vunpack.c.l.b16 %v5162
    %v5461 = vunpack.c.h.b16 %v5162
    %v5462 = vunpack.c.l.b16 %v5163
    %v5463 = vunpack.c.h.b16 %v5163
    %v5464 = vunpack.c.l.b16 %v5164
    %v5465 = vunpack.c.h.b16 %v5164
    %v5466 = vunpack.c.l.b16 %v5165
    %v5467 = vunpack.c.h.b16 %v5165
    %v5468 = vunpack.c.l.b16 %v5166
    %v5469 = vunpack.c.h.b16 %v5166
    %v5470 = vunpack.c.l.b16 %v5167
    %v5471 = vunpack.c.h.b16 %v5167
    %v5472 = vunpack.c.l.b16 %v5168
    %v5473 = vunpack.c.h.b16 %v5168
    %v5474 = vunpack.c.l.b16 %v5169
    %v5475 = vunpack.c.h.b16 %v5169
    %v5476 = vunpack.c.l.b16 %v5170
    %v5477 = vunpack.c.h.b16 %v5170
    %v5478 = vunpack.c.l.b16 %v5171
    %v5479 = vunpack.c.h.b16 %v5171
    %v5480 = vunpack.c.l.b16 %v5172
    %v5481 = vunpack.c.h.b16 %v5172
    %v5482 = vunpack.c.l.b16 %v5173
    %v5483 = vunpack.c.h.b16 %v5173
    %v5484 = vunpack.c.l.b16 %v5174
    %v5485 = vunpack.c.h.b16 %v5174
    %v5486 = vunpack.c.l.b16 %v5175
    %v5487 = vunpack.c.h.b16 %v5175
    %v5488 = vunpack.c.l.b16 %v5176
    %v5489 = vunpack.c.h.b16 %v5176
    %v5490 = vunpack.c.l.b16 %v5177
    %v5491 = vunpack.c.h.b16 %v5177
    %v5492 = vunpack.c.l.b16 %v5178
    %v5493 = vunpack.c.h.b16 %v5178
    %v5494 = vunpack.c.l.b16 %v5179
    %v5495 = vunpack.c.h.b16 %v5179
    %v5496 = vunpack.c.l.b16 %v5180
    %v5497 = vunpack.c.h.b16 %v5180
    %v5498 = vunpack.c.l.b16 %v5181
    %v5499 = vunpack.c.h.b16 %v5181
    %v5500 = vunpack.c.l.b16 %v5182
    %v5501 = vunpack.c.h.b16 %v5182
    %v5502 = vunpack.c.l.b16 %v5183
    %v5503 = vunpack.c.h.b16 %v5183
    %v5504 = vunpack.c.l.b16 %v5184
    %v5505 = vunpack.c.h.b16 %v5184
    %v5506 = vunpack.c.l.b16 %v5185
    %v5507 = vunpack.c.h.b16 %v5185
    %v5508 = vunpack.c.l.b16 %v5186
    %v5509 = vunpack.c.h.b16 %v5186
    %v5510 = vunpack.c.l.b16 %v5187
    %v5511 = vunpack.c.h.b16 %v5187
    %v5512 = vunpack.c.l.b16 %v5188
    %v5513 = vunpack.c.h.b16 %v5188
    %v5514 = vunpack.c.l.b16 %v5189
    %v5515 = vunpack.c.h.b16 %v5189
    %v5516 = vunpack.c.l.b16 %v5190
    %v5517 = vunpack.c.h.b16 %v5190
    %v5518 = vunpack.c.l.b16 %v5191
    %v5519 = vunpack.c.h.b16 %v5191
    %v5520 = vunpack.c.l.b16 %v5192
    %v5521 = vunpack.c.h.b16 %v5192
    %v5522 = vunpack.c.l.b16 %v5193
    %v5523 = vunpack.c.h.b16 %v5193
    %v5524 = vunpack.c.l.b16 %v5194
    %v5525 = vunpack.c.h.b16 %v5194
    %v5526 = vunpack.c.l.b16 %v5195
    %v5527 = vunpack.c.h.b16 %v5195
    %v5528 = vunpack.c.l.b16 %v5196
    %v5529 = vunpack.c.h.b16 %v5196
    %v5530 = vunpack.c.l.b16 %v5197
    %v5531 = vunpack.c.h.b16 %v5197
    %v5532 = vunpack.c.l.b16 %v5198
    %v5533 = vunpack.c.h.b16 %v5198
    %v5534 = vunpack.c.l.b16 %v5199
    %v5535 = vunpack.c.h.b16 %v5199
    %v5536 = vunpack.c.l.b16 %v5200
    %v5537 = vunpack.c.h.b16 %v5200
    %v5538 = vunpack.c.l.b16 %v5201
    %v5539 = vunpack.c.h.b16 %v5201
    %v5540 = vunpack.c.l.b16 %v5202
    %v5541 = vunpack.c.h.b16 %v5202
    %v5542 = vunpack.c.l.b16 %v5203
    %v5543 = vunpack.c.h.b16 %v5203
    %v5544 = vunpack.c.l.b16 %v5204
    %v5545 = vunpack.c.h.b16 %v5204
    %v5546 = vunpack.c.l.b16 %v5205
    %v5547 = vunpack.c.h.b16 %v5205
    %v5548 = vunpack.c.l.b16 %v5206
    %v5549 = vunpack.c.h.b16 %v5206
    %v5550 = vunpack.c.l.b16 %v5207
    %v5551 = vunpack.c.h.b16 %v5207
    %v5552 = vunpack.c.l.b16 %v5208
    %v5553 = vunpack.c.h.b16 %v5208
    %v5554 = vunpack.c.l.b16 %v5209
    %v5555 = vunpack.c.h.b16 %v5209
    %v5556 = vunpack.c.l.b16 %v5210
    %v5557 = vunpack.c.h.b16 %v5210
    %v5558 = vunpack.c.l.b16 %v5211
    %v5559 = vunpack.c.h.b16 %v5211
    %v5560 = vunpack.c.l.b16 %v5212
    %v5561 = vunpack.c.h.b16 %v5212
    %v5562 = vunpack.c.l.b16 %v5213
    %v5563 = vunpack.c.h.b16 %v5213
    %v5564 = vunpack.c.l.b16 %v5214
    %v5565 = vunpack.c.h.b16 %v5214
    %v5566 = vunpack.c.l.b16 %v5215
    %v5567 = vunpack.c.h.b16 %v5215
    %v5568 = vunpack.c.l.b16 %v5216
    %v5569 = vunpack.c.h.b16 %v5216
    %v5570 = vunpack.c.l.b16 %v5217
    %v5571 = vunpack.c.h.b16 %v5217
    %v5572 = vunpack.c.l.b16 %v5218
    %v5573 = vunpack.c.h.b16 %v5218
    %v5574 = vunpack.c.l.b16 %v5219
    %v5575 = vunpack.c.h.b16 %v5219
    %v5576 = vunpack.c.l.b16 %v5220
    %v5577 = vunpack.c.h.b16 %v5220
    %v5578 = vunpack.c.l.b16 %v5221
    %v5579 = vunpack.c.h.b16 %v5221
    %v5580 = vunpack.c.l.b16 %v5222
    %v5581 = vunpack.c.h.b16 %v5222
    %v5582 = vunpack.c.l.b16 %v5223
    %v5583 = vunpack.c.h.b16 %v5223
    %v5584 = vunpack.c.l.b16 %v5224
    %v5585 = vunpack.c.h.b16 %v5224
    %v5586 = vunpack.c.l.b16 %v5225
    %v5587 = vunpack.c.h.b16 %v5225
    %v5588 = vunpack.c.l.b16 %v5226
    %v5589 = vunpack.c.h.b16 %v5226
    %v5590 = vunpack.c.l.b16 %v5227
    %v5591 = vunpack.c.h.b16 %v5227
    %v5592 = vunpack.c.l.b16 %v5228
    %v5593 = vunpack.c.h.b16 %v5228
    %v5594 = vunpack.c.l.b16 %v5229
    %v5595 = vunpack.c.h.b16 %v5229
    %v5596 = vunpack.c.l.b16 %v5230
    %v5597 = vunpack.c.h.b16 %v5230
    %v5598 = vunpack.c.l.b16 %v5231
    %v5599 = vunpack.c.h.b16 %v5231
    %v5600 = vunpack.c.l.b16 %v5232
    %v5601 = vunpack.c.h.b16 %v5232
    %v5602 = vunpack.c.l.b16 %v5233
    %v5603 = vunpack.c.h.b16 %v5233
    %v5604 = vunpack.c.l.b16 %v5234
    %v5605 = vunpack.c.h.b16 %v5234
    %v5606 = vunpack.c.l.b16 %v5235
    %v5607 = vunpack.c.h.b16 %v5235
    %v5608 = vunpack.c.l.b16 %v5236
    %v5609 = vunpack.c.h.b16 %v5236
    %v5610 = vunpack.c.l.b16 %v5237
    %v5611 = vunpack.c.h.b16 %v5237
    %v5612 = vunpack.c.l.b16 %v5238
    %v5613 = vunpack.c.h.b16 %v5238
    %v5614 = vunpack.c.l.b16 %v5239
    %v5615 = vunpack.c.h.b16 %v5239
    %v5616 = vunpack.c.l.b16 %v5240
    %v5617 = vunpack.c.h.b16 %v5240
    %v5618 = vunpack.c.l.b16 %v5241
    %v5619 = vunpack.c.h.b16 %v5241
    %v5620 = vunpack.c.l.b16 %v5242
    %v5621 = vunpack.c.h.b16 %v5242
    %v5622 = vunpack.c.l.b16 %v5243
    %v5623 = vunpack.c.h.b16 %v5243
    %v5624 = vunpack.c.l.b16 %v5244
    %v5625 = vunpack.c.h.b16 %v5244
    %v5626 = vunpack.c.l.b16 %v5245
    %v5627 = vunpack.c.h.b16 %v5245
    %v5628 = vunpack.c.l.b16 %v5246
    %v5629 = vunpack.c.h.b16 %v5246
    %v5630 = vunpack.c.l.b16 %v5247
    %v5631 = vunpack.c.h.b16 %v5247
    %v5632 = vpack.c.b16 %v5380, %v5376
    %v5633 = vpack.c.b16 %v5381, %v5377
    %v5634 = vpack.c.b16 %v5382, %v5378
    %v5635 = vpack.c.b16 %v5383, %v5379
    %v5636 = vpack.c.b16 %v5388, %v5384
    %v5637 = vpack.c.b16 %v5389, %v5385
    %v5638 = vpack.c.b16 %v5390, %v5386
    %v5639 = vpack.c.b16 %v5391, %v5387
    %v5640 = vpack.c.b16 %v5396, %v5392
    %v5641 = vpack.c.b16 %v5397, %v5393
    %v5642 = vpack.c.b16 %v5398, %v5394
    %v5643 = vpack.c.b16 %v5399, %v5395
    %v5644 = vpack.c.b16 %v5404, %v5400
    %v5645 = vpack.c.b16 %v5405, %v5401
    %v5646 = vpack.c.b16 %v5406, %v5402
    %v5647 = vpack.c.b16 %v5407, %v5403
    %v5648 = vpack.c.b16 %v5412, %v5408
    %v5649 = vpack.c.b16 %v5413, %v5409
    %v5650 = vpack.c.b16 %v5414, %v5410
    %v5651 = vpack.c.b16 %v5415, %v5411
    %v5652 = vpack.c.b16 %v5420, %v5416
    %v5653 = vpack.c.b16 %v5421, %v5417
    %v5654 = vpack.c.b16 %v5422, %v5418
    %v5655 = vpack.c.b16 %v5423, %v5419
    %v5656 = vpack.c.b16 %v5428, %v5424
    %v5657 = vpack.c.b16 %v5429, %v5425
    %v5658 = vpack.c.b16 %v5430, %v5426
    %v5659 = vpack.c.b16 %v5431, %v5427
    %v5660 = vpack.c.b16 %v5436, %v5432
    %v5661 = vpack.c.b16 %v5437, %v5433
    %v5662 = vpack.c.b16 %v5438, %v5434
    %v5663 = vpack.c.b16 %v5439, %v5435
    %v5664 = vpack.c.b16 %v5444, %v5440
    %v5665 = vpack.c.b16 %v5445, %v5441
    %v5666 = vpack.c.b16 %v5446, %v5442
    %v5667 = vpack.c.b16 %v5447, %v5443
    %v5668 = vpack.c.b16 %v5452, %v5448
    %v5669 = vpack.c.b16 %v5453, %v5449
    %v5670 = vpack.c.b16 %v5454, %v5450
    %v5671 = vpack.c.b16 %v5455, %v5451
    %v5672 = vpack.c.b16 %v5460, %v5456
    %v5673 = vpack.c.b16 %v5461, %v5457
    %v5674 = vpack.c.b16 %v5462, %v5458
    %v5675 = vpack.c.b16 %v5463, %v5459
    %v5676 = vpack.c.b16 %v5468, %v5464
    %v5677 = vpack.c.b16 %v5469, %v5465
    %v5678 = vpack.c.b16 %v5470, %v5466
    %v5679 = vpack.c.b16 %v5471, %v5467
    %v5680 = vpack.c.b16 %v5476, %v5472
    %v5681 = vpack.c.b16 %v5477, %v5473
    %v5682 = vpack.c.b16 %v5478, %v5474
    %v5683 = vpack.c.b16 %v5479, %v5475
    %v5684 = vpack.c.b16 %v5484, %v5480
    %v5685 = vpack.c.b16 %v5485, %v5481
    %v5686 = vpack.c.b16 %v5486, %v5482
    %v5687 = vpack.c.b16 %v5487, %v5483
    %v5688 = vpack.c.b16 %v5492, %v5488
    %v5689 = vpack.c.b16 %v5493, %v5489
    %v5690 = vpack.c.b16 %v5494, %v5490
    %v5691 = vpack.c.b16 %v5495, %v5491
    %v5692 = vpack.c.b16 %v5500, %v5496
    %v5693 = vpack.c.b16 %v5501, %v5497
    %v5694 = vpack.c.b16 %v5502, %v5498
    %v5695 = vpack.c.b16 %v5503, %v5499
    %v5696 = vpack.c.b16 %v5508, %v5504
    %v5697 = vpack.c.b16 %v5509, %v5505
    %v5698 = vpack.c.b16 %v5510, %v5506
    %v5699 = vpack.c.b16 %v5511, %v5507
    %v5700 = vpack.c.b16 %v5516, %v5512
    %v5701 = vpack.c.b16 %v5517, %v5513
    %v5702 = vpack.c.b16 %v5518, %v5514
    %v5703 = vpack.c.b16 %v5519, %v5515
    %v5704 = vpack.c.b16 %v5524, %v5520
    %v5705 = vpack.c.b16 %v5525, %v5521
    %v5706 = vpack.c.b16 %v5526, %v5522
    %v5707 = vpack.c.b16 %v5527, %v5523
    %v5708 = vpack.c.b16 %v5532, %v5528
    %v5709 = vpack.c.b16 %v5533, %v5529
    %v5710 = vpack.c.b16 %v5534, %v5530
    %v5711 = vpack.c.b16 %v5535, %v5531
    %v5712 = vpack.c.b16 %v5540, %v5536
    %v5713 = vpack.c.b16 %v5541, %v5537
    %v5714 = vpack.c.b16 %v5542, %v5538
    %v5715 = vpack.c.b16 %v5543, %v5539
    %v5716 = vpack.c.b16 %v5548, %v5544
    %v5717 = vpack.c.b16 %v5549, %v5545
    %v5718 = vpack.c.b16 %v5550, %v5546
    %v5719 = vpack.c.b16 %v5551, %v5547
    %v5720 = vpack.c.b16 %v5556, %v5552
    %v5721 = vpack.c.b16 %v5557, %v5553
    %v5722 = vpack.c.b16 %v5558, %v5554
    %v5723 = vpack.c.b16 %v5559, %v5555
    %v5724 = vpack.c.b16 %v5564, %v5560
    %v5725 = vpack.c.b16 %v5565, %v5561
    %v5726 = vpack.c.b16 %v5566, %v5562
    %v5727 = vpack.c.b16 %v5567, %v5563
    %v5728 = vpack.c.b16 %v5572, %v5568
    %v5729 = vpack.c.b16 %v5573, %v5569
    %v5730 = vpack.c.b16 %v5574, %v5570
    %v5731 = vpack.c.b16 %v5575, %v5571
    %v5732 = vpack.c.b16 %v5580, %v5576
    %v5733 = vpack.c.b16 %v5581, %v5577
    %v5734 = vpack.c.b16 %v5582, %v5578
    %v5735 = vpack.c.b16 %v5583, %v5579
    %v5736 = vpack.c.b16 %v5588, %v5584
    %v5737 = vpack.c.b16 %v5589, %v5585
    %v5738 = vpack.c.b16 %v5590, %v5586
    %v5739 = vpack.c.b16 %v5591, %v5587
    %v5740 = vpack.c.b16 %v5596, %v5592
    %v5741 = vpack.c.b16 %v5597, %v5593
    %v5742 = vpack.c.b16 %v5598, %v5594
    %v5743 = vpack.c.b16 %v5599, %v5595
    %v5744 = vpack.c.b16 %v5604, %v5600
    %v5745 = vpack.c.b16 %v5605, %v5601
    %v5746 = vpack.c.b16 %v5606, %v5602
    %v5747 = vpack.c.b16 %v5607, %v5603
    %v5748 = vpack.c.b16 %v5612, %v5608
    %v5749 = vpack.c.b16 %v5613, %v5609
    %v5750 = vpack.c.b16 %v5614, %v5610
    %v5751 = vpack.c.b16 %v5615, %v5611
    %v5752 = vpack.c.b16 %v5620, %v5616
    %v5753 = vpack.c.b16 %v5621, %v5617
    %v5754 = vpack.c.b16 %v5622, %v5618
    %v5755 = vpack.c.b16 %v5623, %v5619
    %v5756 = vpack.c.b16 %v5628, %v5624
    %v5757 = vpack.c.b16 %v5629, %v5625
    %v5758 = vpack.c.b16 %v5630, %v5626
    %v5759 = vpack.c.b16 %v5631, %v5627
    %5888 = vmatprep.subr.bf16.mxu0 %v5633
    %5889 = vmatpush1.bf16.msra.mxu0 %v5632
    %5890 = vmatprep.subr.bf16.mxu0 %v5637
    %5891 = vmatpush1.bf16.msra.mxu0 %v5636
    %5892 = vmatprep.subr.bf16.mxu0 %v5641
    %5893 = vmatpush1.bf16.msra.mxu0 %v5640
    %5894 = vmatprep.subr.bf16.mxu0 %v5645
    %5895 = vmatpush1.bf16.msra.mxu0 %v5644
    %5896 = vmatprep.subr.bf16.mxu0 %v5649
    %5897 = vmatpush1.bf16.msra.mxu0 %v5648
    %5898 = vmatprep.subr.bf16.mxu0 %v5653
    %5899 = vmatpush1.bf16.msra.mxu0 %v5652
    %5900 = vmatprep.subr.bf16.mxu0 %v5657
    %5901 = vmatpush1.bf16.msra.mxu0 %v5656
    %5902 = vmatprep.subr.bf16.mxu0 %v5661
    %5903 = vmatpush1.bf16.msra.mxu0 %v5660
    %5904 = vmatprep.subr.bf16.mxu0 %v5665
    %5905 = vmatpush1.bf16.msra.mxu0 %v5664
    %5906 = vmatprep.subr.bf16.mxu0 %v5669
    %5907 = vmatpush1.bf16.msra.mxu0 %v5668
    %5908 = vmatprep.subr.bf16.mxu0 %v5673
    %5909 = vmatpush1.bf16.msra.mxu0 %v5672
    %5910 = vmatprep.subr.bf16.mxu0 %v5677
    %5911 = vmatpush1.bf16.msra.mxu0 %v5676
    %5912 = vmatprep.subr.bf16.mxu0 %v5681
    %5913 = vmatpush1.bf16.msra.mxu0 %v5680
    %5914 = vmatprep.subr.bf16.mxu0 %v5685
    %5915 = vmatpush1.bf16.msra.mxu0 %v5684
    %5916 = vmatprep.subr.bf16.mxu0 %v5689
    %5917 = vmatpush1.bf16.msra.mxu0 %v5688
    %5918 = vmatprep.subr.bf16.mxu0 %v5693
    %5919 = vmatpush1.bf16.msra.mxu0 %v5692
    %5920 = vmatprep.mubr.bf16.mxu0 %v5117
    %5921 = vmatmul.mubr.bf16.gmra.mrb[0].mxu0 %v5116
    %v5922 = vpop.f32.mrb[0].mxu0
    %v5923 = vadd.f32 0.0, %v5922
    %v5924 = vpop.f32.mrb[0].mxu0
    %v5925 = vadd.f32 0.0, %v5924
    %v5926 = vpop.f32.mrb[0].mxu0
    %v5927 = vpop.f32.mrb[0].mxu0
    %5928 = vdwg.mxu0
    %5929 = vmatprep.subr.bf16.mxu0 %v5697
    %5930 = vmatpush1.bf16.msra.mxu0 %v5696
    %5931 = vmatprep.subr.bf16.mxu0 %v5701
    %5932 = vmatpush1.bf16.msra.mxu0 %v5700
    %5933 = vmatprep.subr.bf16.mxu0 %v5705
    %5934 = vmatpush1.bf16.msra.mxu0 %v5704
    %5935 = vmatprep.subr.bf16.mxu0 %v5709
    %5936 = vmatpush1.bf16.msra.mxu0 %v5708
    %5937 = vmatprep.subr.bf16.mxu0 %v5713
    %5938 = vmatpush1.bf16.msra.mxu0 %v5712
    %5939 = vmatprep.subr.bf16.mxu0 %v5717
    %5940 = vmatpush1.bf16.msra.mxu0 %v5716
    %5941 = vmatprep.subr.bf16.mxu0 %v5721
    %5942 = vmatpush1.bf16.msra.mxu0 %v5720
    %5943 = vmatprep.subr.bf16.mxu0 %v5725
    %5944 = vmatpush1.bf16.msra.mxu0 %v5724
    %5945 = vmatprep.subr.bf16.mxu0 %v5729
    %5946 = vmatpush1.bf16.msra.mxu0 %v5728
    %5947 = vmatprep.subr.bf16.mxu0 %v5733
    %5948 = vmatpush1.bf16.msra.mxu0 %v5732
    %5949 = vmatprep.subr.bf16.mxu0 %v5737
    %5950 = vmatpush1.bf16.msra.mxu0 %v5736
    %5951 = vmatprep.subr.bf16.mxu0 %v5741
    %5952 = vmatpush1.bf16.msra.mxu0 %v5740
    %5953 = vmatprep.subr.bf16.mxu0 %v5745
    %5954 = vmatpush1.bf16.msra.mxu0 %v5744
    %5955 = vmatprep.subr.bf16.mxu0 %v5749
    %5956 = vmatpush1.bf16.msra.mxu0 %v5748
    %5957 = vmatprep.subr.bf16.mxu0 %v5753
    %5958 = vmatpush1.bf16.msra.mxu0 %v5752
    %5959 = vmatprep.subr.bf16.mxu0 %v5757
    %5960 = vmatpush1.bf16.msra.mxu0 %v5756
    %5961 = vmatprep.mubr.bf16.mxu0 %v5119
    %5962 = vmatmul.mubr.bf16.gmra.mrb[0].mxu0 %v5118
    %v5963 = vpop.f32.mrb[0].mxu0
    %v5964 = vadd.f32 %v5923, %v5963
    %v5965 = vpop.f32.mrb[0].mxu0
    %v5966 = vadd.f32 %v5925, %v5965
    %v5967 = vpop.f32.mrb[0].mxu0
    %v5968 = vpop.f32.mrb[0].mxu0
    %5969 = vdwg.mxu0
    %5970 = vmatprep.subr.bf16.mxu0 %v5635
    %5971 = vmatpush1.bf16.msra.mxu0 %v5634
    %5972 = vmatprep.subr.bf16.mxu0 %v5639
    %5973 = vmatpush1.bf16.msra.mxu0 %v5638
    %5974 = vmatprep.subr.bf16.mxu0 %v5643
    %5975 = vmatpush1.bf16.msra.mxu0 %v5642
    %5976 = vmatprep.subr.bf16.mxu0 %v5647
    %5977 = vmatpush1.bf16.msra.mxu0 %v5646
    %5978 = vmatprep.subr.bf16.mxu0 %v5651
    %5979 = vmatpush1.bf16.msra.mxu0 %v5650
    %5980 = vmatprep.subr.bf16.mxu0 %v5655
    %5981 = vmatpush1.bf16.msra.mxu0 %v5654
    %5982 = vmatprep.subr.bf16.mxu0 %v5659
    %5983 = vmatpush1.bf16.msra.mxu0 %v5658
    %5984 = vmatprep.subr.bf16.mxu0 %v5663
    %5985 = vmatpush1.bf16.msra.mxu0 %v5662
    %5986 = vmatprep.subr.bf16.mxu0 %v5667
    %5987 = vmatpush1.bf16.msra.mxu0 %v5666
    %5988 = vmatprep.subr.bf16.mxu0 %v5671
    %5989 = vmatpush1.bf16.msra.mxu0 %v5670
    %5990 = vmatprep.subr.bf16.mxu0 %v5675
    %5991 = vmatpush1.bf16.msra.mxu0 %v5674
    %5992 = vmatprep.subr.bf16.mxu0 %v5679
    %5993 = vmatpush1.bf16.msra.mxu0 %v5678
    %5994 = vmatprep.subr.bf16.mxu0 %v5683
    %5995 = vmatpush1.bf16.msra.mxu0 %v5682
    %5996 = vmatprep.subr.bf16.mxu0 %v5687
    %5997 = vmatpush1.bf16.msra.mxu0 %v5686
    %5998 = vmatprep.subr.bf16.mxu0 %v5691
    %5999 = vmatpush1.bf16.msra.mxu0 %v5690
    %6000 = vmatprep.subr.bf16.mxu0 %v5695
    %6001 = vmatpush1.bf16.msra.mxu0 %v5694
    %6002 = vmatprep.mubr.bf16.mxu0 %v5117
    %6003 = vmatmul.mubr.bf16.gmra.mrb[0].mxu0 %v5116
    %v6004 = vpop.f32.mrb[0].mxu0
    %v6005 = vadd.f32 0.0, %v6004
    %v6006 = vpop.f32.mrb[0].mxu0
    %v6007 = vadd.f32 0.0, %v6006
    %v6008 = vpop.f32.mrb[0].mxu0
    %v6009 = vpop.f32.mrb[0].mxu0
    %6010 = vdwg.mxu0
    %6011 = vmatprep.subr.bf16.mxu0 %v5699
    %6012 = vmatpush1.bf16.msra.mxu0 %v5698
    %6013 = vmatprep.subr.bf16.mxu0 %v5703
    %6014 = vmatpush1.bf16.msra.mxu0 %v5702
    %6015 = vmatprep.subr.bf16.mxu0 %v5707
    %6016 = vmatpush1.bf16.msra.mxu0 %v5706
    %6017 = vmatprep.subr.bf16.mxu0 %v5711
    %6018 = vmatpush1.bf16.msra.mxu0 %v5710
    %6019 = vmatprep.subr.bf16.mxu0 %v5715
    %6020 = vmatpush1.bf16.msra.mxu0 %v5714
    %6021 = vmatprep.subr.bf16.mxu0 %v5719
    %6022 = vmatpush1.bf16.msra.mxu0 %v5718
    %6023 = vmatprep.subr.bf16.mxu0 %v5723
    %6024 = vmatpush1.bf16.msra.mxu0 %v5722
    %6025 = vmatprep.subr.bf16.mxu0 %v5727
    %6026 = vmatpush1.bf16.msra.mxu0 %v5726
    %6027 = vmatprep.subr.bf16.mxu0 %v5731
    %6028 = vmatpush1.bf16.msra.mxu0 %v5730
    %6029 = vmatprep.subr.bf16.mxu0 %v5735
    %6030 = vmatpush1.bf16.msra.mxu0 %v5734
    %6031 = vmatprep.subr.bf16.mxu0 %v5739
    %6032 = vmatpush1.bf16.msra.mxu0 %v5738
    %6033 = vmatprep.subr.bf16.mxu0 %v5743
    %6034 = vmatpush1.bf16.msra.mxu0 %v5742
    %6035 = vmatprep.subr.bf16.mxu0 %v5747
    %6036 = vmatpush1.bf16.msra.mxu0 %v5746
    %6037 = vmatprep.subr.bf16.mxu0 %v5751
    %6038 = vmatpush1.bf16.msra.mxu0 %v5750
    %6039 = vmatprep.subr.bf16.mxu0 %v5755
    %6040 = vmatpush1.bf16.msra.mxu0 %v5754
    %6041 = vmatprep.subr.bf16.mxu0 %v5759
    %6042 = vmatpush1.bf16.msra.mxu0 %v5758
    %6043 = vmatprep.mubr.bf16.mxu0 %v5119
    %6044 = vmatmul.mubr.bf16.gmra.mrb[0].mxu0 %v5118
    %v6045 = vpop.f32.mrb[0].mxu0
    %v6046 = vadd.f32 %v6005, %v6045
    %v6047 = vpop.f32.mrb[0].mxu0
    %v6048 = vadd.f32 %v6007, %v6047
    %v6049 = vpop.f32.mrb[0].mxu0
    %v6050 = vpop.f32.mrb[0].mxu0
    %6051 = vdwg.mxu0
    %v6180 = vunpack.c.l.b16 %v4988
    %v6181 = vunpack.c.h.b16 %v4988
    %v6182 = vunpack.c.l.b16 %v4989
    %v6183 = vunpack.c.h.b16 %v4989
    %v6184 = vunpack.c.l.b16 %v4990
    %v6185 = vunpack.c.h.b16 %v4990
    %v6186 = vunpack.c.l.b16 %v4991
    %v6187 = vunpack.c.h.b16 %v4991
    %v6188 = vunpack.c.l.b16 %v4992
    %v6189 = vunpack.c.h.b16 %v4992
    %v6190 = vunpack.c.l.b16 %v4993
    %v6191 = vunpack.c.h.b16 %v4993
    %v6192 = vunpack.c.l.b16 %v4994
    %v6193 = vunpack.c.h.b16 %v4994
    %v6194 = vunpack.c.l.b16 %v4995
    %v6195 = vunpack.c.h.b16 %v4995
    %v6196 = vunpack.c.l.b16 %v4996
    %v6197 = vunpack.c.h.b16 %v4996
    %v6198 = vunpack.c.l.b16 %v4997
    %v6199 = vunpack.c.h.b16 %v4997
    %v6200 = vunpack.c.l.b16 %v4998
    %v6201 = vunpack.c.h.b16 %v4998
    %v6202 = vunpack.c.l.b16 %v4999
    %v6203 = vunpack.c.h.b16 %v4999
    %v6204 = vunpack.c.l.b16 %v5000
    %v6205 = vunpack.c.h.b16 %v5000
    %v6206 = vunpack.c.l.b16 %v5001
    %v6207 = vunpack.c.h.b16 %v5001
    %v6208 = vunpack.c.l.b16 %v5002
    %v6209 = vunpack.c.h.b16 %v5002
    %v6210 = vunpack.c.l.b16 %v5003
    %v6211 = vunpack.c.h.b16 %v5003
    %v6212 = vunpack.c.l.b16 %v5004
    %v6213 = vunpack.c.h.b16 %v5004
    %v6214 = vunpack.c.l.b16 %v5005
    %v6215 = vunpack.c.h.b16 %v5005
    %v6216 = vunpack.c.l.b16 %v5006
    %v6217 = vunpack.c.h.b16 %v5006
    %v6218 = vunpack.c.l.b16 %v5007
    %v6219 = vunpack.c.h.b16 %v5007
    %v6220 = vunpack.c.l.b16 %v5008
    %v6221 = vunpack.c.h.b16 %v5008
    %v6222 = vunpack.c.l.b16 %v5009
    %v6223 = vunpack.c.h.b16 %v5009
    %v6224 = vunpack.c.l.b16 %v5010
    %v6225 = vunpack.c.h.b16 %v5010
    %v6226 = vunpack.c.l.b16 %v5011
    %v6227 = vunpack.c.h.b16 %v5011
    %v6228 = vunpack.c.l.b16 %v5012
    %v6229 = vunpack.c.h.b16 %v5012
    %v6230 = vunpack.c.l.b16 %v5013
    %v6231 = vunpack.c.h.b16 %v5013
    %v6232 = vunpack.c.l.b16 %v5014
    %v6233 = vunpack.c.h.b16 %v5014
    %v6234 = vunpack.c.l.b16 %v5015
    %v6235 = vunpack.c.h.b16 %v5015
    %v6236 = vunpack.c.l.b16 %v5016
    %v6237 = vunpack.c.h.b16 %v5016
    %v6238 = vunpack.c.l.b16 %v5017
    %v6239 = vunpack.c.h.b16 %v5017
    %v6240 = vunpack.c.l.b16 %v5018
    %v6241 = vunpack.c.h.b16 %v5018
    %v6242 = vunpack.c.l.b16 %v5019
    %v6243 = vunpack.c.h.b16 %v5019
    %v6244 = vunpack.c.l.b16 %v5020
    %v6245 = vunpack.c.h.b16 %v5020
    %v6246 = vunpack.c.l.b16 %v5021
    %v6247 = vunpack.c.h.b16 %v5021
    %v6248 = vunpack.c.l.b16 %v5022
    %v6249 = vunpack.c.h.b16 %v5022
    %v6250 = vunpack.c.l.b16 %v5023
    %v6251 = vunpack.c.h.b16 %v5023
    %v6252 = vunpack.c.l.b16 %v5024
    %v6253 = vunpack.c.h.b16 %v5024
    %v6254 = vunpack.c.l.b16 %v5025
    %v6255 = vunpack.c.h.b16 %v5025
    %v6256 = vunpack.c.l.b16 %v5026
    %v6257 = vunpack.c.h.b16 %v5026
    %v6258 = vunpack.c.l.b16 %v5027
    %v6259 = vunpack.c.h.b16 %v5027
    %v6260 = vunpack.c.l.b16 %v5028
    %v6261 = vunpack.c.h.b16 %v5028
    %v6262 = vunpack.c.l.b16 %v5029
    %v6263 = vunpack.c.h.b16 %v5029
    %v6264 = vunpack.c.l.b16 %v5030
    %v6265 = vunpack.c.h.b16 %v5030
    %v6266 = vunpack.c.l.b16 %v5031
    %v6267 = vunpack.c.h.b16 %v5031
    %v6268 = vunpack.c.l.b16 %v5032
    %v6269 = vunpack.c.h.b16 %v5032
    %v6270 = vunpack.c.l.b16 %v5033
    %v6271 = vunpack.c.h.b16 %v5033
    %v6272 = vunpack.c.l.b16 %v5034
    %v6273 = vunpack.c.h.b16 %v5034
    %v6274 = vunpack.c.l.b16 %v5035
    %v6275 = vunpack.c.h.b16 %v5035
    %v6276 = vunpack.c.l.b16 %v5036
    %v6277 = vunpack.c.h.b16 %v5036
    %v6278 = vunpack.c.l.b16 %v5037
    %v6279 = vunpack.c.h.b16 %v5037
    %v6280 = vunpack.c.l.b16 %v5038
    %v6281 = vunpack.c.h.b16 %v5038
    %v6282 = vunpack.c.l.b16 %v5039
    %v6283 = vunpack.c.h.b16 %v5039
    %v6284 = vunpack.c.l.b16 %v5040
    %v6285 = vunpack.c.h.b16 %v5040
    %v6286 = vunpack.c.l.b16 %v5041
    %v6287 = vunpack.c.h.b16 %v5041
    %v6288 = vunpack.c.l.b16 %v5042
    %v6289 = vunpack.c.h.b16 %v5042
    %v6290 = vunpack.c.l.b16 %v5043
    %v6291 = vunpack.c.h.b16 %v5043
    %v6292 = vunpack.c.l.b16 %v5044
    %v6293 = vunpack.c.h.b16 %v5044
    %v6294 = vunpack.c.l.b16 %v5045
    %v6295 = vunpack.c.h.b16 %v5045
    %v6296 = vunpack.c.l.b16 %v5046
    %v6297 = vunpack.c.h.b16 %v5046
    %v6298 = vunpack.c.l.b16 %v5047
    %v6299 = vunpack.c.h.b16 %v5047
    %v6300 = vunpack.c.l.b16 %v5048
    %v6301 = vunpack.c.h.b16 %v5048
    %v6302 = vunpack.c.l.b16 %v5049
    %v6303 = vunpack.c.h.b16 %v5049
    %v6304 = vunpack.c.l.b16 %v5050
    %v6305 = vunpack.c.h.b16 %v5050
    %v6306 = vunpack.c.l.b16 %v5051
    %v6307 = vunpack.c.h.b16 %v5051
    %v6308 = vunpack.c.l.b16 %v5052
    %v6309 = vunpack.c.h.b16 %v5052
    %v6310 = vunpack.c.l.b16 %v5053
    %v6311 = vunpack.c.h.b16 %v5053
    %v6312 = vunpack.c.l.b16 %v5054
    %v6313 = vunpack.c.h.b16 %v5054
    %v6314 = vunpack.c.l.b16 %v5055
    %v6315 = vunpack.c.h.b16 %v5055
    %v6316 = vunpack.c.l.b16 %v5056
    %v6317 = vunpack.c.h.b16 %v5056
    %v6318 = vunpack.c.l.b16 %v5057
    %v6319 = vunpack.c.h.b16 %v5057
    %v6320 = vunpack.c.l.b16 %v5058
    %v6321 = vunpack.c.h.b16 %v5058
    %v6322 = vunpack.c.l.b16 %v5059
    %v6323 = vunpack.c.h.b16 %v5059
    %v6324 = vunpack.c.l.b16 %v5060
    %v6325 = vunpack.c.h.b16 %v5060
    %v6326 = vunpack.c.l.b16 %v5061
    %v6327 = vunpack.c.h.b16 %v5061
    %v6328 = vunpack.c.l.b16 %v5062
    %v6329 = vunpack.c.h.b16 %v5062
    %v6330 = vunpack.c.l.b16 %v5063
    %v6331 = vunpack.c.h.b16 %v5063
    %v6332 = vunpack.c.l.b16 %v5064
    %v6333 = vunpack.c.h.b16 %v5064
    %v6334 = vunpack.c.l.b16 %v5065
    %v6335 = vunpack.c.h.b16 %v5065
    %v6336 = vunpack.c.l.b16 %v5066
    %v6337 = vunpack.c.h.b16 %v5066
    %v6338 = vunpack.c.l.b16 %v5067
    %v6339 = vunpack.c.h.b16 %v5067
    %v6340 = vunpack.c.l.b16 %v5068
    %v6341 = vunpack.c.h.b16 %v5068
    %v6342 = vunpack.c.l.b16 %v5069
    %v6343 = vunpack.c.h.b16 %v5069
    %v6344 = vunpack.c.l.b16 %v5070
    %v6345 = vunpack.c.h.b16 %v5070
    %v6346 = vunpack.c.l.b16 %v5071
    %v6347 = vunpack.c.h.b16 %v5071
    %v6348 = vunpack.c.l.b16 %v5072
    %v6349 = vunpack.c.h.b16 %v5072
    %v6350 = vunpack.c.l.b16 %v5073
    %v6351 = vunpack.c.h.b16 %v5073
    %v6352 = vunpack.c.l.b16 %v5074
    %v6353 = vunpack.c.h.b16 %v5074
    %v6354 = vunpack.c.l.b16 %v5075
    %v6355 = vunpack.c.h.b16 %v5075
    %v6356 = vunpack.c.l.b16 %v5076
    %v6357 = vunpack.c.h.b16 %v5076
    %v6358 = vunpack.c.l.b16 %v5077
    %v6359 = vunpack.c.h.b16 %v5077
    %v6360 = vunpack.c.l.b16 %v5078
    %v6361 = vunpack.c.h.b16 %v5078
    %v6362 = vunpack.c.l.b16 %v5079
    %v6363 = vunpack.c.h.b16 %v5079
    %v6364 = vunpack.c.l.b16 %v5080
    %v6365 = vunpack.c.h.b16 %v5080
    %v6366 = vunpack.c.l.b16 %v5081
    %v6367 = vunpack.c.h.b16 %v5081
    %v6368 = vunpack.c.l.b16 %v5082
    %v6369 = vunpack.c.h.b16 %v5082
    %v6370 = vunpack.c.l.b16 %v5083
    %v6371 = vunpack.c.h.b16 %v5083
    %v6372 = vunpack.c.l.b16 %v5084
    %v6373 = vunpack.c.h.b16 %v5084
    %v6374 = vunpack.c.l.b16 %v5085
    %v6375 = vunpack.c.h.b16 %v5085
    %v6376 = vunpack.c.l.b16 %v5086
    %v6377 = vunpack.c.h.b16 %v5086
    %v6378 = vunpack.c.l.b16 %v5087
    %v6379 = vunpack.c.h.b16 %v5087
    %v6380 = vunpack.c.l.b16 %v5088
    %v6381 = vunpack.c.h.b16 %v5088
    %v6382 = vunpack.c.l.b16 %v5089
    %v6383 = vunpack.c.h.b16 %v5089
    %v6384 = vunpack.c.l.b16 %v5090
    %v6385 = vunpack.c.h.b16 %v5090
    %v6386 = vunpack.c.l.b16 %v5091
    %v6387 = vunpack.c.h.b16 %v5091
    %v6388 = vunpack.c.l.b16 %v5092
    %v6389 = vunpack.c.h.b16 %v5092
    %v6390 = vunpack.c.l.b16 %v5093
    %v6391 = vunpack.c.h.b16 %v5093
    %v6392 = vunpack.c.l.b16 %v5094
    %v6393 = vunpack.c.h.b16 %v5094
    %v6394 = vunpack.c.l.b16 %v5095
    %v6395 = vunpack.c.h.b16 %v5095
    %v6396 = vunpack.c.l.b16 %v5096
    %v6397 = vunpack.c.h.b16 %v5096
    %v6398 = vunpack.c.l.b16 %v5097
    %v6399 = vunpack.c.h.b16 %v5097
    %v6400 = vunpack.c.l.b16 %v5098
    %v6401 = vunpack.c.h.b16 %v5098
    %v6402 = vunpack.c.l.b16 %v5099
    %v6403 = vunpack.c.h.b16 %v5099
    %v6404 = vunpack.c.l.b16 %v5100
    %v6405 = vunpack.c.h.b16 %v5100
    %v6406 = vunpack.c.l.b16 %v5101
    %v6407 = vunpack.c.h.b16 %v5101
    %v6408 = vunpack.c.l.b16 %v5102
    %v6409 = vunpack.c.h.b16 %v5102
    %v6410 = vunpack.c.l.b16 %v5103
    %v6411 = vunpack.c.h.b16 %v5103
    %v6412 = vunpack.c.l.b16 %v5104
    %v6413 = vunpack.c.h.b16 %v5104
    %v6414 = vunpack.c.l.b16 %v5105
    %v6415 = vunpack.c.h.b16 %v5105
    %v6416 = vunpack.c.l.b16 %v5106
    %v6417 = vunpack.c.h.b16 %v5106
    %v6418 = vunpack.c.l.b16 %v5107
    %v6419 = vunpack.c.h.b16 %v5107
    %v6420 = vunpack.c.l.b16 %v5108
    %v6421 = vunpack.c.h.b16 %v5108
    %v6422 = vunpack.c.l.b16 %v5109
    %v6423 = vunpack.c.h.b16 %v5109
    %v6424 = vunpack.c.l.b16 %v5110
    %v6425 = vunpack.c.h.b16 %v5110
    %v6426 = vunpack.c.l.b16 %v5111
    %v6427 = vunpack.c.h.b16 %v5111
    %v6428 = vunpack.c.l.b16 %v5112
    %v6429 = vunpack.c.h.b16 %v5112
    %v6430 = vunpack.c.l.b16 %v5113
    %v6431 = vunpack.c.h.b16 %v5113
    %v6432 = vunpack.c.l.b16 %v5114
    %v6433 = vunpack.c.h.b16 %v5114
    %v6434 = vunpack.c.l.b16 %v5115
    %v6435 = vunpack.c.h.b16 %v5115
    %v6436 = vpack.c.b16 %v6184, %v6180
    %v6437 = vpack.c.b16 %v6185, %v6181
    %v6438 = vpack.c.b16 %v6186, %v6182
    %v6439 = vpack.c.b16 %v6187, %v6183
    %v6440 = vpack.c.b16 %v6192, %v6188
    %v6441 = vpack.c.b16 %v6193, %v6189
    %v6442 = vpack.c.b16 %v6194, %v6190
    %v6443 = vpack.c.b16 %v6195, %v6191
    %v6444 = vpack.c.b16 %v6200, %v6196
    %v6445 = vpack.c.b16 %v6201, %v6197
    %v6446 = vpack.c.b16 %v6202, %v6198
    %v6447 = vpack.c.b16 %v6203, %v6199
    %v6448 = vpack.c.b16 %v6208, %v6204
    %v6449 = vpack.c.b16 %v6209, %v6205
    %v6450 = vpack.c.b16 %v6210, %v6206
    %v6451 = vpack.c.b16 %v6211, %v6207
    %v6452 = vpack.c.b16 %v6216, %v6212
    %v6453 = vpack.c.b16 %v6217, %v6213
    %v6454 = vpack.c.b16 %v6218, %v6214
    %v6455 = vpack.c.b16 %v6219, %v6215
    %v6456 = vpack.c.b16 %v6224, %v6220
    %v6457 = vpack.c.b16 %v6225, %v6221
    %v6458 = vpack.c.b16 %v6226, %v6222
    %v6459 = vpack.c.b16 %v6227, %v6223
    %v6460 = vpack.c.b16 %v6232, %v6228
    %v6461 = vpack.c.b16 %v6233, %v6229
    %v6462 = vpack.c.b16 %v6234, %v6230
    %v6463 = vpack.c.b16 %v6235, %v6231
    %v6464 = vpack.c.b16 %v6240, %v6236
    %v6465 = vpack.c.b16 %v6241, %v6237
    %v6466 = vpack.c.b16 %v6242, %v6238
    %v6467 = vpack.c.b16 %v6243, %v6239
    %v6468 = vpack.c.b16 %v6248, %v6244
    %v6469 = vpack.c.b16 %v6249, %v6245
    %v6470 = vpack.c.b16 %v6250, %v6246
    %v6471 = vpack.c.b16 %v6251, %v6247
    %v6472 = vpack.c.b16 %v6256, %v6252
    %v6473 = vpack.c.b16 %v6257, %v6253
    %v6474 = vpack.c.b16 %v6258, %v6254
    %v6475 = vpack.c.b16 %v6259, %v6255
    %v6476 = vpack.c.b16 %v6264, %v6260
    %v6477 = vpack.c.b16 %v6265, %v6261
    %v6478 = vpack.c.b16 %v6266, %v6262
    %v6479 = vpack.c.b16 %v6267, %v6263
    %v6480 = vpack.c.b16 %v6272, %v6268
    %v6481 = vpack.c.b16 %v6273, %v6269
    %v6482 = vpack.c.b16 %v6274, %v6270
    %v6483 = vpack.c.b16 %v6275, %v6271
    %v6484 = vpack.c.b16 %v6280, %v6276
    %v6485 = vpack.c.b16 %v6281, %v6277
    %v6486 = vpack.c.b16 %v6282, %v6278
    %v6487 = vpack.c.b16 %v6283, %v6279
    %v6488 = vpack.c.b16 %v6288, %v6284
    %v6489 = vpack.c.b16 %v6289, %v6285
    %v6490 = vpack.c.b16 %v6290, %v6286
    %v6491 = vpack.c.b16 %v6291, %v6287
    %v6492 = vpack.c.b16 %v6296, %v6292
    %v6493 = vpack.c.b16 %v6297, %v6293
    %v6494 = vpack.c.b16 %v6298, %v6294
    %v6495 = vpack.c.b16 %v6299, %v6295
    %v6496 = vpack.c.b16 %v6304, %v6300
    %v6497 = vpack.c.b16 %v6305, %v6301
    %v6498 = vpack.c.b16 %v6306, %v6302
    %v6499 = vpack.c.b16 %v6307, %v6303
    %v6500 = vpack.c.b16 %v6312, %v6308
    %v6501 = vpack.c.b16 %v6313, %v6309
    %v6502 = vpack.c.b16 %v6314, %v6310
    %v6503 = vpack.c.b16 %v6315, %v6311
    %v6504 = vpack.c.b16 %v6320, %v6316
    %v6505 = vpack.c.b16 %v6321, %v6317
    %v6506 = vpack.c.b16 %v6322, %v6318
    %v6507 = vpack.c.b16 %v6323, %v6319
    %v6508 = vpack.c.b16 %v6328, %v6324
    %v6509 = vpack.c.b16 %v6329, %v6325
    %v6510 = vpack.c.b16 %v6330, %v6326
    %v6511 = vpack.c.b16 %v6331, %v6327
    %v6512 = vpack.c.b16 %v6336, %v6332
    %v6513 = vpack.c.b16 %v6337, %v6333
    %v6514 = vpack.c.b16 %v6338, %v6334
    %v6515 = vpack.c.b16 %v6339, %v6335
    %v6516 = vpack.c.b16 %v6344, %v6340
    %v6517 = vpack.c.b16 %v6345, %v6341
    %v6518 = vpack.c.b16 %v6346, %v6342
    %v6519 = vpack.c.b16 %v6347, %v6343
    %v6520 = vpack.c.b16 %v6352, %v6348
    %v6521 = vpack.c.b16 %v6353, %v6349
    %v6522 = vpack.c.b16 %v6354, %v6350
    %v6523 = vpack.c.b16 %v6355, %v6351
    %v6524 = vpack.c.b16 %v6360, %v6356
    %v6525 = vpack.c.b16 %v6361, %v6357
    %v6526 = vpack.c.b16 %v6362, %v6358
    %v6527 = vpack.c.b16 %v6363, %v6359
    %v6528 = vpack.c.b16 %v6368, %v6364
    %v6529 = vpack.c.b16 %v6369, %v6365
    %v6530 = vpack.c.b16 %v6370, %v6366
    %v6531 = vpack.c.b16 %v6371, %v6367
    %v6532 = vpack.c.b16 %v6376, %v6372
    %v6533 = vpack.c.b16 %v6377, %v6373
    %v6534 = vpack.c.b16 %v6378, %v6374
    %v6535 = vpack.c.b16 %v6379, %v6375
    %v6536 = vpack.c.b16 %v6384, %v6380
    %v6537 = vpack.c.b16 %v6385, %v6381
    %v6538 = vpack.c.b16 %v6386, %v6382
    %v6539 = vpack.c.b16 %v6387, %v6383
    %v6540 = vpack.c.b16 %v6392, %v6388
    %v6541 = vpack.c.b16 %v6393, %v6389
    %v6542 = vpack.c.b16 %v6394, %v6390
    %v6543 = vpack.c.b16 %v6395, %v6391
    %v6544 = vpack.c.b16 %v6400, %v6396
    %v6545 = vpack.c.b16 %v6401, %v6397
    %v6546 = vpack.c.b16 %v6402, %v6398
    %v6547 = vpack.c.b16 %v6403, %v6399
    %v6548 = vpack.c.b16 %v6408, %v6404
    %v6549 = vpack.c.b16 %v6409, %v6405
    %v6550 = vpack.c.b16 %v6410, %v6406
    %v6551 = vpack.c.b16 %v6411, %v6407
    %v6552 = vpack.c.b16 %v6416, %v6412
    %v6553 = vpack.c.b16 %v6417, %v6413
    %v6554 = vpack.c.b16 %v6418, %v6414
    %v6555 = vpack.c.b16 %v6419, %v6415
    %v6556 = vpack.c.b16 %v6424, %v6420
    %v6557 = vpack.c.b16 %v6425, %v6421
    %v6558 = vpack.c.b16 %v6426, %v6422
    %v6559 = vpack.c.b16 %v6427, %v6423
    %v6560 = vpack.c.b16 %v6432, %v6428
    %v6561 = vpack.c.b16 %v6433, %v6429
    %v6562 = vpack.c.b16 %v6434, %v6430
    %v6563 = vpack.c.b16 %v6435, %v6431
    %6692 = vmatprep.subr.bf16.mxu0 %v6437
    %6693 = vmatpush1.bf16.msra.mxu0 %v6436
    %6694 = vmatprep.subr.bf16.mxu0 %v6441
    %6695 = vmatpush1.bf16.msra.mxu0 %v6440
    %6696 = vmatprep.subr.bf16.mxu0 %v6445
    %6697 = vmatpush1.bf16.msra.mxu0 %v6444
    %6698 = vmatprep.subr.bf16.mxu0 %v6449
    %6699 = vmatpush1.bf16.msra.mxu0 %v6448
    %6700 = vmatprep.subr.bf16.mxu0 %v6453
    %6701 = vmatpush1.bf16.msra.mxu0 %v6452
    %6702 = vmatprep.subr.bf16.mxu0 %v6457
    %6703 = vmatpush1.bf16.msra.mxu0 %v6456
    %6704 = vmatprep.subr.bf16.mxu0 %v6461
    %6705 = vmatpush1.bf16.msra.mxu0 %v6460
    %6706 = vmatprep.subr.bf16.mxu0 %v6465
    %6707 = vmatpush1.bf16.msra.mxu0 %v6464
    %6708 = vmatprep.subr.bf16.mxu0 %v6469
    %6709 = vmatpush1.bf16.msra.mxu0 %v6468
    %6710 = vmatprep.subr.bf16.mxu0 %v6473
    %6711 = vmatpush1.bf16.msra.mxu0 %v6472
    %6712 = vmatprep.subr.bf16.mxu0 %v6477
    %6713 = vmatpush1.bf16.msra.mxu0 %v6476
    %6714 = vmatprep.subr.bf16.mxu0 %v6481
    %6715 = vmatpush1.bf16.msra.mxu0 %v6480
    %6716 = vmatprep.subr.bf16.mxu0 %v6485
    %6717 = vmatpush1.bf16.msra.mxu0 %v6484
    %6718 = vmatprep.subr.bf16.mxu0 %v6489
    %6719 = vmatpush1.bf16.msra.mxu0 %v6488
    %6720 = vmatprep.subr.bf16.mxu0 %v6493
    %6721 = vmatpush1.bf16.msra.mxu0 %v6492
    %6722 = vmatprep.subr.bf16.mxu0 %v6497
    %6723 = vmatpush1.bf16.msra.mxu0 %v6496
    %6724 = vmatprep.mubr.bf16.mxu0 %v4985
    %6725 = vmatmul.mubr.bf16.gmra.mrb[0].mxu0 %v4984
    %v6726 = vpop.f32.mrb[0].mxu0
    %v6727 = vadd.f32 %v5964, %v6726
    %v6728 = vpop.f32.mrb[0].mxu0
    %v6729 = vadd.f32 %v5966, %v6728
    %v6730 = vpop.f32.mrb[0].mxu0
    %v6731 = vpop.f32.mrb[0].mxu0
    %6732 = vdwg.mxu0
    %6733 = vmatprep.subr.bf16.mxu0 %v6501
    %6734 = vmatpush1.bf16.msra.mxu0 %v6500
    %6735 = vmatprep.subr.bf16.mxu0 %v6505
    %6736 = vmatpush1.bf16.msra.mxu0 %v6504
    %6737 = vmatprep.subr.bf16.mxu0 %v6509
    %6738 = vmatpush1.bf16.msra.mxu0 %v6508
    %6739 = vmatprep.subr.bf16.mxu0 %v6513
    %6740 = vmatpush1.bf16.msra.mxu0 %v6512
    %6741 = vmatprep.subr.bf16.mxu0 %v6517
    %6742 = vmatpush1.bf16.msra.mxu0 %v6516
    %6743 = vmatprep.subr.bf16.mxu0 %v6521
    %6744 = vmatpush1.bf16.msra.mxu0 %v6520
    %6745 = vmatprep.subr.bf16.mxu0 %v6525
    %6746 = vmatpush1.bf16.msra.mxu0 %v6524
    %6747 = vmatprep.subr.bf16.mxu0 %v6529
    %6748 = vmatpush1.bf16.msra.mxu0 %v6528
    %6749 = vmatprep.subr.bf16.mxu0 %v6533
    %6750 = vmatpush1.bf16.msra.mxu0 %v6532
    %6751 = vmatprep.subr.bf16.mxu0 %v6537
    %6752 = vmatpush1.bf16.msra.mxu0 %v6536
    %6753 = vmatprep.subr.bf16.mxu0 %v6541
    %6754 = vmatpush1.bf16.msra.mxu0 %v6540
    %6755 = vmatprep.subr.bf16.mxu0 %v6545
    %6756 = vmatpush1.bf16.msra.mxu0 %v6544
    %6757 = vmatprep.subr.bf16.mxu0 %v6549
    %6758 = vmatpush1.bf16.msra.mxu0 %v6548
    %6759 = vmatprep.subr.bf16.mxu0 %v6553
    %6760 = vmatpush1.bf16.msra.mxu0 %v6552
    %6761 = vmatprep.subr.bf16.mxu0 %v6557
    %6762 = vmatpush1.bf16.msra.mxu0 %v6556
    %6763 = vmatprep.subr.bf16.mxu0 %v6561
    %6764 = vmatpush1.bf16.msra.mxu0 %v6560
    %6765 = vmatprep.mubr.bf16.mxu0 %v4987
    %6766 = vmatmul.mubr.bf16.gmra.mrb[0].mxu0 %v4986
    %v6767 = vpop.f32.mrb[0].mxu0
    %v6768 = vadd.f32 %v6727, %v6767
    %v6769 = vpop.f32.mrb[0].mxu0
    %v6770 = vadd.f32 %v6729, %v6769
    %v6771 = vpop.f32.mrb[0].mxu0
    %v6772 = vpop.f32.mrb[0].mxu0
    %6773 = vdwg.mxu0
    %6774 = vmatprep.subr.bf16.mxu0 %v6439
    %6775 = vmatpush1.bf16.msra.mxu0 %v6438
    %6776 = vmatprep.subr.bf16.mxu0 %v6443
    %6777 = vmatpush1.bf16.msra.mxu0 %v6442
    %6778 = vmatprep.subr.bf16.mxu0 %v6447
    %6779 = vmatpush1.bf16.msra.mxu0 %v6446
    %6780 = vmatprep.subr.bf16.mxu0 %v6451
    %6781 = vmatpush1.bf16.msra.mxu0 %v6450
    %6782 = vmatprep.subr.bf16.mxu0 %v6455
    %6783 = vmatpush1.bf16.msra.mxu0 %v6454
    %6784 = vmatprep.subr.bf16.mxu0 %v6459
    %6785 = vmatpush1.bf16.msra.mxu0 %v6458
    %6786 = vmatprep.subr.bf16.mxu0 %v6463
    %6787 = vmatpush1.bf16.msra.mxu0 %v6462
    %6788 = vmatprep.subr.bf16.mxu0 %v6467
    %6789 = vmatpush1.bf16.msra.mxu0 %v6466
    %6790 = vmatprep.subr.bf16.mxu0 %v6471
    %6791 = vmatpush1.bf16.msra.mxu0 %v6470
    %6792 = vmatprep.subr.bf16.mxu0 %v6475
    %6793 = vmatpush1.bf16.msra.mxu0 %v6474
    %6794 = vmatprep.subr.bf16.mxu0 %v6479
    %6795 = vmatpush1.bf16.msra.mxu0 %v6478
    %6796 = vmatprep.subr.bf16.mxu0 %v6483
    %6797 = vmatpush1.bf16.msra.mxu0 %v6482
    %6798 = vmatprep.subr.bf16.mxu0 %v6487
    %6799 = vmatpush1.bf16.msra.mxu0 %v6486
    %6800 = vmatprep.subr.bf16.mxu0 %v6491
    %6801 = vmatpush1.bf16.msra.mxu0 %v6490
    %6802 = vmatprep.subr.bf16.mxu0 %v6495
    %6803 = vmatpush1.bf16.msra.mxu0 %v6494
    %6804 = vmatprep.subr.bf16.mxu0 %v6499
    %6805 = vmatpush1.bf16.msra.mxu0 %v6498
    %6806 = vmatprep.mubr.bf16.mxu0 %v4985
    %6807 = vmatmul.mubr.bf16.gmra.mrb[0].mxu0 %v4984
    %v6808 = vpop.f32.mrb[0].mxu0
    %v6809 = vadd.f32 %v6046, %v6808
    %v6810 = vpop.f32.mrb[0].mxu0
    %v6811 = vadd.f32 %v6048, %v6810
    %v6812 = vpop.f32.mrb[0].mxu0
    %v6813 = vpop.f32.mrb[0].mxu0
    %6814 = vdwg.mxu0
    %6815 = vmatprep.subr.bf16.mxu0 %v6503
    %6816 = vmatpush1.bf16.msra.mxu0 %v6502
    %6817 = vmatprep.subr.bf16.mxu0 %v6507
    %6818 = vmatpush1.bf16.msra.mxu0 %v6506
    %6819 = vmatprep.subr.bf16.mxu0 %v6511
    %6820 = vmatpush1.bf16.msra.mxu0 %v6510
    %6821 = vmatprep.subr.bf16.mxu0 %v6515
    %6822 = vmatpush1.bf16.msra.mxu0 %v6514
    %6823 = vmatprep.subr.bf16.mxu0 %v6519
    %6824 = vmatpush1.bf16.msra.mxu0 %v6518
    %6825 = vmatprep.subr.bf16.mxu0 %v6523
    %6826 = vmatpush1.bf16.msra.mxu0 %v6522
    %6827 = vmatprep.subr.bf16.mxu0 %v6527
    %6828 = vmatpush1.bf16.msra.mxu0 %v6526
    %6829 = vmatprep.subr.bf16.mxu0 %v6531
    %6830 = vmatpush1.bf16.msra.mxu0 %v6530
    %6831 = vmatprep.subr.bf16.mxu0 %v6535
    %6832 = vmatpush1.bf16.msra.mxu0 %v6534
    %6833 = vmatprep.subr.bf16.mxu0 %v6539
    %6834 = vmatpush1.bf16.msra.mxu0 %v6538
    %6835 = vmatprep.subr.bf16.mxu0 %v6543
    %6836 = vmatpush1.bf16.msra.mxu0 %v6542
    %6837 = vmatprep.subr.bf16.mxu0 %v6547
    %6838 = vmatpush1.bf16.msra.mxu0 %v6546
    %6839 = vmatprep.subr.bf16.mxu0 %v6551
    %6840 = vmatpush1.bf16.msra.mxu0 %v6550
    %6841 = vmatprep.subr.bf16.mxu0 %v6555
    %6842 = vmatpush1.bf16.msra.mxu0 %v6554
    %6843 = vmatprep.subr.bf16.mxu0 %v6559
    %6844 = vmatpush1.bf16.msra.mxu0 %v6558
    %6845 = vmatprep.subr.bf16.mxu0 %v6563
    %6846 = vmatpush1.bf16.msra.mxu0 %v6562
    %6847 = vmatprep.mubr.bf16.mxu0 %v4987
    %6848 = vmatmul.mubr.bf16.gmra.mrb[0].mxu0 %v4986
    %v6849 = vpop.f32.mrb[0].mxu0
    %v6850 = vadd.f32 %v6809, %v6849
    %v6851 = vpop.f32.mrb[0].mxu0
    %v6852 = vadd.f32 %v6811, %v6851
    %v6853 = vpop.f32.mrb[0].mxu0
    %v6854 = vpop.f32.mrb[0].mxu0
    %6855 = vdwg.mxu0
    %v6856 = vld [vmem:[%s8 + $0x14] sm:$0xf]
    %v6858 = vlaneseq
    %v6859 = vshrl.u32 %v6858, 7
    %v6860 = vsub.s32 0, %v6859
    %v6861 = vrot.slane %v6856, %v6860
    %v6862 = vlaneseq
    %v6863 = vshrl.u32 %v6862, 7
    %v6864 = vsub.s32 1, %v6863
    %v6865 = vrot.slane %v6856, %v6864
    %v6866 = vlaneseq
    %v6867 = vshrl.u32 %v6866, 7
    %v6868 = vsub.s32 2, %v6867
    %v6869 = vrot.slane %v6856, %v6868
    %v6870 = vlaneseq
    %v6871 = vshrl.u32 %v6870, 7
    %v6872 = vsub.s32 3, %v6871
    %v6873 = vrot.slane %v6856, %v6872
    %v6878 = vadd.f32 %v6768, %v6861
    %v6879 = vadd.f32 %v6770, %v6865
    %v6880 = vadd.f32 %v6850, %v6869
    %v6881 = vadd.f32 %v6852, %v6873
    %v6882 = vmax.f32 %v6878, 0.0
    %v6883 = vmax.f32 %v6879, 0.0
    %v6884 = vmax.f32 %v6880, 0.0
    %v6885 = vmax.f32 %v6881, 0.0
    %v6886 = vpack.c.bf16 %v6882, %v6882
    %v6887 = vpack.c.bf16 %v6883, %v6883
    %v6888 = vpack.c.bf16 %v6884, %v6884
    %v6889 = vpack.c.bf16 %v6885, %v6885
    %v6890 = vld [vmem:[#allocation10] sm:$0xff]
    %v6891 = vld [vmem:[#allocation10 + $0x8] sm:$0xf]
    %v6892 = vld [vmem:[#allocation10 + $0xc] sm:$0xff]
    %v6893 = vld [vmem:[#allocation10 + $0x14] sm:$0xf]
    %v6894 = vld [vmem:[#allocation10 + $0x18] sm:$0xff]
    %v6895 = vld [vmem:[#allocation10 + $0x20] sm:$0xf]
    %v6896 = vld [vmem:[#allocation10 + $0x24] sm:$0xff]
    %v6897 = vld [vmem:[#allocation10 + $0x2c] sm:$0xf]
    %v6898 = vld [vmem:[#allocation10 + $0x30] sm:$0xff]
    %v6899 = vld [vmem:[#allocation10 + $0x38] sm:$0xf]
    %v6900 = vld [vmem:[#allocation10 + $0x3c] sm:$0xff]
    %v6901 = vld [vmem:[#allocation10 + $0x44] sm:$0xf]
    %v6902 = vld [vmem:[#allocation10 + $0x48] sm:$0xff]
    %v6903 = vld [vmem:[#allocation10 + $0x50] sm:$0xf]
    %v6904 = vld [vmem:[#allocation10 + $0x54] sm:$0xff]
    %v6905 = vld [vmem:[#allocation10 + $0x5c] sm:$0xf]
    %v6906 = vld [vmem:[#allocation10 + $0x60] sm:$0xff]
    %v6907 = vld [vmem:[#allocation10 + $0x68] sm:$0xf]
    %v6908 = vld [vmem:[#allocation10 + $0x6c] sm:$0xff]
    %v6909 = vld [vmem:[#allocation10 + $0x74] sm:$0xf]
    %v6910 = vld [vmem:[#allocation10 + $0x78] sm:$0xff]
    %v6911 = vld [vmem:[#allocation10 + $0x80] sm:$0xf]
    %v6912 = vld [vmem:[#allocation10 + $0x84] sm:$0xff]
    %v6913 = vld [vmem:[#allocation10 + $0x8c] sm:$0xf]
    %v6914 = vld [vmem:[#allocation10 + $0x90] sm:$0xff]
    %v6915 = vld [vmem:[#allocation10 + $0x98] sm:$0xf]
    %v6916 = vld [vmem:[#allocation10 + $0x9c] sm:$0xff]
    %v6917 = vld [vmem:[#allocation10 + $0xa4] sm:$0xf]
    %v6918 = vld [vmem:[#allocation10 + $0xa8] sm:$0xff]
    %v6919 = vld [vmem:[#allocation10 + $0xb0] sm:$0xf]
    %v6920 = vld [vmem:[#allocation10 + $0xb4] sm:$0xff]
    %v6921 = vld [vmem:[#allocation10 + $0xbc] sm:$0xf]
    %v6922 = vld [vmem:[#allocation10 + $0xc0] sm:$0xff]
    %v6923 = vld [vmem:[#allocation10 + $0xc8] sm:$0xf]
    %v6924 = vld [vmem:[#allocation10 + $0xcc] sm:$0xff]
    %v6925 = vld [vmem:[#allocation10 + $0xd4] sm:$0xf]
    %v6926 = vld [vmem:[#allocation10 + $0xd8] sm:$0xff]
    %v6927 = vld [vmem:[#allocation10 + $0xe0] sm:$0xf]
    %v6928 = vld [vmem:[#allocation10 + $0xe4] sm:$0xff]
    %v6929 = vld [vmem:[#allocation10 + $0xec] sm:$0xf]
    %v6930 = vld [vmem:[#allocation10 + $0xf0] sm:$0xff]
    %v6931 = vld [vmem:[#allocation10 + $0xf8] sm:$0xf]
    %v6932 = vld [vmem:[#allocation10 + $0xfc] sm:$0xff]
    %v6933 = vld [vmem:[#allocation10 + $0x104] sm:$0xf]
    %v6934 = vld [vmem:[#allocation10 + $0x108] sm:$0xff]
    %v6935 = vld [vmem:[#allocation10 + $0x110] sm:$0xf]
    %v6936 = vld [vmem:[#allocation10 + $0x114] sm:$0xff]
    %v6937 = vld [vmem:[#allocation10 + $0x11c] sm:$0xf]
    %v6938 = vld [vmem:[#allocation10 + $0x120] sm:$0xff]
    %v6939 = vld [vmem:[#allocation10 + $0x128] sm:$0xf]
    %v6940 = vld [vmem:[#allocation10 + $0x12c] sm:$0xff]
    %v6941 = vld [vmem:[#allocation10 + $0x134] sm:$0xf]
    %v6942 = vld [vmem:[#allocation10 + $0x138] sm:$0xff]
    %v6943 = vld [vmem:[#allocation10 + $0x140] sm:$0xf]
    %v6944 = vld [vmem:[#allocation10 + $0x144] sm:$0xff]
    %v6945 = vld [vmem:[#allocation10 + $0x14c] sm:$0xf]
    %v6946 = vld [vmem:[#allocation10 + $0x150] sm:$0xff]
    %v6947 = vld [vmem:[#allocation10 + $0x158] sm:$0xf]
    %v6948 = vld [vmem:[#allocation10 + $0x15c] sm:$0xff]
    %v6949 = vld [vmem:[#allocation10 + $0x164] sm:$0xf]
    %v6950 = vld [vmem:[#allocation10 + $0x168] sm:$0xff]
    %v6951 = vld [vmem:[#allocation10 + $0x170] sm:$0xf]
    %v6952 = vld [vmem:[#allocation10 + $0x174] sm:$0xff]
    %v6953 = vld [vmem:[#allocation10 + $0x17c] sm:$0xf]
    %v6954 = vld [vmem:[#allocation10 + $0x180] sm:$0xff]
    %v6955 = vld [vmem:[#allocation10 + $0x188] sm:$0xf]
    %v6956 = vld [vmem:[#allocation10 + $0x18c] sm:$0xff]
    %v6957 = vld [vmem:[#allocation10 + $0x194] sm:$0xf]
    %v6958 = vld [vmem:[#allocation10 + $0x198] sm:$0xff]
    %v6959 = vld [vmem:[#allocation10 + $0x1a0] sm:$0xf]
    %v6960 = vld [vmem:[#allocation10 + $0x1a4] sm:$0xff]
    %v6961 = vld [vmem:[#allocation10 + $0x1ac] sm:$0xf]
    %v6962 = vld [vmem:[#allocation10 + $0x1b0] sm:$0xff]
    %v6963 = vld [vmem:[#allocation10 + $0x1b8] sm:$0xf]
    %v6964 = vld [vmem:[#allocation10 + $0x1bc] sm:$0xff]
    %v6965 = vld [vmem:[#allocation10 + $0x1c4] sm:$0xf]
    %v6966 = vld [vmem:[#allocation10 + $0x1c8] sm:$0xff]
    %v6967 = vld [vmem:[#allocation10 + $0x1d0] sm:$0xf]
    %v6968 = vld [vmem:[#allocation10 + $0x1d4] sm:$0xff]
    %v6969 = vld [vmem:[#allocation10 + $0x1dc] sm:$0xf]
    %v6970 = vld [vmem:[#allocation10 + $0x1e0] sm:$0xff]
    %v6971 = vld [vmem:[#allocation10 + $0x1e8] sm:$0xf]
    %v6972 = vld [vmem:[#allocation10 + $0x1ec] sm:$0xff]
    %v6973 = vld [vmem:[#allocation10 + $0x1f4] sm:$0xf]
    %v6974 = vld [vmem:[#allocation10 + $0x1f8] sm:$0xff]
    %v6975 = vld [vmem:[#allocation10 + $0x200] sm:$0xf]
    %v6976 = vld [vmem:[#allocation10 + $0x204] sm:$0xff]
    %v6977 = vld [vmem:[#allocation10 + $0x20c] sm:$0xf]
    %v6978 = vld [vmem:[#allocation10 + $0x210] sm:$0xff]
    %v6979 = vld [vmem:[#allocation10 + $0x218] sm:$0xf]
    %v6980 = vld [vmem:[#allocation10 + $0x21c] sm:$0xff]
    %v6981 = vld [vmem:[#allocation10 + $0x224] sm:$0xf]
    %v6982 = vld [vmem:[#allocation10 + $0x228] sm:$0xff]
    %v6983 = vld [vmem:[#allocation10 + $0x230] sm:$0xf]
    %v6984 = vld [vmem:[#allocation10 + $0x234] sm:$0xff]
    %v6985 = vld [vmem:[#allocation10 + $0x23c] sm:$0xf]
    %v6986 = vld [vmem:[#allocation10 + $0x240] sm:$0xff]
    %v6987 = vld [vmem:[#allocation10 + $0x248] sm:$0xf]
    %v6988 = vld [vmem:[#allocation10 + $0x24c] sm:$0xff]
    %v6989 = vld [vmem:[#allocation10 + $0x254] sm:$0xf]
    %v6990 = vld [vmem:[#allocation10 + $0x258] sm:$0xff]
    %v6991 = vld [vmem:[#allocation10 + $0x260] sm:$0xf]
    %v6992 = vld [vmem:[#allocation10 + $0x264] sm:$0xff]
    %v6993 = vld [vmem:[#allocation10 + $0x26c] sm:$0xf]
    %v6994 = vld [vmem:[#allocation10 + $0x270] sm:$0xff]
    %v6995 = vld [vmem:[#allocation10 + $0x278] sm:$0xf]
    %v6996 = vld [vmem:[#allocation10 + $0x27c] sm:$0xff]
    %v6997 = vld [vmem:[#allocation10 + $0x284] sm:$0xf]
    %v6998 = vld [vmem:[#allocation10 + $0x288] sm:$0xff]
    %v6999 = vld [vmem:[#allocation10 + $0x290] sm:$0xf]
    %v7000 = vld [vmem:[#allocation10 + $0x294] sm:$0xff]
    %v7001 = vld [vmem:[#allocation10 + $0x29c] sm:$0xf]
    %v7002 = vld [vmem:[#allocation10 + $0x2a0] sm:$0xff]
    %v7003 = vld [vmem:[#allocation10 + $0x2a8] sm:$0xf]
    %v7004 = vld [vmem:[#allocation10 + $0x2ac] sm:$0xff]
    %v7005 = vld [vmem:[#allocation10 + $0x2b4] sm:$0xf]
    %v7006 = vld [vmem:[#allocation10 + $0x2b8] sm:$0xff]
    %v7007 = vld [vmem:[#allocation10 + $0x2c0] sm:$0xf]
    %v7008 = vld [vmem:[#allocation10 + $0x2c4] sm:$0xff]
    %v7009 = vld [vmem:[#allocation10 + $0x2cc] sm:$0xf]
    %v7010 = vld [vmem:[#allocation10 + $0x2d0] sm:$0xff]
    %v7011 = vld [vmem:[#allocation10 + $0x2d8] sm:$0xf]
    %v7012 = vld [vmem:[#allocation10 + $0x2dc] sm:$0xff]
    %v7013 = vld [vmem:[#allocation10 + $0x2e4] sm:$0xf]
    %v7014 = vld [vmem:[#allocation10 + $0x2e8] sm:$0xff]
    %v7015 = vld [vmem:[#allocation10 + $0x2f0] sm:$0xf]
    %v7016 = vld [vmem:[#allocation10 + $0x2f4] sm:$0xff]
    %v7017 = vld [vmem:[#allocation10 + $0x2fc] sm:$0xf]
    %v7018 = vld [vmem:[%s8 + $0x18] sm:$0x7]
    %v7020 = vlaneseq
    %v7021 = vshrl.u32 %v7020, 7
    %v7022 = vsub.s32 0, %v7021
    %v7023 = vrot.slane %v7018, %v7022
    %v7024 = vlaneseq
    %v7025 = vshrl.u32 %v7024, 7
    %v7026 = vsub.s32 1, %v7025
    %v7027 = vrot.slane %v7018, %v7026
    %v7028 = vlaneseq
    %v7029 = vshrl.u32 %v7028, 7
    %v7030 = vsub.s32 2, %v7029
    %v7031 = vrot.slane %v7018, %v7030
    %v7163 = vunpack.c.l.b16 %v6890
    %v7164 = vunpack.c.h.b16 %v6890
    %v7165 = vunpack.c.l.b16 %v6891
    %v7166 = vunpack.c.l.b16 %v6892
    %v7167 = vunpack.c.h.b16 %v6892
    %v7168 = vunpack.c.l.b16 %v6893
    %v7169 = vunpack.c.l.b16 %v6894
    %v7170 = vunpack.c.h.b16 %v6894
    %v7171 = vunpack.c.l.b16 %v6895
    %v7172 = vunpack.c.l.b16 %v6896
    %v7173 = vunpack.c.h.b16 %v6896
    %v7174 = vunpack.c.l.b16 %v6897
    %v7175 = vunpack.c.l.b16 %v6898
    %v7176 = vunpack.c.h.b16 %v6898
    %v7177 = vunpack.c.l.b16 %v6899
    %v7178 = vunpack.c.l.b16 %v6900
    %v7179 = vunpack.c.h.b16 %v6900
    %v7180 = vunpack.c.l.b16 %v6901
    %v7181 = vunpack.c.l.b16 %v6902
    %v7182 = vunpack.c.h.b16 %v6902
    %v7183 = vunpack.c.l.b16 %v6903
    %v7184 = vunpack.c.l.b16 %v6904
    %v7185 = vunpack.c.h.b16 %v6904
    %v7186 = vunpack.c.l.b16 %v6905
    %v7187 = vunpack.c.l.b16 %v6906
    %v7188 = vunpack.c.h.b16 %v6906
    %v7189 = vunpack.c.l.b16 %v6907
    %v7190 = vunpack.c.l.b16 %v6908
    %v7191 = vunpack.c.h.b16 %v6908
    %v7192 = vunpack.c.l.b16 %v6909
    %v7193 = vunpack.c.l.b16 %v6910
    %v7194 = vunpack.c.h.b16 %v6910
    %v7195 = vunpack.c.l.b16 %v6911
    %v7196 = vunpack.c.l.b16 %v6912
    %v7197 = vunpack.c.h.b16 %v6912
    %v7198 = vunpack.c.l.b16 %v6913
    %v7199 = vunpack.c.l.b16 %v6914
    %v7200 = vunpack.c.h.b16 %v6914
    %v7201 = vunpack.c.l.b16 %v6915
    %v7202 = vunpack.c.l.b16 %v6916
    %v7203 = vunpack.c.h.b16 %v6916
    %v7204 = vunpack.c.l.b16 %v6917
    %v7205 = vunpack.c.l.b16 %v6918
    %v7206 = vunpack.c.h.b16 %v6918
    %v7207 = vunpack.c.l.b16 %v6919
    %v7208 = vunpack.c.l.b16 %v6920
    %v7209 = vunpack.c.h.b16 %v6920
    %v7210 = vunpack.c.l.b16 %v6921
    %v7211 = vunpack.c.l.b16 %v6922
    %v7212 = vunpack.c.h.b16 %v6922
    %v7213 = vunpack.c.l.b16 %v6923
    %v7214 = vunpack.c.l.b16 %v6924
    %v7215 = vunpack.c.h.b16 %v6924
    %v7216 = vunpack.c.l.b16 %v6925
    %v7217 = vunpack.c.l.b16 %v6926
    %v7218 = vunpack.c.h.b16 %v6926
    %v7219 = vunpack.c.l.b16 %v6927
    %v7220 = vunpack.c.l.b16 %v6928
    %v7221 = vunpack.c.h.b16 %v6928
    %v7222 = vunpack.c.l.b16 %v6929
    %v7223 = vunpack.c.l.b16 %v6930
    %v7224 = vunpack.c.h.b16 %v6930
    %v7225 = vunpack.c.l.b16 %v6931
    %v7226 = vunpack.c.l.b16 %v6932
    %v7227 = vunpack.c.h.b16 %v6932
    %v7228 = vunpack.c.l.b16 %v6933
    %v7229 = vunpack.c.l.b16 %v6934
    %v7230 = vunpack.c.h.b16 %v6934
    %v7231 = vunpack.c.l.b16 %v6935
    %v7232 = vunpack.c.l.b16 %v6936
    %v7233 = vunpack.c.h.b16 %v6936
    %v7234 = vunpack.c.l.b16 %v6937
    %v7235 = vunpack.c.l.b16 %v6938
    %v7236 = vunpack.c.h.b16 %v6938
    %v7237 = vunpack.c.l.b16 %v6939
    %v7238 = vunpack.c.l.b16 %v6940
    %v7239 = vunpack.c.h.b16 %v6940
    %v7240 = vunpack.c.l.b16 %v6941
    %v7241 = vunpack.c.l.b16 %v6942
    %v7242 = vunpack.c.h.b16 %v6942
    %v7243 = vunpack.c.l.b16 %v6943
    %v7244 = vunpack.c.l.b16 %v6944
    %v7245 = vunpack.c.h.b16 %v6944
    %v7246 = vunpack.c.l.b16 %v6945
    %v7247 = vunpack.c.l.b16 %v6946
    %v7248 = vunpack.c.h.b16 %v6946
    %v7249 = vunpack.c.l.b16 %v6947
    %v7250 = vunpack.c.l.b16 %v6948
    %v7251 = vunpack.c.h.b16 %v6948
    %v7252 = vunpack.c.l.b16 %v6949
    %v7253 = vunpack.c.l.b16 %v6950
    %v7254 = vunpack.c.h.b16 %v6950
    %v7255 = vunpack.c.l.b16 %v6951
    %v7256 = vunpack.c.l.b16 %v6952
    %v7257 = vunpack.c.h.b16 %v6952
    %v7258 = vunpack.c.l.b16 %v6953
    %v7259 = vunpack.c.l.b16 %v6954
    %v7260 = vunpack.c.h.b16 %v6954
    %v7261 = vunpack.c.l.b16 %v6955
    %v7262 = vunpack.c.l.b16 %v6956
    %v7263 = vunpack.c.h.b16 %v6956
    %v7264 = vunpack.c.l.b16 %v6957
    %v7265 = vunpack.c.l.b16 %v6958
    %v7266 = vunpack.c.h.b16 %v6958
    %v7267 = vunpack.c.l.b16 %v6959
    %v7268 = vunpack.c.l.b16 %v6960
    %v7269 = vunpack.c.h.b16 %v6960
    %v7270 = vunpack.c.l.b16 %v6961
    %v7271 = vunpack.c.l.b16 %v6962
    %v7272 = vunpack.c.h.b16 %v6962
    %v7273 = vunpack.c.l.b16 %v6963
    %v7274 = vunpack.c.l.b16 %v6964
    %v7275 = vunpack.c.h.b16 %v6964
    %v7276 = vunpack.c.l.b16 %v6965
    %v7277 = vunpack.c.l.b16 %v6966
    %v7278 = vunpack.c.h.b16 %v6966
    %v7279 = vunpack.c.l.b16 %v6967
    %v7280 = vunpack.c.l.b16 %v6968
    %v7281 = vunpack.c.h.b16 %v6968
    %v7282 = vunpack.c.l.b16 %v6969
    %v7283 = vunpack.c.l.b16 %v6970
    %v7284 = vunpack.c.h.b16 %v6970
    %v7285 = vunpack.c.l.b16 %v6971
    %v7286 = vunpack.c.l.b16 %v6972
    %v7287 = vunpack.c.h.b16 %v6972
    %v7288 = vunpack.c.l.b16 %v6973
    %v7289 = vunpack.c.l.b16 %v6974
    %v7290 = vunpack.c.h.b16 %v6974
    %v7291 = vunpack.c.l.b16 %v6975
    %v7292 = vunpack.c.l.b16 %v6976
    %v7293 = vunpack.c.h.b16 %v6976
    %v7294 = vunpack.c.l.b16 %v6977
    %v7295 = vunpack.c.l.b16 %v6978
    %v7296 = vunpack.c.h.b16 %v6978
    %v7297 = vunpack.c.l.b16 %v6979
    %v7298 = vunpack.c.l.b16 %v6980
    %v7299 = vunpack.c.h.b16 %v6980
    %v7300 = vunpack.c.l.b16 %v6981
    %v7301 = vunpack.c.l.b16 %v6982
    %v7302 = vunpack.c.h.b16 %v6982
    %v7303 = vunpack.c.l.b16 %v6983
    %v7304 = vunpack.c.l.b16 %v6984
    %v7305 = vunpack.c.h.b16 %v6984
    %v7306 = vunpack.c.l.b16 %v6985
    %v7307 = vunpack.c.l.b16 %v6986
    %v7308 = vunpack.c.h.b16 %v6986
    %v7309 = vunpack.c.l.b16 %v6987
    %v7310 = vunpack.c.l.b16 %v6988
    %v7311 = vunpack.c.h.b16 %v6988
    %v7312 = vunpack.c.l.b16 %v6989
    %v7313 = vunpack.c.l.b16 %v6990
    %v7314 = vunpack.c.h.b16 %v6990
    %v7315 = vunpack.c.l.b16 %v6991
    %v7316 = vunpack.c.l.b16 %v6992
    %v7317 = vunpack.c.h.b16 %v6992
    %v7318 = vunpack.c.l.b16 %v6993
    %v7319 = vunpack.c.l.b16 %v6994
    %v7320 = vunpack.c.h.b16 %v6994
    %v7321 = vunpack.c.l.b16 %v6995
    %v7322 = vunpack.c.l.b16 %v6996
    %v7323 = vunpack.c.h.b16 %v6996
    %v7324 = vunpack.c.l.b16 %v6997
    %v7325 = vunpack.c.l.b16 %v6998
    %v7326 = vunpack.c.h.b16 %v6998
    %v7327 = vunpack.c.l.b16 %v6999
    %v7328 = vunpack.c.l.b16 %v7000
    %v7329 = vunpack.c.h.b16 %v7000
    %v7330 = vunpack.c.l.b16 %v7001
    %v7331 = vunpack.c.l.b16 %v7002
    %v7332 = vunpack.c.h.b16 %v7002
    %v7333 = vunpack.c.l.b16 %v7003
    %v7334 = vunpack.c.l.b16 %v7004
    %v7335 = vunpack.c.h.b16 %v7004
    %v7336 = vunpack.c.l.b16 %v7005
    %v7337 = vunpack.c.l.b16 %v7006
    %v7338 = vunpack.c.h.b16 %v7006
    %v7339 = vunpack.c.l.b16 %v7007
    %v7340 = vunpack.c.l.b16 %v7008
    %v7341 = vunpack.c.h.b16 %v7008
    %v7342 = vunpack.c.l.b16 %v7009
    %v7343 = vunpack.c.l.b16 %v7010
    %v7344 = vunpack.c.h.b16 %v7010
    %v7345 = vunpack.c.l.b16 %v7011
    %v7346 = vunpack.c.l.b16 %v7012
    %v7347 = vunpack.c.h.b16 %v7012
    %v7348 = vunpack.c.l.b16 %v7013
    %v7349 = vunpack.c.l.b16 %v7014
    %v7350 = vunpack.c.h.b16 %v7014
    %v7351 = vunpack.c.l.b16 %v7015
    %v7352 = vunpack.c.l.b16 %v7016
    %v7353 = vunpack.c.h.b16 %v7016
    %v7354 = vunpack.c.l.b16 %v7017
    %v7355 = vpack.c.b16 %v7166, %v7163
    %v7356 = vpack.c.b16 %v7167, %v7164
    %v7357 = vpack.c.b16 %v7168, %v7165
    %v7358 = vpack.c.b16 %v7172, %v7169
    %v7359 = vpack.c.b16 %v7173, %v7170
    %v7360 = vpack.c.b16 %v7174, %v7171
    %v7361 = vpack.c.b16 %v7178, %v7175
    %v7362 = vpack.c.b16 %v7179, %v7176
    %v7363 = vpack.c.b16 %v7180, %v7177
    %v7364 = vpack.c.b16 %v7184, %v7181
    %v7365 = vpack.c.b16 %v7185, %v7182
    %v7366 = vpack.c.b16 %v7186, %v7183
    %v7367 = vpack.c.b16 %v7190, %v7187
    %v7368 = vpack.c.b16 %v7191, %v7188
    %v7369 = vpack.c.b16 %v7192, %v7189
    %v7370 = vpack.c.b16 %v7196, %v7193
    %v7371 = vpack.c.b16 %v7197, %v7194
    %v7372 = vpack.c.b16 %v7198, %v7195
    %v7373 = vpack.c.b16 %v7202, %v7199
    %v7374 = vpack.c.b16 %v7203, %v7200
    %v7375 = vpack.c.b16 %v7204, %v7201
    %v7376 = vpack.c.b16 %v7208, %v7205
    %v7377 = vpack.c.b16 %v7209, %v7206
    %v7378 = vpack.c.b16 %v7210, %v7207
    %v7379 = vpack.c.b16 %v7214, %v7211
    %v7380 = vpack.c.b16 %v7215, %v7212
    %v7381 = vpack.c.b16 %v7216, %v7213
    %v7382 = vpack.c.b16 %v7220, %v7217
    %v7383 = vpack.c.b16 %v7221, %v7218
    %v7384 = vpack.c.b16 %v7222, %v7219
    %v7385 = vpack.c.b16 %v7226, %v7223
    %v7386 = vpack.c.b16 %v7227, %v7224
    %v7387 = vpack.c.b16 %v7228, %v7225
    %v7388 = vpack.c.b16 %v7232, %v7229
    %v7389 = vpack.c.b16 %v7233, %v7230
    %v7390 = vpack.c.b16 %v7234, %v7231
    %v7391 = vpack.c.b16 %v7238, %v7235
    %v7392 = vpack.c.b16 %v7239, %v7236
    %v7393 = vpack.c.b16 %v7240, %v7237
    %v7394 = vpack.c.b16 %v7244, %v7241
    %v7395 = vpack.c.b16 %v7245, %v7242
    %v7396 = vpack.c.b16 %v7246, %v7243
    %v7397 = vpack.c.b16 %v7250, %v7247
    %v7398 = vpack.c.b16 %v7251, %v7248
    %v7399 = vpack.c.b16 %v7252, %v7249
    %v7400 = vpack.c.b16 %v7256, %v7253
    %v7401 = vpack.c.b16 %v7257, %v7254
    %v7402 = vpack.c.b16 %v7258, %v7255
    %v7403 = vpack.c.b16 %v7262, %v7259
    %v7404 = vpack.c.b16 %v7263, %v7260
    %v7405 = vpack.c.b16 %v7264, %v7261
    %v7406 = vpack.c.b16 %v7268, %v7265
    %v7407 = vpack.c.b16 %v7269, %v7266
    %v7408 = vpack.c.b16 %v7270, %v7267
    %v7409 = vpack.c.b16 %v7274, %v7271
    %v7410 = vpack.c.b16 %v7275, %v7272
    %v7411 = vpack.c.b16 %v7276, %v7273
    %v7412 = vpack.c.b16 %v7280, %v7277
    %v7413 = vpack.c.b16 %v7281, %v7278
    %v7414 = vpack.c.b16 %v7282, %v7279
    %v7415 = vpack.c.b16 %v7286, %v7283
    %v7416 = vpack.c.b16 %v7287, %v7284
    %v7417 = vpack.c.b16 %v7288, %v7285
    %v7418 = vpack.c.b16 %v7292, %v7289
    %v7419 = vpack.c.b16 %v7293, %v7290
    %v7420 = vpack.c.b16 %v7294, %v7291
    %v7421 = vpack.c.b16 %v7298, %v7295
    %v7422 = vpack.c.b16 %v7299, %v7296
    %v7423 = vpack.c.b16 %v7300, %v7297
    %v7424 = vpack.c.b16 %v7304, %v7301
    %v7425 = vpack.c.b16 %v7305, %v7302
    %v7426 = vpack.c.b16 %v7306, %v7303
    %v7427 = vpack.c.b16 %v7310, %v7307
    %v7428 = vpack.c.b16 %v7311, %v7308
    %v7429 = vpack.c.b16 %v7312, %v7309
    %v7430 = vpack.c.b16 %v7316, %v7313
    %v7431 = vpack.c.b16 %v7317, %v7314
    %v7432 = vpack.c.b16 %v7318, %v7315
    %v7433 = vpack.c.b16 %v7322, %v7319
    %v7434 = vpack.c.b16 %v7323, %v7320
    %v7435 = vpack.c.b16 %v7324, %v7321
    %v7436 = vpack.c.b16 %v7328, %v7325
    %v7437 = vpack.c.b16 %v7329, %v7326
    %v7438 = vpack.c.b16 %v7330, %v7327
    %v7439 = vpack.c.b16 %v7334, %v7331
    %v7440 = vpack.c.b16 %v7335, %v7332
    %v7441 = vpack.c.b16 %v7336, %v7333
    %v7442 = vpack.c.b16 %v7340, %v7337
    %v7443 = vpack.c.b16 %v7341, %v7338
    %v7444 = vpack.c.b16 %v7342, %v7339
    %v7445 = vpack.c.b16 %v7346, %v7343
    %v7446 = vpack.c.b16 %v7347, %v7344
    %v7447 = vpack.c.b16 %v7348, %v7345
    %v7448 = vpack.c.b16 %v7352, %v7349
    %v7449 = vpack.c.b16 %v7353, %v7350
    %v7450 = vpack.c.b16 %v7354, %v7351
    %7547 = vmatprep.subr.bf16.mxu0 %v7356
    %7548 = vmatpush1.bf16.msra.mxu0 %v7355
    %7549 = vmatprep.subr.bf16.mxu0 %v7359
    %7550 = vmatpush1.bf16.msra.mxu0 %v7358
    %7551 = vmatprep.subr.bf16.mxu0 %v7362
    %7552 = vmatpush1.bf16.msra.mxu0 %v7361
    %7553 = vmatprep.subr.bf16.mxu0 %v7365
    %7554 = vmatpush1.bf16.msra.mxu0 %v7364
    %7555 = vmatprep.subr.bf16.mxu0 %v7368
    %7556 = vmatpush1.bf16.msra.mxu0 %v7367
    %7557 = vmatprep.subr.bf16.mxu0 %v7371
    %7558 = vmatpush1.bf16.msra.mxu0 %v7370
    %7559 = vmatprep.subr.bf16.mxu0 %v7374
    %7560 = vmatpush1.bf16.msra.mxu0 %v7373
    %7561 = vmatprep.subr.bf16.mxu0 %v7377
    %7562 = vmatpush1.bf16.msra.mxu0 %v7376
    %7563 = vmatprep.subr.bf16.mxu0 %v7380
    %7564 = vmatpush1.bf16.msra.mxu0 %v7379
    %7565 = vmatprep.subr.bf16.mxu0 %v7383
    %7566 = vmatpush1.bf16.msra.mxu0 %v7382
    %7567 = vmatprep.subr.bf16.mxu0 %v7386
    %7568 = vmatpush1.bf16.msra.mxu0 %v7385
    %7569 = vmatprep.subr.bf16.mxu0 %v7389
    %7570 = vmatpush1.bf16.msra.mxu0 %v7388
    %7571 = vmatprep.subr.bf16.mxu0 %v7392
    %7572 = vmatpush1.bf16.msra.mxu0 %v7391
    %7573 = vmatprep.subr.bf16.mxu0 %v7395
    %7574 = vmatpush1.bf16.msra.mxu0 %v7394
    %7575 = vmatprep.subr.bf16.mxu0 %v7398
    %7576 = vmatpush1.bf16.msra.mxu0 %v7397
    %7577 = vmatprep.subr.bf16.mxu0 %v7401
    %7578 = vmatpush1.bf16.msra.mxu0 %v7400
    %7579 = vmatprep.mubr.bf16.mxu0 %v6887
    %7580 = vmatmul.mubr.bf16.gmra.mrb[0].mxu0 %v6886
    %v7581 = vpop.f32.mrb[0].mxu0
    %v7582 = vadd.f32 %v7023, %v7581
    %v7583 = vpop.f32.mrb[0].mxu0
    %v7584 = vadd.f32 %v7027, %v7583
    %v7585 = vpop.f32.mrb[0].mxu0
    %v7586 = vpop.f32.mrb[0].mxu0
    %7587 = vdwg.mxu0
    %7588 = vmatprep.subr.bf16.mxu0 %v7404
    %7589 = vmatpush1.bf16.msra.mxu0 %v7403
    %7590 = vmatprep.subr.bf16.mxu0 %v7407
    %7591 = vmatpush1.bf16.msra.mxu0 %v7406
    %7592 = vmatprep.subr.bf16.mxu0 %v7410
    %7593 = vmatpush1.bf16.msra.mxu0 %v7409
    %7594 = vmatprep.subr.bf16.mxu0 %v7413
    %7595 = vmatpush1.bf16.msra.mxu0 %v7412
    %7596 = vmatprep.subr.bf16.mxu0 %v7416
    %7597 = vmatpush1.bf16.msra.mxu0 %v7415
    %7598 = vmatprep.subr.bf16.mxu0 %v7419
    %7599 = vmatpush1.bf16.msra.mxu0 %v7418
    %7600 = vmatprep.subr.bf16.mxu0 %v7422
    %7601 = vmatpush1.bf16.msra.mxu0 %v7421
    %7602 = vmatprep.subr.bf16.mxu0 %v7425
    %7603 = vmatpush1.bf16.msra.mxu0 %v7424
    %7604 = vmatprep.subr.bf16.mxu0 %v7428
    %7605 = vmatpush1.bf16.msra.mxu0 %v7427
    %7606 = vmatprep.subr.bf16.mxu0 %v7431
    %7607 = vmatpush1.bf16.msra.mxu0 %v7430
    %7608 = vmatprep.subr.bf16.mxu0 %v7434
    %7609 = vmatpush1.bf16.msra.mxu0 %v7433
    %7610 = vmatprep.subr.bf16.mxu0 %v7437
    %7611 = vmatpush1.bf16.msra.mxu0 %v7436
    %7612 = vmatprep.subr.bf16.mxu0 %v7440
    %7613 = vmatpush1.bf16.msra.mxu0 %v7439
    %7614 = vmatprep.subr.bf16.mxu0 %v7443
    %7615 = vmatpush1.bf16.msra.mxu0 %v7442
    %7616 = vmatprep.subr.bf16.mxu0 %v7446
    %7617 = vmatpush1.bf16.msra.mxu0 %v7445
    %7618 = vmatprep.subr.bf16.mxu0 %v7449
    %7619 = vmatpush1.bf16.msra.mxu0 %v7448
    %7620 = vmatprep.mubr.bf16.mxu0 %v6889
    %7621 = vmatmul.mubr.bf16.gmra.mrb[0].mxu0 %v6888
    %v7622 = vpop.f32.mrb[0].mxu0
    %v7623 = vadd.f32 %v7582, %v7622
    %v7624 = vpop.f32.mrb[0].mxu0
    %v7625 = vadd.f32 %v7584, %v7624
    %v7626 = vpop.f32.mrb[0].mxu0
    %v7627 = vpop.f32.mrb[0].mxu0
    %7628 = vdwg.mxu0
    %7629 = vmatprep.subr.bf16.mxu0 0
    %7630 = vmatpush1.bf16.msra.mxu0 %v7357
    %7631 = vmatprep.subr.bf16.mxu0 0
    %7632 = vmatpush1.bf16.msra.mxu0 %v7360
    %7633 = vmatprep.subr.bf16.mxu0 0
    %7634 = vmatpush1.bf16.msra.mxu0 %v7363
    %7635 = vmatprep.subr.bf16.mxu0 0
    %7636 = vmatpush1.bf16.msra.mxu0 %v7366
    %7637 = vmatprep.subr.bf16.mxu0 0
    %7638 = vmatpush1.bf16.msra.mxu0 %v7369
    %7639 = vmatprep.subr.bf16.mxu0 0
    %7640 = vmatpush1.bf16.msra.mxu0 %v7372
    %7641 = vmatprep.subr.bf16.mxu0 0
    %7642 = vmatpush1.bf16.msra.mxu0 %v7375
    %7643 = vmatprep.subr.bf16.mxu0 0
    %7644 = vmatpush1.bf16.msra.mxu0 %v7378
    %7645 = vmatprep.subr.bf16.mxu0 0
    %7646 = vmatpush1.bf16.msra.mxu0 %v7381
    %7647 = vmatprep.subr.bf16.mxu0 0
    %7648 = vmatpush1.bf16.msra.mxu0 %v7384
    %7649 = vmatprep.subr.bf16.mxu0 0
    %7650 = vmatpush1.bf16.msra.mxu0 %v7387
    %7651 = vmatprep.subr.bf16.mxu0 0
    %7652 = vmatpush1.bf16.msra.mxu0 %v7390
    %7653 = vmatprep.subr.bf16.mxu0 0
    %7654 = vmatpush1.bf16.msra.mxu0 %v7393
    %7655 = vmatprep.subr.bf16.mxu0 0
    %7656 = vmatpush1.bf16.msra.mxu0 %v7396
    %7657 = vmatprep.subr.bf16.mxu0 0
    %7658 = vmatpush1.bf16.msra.mxu0 %v7399
    %7659 = vmatprep.subr.bf16.mxu0 0
    %7660 = vmatpush1.bf16.msra.mxu0 %v7402
    %7661 = vmatprep.mubr.bf16.mxu0 %v6887
    %7662 = vmatmul.mubr.bf16.gmra.mrb[0].mxu0 %v6886
    %v7663 = vpop.f32.mrb[0].mxu0
    %v7664 = vadd.f32 %v7031, %v7663
    %v7665 = vpop.f32.mrb[0].mxu0
    %v7666 = vpop.f32.mrb[0].mxu0
    %v7667 = vpop.f32.mrb[0].mxu0
    %7668 = vdwg.mxu0
    %7669 = vmatprep.subr.bf16.mxu0 0
    %7670 = vmatpush1.bf16.msra.mxu0 %v7405
    %7671 = vmatprep.subr.bf16.mxu0 0
    %7672 = vmatpush1.bf16.msra.mxu0 %v7408
    %7673 = vmatprep.subr.bf16.mxu0 0
    %7674 = vmatpush1.bf16.msra.mxu0 %v7411
    %7675 = vmatprep.subr.bf16.mxu0 0
    %7676 = vmatpush1.bf16.msra.mxu0 %v7414
    %7677 = vmatprep.subr.bf16.mxu0 0
    %7678 = vmatpush1.bf16.msra.mxu0 %v7417
    %7679 = vmatprep.subr.bf16.mxu0 0
    %7680 = vmatpush1.bf16.msra.mxu0 %v7420
    %7681 = vmatprep.subr.bf16.mxu0 0
    %7682 = vmatpush1.bf16.msra.mxu0 %v7423
    %7683 = vmatprep.subr.bf16.mxu0 0
    %7684 = vmatpush1.bf16.msra.mxu0 %v7426
    %7685 = vmatprep.subr.bf16.mxu0 0
    %7686 = vmatpush1.bf16.msra.mxu0 %v7429
    %7687 = vmatprep.subr.bf16.mxu0 0
    %7688 = vmatpush1.bf16.msra.mxu0 %v7432
    %7689 = vmatprep.subr.bf16.mxu0 0
    %7690 = vmatpush1.bf16.msra.mxu0 %v7435
    %7691 = vmatprep.subr.bf16.mxu0 0
    %7692 = vmatpush1.bf16.msra.mxu0 %v7438
    %7693 = vmatprep.subr.bf16.mxu0 0
    %7694 = vmatpush1.bf16.msra.mxu0 %v7441
    %7695 = vmatprep.subr.bf16.mxu0 0
    %7696 = vmatpush1.bf16.msra.mxu0 %v7444
    %7697 = vmatprep.subr.bf16.mxu0 0
    %7698 = vmatpush1.bf16.msra.mxu0 %v7447
    %7699 = vmatprep.subr.bf16.mxu0 0
    %7700 = vmatpush1.bf16.msra.mxu0 %v7450
    %7701 = vmatprep.mubr.bf16.mxu0 %v6889
    %7702 = vmatmul.mubr.bf16.gmra.mrb[0].mxu0 %v6888
    %v7703 = vpop.f32.mrb[0].mxu0
    %v7704 = vadd.f32 %v7664, %v7703
    %v7705 = vpop.f32.mrb[0].mxu0
    %v7706 = vpop.f32.mrb[0].mxu0
    %v7707 = vpop.f32.mrb[0].mxu0
    %7708 = vdwg.mxu0
    %v7709 = vmax.f32 %v7623, 0.0
    %v7710 = vmax.f32 %v7625, 0.0
    %v7711 = vmax.f32 %v7704, 0.0
    %v7712 = vpack.c.bf16 %v7709, %v7709
    %v7713 = vpack.c.bf16 %v7710, %v7710
    %v7714 = vpack.c.bf16 %v7711, %v7711
    %v7715 = vld [vmem:[#allocation12] sm:$0xf]
    %v7716 = vld [vmem:[#allocation12 + $0x4] sm:$0xf]
    %v7717 = vld [vmem:[#allocation12 + $0x8] sm:$0xf]
    %v7718 = vld [vmem:[#allocation12 + $0xc] sm:$0xf]
    %v7719 = vld [vmem:[#allocation12 + $0x10] sm:$0xf]
    %v7720 = vld [vmem:[#allocation12 + $0x14] sm:$0xf]
    %v7721 = vld [vmem:[#allocation12 + $0x18] sm:$0xf]
    %v7722 = vld [vmem:[#allocation12 + $0x1c] sm:$0xf]
    %v7723 = vld [vmem:[#allocation12 + $0x20] sm:$0xf]
    %v7724 = vld [vmem:[#allocation12 + $0x24] sm:$0xf]
    %v7725 = vld [vmem:[#allocation12 + $0x28] sm:$0xf]
    %v7726 = vld [vmem:[#allocation12 + $0x2c] sm:$0xf]
    %v7727 = vld [vmem:[#allocation12 + $0x30] sm:$0xf]
    %v7728 = vld [vmem:[#allocation12 + $0x34] sm:$0xf]
    %v7729 = vld [vmem:[#allocation12 + $0x38] sm:$0xf]
    %v7730 = vld [vmem:[#allocation12 + $0x3c] sm:$0xf]
    %v7731 = vld [vmem:[#allocation12 + $0x40] sm:$0xf]
    %v7732 = vld [vmem:[#allocation12 + $0x44] sm:$0xf]
    %v7733 = vld [vmem:[#allocation12 + $0x48] sm:$0xf]
    %v7734 = vld [vmem:[#allocation12 + $0x4c] sm:$0xf]
    %v7735 = vld [vmem:[#allocation12 + $0x50] sm:$0xf]
    %v7736 = vld [vmem:[#allocation12 + $0x54] sm:$0xf]
    %v7737 = vld [vmem:[#allocation12 + $0x58] sm:$0xf]
    %v7738 = vld [vmem:[#allocation12 + $0x5c] sm:$0xf]
    %v7739 = vld [vmem:[#allocation12 + $0x60] sm:$0xf]
    %v7740 = vld [vmem:[#allocation12 + $0x64] sm:$0xf]
    %v7741 = vld [vmem:[#allocation12 + $0x68] sm:$0xf]
    %v7742 = vld [vmem:[#allocation12 + $0x6c] sm:$0xf]
    %v7743 = vld [vmem:[#allocation12 + $0x70] sm:$0xf]
    %v7744 = vld [vmem:[#allocation12 + $0x74] sm:$0xf]
    %v7745 = vld [vmem:[#allocation12 + $0x78] sm:$0xf]
    %v7746 = vld [vmem:[#allocation12 + $0x7c] sm:$0xf]
    %v7747 = vld [vmem:[#allocation12 + $0x80] sm:$0xf]
    %v7748 = vld [vmem:[#allocation12 + $0x84] sm:$0xf]
    %v7749 = vld [vmem:[#allocation12 + $0x88] sm:$0xf]
    %v7750 = vld [vmem:[#allocation12 + $0x8c] sm:$0xf]
    %v7751 = vld [vmem:[#allocation12 + $0x90] sm:$0xf]
    %v7752 = vld [vmem:[#allocation12 + $0x94] sm:$0xf]
    %v7753 = vld [vmem:[#allocation12 + $0x98] sm:$0xf]
    %v7754 = vld [vmem:[#allocation12 + $0x9c] sm:$0xf]
    %v7755 = vld [vmem:[#allocation12 + $0xa0] sm:$0xf]
    %v7756 = vld [vmem:[#allocation12 + $0xa4] sm:$0xf]
    %v7757 = vld [vmem:[#allocation12 + $0xa8] sm:$0xf]
    %v7758 = vld [vmem:[#allocation12 + $0xac] sm:$0xf]
    %v7759 = vld [vmem:[#allocation12 + $0xb0] sm:$0xf]
    %v7760 = vld [vmem:[#allocation12 + $0xb4] sm:$0xf]
    %v7761 = vld [vmem:[#allocation12 + $0xb8] sm:$0xf]
    %v7762 = vld [vmem:[#allocation12 + $0xbc] sm:$0xf]
    %v7763 = vld [vmem:[%s8 + $0x1b] sm:$0x1]
    %v7765 = vlaneseq
    %v7766 = vshrl.u32 %v7765, 7
    %v7767 = vsub.s32 0, %v7766
    %v7768 = vrot.slane %v7763, %v7767
    %v7818 = vunpack.c.l.b16 %v7715
    %v7819 = vunpack.c.l.b16 %v7716
    %v7820 = vunpack.c.l.b16 %v7717
    %v7821 = vunpack.c.l.b16 %v7718
    %v7822 = vunpack.c.l.b16 %v7719
    %v7823 = vunpack.c.l.b16 %v7720
    %v7824 = vunpack.c.l.b16 %v7721
    %v7825 = vunpack.c.l.b16 %v7722
    %v7826 = vunpack.c.l.b16 %v7723
    %v7827 = vunpack.c.l.b16 %v7724
    %v7828 = vunpack.c.l.b16 %v7725
    %v7829 = vunpack.c.l.b16 %v7726
    %v7830 = vunpack.c.l.b16 %v7727
    %v7831 = vunpack.c.l.b16 %v7728
    %v7832 = vunpack.c.l.b16 %v7729
    %v7833 = vunpack.c.l.b16 %v7730
    %v7834 = vunpack.c.l.b16 %v7731
    %v7835 = vunpack.c.l.b16 %v7732
    %v7836 = vunpack.c.l.b16 %v7733
    %v7837 = vunpack.c.l.b16 %v7734
    %v7838 = vunpack.c.l.b16 %v7735
    %v7839 = vunpack.c.l.b16 %v7736
    %v7840 = vunpack.c.l.b16 %v7737
    %v7841 = vunpack.c.l.b16 %v7738
    %v7842 = vunpack.c.l.b16 %v7739
    %v7843 = vunpack.c.l.b16 %v7740
    %v7844 = vunpack.c.l.b16 %v7741
    %v7845 = vunpack.c.l.b16 %v7742
    %v7846 = vunpack.c.l.b16 %v7743
    %v7847 = vunpack.c.l.b16 %v7744
    %v7848 = vunpack.c.l.b16 %v7745
    %v7849 = vunpack.c.l.b16 %v7746
    %v7850 = vunpack.c.l.b16 %v7747
    %v7851 = vunpack.c.l.b16 %v7748
    %v7852 = vunpack.c.l.b16 %v7749
    %v7853 = vunpack.c.l.b16 %v7750
    %v7854 = vunpack.c.l.b16 %v7751
    %v7855 = vunpack.c.l.b16 %v7752
    %v7856 = vunpack.c.l.b16 %v7753
    %v7857 = vunpack.c.l.b16 %v7754
    %v7858 = vunpack.c.l.b16 %v7755
    %v7859 = vunpack.c.l.b16 %v7756
    %v7860 = vunpack.c.l.b16 %v7757
    %v7861 = vunpack.c.l.b16 %v7758
    %v7862 = vunpack.c.l.b16 %v7759
    %v7863 = vunpack.c.l.b16 %v7760
    %v7864 = vunpack.c.l.b16 %v7761
    %v7865 = vunpack.c.l.b16 %v7762
    %v7866 = vpack.c.b16 %v7819, %v7818
    %v7867 = vpack.c.b16 %v7821, %v7820
    %v7868 = vpack.c.b16 %v7823, %v7822
    %v7869 = vpack.c.b16 %v7825, %v7824
    %v7870 = vpack.c.b16 %v7827, %v7826
    %v7871 = vpack.c.b16 %v7829, %v7828
    %v7872 = vpack.c.b16 %v7831, %v7830
    %v7873 = vpack.c.b16 %v7833, %v7832
    %v7874 = vpack.c.b16 %v7835, %v7834
    %v7875 = vpack.c.b16 %v7837, %v7836
    %v7876 = vpack.c.b16 %v7839, %v7838
    %v7877 = vpack.c.b16 %v7841, %v7840
    %v7878 = vpack.c.b16 %v7843, %v7842
    %v7879 = vpack.c.b16 %v7845, %v7844
    %v7880 = vpack.c.b16 %v7847, %v7846
    %v7881 = vpack.c.b16 %v7849, %v7848
    %v7882 = vpack.c.b16 %v7851, %v7850
    %v7883 = vpack.c.b16 %v7853, %v7852
    %v7884 = vpack.c.b16 %v7855, %v7854
    %v7885 = vpack.c.b16 %v7857, %v7856
    %v7886 = vpack.c.b16 %v7859, %v7858
    %v7887 = vpack.c.b16 %v7861, %v7860
    %v7888 = vpack.c.b16 %v7863, %v7862
    %v7889 = vpack.c.b16 %v7865, %v7864
    %7914 = vmatprep.subr.bf16.mxu0 0
    %7915 = vmatpush1.bf16.msra.mxu0 %v7866
    %7916 = vmatprep.subr.bf16.mxu0 0
    %7917 = vmatpush1.bf16.msra.mxu0 %v7867
    %7918 = vmatprep.subr.bf16.mxu0 0
    %7919 = vmatpush1.bf16.msra.mxu0 %v7868
    %7920 = vmatprep.subr.bf16.mxu0 0
    %7921 = vmatpush1.bf16.msra.mxu0 %v7869
    %7922 = vmatprep.subr.bf16.mxu0 0
    %7923 = vmatpush1.bf16.msra.mxu0 %v7870
    %7924 = vmatprep.subr.bf16.mxu0 0
    %7925 = vmatpush1.bf16.msra.mxu0 %v7871
    %7926 = vmatprep.subr.bf16.mxu0 0
    %7927 = vmatpush1.bf16.msra.mxu0 %v7872
    %7928 = vmatprep.subr.bf16.mxu0 0
    %7929 = vmatpush1.bf16.msra.mxu0 %v7873
    %7930 = vmatprep.subr.bf16.mxu0 0
    %7931 = vmatpush1.bf16.msra.mxu0 %v7874
    %7932 = vmatprep.subr.bf16.mxu0 0
    %7933 = vmatpush1.bf16.msra.mxu0 %v7875
    %7934 = vmatprep.subr.bf16.mxu0 0
    %7935 = vmatpush1.bf16.msra.mxu0 %v7876
    %7936 = vmatprep.subr.bf16.mxu0 0
    %7937 = vmatpush1.bf16.msra.mxu0 %v7877
    %7938 = vmatprep.subr.bf16.mxu0 0
    %7939 = vmatpush1.bf16.msra.mxu0 %v7878
    %7940 = vmatprep.subr.bf16.mxu0 0
    %7941 = vmatpush1.bf16.msra.mxu0 %v7879
    %7942 = vmatprep.subr.bf16.mxu0 0
    %7943 = vmatpush1.bf16.msra.mxu0 %v7880
    %7944 = vmatprep.subr.bf16.mxu0 0
    %7945 = vmatpush1.bf16.msra.mxu0 %v7881
    %7946 = vmatprep.mubr.bf16.mxu0 %v7713
    %7947 = vmatmul.mubr.bf16.gmra.mrb[0].mxu0 %v7712
    %v7948 = vpop.f32.mrb[0].mxu0
    %v7949 = vadd.f32 %v7768, %v7948
    %v7950 = vpop.f32.mrb[0].mxu0
    %v7951 = vpop.f32.mrb[0].mxu0
    %v7952 = vpop.f32.mrb[0].mxu0
    %7953 = vdwg.mxu0
    %7954 = vmatprep.subr.bf16.mxu0 0
    %7955 = vmatpush1.bf16.msra.mxu0 %v7882
    %7956 = vmatprep.subr.bf16.mxu0 0
    %7957 = vmatpush1.bf16.msra.mxu0 %v7883
    %7958 = vmatprep.subr.bf16.mxu0 0
    %7959 = vmatpush1.bf16.msra.mxu0 %v7884
    %7960 = vmatprep.subr.bf16.mxu0 0
    %7961 = vmatpush1.bf16.msra.mxu0 %v7885
    %7962 = vmatprep.subr.bf16.mxu0 0
    %7963 = vmatpush1.bf16.msra.mxu0 %v7886
    %7964 = vmatprep.subr.bf16.mxu0 0
    %7965 = vmatpush1.bf16.msra.mxu0 %v7887
    %7966 = vmatprep.subr.bf16.mxu0 0
    %7967 = vmatpush1.bf16.msra.mxu0 %v7888
    %7968 = vmatprep.subr.bf16.mxu0 0
    %7969 = vmatpush1.bf16.msra.mxu0 %v7889
    %7970 = vmatprep.subr.bf16.mxu0 0
    %7971 = vmatpush1.bf16.msra.mxu0 0
    %7972 = vmatprep.subr.bf16.mxu0 0
    %7973 = vmatpush1.bf16.msra.mxu0 0
    %7974 = vmatprep.subr.bf16.mxu0 0
    %7975 = vmatpush1.bf16.msra.mxu0 0
    %7976 = vmatprep.subr.bf16.mxu0 0
    %7977 = vmatpush1.bf16.msra.mxu0 0
    %7978 = vmatprep.subr.bf16.mxu0 0
    %7979 = vmatpush1.bf16.msra.mxu0 0
    %7980 = vmatprep.subr.bf16.mxu0 0
    %7981 = vmatpush1.bf16.msra.mxu0 0
    %7982 = vmatprep.subr.bf16.mxu0 0
    %7983 = vmatpush1.bf16.msra.mxu0 0
    %7984 = vmatprep.subr.bf16.mxu0 0
    %7985 = vmatpush1.bf16.msra.mxu0 0
    %7986 = vmatprep.mubr.bf16.mxu0 0
    %7987 = vmatmul.mubr.bf16.gmra.mrb[0].mxu0 %v7714
    %v7988 = vpop.f32.mrb[0].mxu0
    %v7989 = vadd.f32 %v7949, %v7988
    %v7990 = vpop.f32.mrb[0].mxu0
    %v7991 = vpop.f32.mrb[0].mxu0
    %v7992 = vpop.f32.mrb[0].mxu0
    %7993 = vdwg.mxu0
    %v7994 = vlaneseq
    %v7995 = vand.u32 %v7994, 127
    %vm7996 = vcmp.lt.s32.totalorder %v7995, 12
    %vm7997 = vcmp.ge.s32.totalorder %v7995, 12
    %vm7998 = vcmp.lt.s32.totalorder %v7995, 15
    %vm7999 = vmand %vm7997, %vm7998
    %v8000 = vxor.u32 %v7989, 2147483648
    %v8001 = vmul.f32 %v8000, 1.442695
    %v8002 = vpow.pop %v8001
    %v8003 = vadd.f32 %v8002, 1.0
    %v8004 = vrcp.pop %v8003
    %v8005 = vmul.f32 1.0, %v8004
    %v8006 = vsel %vm7999, %v7989, -1e+30
    %vm8007 = vcmask 1041408
    %v8008 = vsel %vm8007, %v8006, -inf
    %8009 = vmax.xlane.f32.xlu0 %v8008
    %v8010 = vpop.xlane.xlu0 %8009
    %v8011 = vsub.f32 %v8006, %v8010
    %v8012 = vmul.f32 %v8011, 1.442695
    %v8013 = vpow.pop %v8012
    %v8014 = vsel %vm7999, %v8013, 0.0
    %v8015 = vsel %vm8007, %v8014, 0.0
    %8016 = vadd.xlane.f32.xlu0 %v8015
    %v8017 = vpop.xlane.xlu0 %8016
    %v8018 = vrcp.pop %v8017
    %v8019 = vmul.f32 %v8017, %v8018
    %v8020 = vsub.f32 2.0, %v8019
    %v8021 = vmul.f32 %v8018, %v8020
    %v8022 = vmul.f32 %v8014, %v8021
    %v8023 = vsel %vm7996, %v8005, 0.0
    %v8024 = vsel %vm7999, %v8022, %v8023
    %8025 = vst [vmem:[%s9] sm:$0x3] %v8024
    // Predicated region
    $region66: #{ican_v1_forward.1} parent=1 // pred_check
      _
    $region67: #{ican_v1_forward.1} parent=1 // pred_check_branch
      %8027 = sbr.rel (0) target = $region69
    $region68: #{ican_v1_forward.1} parent=1 // pred_region
      _
    $region69: #{ican_v1_forward.1} parent=1 // pred_fallthru
      _
    // Predicated region
    $region70: #{ican_v1_forward.1} parent=1 // pred_check
      _
    $region71: #{ican_v1_forward.1} parent=1 // pred_check_branch
      %8029 = sbr.rel (0) target = $region73
    $region72: #{ican_v1_forward.1} parent=1 // pred_region
      _
    $region73: #{ican_v1_forward.1} parent=1 // pred_fallthru
      _
    %8030 = vsyncpa [#allocation3], 1
    %8031 = vsyncpa [#allocation5], 1
    %8032 = vsyncpa [#allocation8], 1
    %8033 = vsyncpa [#allocation11], 1

</llo_original>
